<compile_context>
chip_gen: v6e
topology: v6e:2x2x1
jax: 0.10.0
libtpu: 0.0.40
codegen_flags: <defaults>
</compile_context>

<pallas_src>
import functools

import jax
import jax.numpy as jnp
from jax.experimental import pallas as pl
from jax.experimental.pallas import tpu as pltpu


# ----------------------------------------------------------------------------
# Fused kernel: per-phase stride-1 taps (MXU matmuls) + bias(+BN) + ReLU
#               + in-VMEM pixel-shuffle of the s*s phases
# ----------------------------------------------------------------------------

def _convt_bn_relu_kernel(x_ref, w_ref, b_ref, o_ref, *, s, tq, wq,
                          rho_h, base_h, ntap_h, rho_w, base_w, ntap_w,
                          p_top, p_left, min_roff, halo_h):
    """One (batch, output-row-tile) grid step.

    x_ref: (1, Hp, Wp, Cin)   zero-padded ORIGINAL input (no dilation), all
                              rows of one batch element (resident across the
                              row-tile grid axis).
    w_ref: (K, K, Cin, Cout)  BN-folded weights, PyTorch tap order (resident).
    b_ref: (1, Cout)          BN-folded bias (f32, resident).
    o_ref: (1, s*tq, s*wq, Cout) output row tile (lane-dense stores).
    """
    Cin = x_ref.shape[-1]
    Cout = o_ref.shape[-1]

    # Phase-quotient row offset of this tile + halo rows needed by all taps.
    q0 = pl.multiple_of(pl.program_id(1) * tq, tq)
    x_halo = x_ref[0, pl.ds(q0 + min_roff, halo_h), :, :]   # (halo_h, Wp, Cin)
    bvec = b_ref[...].astype(jnp.float32)                   # (1, Cout)

    row_blocks = []
    for rh in range(s):                          # output-row phase (static)
        col_blocks = []
        for rw in range(s):                      # output-col phase (static)
            acc = jnp.zeros((tq * wq, Cout), jnp.float32)
            for th in range(ntap_h[rh]):         # taps of this phase (static)
                kh = rho_h[rh] + s * th
                r0 = base_h[rh] - th + p_top - min_roff
                for tw in range(ntap_w[rw]):
                    kw = rho_w[rw] + s * tw
                    c0 = base_w[rw] - tw + p_left
                    xs = x_halo[r0:r0 + tq, c0:c0 + wq, :]
                    acc = acc + jnp.dot(xs.reshape(tq * wq, Cin),
                                        w_ref[kh, kw, :, :],
                                        preferred_element_type=jnp.float32)
            y = jnp.maximum(acc + bvec, 0.0)      # fused bias + ReLU (f32 VPU)
            col_blocks.append(y.reshape(tq, wq, Cout))
        # Interleave width phases: out[:, v*s + rw, :] = phase[rw][:, v, :]
        row = jnp.stack(col_blocks, axis=2).reshape(tq, wq * s, Cout)
        row_blocks.append(row)
    # Interleave row phases: out[u*s + rh, :, :] = row_blocks[rh][u, :, :]
    tile = jnp.stack(row_blocks, axis=1).reshape(tq * s, wq * s, Cout)
    o_ref[...] = tile.reshape(o_ref.shape).astype(o_ref.dtype)


# ----------------------------------------------------------------------------
# Wrapper: ConvTranspose2d + BatchNorm2d(eval) + ReLU
# ----------------------------------------------------------------------------

def conv2d_transpose_bn_relu(x, weight, bias, gamma, beta, running_mean,
                             running_var, *, stride, padding,
                             output_padding=0, eps=1e-5, tile_h=16,
                             operand_dtype=None):
    """x: (B, Cin, H, W) NCHW.  weight: (Cin, Cout, K, K) (PyTorch layout).
    Returns (B, Cout, H_out, W_out) NCHW, matching
    ReLU(BatchNorm2d(ConvTranspose2d(x))) in eval mode."""
    B, Cin, H, W = x.shape
    wCin, Cout, K, Kw = weight.shape
    assert wCin == Cin and K == Kw, "weight must be (Cin, Cout, K, K)"
    s = int(stride)
    assert s >= 1
    assert 0 <= output_padding < max(s, 1)

    H_out = (H - 1) * s - 2 * padding + K + output_padding
    W_out = (W - 1) * s - 2 * padding + K + output_padding
    assert H_out > 0 and W_out > 0

    # ---- Fold eval-mode BatchNorm into the conv weights / bias (fusion) ----
    scale = gamma / jnp.sqrt(running_var + eps)                     # (Cout,)
    w_folded = weight * scale[None, :, None, None]
    b_folded = (bias - running_mean) * scale + beta                 # (Cout,)
    w_eff = jnp.transpose(w_folded, (2, 3, 0, 1))                   # (K,K,Cin,Cout)

    # ---- Static sub-pixel (phase) decomposition tables ----------------------
    # y[s*q + r] = sum_t x[q + base_r - t] * w[rho_r + s*t]   (per spatial dim)
    rho = tuple((r + padding) % s for r in range(s))
    base = tuple((r + padding) // s for r in range(s))
    ntap = tuple(len(range(rho[r], K, s)) for r in range(s))

    HQ = pl.cdiv(H_out, s)                       # phase-quotient rows needed
    WQ = pl.cdiv(W_out, s)                       # phase-quotient cols needed
    tile_h = int(max(s, (min(tile_h, s * HQ) // s) * s))   # multiple of s
    tq = tile_h // s
    n_h_tiles = pl.cdiv(HQ, tq)
    HQ_pad = n_h_tiles * tq
    H_out_pad, W_out_pad = s * HQ_pad, s * WQ

    # ---- Zero-pad the ORIGINAL input (no fractional-stride zero insertion) --
    p_top = max(0, max(ntap[r] - 1 - base[r] for r in range(s)))
    p_left = p_top                                    # square kernel/stride/pad
    p_bot = max(0, max(base) + HQ_pad - H)
    p_right = max(0, max(base) + WQ - W)

    x_nhwc = jnp.transpose(x, (0, 2, 3, 1))                          # (B,H,W,Cin)
    xp = jnp.pad(x_nhwc, ((0, 0), (p_top, p_bot), (p_left, p_right), (0, 0)))
    Hp, Wp = xp.shape[1], xp.shape[2]

    # Halo extent (in phase-quotient rows) a single output row tile touches.
    roffs = [base[r] - t + p_top for r in range(s) for t in range(ntap[r])]
    if not roffs:
        roffs = [0]
    min_roff, max_roff = min(roffs), max(roffs)
    halo_h = max_roff - min_roff + tq

    if operand_dtype is not None:          # bf16 MXU operands on v6e / v7x
        xp = xp.astype(operand_dtype)
        w_eff = w_eff.astype(operand_dtype)
    b2d = b_folded.astype(jnp.float32).reshape(1, Cout)

    # Explicit scoped-VMEM budget (resident input + weights, dbl-buffered out,
    # f32 phase buffers) — v5e scoped default is only 16 MiB.
    in_isz = jnp.dtype(xp.dtype).itemsize
    out_isz = jnp.dtype(x.dtype).itemsize
    vmem_est = (2 * Hp * Wp * Cin * in_isz
                + 2 * K * K * Cin * Cout * in_isz
                + 2 * tile_h * W_out_pad * Cout * out_isz
                + 2 * tile_h * W_out_pad * Cout * 4)
    vmem_limit = int(min(48 * 2**20, max(16 * 2**20, 4 * vmem_est)))

    kernel = functools.partial(
        _convt_bn_relu_kernel, s=s, tq=tq, wq=WQ,
        rho_h=rho, base_h=base, ntap_h=ntap,
        rho_w=rho, base_w=base, ntap_w=ntap,
        p_top=p_top, p_left=p_left, min_roff=min_roff, halo_h=halo_h)

    out_nhwc = pl.pallas_call(
        kernel,
        out_shape=jax.ShapeDtypeStruct((B, H_out_pad, W_out_pad, Cout), x.dtype),
        grid=(B, n_h_tiles),
        in_specs=[
            # full (small, un-dilated) input of one batch element; constant
            # over the row-tile axis so it is DMA'd once per batch element.
            pl.BlockSpec((1, Hp, Wp, Cin), lambda n, i: (n, 0, 0, 0)),
            pl.BlockSpec((K, K, Cin, Cout), lambda n, i: (0, 0, 0, 0)),
            pl.BlockSpec((1, Cout), lambda n, i: (0, 0)),
        ],
        out_specs=pl.BlockSpec((1, tile_h, W_out_pad, Cout),
                               lambda n, i: (n, i, 0, 0)),
        compiler_params=pltpu.CompilerParams(
            dimension_semantics=("parallel", "parallel"),
            vmem_limit_bytes=vmem_limit),
    )(xp, w_eff, b2d)

    out_nhwc = out_nhwc[:, :H_out, :W_out, :]    # crop tile padding (no-op here)
    return jnp.transpose(out_nhwc, (0, 3, 1, 2))                     # NCHW


# ----------------------------------------------------------------------------
# Pure-JAX reference (independent path via lhs-dilated convolution)
# ----------------------------------------------------------------------------

def _reference_forward(x, weight, bias, gamma, beta, running_mean, running_var,
                       *, stride, padding, output_padding, eps=1e-5):
    K = weight.shape[2]
    lo = K - 1 - padding
    hi = K - 1 - padding + output_padding
    rhs = jnp.transpose(weight[:, :, ::-1, ::-1], (1, 0, 2, 3))      # (Cout,Cin,K,K)
    y = jax.lax.conv_general_dilated(
        x, rhs, window_strides=(1, 1), padding=((lo, hi), (lo, hi)),
        lhs_dilation=(stride, stride), rhs_dilation=(1, 1),
        dimension_numbers=("NCHW", "OIHW", "NCHW"))
    y = y + bias[None, :, None, None]
    scale = gamma / jnp.sqrt(running_var + eps)
    y = (y - running_mean[None, :, None, None]) * scale[None, :, None, None] \
        + beta[None, :, None, None]
    return jnp.maximum(y, 0.0)


# ----------------------------------------------------------------------------
# Demo
# ----------------------------------------------------------------------------

if __name__ == "__main__":
    B, Cin, H, W = 2, 16, 16, 16
    Cout, K = 128, 4                       # Cout=128 -> lane-dense output stores
    stride, padding, output_padding = 2, 1, 0
    eps = 1e-5

    key = jax.random.PRNGKey(0)
    kx, kw, kb, kg, kbe, km, kv = jax.random.split(key, 7)
    x = jax.random.normal(kx, (B, Cin, H, W), jnp.float32)
    weight = 0.1 * jax.random.normal(kw, (Cin, Cout, K, K), jnp.float32)
    bias = 0.1 * jax.random.normal(kb, (Cout,), jnp.float32)
    gamma = 1.0 + 0.1 * jax.random.normal(kg, (Cout,), jnp.float32)
    beta = 0.1 * jax.random.normal(kbe, (Cout,), jnp.float32)
    running_mean = 0.1 * jax.random.normal(km, (Cout,), jnp.float32)
    running_var = 1.0 + 0.2 * jax.nn.sigmoid(jax.random.normal(kv, (Cout,), jnp.float32))

    fwd = jax.jit(functools.partial(
        conv2d_transpose_bn_relu, stride=stride, padding=padding,
        output_padding=output_padding, eps=eps, tile_h=16))
    out = fwd(x, weight, bias, gamma, beta, running_mean, running_var)
    jax.block_until_ready(out)

    H_out = (H - 1) * stride - 2 * padding + K + output_padding
    W_out = (W - 1) * stride - 2 * padding + K + output_padding
    assert out.shape == (B, Cout, H_out, W_out), out.shape
    assert bool(jnp.all(jnp.isfinite(out)))

    ref = _reference_forward(x, weight, bias, gamma, beta, running_mean,
                             running_var, stride=stride, padding=padding,
                             output_padding=output_padding, eps=eps)
    max_err = float(jnp.max(jnp.abs(out - ref)))
    tol = 5e-2 * (float(jnp.max(jnp.abs(ref))) + 1.0)   # MXU-precision headroom
    assert max_err <= tol, (max_err, tol)

    print("KERNEL_OK")
</pallas_src>

<mosaic_0001>
module attributes {stable_mosaic.version = 11 : i64} {
  func.func @_convt_bn_relu_kernel(%arg0: i32, %arg1: i32, %arg2: memref<1x18x18x16xf32, #tpu.memory_space<vmem>>, %arg3: memref<4x4x16x128xf32, #tpu.memory_space<vmem>>, %arg4: memref<1x128xf32, #tpu.memory_space<vmem>>, %arg5: memref<1x16x32x128xf32, #tpu.memory_space<vmem>>) attributes {dimension_semantics = [#tpu.dimension_semantics<parallel>, #tpu.dimension_semantics<parallel>], iteration_bounds = array<i64: 2, 2>, scalar_prefetch = 0 : i64, scratch_operands = 0 : i64, tpu.core_type = #tpu.core_type<tc>, window_params = [{transform_indices = @transform_0, window_bounds = array<i64: 1, 18, 18, 16>}, {pipeline_mode = #tpu.pipeline_mode<synchronous>, transform_indices = @transform_1, window_bounds = array<i64: 4, 4, 16, 128>}, {pipeline_mode = #tpu.pipeline_mode<synchronous>, transform_indices = @transform_2, window_bounds = array<i64: 1, 128>}, {transform_indices = @transform_3, window_bounds = array<i64: 1, 16, 32, 128>}]} {
    %c8_i32 = arith.constant 8 : i32
    %0 = arith.muli %arg1, %c8_i32 : i32
    %1 = tpu.assume_multiple %0, 8 : i32
    %c0_i32 = arith.constant 0 : i32
    %2 = arith.addi %1, %c0_i32 : i32
    %c0 = arith.constant 0 : index
    %3 = arith.index_cast %2 : i32 to index
    %c0_0 = arith.constant 0 : index
    %c0_1 = arith.constant 0 : index
    %4 = vector.load %arg2[%c0, %3, %c0_0, %c0_1] : memref<1x18x18x16xf32, #tpu.memory_space<vmem>>, vector<1x10x18x16xf32>
    %5 = vector.shape_cast %4 : vector<1x10x18x16xf32> to vector<10x18x16xf32>
    %c0_2 = arith.constant 0 : index
    %c0_3 = arith.constant 0 : index
    %6 = vector.load %arg4[%c0_2, %c0_3] : memref<1x128xf32, #tpu.memory_space<vmem>>, vector<1x128xf32>
    %cst = arith.constant 0.000000e+00 : f32
    %7 = vector.broadcast %cst : f32 to vector<128x128xf32>
    %8 = vector.extract_strided_slice %5 {offsets = [1, 1, 0], sizes = [8, 16, 16], strides = [1, 1, 1]} : vector<10x18x16xf32> to vector<8x16x16xf32>
    %9 = vector.shape_cast %8 : vector<8x16x16xf32> to vector<128x16xf32>
    %c1 = arith.constant 1 : index
    %c1_4 = arith.constant 1 : index
    %c0_5 = arith.constant 0 : index
    %c0_6 = arith.constant 0 : index
    %10 = vector.load %arg3[%c1, %c1_4, %c0_5, %c0_6] : memref<4x4x16x128xf32, #tpu.memory_space<vmem>>, vector<1x1x16x128xf32>
    %11 = vector.shape_cast %10 : vector<1x1x16x128xf32> to vector<16x128xf32>
    %cst_7 = arith.constant dense<0.000000e+00> : vector<128x128xf32>
    %12 = tpu.matmul %9, %11, %cst_7 {dimension_numbers = #tpu.dot_dimension_numbers<[1], [0], [0], [1], [0, 0, 1, 1], [], []>} : vector<128x16xf32>, vector<16x128xf32>, vector<128x128xf32> -> vector<128x128xf32>
    %13 = arith.addf %7, %12 : vector<128x128xf32>
    %14 = vector.extract_strided_slice %5 {offsets = [1, 0, 0], sizes = [8, 16, 16], strides = [1, 1, 1]} : vector<10x18x16xf32> to vector<8x16x16xf32>
    %15 = vector.shape_cast %14 : vector<8x16x16xf32> to vector<128x16xf32>
    %c1_8 = arith.constant 1 : index
    %c3 = arith.constant 3 : index
    %c0_9 = arith.constant 0 : index
    %c0_10 = arith.constant 0 : index
    %16 = vector.load %arg3[%c1_8, %c3, %c0_9, %c0_10] : memref<4x4x16x128xf32, #tpu.memory_space<vmem>>, vector<1x1x16x128xf32>
    %17 = vector.shape_cast %16 : vector<1x1x16x128xf32> to vector<16x128xf32>
    %cst_11 = arith.constant dense<0.000000e+00> : vector<128x128xf32>
    %18 = tpu.matmul %15, %17, %cst_11 {dimension_numbers = #tpu.dot_dimension_numbers<[1], [0], [0], [1], [0, 0, 1, 1], [], []>} : vector<128x16xf32>, vector<16x128xf32>, vector<128x128xf32> -> vector<128x128xf32>
    %19 = arith.addf %13, %18 : vector<128x128xf32>
    %20 = vector.extract_strided_slice %5 {offsets = [0, 1, 0], sizes = [8, 16, 16], strides = [1, 1, 1]} : vector<10x18x16xf32> to vector<8x16x16xf32>
    %21 = vector.shape_cast %20 : vector<8x16x16xf32> to vector<128x16xf32>
    %c3_12 = arith.constant 3 : index
    %c1_13 = arith.constant 1 : index
    %c0_14 = arith.constant 0 : index
    %c0_15 = arith.constant 0 : index
    %22 = vector.load %arg3[%c3_12, %c1_13, %c0_14, %c0_15] : memref<4x4x16x128xf32, #tpu.memory_space<vmem>>, vector<1x1x16x128xf32>
    %23 = vector.shape_cast %22 : vector<1x1x16x128xf32> to vector<16x128xf32>
    %cst_16 = arith.constant dense<0.000000e+00> : vector<128x128xf32>
    %24 = tpu.matmul %21, %23, %cst_16 {dimension_numbers = #tpu.dot_dimension_numbers<[1], [0], [0], [1], [0, 0, 1, 1], [], []>} : vector<128x16xf32>, vector<16x128xf32>, vector<128x128xf32> -> vector<128x128xf32>
    %25 = arith.addf %19, %24 : vector<128x128xf32>
    %26 = vector.extract_strided_slice %5 {offsets = [0, 0, 0], sizes = [8, 16, 16], strides = [1, 1, 1]} : vector<10x18x16xf32> to vector<8x16x16xf32>
    %27 = vector.shape_cast %26 : vector<8x16x16xf32> to vector<128x16xf32>
    %c3_17 = arith.constant 3 : index
    %c3_18 = arith.constant 3 : index
    %c0_19 = arith.constant 0 : index
    %c0_20 = arith.constant 0 : index
    %28 = vector.load %arg3[%c3_17, %c3_18, %c0_19, %c0_20] : memref<4x4x16x128xf32, #tpu.memory_space<vmem>>, vector<1x1x16x128xf32>
    %29 = vector.shape_cast %28 : vector<1x1x16x128xf32> to vector<16x128xf32>
    %cst_21 = arith.constant dense<0.000000e+00> : vector<128x128xf32>
    %30 = tpu.matmul %27, %29, %cst_21 {dimension_numbers = #tpu.dot_dimension_numbers<[1], [0], [0], [1], [0, 0, 1, 1], [], []>} : vector<128x16xf32>, vector<16x128xf32>, vector<128x128xf32> -> vector<128x128xf32>
    %31 = arith.addf %25, %30 : vector<128x128xf32>
    %32 = vector.broadcast %6 : vector<1x128xf32> to vector<128x128xf32>
    %33 = arith.addf %31, %32 : vector<128x128xf32>
    %cst_22 = arith.constant 0.000000e+00 : f32
    %34 = vector.broadcast %cst_22 : f32 to vector<128x128xf32>
    %35 = arith.maximumf %33, %34 : vector<128x128xf32>
    %36 = vector.shape_cast %35 : vector<128x128xf32> to vector<8x16x128xf32>
    %cst_23 = arith.constant 0.000000e+00 : f32
    %37 = vector.broadcast %cst_23 : f32 to vector<128x128xf32>
    %38 = vector.extract_strided_slice %5 {offsets = [1, 2, 0], sizes = [8, 16, 16], strides = [1, 1, 1]} : vector<10x18x16xf32> to vector<8x16x16xf32>
    %39 = vector.shape_cast %38 : vector<8x16x16xf32> to vector<128x16xf32>
    %c1_24 = arith.constant 1 : index
    %c0_25 = arith.constant 0 : index
    %c0_26 = arith.constant 0 : index
    %c0_27 = arith.constant 0 : index
    %40 = vector.load %arg3[%c1_24, %c0_25, %c0_26, %c0_27] : memref<4x4x16x128xf32, #tpu.memory_space<vmem>>, vector<1x1x16x128xf32>
    %41 = vector.shape_cast %40 : vector<1x1x16x128xf32> to vector<16x128xf32>
    %cst_28 = arith.constant dense<0.000000e+00> : vector<128x128xf32>
    %42 = tpu.matmul %39, %41, %cst_28 {dimension_numbers = #tpu.dot_dimension_numbers<[1], [0], [0], [1], [0, 0, 1, 1], [], []>} : vector<128x16xf32>, vector<16x128xf32>, vector<128x128xf32> -> vector<128x128xf32>
    %43 = arith.addf %37, %42 : vector<128x128xf32>
    %44 = vector.extract_strided_slice %5 {offsets = [1, 1, 0], sizes = [8, 16, 16], strides = [1, 1, 1]} : vector<10x18x16xf32> to vector<8x16x16xf32>
    %45 = vector.shape_cast %44 : vector<8x16x16xf32> to vector<128x16xf32>
    %c1_29 = arith.constant 1 : index
    %c2 = arith.constant 2 : index
    %c0_30 = arith.constant 0 : index
    %c0_31 = arith.constant 0 : index
    %46 = vector.load %arg3[%c1_29, %c2, %c0_30, %c0_31] : memref<4x4x16x128xf32, #tpu.memory_space<vmem>>, vector<1x1x16x128xf32>
    %47 = vector.shape_cast %46 : vector<1x1x16x128xf32> to vector<16x128xf32>
    %cst_32 = arith.constant dense<0.000000e+00> : vector<128x128xf32>
    %48 = tpu.matmul %45, %47, %cst_32 {dimension_numbers = #tpu.dot_dimension_numbers<[1], [0], [0], [1], [0, 0, 1, 1], [], []>} : vector<128x16xf32>, vector<16x128xf32>, vector<128x128xf32> -> vector<128x128xf32>
    %49 = arith.addf %43, %48 : vector<128x128xf32>
    %50 = vector.extract_strided_slice %5 {offsets = [0, 2, 0], sizes = [8, 16, 16], strides = [1, 1, 1]} : vector<10x18x16xf32> to vector<8x16x16xf32>
    %51 = vector.shape_cast %50 : vector<8x16x16xf32> to vector<128x16xf32>
    %c3_33 = arith.constant 3 : index
    %c0_34 = arith.constant 0 : index
    %c0_35 = arith.constant 0 : index
    %c0_36 = arith.constant 0 : index
    %52 = vector.load %arg3[%c3_33, %c0_34, %c0_35, %c0_36] : memref<4x4x16x128xf32, #tpu.memory_space<vmem>>, vector<1x1x16x128xf32>
    %53 = vector.shape_cast %52 : vector<1x1x16x128xf32> to vector<16x128xf32>
    %cst_37 = arith.constant dense<0.000000e+00> : vector<128x128xf32>
    %54 = tpu.matmul %51, %53, %cst_37 {dimension_numbers = #tpu.dot_dimension_numbers<[1], [0], [0], [1], [0, 0, 1, 1], [], []>} : vector<128x16xf32>, vector<16x128xf32>, vector<128x128xf32> -> vector<128x128xf32>
    %55 = arith.addf %49, %54 : vector<128x128xf32>
    %56 = vector.extract_strided_slice %5 {offsets = [0, 1, 0], sizes = [8, 16, 16], strides = [1, 1, 1]} : vector<10x18x16xf32> to vector<8x16x16xf32>
    %57 = vector.shape_cast %56 : vector<8x16x16xf32> to vector<128x16xf32>
    %c3_38 = arith.constant 3 : index
    %c2_39 = arith.constant 2 : index
    %c0_40 = arith.constant 0 : index
    %c0_41 = arith.constant 0 : index
    %58 = vector.load %arg3[%c3_38, %c2_39, %c0_40, %c0_41] : memref<4x4x16x128xf32, #tpu.memory_space<vmem>>, vector<1x1x16x128xf32>
    %59 = vector.shape_cast %58 : vector<1x1x16x128xf32> to vector<16x128xf32>
    %cst_42 = arith.constant dense<0.000000e+00> : vector<128x128xf32>
    %60 = tpu.matmul %57, %59, %cst_42 {dimension_numbers = #tpu.dot_dimension_numbers<[1], [0], [0], [1], [0, 0, 1, 1], [], []>} : vector<128x16xf32>, vector<16x128xf32>, vector<128x128xf32> -> vector<128x128xf32>
    %61 = arith.addf %55, %60 : vector<128x128xf32>
    %62 = vector.broadcast %6 : vector<1x128xf32> to vector<128x128xf32>
    %63 = arith.addf %61, %62 : vector<128x128xf32>
    %cst_43 = arith.constant 0.000000e+00 : f32
    %64 = vector.broadcast %cst_43 : f32 to vector<128x128xf32>
    %65 = arith.maximumf %63, %64 : vector<128x128xf32>
    %66 = vector.shape_cast %65 : vector<128x128xf32> to vector<8x16x128xf32>
    %67 = vector.shape_cast %36 : vector<8x16x128xf32> to vector<8x16x1x128xf32>
    %68 = vector.shape_cast %66 : vector<8x16x128xf32> to vector<8x16x1x128xf32>
    %69 = tpu.concatenate %67, %68 in 2 : vector<8x16x1x128xf32>, vector<8x16x1x128xf32> -> vector<8x16x2x128xf32>
    %70 = vector.shape_cast %69 : vector<8x16x2x128xf32> to vector<8x32x128xf32>
    %cst_44 = arith.constant 0.000000e+00 : f32
    %71 = vector.broadcast %cst_44 : f32 to vector<128x128xf32>
    %72 = vector.extract_strided_slice %5 {offsets = [2, 1, 0], sizes = [8, 16, 16], strides = [1, 1, 1]} : vector<10x18x16xf32> to vector<8x16x16xf32>
    %73 = vector.shape_cast %72 : vector<8x16x16xf32> to vector<128x16xf32>
    %c0_45 = arith.constant 0 : index
    %c1_46 = arith.constant 1 : index
    %c0_47 = arith.constant 0 : index
    %c0_48 = arith.constant 0 : index
    %74 = vector.load %arg3[%c0_45, %c1_46, %c0_47, %c0_48] : memref<4x4x16x128xf32, #tpu.memory_space<vmem>>, vector<1x1x16x128xf32>
    %75 = vector.shape_cast %74 : vector<1x1x16x128xf32> to vector<16x128xf32>
    %cst_49 = arith.constant dense<0.000000e+00> : vector<128x128xf32>
    %76 = tpu.matmul %73, %75, %cst_49 {dimension_numbers = #tpu.dot_dimension_numbers<[1], [0], [0], [1], [0, 0, 1, 1], [], []>} : vector<128x16xf32>, vector<16x128xf32>, vector<128x128xf32> -> vector<128x128xf32>
    %77 = arith.addf %71, %76 : vector<128x128xf32>
    %78 = vector.extract_strided_slice %5 {offsets = [2, 0, 0], sizes = [8, 16, 16], strides = [1, 1, 1]} : vector<10x18x16xf32> to vector<8x16x16xf32>
    %79 = vector.shape_cast %78 : vector<8x16x16xf32> to vector<128x16xf32>
    %c0_50 = arith.constant 0 : index
    %c3_51 = arith.constant 3 : index
    %c0_52 = arith.constant 0 : index
    %c0_53 = arith.constant 0 : index
    %80 = vector.load %arg3[%c0_50, %c3_51, %c0_52, %c0_53] : memref<4x4x16x128xf32, #tpu.memory_space<vmem>>, vector<1x1x16x128xf32>
    %81 = vector.shape_cast %80 : vector<1x1x16x128xf32> to vector<16x128xf32>
    %cst_54 = arith.constant dense<0.000000e+00> : vector<128x128xf32>
    %82 = tpu.matmul %79, %81, %cst_54 {dimension_numbers = #tpu.dot_dimension_numbers<[1], [0], [0], [1], [0, 0, 1, 1], [], []>} : vector<128x16xf32>, vector<16x128xf32>, vector<128x128xf32> -> vector<128x128xf32>
    %83 = arith.addf %77, %82 : vector<128x128xf32>
    %84 = vector.extract_strided_slice %5 {offsets = [1, 1, 0], sizes = [8, 16, 16], strides = [1, 1, 1]} : vector<10x18x16xf32> to vector<8x16x16xf32>
    %85 = vector.shape_cast %84 : vector<8x16x16xf32> to vector<128x16xf32>
    %c2_55 = arith.constant 2 : index
    %c1_56 = arith.constant 1 : index
    %c0_57 = arith.constant 0 : index
    %c0_58 = arith.constant 0 : index
    %86 = vector.load %arg3[%c2_55, %c1_56, %c0_57, %c0_58] : memref<4x4x16x128xf32, #tpu.memory_space<vmem>>, vector<1x1x16x128xf32>
    %87 = vector.shape_cast %86 : vector<1x1x16x128xf32> to vector<16x128xf32>
    %cst_59 = arith.constant dense<0.000000e+00> : vector<128x128xf32>
    %88 = tpu.matmul %85, %87, %cst_59 {dimension_numbers = #tpu.dot_dimension_numbers<[1], [0], [0], [1], [0, 0, 1, 1], [], []>} : vector<128x16xf32>, vector<16x128xf32>, vector<128x128xf32> -> vector<128x128xf32>
    %89 = arith.addf %83, %88 : vector<128x128xf32>
    %90 = vector.extract_strided_slice %5 {offsets = [1, 0, 0], sizes = [8, 16, 16], strides = [1, 1, 1]} : vector<10x18x16xf32> to vector<8x16x16xf32>
    %91 = vector.shape_cast %90 : vector<8x16x16xf32> to vector<128x16xf32>
    %c2_60 = arith.constant 2 : index
    %c3_61 = arith.constant 3 : index
    %c0_62 = arith.constant 0 : index
    %c0_63 = arith.constant 0 : index
    %92 = vector.load %arg3[%c2_60, %c3_61, %c0_62, %c0_63] : memref<4x4x16x128xf32, #tpu.memory_space<vmem>>, vector<1x1x16x128xf32>
    %93 = vector.shape_cast %92 : vector<1x1x16x128xf32> to vector<16x128xf32>
    %cst_64 = arith.constant dense<0.000000e+00> : vector<128x128xf32>
    %94 = tpu.matmul %91, %93, %cst_64 {dimension_numbers = #tpu.dot_dimension_numbers<[1], [0], [0], [1], [0, 0, 1, 1], [], []>} : vector<128x16xf32>, vector<16x128xf32>, vector<128x128xf32> -> vector<128x128xf32>
    %95 = arith.addf %89, %94 : vector<128x128xf32>
    %96 = vector.broadcast %6 : vector<1x128xf32> to vector<128x128xf32>
    %97 = arith.addf %95, %96 : vector<128x128xf32>
    %cst_65 = arith.constant 0.000000e+00 : f32
    %98 = vector.broadcast %cst_65 : f32 to vector<128x128xf32>
    %99 = arith.maximumf %97, %98 : vector<128x128xf32>
    %100 = vector.shape_cast %99 : vector<128x128xf32> to vector<8x16x128xf32>
    %cst_66 = arith.constant 0.000000e+00 : f32
    %101 = vector.broadcast %cst_66 : f32 to vector<128x128xf32>
    %102 = vector.extract_strided_slice %5 {offsets = [2, 2, 0], sizes = [8, 16, 16], strides = [1, 1, 1]} : vector<10x18x16xf32> to vector<8x16x16xf32>
    %103 = vector.shape_cast %102 : vector<8x16x16xf32> to vector<128x16xf32>
    %c0_67 = arith.constant 0 : index
    %c0_68 = arith.constant 0 : index
    %c0_69 = arith.constant 0 : index
    %c0_70 = arith.constant 0 : index
    %104 = vector.load %arg3[%c0_67, %c0_68, %c0_69, %c0_70] : memref<4x4x16x128xf32, #tpu.memory_space<vmem>>, vector<1x1x16x128xf32>
    %105 = vector.shape_cast %104 : vector<1x1x16x128xf32> to vector<16x128xf32>
    %cst_71 = arith.constant dense<0.000000e+00> : vector<128x128xf32>
    %106 = tpu.matmul %103, %105, %cst_71 {dimension_numbers = #tpu.dot_dimension_numbers<[1], [0], [0], [1], [0, 0, 1, 1], [], []>} : vector<128x16xf32>, vector<16x128xf32>, vector<128x128xf32> -> vector<128x128xf32>
    %107 = arith.addf %101, %106 : vector<128x128xf32>
    %108 = vector.extract_strided_slice %5 {offsets = [2, 1, 0], sizes = [8, 16, 16], strides = [1, 1, 1]} : vector<10x18x16xf32> to vector<8x16x16xf32>
    %109 = vector.shape_cast %108 : vector<8x16x16xf32> to vector<128x16xf32>
    %c0_72 = arith.constant 0 : index
    %c2_73 = arith.constant 2 : index
    %c0_74 = arith.constant 0 : index
    %c0_75 = arith.constant 0 : index
    %110 = vector.load %arg3[%c0_72, %c2_73, %c0_74, %c0_75] : memref<4x4x16x128xf32, #tpu.memory_space<vmem>>, vector<1x1x16x128xf32>
    %111 = vector.shape_cast %110 : vector<1x1x16x128xf32> to vector<16x128xf32>
    %cst_76 = arith.constant dense<0.000000e+00> : vector<128x128xf32>
    %112 = tpu.matmul %109, %111, %cst_76 {dimension_numbers = #tpu.dot_dimension_numbers<[1], [0], [0], [1], [0, 0, 1, 1], [], []>} : vector<128x16xf32>, vector<16x128xf32>, vector<128x128xf32> -> vector<128x128xf32>
    %113 = arith.addf %107, %112 : vector<128x128xf32>
    %114 = vector.extract_strided_slice %5 {offsets = [1, 2, 0], sizes = [8, 16, 16], strides = [1, 1, 1]} : vector<10x18x16xf32> to vector<8x16x16xf32>
    %115 = vector.shape_cast %114 : vector<8x16x16xf32> to vector<128x16xf32>
    %c2_77 = arith.constant 2 : index
    %c0_78 = arith.constant 0 : index
    %c0_79 = arith.constant 0 : index
    %c0_80 = arith.constant 0 : index
    %116 = vector.load %arg3[%c2_77, %c0_78, %c0_79, %c0_80] : memref<4x4x16x128xf32, #tpu.memory_space<vmem>>, vector<1x1x16x128xf32>
    %117 = vector.shape_cast %116 : vector<1x1x16x128xf32> to vector<16x128xf32>
    %cst_81 = arith.constant dense<0.000000e+00> : vector<128x128xf32>
    %118 = tpu.matmul %115, %117, %cst_81 {dimension_numbers = #tpu.dot_dimension_numbers<[1], [0], [0], [1], [0, 0, 1, 1], [], []>} : vector<128x16xf32>, vector<16x128xf32>, vector<128x128xf32> -> vector<128x128xf32>
    %119 = arith.addf %113, %118 : vector<128x128xf32>
    %120 = vector.extract_strided_slice %5 {offsets = [1, 1, 0], sizes = [8, 16, 16], strides = [1, 1, 1]} : vector<10x18x16xf32> to vector<8x16x16xf32>
    %121 = vector.shape_cast %120 : vector<8x16x16xf32> to vector<128x16xf32>
    %c2_82 = arith.constant 2 : index
    %c2_83 = arith.constant 2 : index
    %c0_84 = arith.constant 0 : index
    %c0_85 = arith.constant 0 : index
    %122 = vector.load %arg3[%c2_82, %c2_83, %c0_84, %c0_85] : memref<4x4x16x128xf32, #tpu.memory_space<vmem>>, vector<1x1x16x128xf32>
    %123 = vector.shape_cast %122 : vector<1x1x16x128xf32> to vector<16x128xf32>
    %cst_86 = arith.constant dense<0.000000e+00> : vector<128x128xf32>
    %124 = tpu.matmul %121, %123, %cst_86 {dimension_numbers = #tpu.dot_dimension_numbers<[1], [0], [0], [1], [0, 0, 1, 1], [], []>} : vector<128x16xf32>, vector<16x128xf32>, vector<128x128xf32> -> vector<128x128xf32>
    %125 = arith.addf %119, %124 : vector<128x128xf32>
    %126 = vector.broadcast %6 : vector<1x128xf32> to vector<128x128xf32>
    %127 = arith.addf %125, %126 : vector<128x128xf32>
    %cst_87 = arith.constant 0.000000e+00 : f32
    %128 = vector.broadcast %cst_87 : f32 to vector<128x128xf32>
    %129 = arith.maximumf %127, %128 : vector<128x128xf32>
    %130 = vector.shape_cast %129 : vector<128x128xf32> to vector<8x16x128xf32>
    %131 = vector.shape_cast %100 : vector<8x16x128xf32> to vector<8x16x1x128xf32>
    %132 = vector.shape_cast %130 : vector<8x16x128xf32> to vector<8x16x1x128xf32>
    %133 = tpu.concatenate %131, %132 in 2 : vector<8x16x1x128xf32>, vector<8x16x1x128xf32> -> vector<8x16x2x128xf32>
    %134 = vector.shape_cast %133 : vector<8x16x2x128xf32> to vector<8x32x128xf32>
    %135 = vector.shape_cast %70 : vector<8x32x128xf32> to vector<8x1x32x128xf32>
    %136 = vector.shape_cast %134 : vector<8x32x128xf32> to vector<8x1x32x128xf32>
    %137 = tpu.concatenate %135, %136 in 1 : vector<8x1x32x128xf32>, vector<8x1x32x128xf32> -> vector<8x2x32x128xf32>
    %138 = vector.shape_cast %137 : vector<8x2x32x128xf32> to vector<16x32x128xf32>
    %139 = vector.shape_cast %138 : vector<16x32x128xf32> to vector<1x16x32x128xf32>
    %c0_88 = arith.constant 0 : index
    %c0_89 = arith.constant 0 : index
    %c0_90 = arith.constant 0 : index
    %c0_91 = arith.constant 0 : index
    %140 = vector.load %arg5[%c0_88, %c0_89, %c0_90, %c0_91] : memref<1x16x32x128xf32, #tpu.memory_space<vmem>>, vector<1x16x32x128xf32>
    tpu.vector_store %arg5[%c0_88, %c0_89, %c0_90, %c0_91], %139 {strides = array<i32>} : memref<1x16x32x128xf32, #tpu.memory_space<vmem>>, vector<1x16x32x128xf32>,
    return
  }
  func.func @transform_0(%arg0: i32, %arg1: i32) -> (i32, i32, i32, i32) {
    %c0_i32 = arith.constant 0 : i32
    %c0_i32_0 = arith.constant 0 : i32
    %c0_i32_1 = arith.constant 0 : i32
    %c0_i32_2 = arith.constant 0 : i32
    return %arg0, %c0_i32, %c0_i32_0, %c0_i32_1 : i32, i32, i32, i32
  }
  func.func @transform_1(%arg0: i32, %arg1: i32) -> (i32, i32, i32, i32) {
    %c0_i32 = arith.constant 0 : i32
    %c0_i32_0 = arith.constant 0 : i32
    %c0_i32_1 = arith.constant 0 : i32
    %c0_i32_2 = arith.constant 0 : i32
    %c0_i32_3 = arith.constant 0 : i32
    return %c0_i32, %c0_i32_0, %c0_i32_1, %c0_i32_2 : i32, i32, i32, i32
  }
  func.func @transform_2(%arg0: i32, %arg1: i32) -> (i32, i32) {
    %c0_i32 = arith.constant 0 : i32
    %c0_i32_0 = arith.constant 0 : i32
    %c0_i32_1 = arith.constant 0 : i32
    return %c0_i32, %c0_i32_0 : i32, i32
  }
  func.func @transform_3(%arg0: i32, %arg1: i32) -> (i32, i32, i32, i32) {
    %c0_i32 = arith.constant 0 : i32
    %c0_i32_0 = arith.constant 0 : i32
    %c0_i32_1 = arith.constant 0 : i32
    return %arg0, %arg1, %c0_i32, %c0_i32_0 : i32, i32, i32, i32
  }
}

</mosaic_0001>

<llo_original>
// kernel: conv2d_transpose_bn_relu.1
$region0: #{conv2d_transpose_bn_relu.1}
  #allocation0 [shape = 'u32[]', space=smem, size = 0x4, offset = 0x4, fixed_abs, tag = 'smem constant byte address 0x4 - core index']
  #allocation1 [shape = 'u32[144,128]{1,0:T(1,128)}', space=vmem, size = 0x12000, scoped, tag = 'internal scratch']
  %s0 = inlined_call_operand.vmem [shape: f32[2,18,18,16], index: 0, kind: input, shape index: {}]
  %s1 = inlined_call_operand.vmem [shape: f32[4,4,16,128], index: 1, kind: input, shape index: {}]
  %s2 = inlined_call_operand.vmem [shape: f32[1,128], index: 2, kind: input, shape index: {}]
  %s3 = inlined_call_operand.hbm [shape: f32[2,32,32,128], index: 3, kind: output, shape index: {}]
  %s4 = sld [smem:[#allocation0]]
  $region45: #{conv2d_transpose_bn_relu.1} parent=0
    _
  %s6 = ssub.s32 1, %s4
  %s7 = scalar_select 0, %s6, %s4
  $region1: #{conv2d_transpose_bn_relu.1} parent=0
    #allocation2 [shape = 'u8[524288]{0}', space=vmem, size = 0x80000, scoped, tag = 'output window, operand 0']
    #allocation3 [shape = 's32[2]{0}', space=sflag, size = 0x8, scoped, tag = 'scoped memory for conv2d_transpose_bn_relu.1']
    %8 = vsyncpa [#allocation3], 0
    %s9 = scalar_lea.sflag [#allocation3], 1
    %10 = vsyncpa %s9, 0
    loop: start=0, step=1, limit=6
    $region2: #{conv2d_transpose_bn_relu.1} parent=1 // loop_pre_header
      _
    $region3: #{conv2d_transpose_bn_relu.1} parent=1 // loop_header
      %s12 = sphi 0, %s16
      %p13 = scmp.ge.s32.totalorder %s12, 6
      %s19 = sphi 0, %s31
      %s20 = sphi 0, %s27
      %s21 = sphi 0, %s19
      %s22 = sphi 0, %s20
      %s23 = sphi 0, %s21
      %s24 = sphi 0, %s22
      %s34 = sphi 0, %s36
      %s37 = sphi 0, %s34
      %s38 = sphi 0, %s37
      %s54 = sphi 0, %s38
      %s58 = sphi 0, %s58
      %s60 = sphi 0, %s58
      %s61 = sphi 0, %s60
      %s75 = sphi 0, %s61
      %s79 = sphi 0, %s79
      %s81 = sphi 0, %s79
      %s82 = sphi 0, %s81
      %s96 = sphi 0, %s82
      %s104 = sphi 0, %s106
      %s107 = sphi 0, %s104
      %s108 = sphi 0, %s107
      %s124 = sphi 0, %s108
    $region4: #{conv2d_transpose_bn_relu.1} parent=1 // loop_header_branch
      %15 = sbr.rel (%p13) target = $region8
    $region5: #{conv2d_transpose_bn_relu.1} parent=1 // loop_body
      %s17 = ssub.s32 %s12, 1
      %s18 = ssub.s32 %s12, 2
      %s25 = sadd.s32 1, %s20
      %p26 = scmp.ge.s32.totalorder %s25, 2
      %s27 = scalar_select %p26, 0, %s25
      %s28 = sadd.s32 1, %s19
      %s29 = scalar_select %p26, %s28, %s19
      %p30 = scmp.ge.s32.totalorder %s29, 2
      %s31 = scalar_select %p30, 0, %s29
      %s32 = ssub.s32 %s19, %s31
      %p33 = scmp.eq.s32.totalorder %s32, 0
      %s35 = sadd.s32 %s34, 1
      %s36 = scalar_select %p33, %s34, %s35
      %p39 = pneg %p33
      %p40 = scmp.eq.s32.totalorder %s12, 3
      %p41 = por %p39, %p40
      %p42 = scmp.ne.s32.totalorder %s34, %s37
      %p43 = scmp.eq.s32.totalorder %s12, 0
      %p44 = por %p42, %p43
      %p45 = scmp.ne.s32.totalorder %s34, %s37
      %p46 = scmp.eq.s32.totalorder %s17, 3
      %p47 = por %p45, %p46
      %p48 = scmp.ne.s32.totalorder %s37, %s38
      %p49 = scmp.eq.s32.totalorder %s17, 0
      %p50 = por %p48, %p49
      %p51 = scmp.ne.s32.totalorder %s37, %s38
      %p52 = scmp.eq.s32.totalorder %s18, 3
      %p53 = por %p51, %p52
      %p55 = scmp.ne.s32.totalorder %s38, %s54
      %p56 = scmp.eq.s32.totalorder %s18, 0
      %p57 = por %p55, %p56
      %s59 = sadd.s32 %s58, 1
      %p62 = scmp.eq.s32.totalorder %s12, 3
      %p63 = scmp.ne.s32.totalorder %s58, %s60
      %p64 = scmp.eq.s32.totalorder %s12, 0
      %p65 = por %p63, %p64
      %p66 = scmp.ne.s32.totalorder %s58, %s60
      %p67 = scmp.eq.s32.totalorder %s17, 3
      %p68 = por %p66, %p67
      %p69 = scmp.ne.s32.totalorder %s60, %s61
      %p70 = scmp.eq.s32.totalorder %s17, 0
      %p71 = por %p69, %p70
      %p72 = scmp.ne.s32.totalorder %s60, %s61
      %p73 = scmp.eq.s32.totalorder %s18, 3
      %p74 = por %p72, %p73
      %p76 = scmp.ne.s32.totalorder %s61, %s75
      %p77 = scmp.eq.s32.totalorder %s18, 0
      %p78 = por %p76, %p77
      %s80 = sadd.s32 %s79, 1
      %p83 = scmp.eq.s32.totalorder %s12, 3
      %p84 = scmp.ne.s32.totalorder %s79, %s81
      %p85 = scmp.eq.s32.totalorder %s12, 0
      %p86 = por %p84, %p85
      %p87 = scmp.ne.s32.totalorder %s79, %s81
      %p88 = scmp.eq.s32.totalorder %s17, 3
      %p89 = por %p87, %p88
      %p90 = scmp.ne.s32.totalorder %s81, %s82
      %p91 = scmp.eq.s32.totalorder %s17, 0
      %p92 = por %p90, %p91
      %p93 = scmp.ne.s32.totalorder %s81, %s82
      %p94 = scmp.eq.s32.totalorder %s18, 3
      %p95 = por %p93, %p94
      %p97 = scmp.ne.s32.totalorder %s82, %s96
      %p98 = scmp.eq.s32.totalorder %s18, 0
      %p99 = por %p97, %p98
      %s100 = ssub.s32 %s19, %s31
      %s101 = ssub.s32 %s20, %s27
      %s102 = sor.u32 %s100, %s101
      %p103 = scmp.eq.s32.totalorder %s102, 0
      %s105 = sadd.s32 %s104, 1
      %s106 = scalar_select %p103, %s104, %s105
      %p109 = pneg %p103
      %p110 = scmp.eq.s32.totalorder %s12, 3
      %p111 = por %p109, %p110
      %p112 = scmp.ne.s32.totalorder %s104, %s107
      %p113 = scmp.eq.s32.totalorder %s12, 0
      %p114 = por %p112, %p113
      %p115 = scmp.ne.s32.totalorder %s104, %s107
      %p116 = scmp.eq.s32.totalorder %s17, 3
      %p117 = por %p115, %p116
      %p118 = scmp.ne.s32.totalorder %s107, %s108
      %p119 = scmp.eq.s32.totalorder %s17, 0
      %p120 = por %p118, %p119
      %p121 = scmp.ne.s32.totalorder %s107, %s108
      %p122 = scmp.eq.s32.totalorder %s18, 3
      %p123 = por %p121, %p122
      %p125 = scmp.ne.s32.totalorder %s108, %s124
      %p126 = scmp.eq.s32.totalorder %s18, 0
      %p127 = por %p125, %p126
      %p128 = scmp.le.s32.totalorder 1, %s12
      %p129 = scmp.lt.s32.totalorder %s12, 5
      %p130 = pnand %p128, %p129
      %p131 = pneg %p130
      // Predicated region
      $region9: #{conv2d_transpose_bn_relu.1} parent=5 // pred_check
        _
      $region10: #{conv2d_transpose_bn_relu.1} parent=5 // pred_check_branch
        %133 = sbr.rel (%p130) target = $region12
      $region11: #{conv2d_transpose_bn_relu.1} parent=5 // pred_region
        %s134 = ssub.s32 %s12, 1
        // Predicated region
        $region13: #{conv2d_transpose_bn_relu.1} parent=11 // pred_check
          %p135 = pneg %p71
        $region14: #{conv2d_transpose_bn_relu.1} parent=11 // pred_check_branch
          %137 = sbr.rel (%p135) target = $region16
        $region15: #{conv2d_transpose_bn_relu.1} parent=11 // pred_region
          _
        $region16: #{conv2d_transpose_bn_relu.1} parent=11 // pred_fallthru
          _
        // Predicated region
        $region17: #{conv2d_transpose_bn_relu.1} parent=11 // pred_check
          %p138 = pneg %p92
        $region18: #{conv2d_transpose_bn_relu.1} parent=11 // pred_check_branch
          %140 = sbr.rel (%p138) target = $region20
        $region19: #{conv2d_transpose_bn_relu.1} parent=11 // pred_region
          _
        $region20: #{conv2d_transpose_bn_relu.1} parent=11 // pred_fallthru
          _
      $region12: #{conv2d_transpose_bn_relu.1} parent=5 // pred_fallthru
        _
      %p141 = scmp.lt.s32.totalorder %s12, 4
      // Predicated region
      $region21: #{conv2d_transpose_bn_relu.1} parent=5 // pred_check
        %p142 = pneg %p141
      $region22: #{conv2d_transpose_bn_relu.1} parent=5 // pred_check_branch
        %144 = sbr.rel (%p142) target = $region24
      $region23: #{conv2d_transpose_bn_relu.1} parent=5 // pred_region
        // Predicated region
        $region25: #{conv2d_transpose_bn_relu.1} parent=23 // pred_check
          %p145 = pneg %p44
        $region26: #{conv2d_transpose_bn_relu.1} parent=23 // pred_check_branch
          %147 = sbr.rel (%p145) target = $region28
        $region27: #{conv2d_transpose_bn_relu.1} parent=23 // pred_region
          %p148 = scmp.lt.s32.totalorder %s19, 1
          %s149 = scalar_select %p148, %s19, 1
          %s150 = smul.addr %s149, 54
          %s151 = smul.addr %s150, 8
          %s152 = scalar_lea.vmem %s0, %s151
        $region28: #{conv2d_transpose_bn_relu.1} parent=23 // pred_fallthru
          _
      $region24: #{conv2d_transpose_bn_relu.1} parent=5 // pred_fallthru
        _
      %p153 = scmp.le.s32.totalorder 1, %s12
      %p154 = scmp.lt.s32.totalorder %s12, 5
      %p155 = pnand %p153, %p154
      %p156 = pneg %p155
      // Predicated region
      $region29: #{conv2d_transpose_bn_relu.1} parent=5 // pred_check
        _
      $region30: #{conv2d_transpose_bn_relu.1} parent=5 // pred_check_branch
        %158 = sbr.rel (%p155) target = $region32
      $region31: #{conv2d_transpose_bn_relu.1} parent=5 // pred_region
        %s159 = ssub.s32 %s12, 1
        %p160 = scmp.lt.s32.totalorder %s21, 1
        %s161 = scalar_select %p160, %s21, 1
        %s162 = smul.addr %s161, 54
        %s163 = smul.addr %s162, 8
        %s164 = scalar_lea.vmem %s0, %s163
        %p165 = pneg %p50
        %p166 = pneg %p47
        %p167 = pneg %p71
        %p168 = pneg %p68
        %p169 = pneg %p92
        %p170 = pneg %p89
        %p171 = pneg %p120
        %p172 = pneg %p117
        %s173 = sand.u32 %s107, 1
        %s174 = scalar_lea.sflag [#allocation3], %s173
        %s175 = sand.u32 %s107, 1
        %s176 = smul.addr %s175, 512
        %s177 = scalar_lea.vmem [#allocation2], %s176
        %p178 = scmp.lt.s32.totalorder %s21, 1
        %s179 = scalar_select %p178, %s21, 1
        %s180 = smul.addr %s179, 54
        %s181 = smul.addr %s180, 8
        %s182 = scalar_lea.vmem %s0, %s181
        %s183 = smul.u32 16, %s22
        %s184 = smul.u32 %s22, 8
        %s185 = smul.u32 %s184, 24
        %s186 = scalar_lea.vmem %s182, %s185
        %v187 = vld [vmem:[%s186] sm:$0xff]
        %v188 = vld [vmem:[%s186 + $0x8] sm:$0xff]
        %v189 = vld [vmem:[%s186 + $0x10] sm:$0x3]
        %v190 = vld [vmem:[%s186 + $0x18] sm:$0xff]
        %v191 = vld [vmem:[%s186 + $0x20] sm:$0xff]
        %v192 = vld [vmem:[%s186 + $0x28] sm:$0x3]
        %v193 = vld [vmem:[%s186 + $0x30] sm:$0xff]
        %v194 = vld [vmem:[%s186 + $0x38] sm:$0xff]
        %v195 = vld [vmem:[%s186 + $0x40] sm:$0x3]
        %v196 = vld [vmem:[%s186 + $0x48] sm:$0xff]
        %v197 = vld [vmem:[%s186 + $0x50] sm:$0xff]
        %v198 = vld [vmem:[%s186 + $0x58] sm:$0x3]
        %v199 = vld [vmem:[%s186 + $0x60] sm:$0xff]
        %v200 = vld [vmem:[%s186 + $0x68] sm:$0xff]
        %v201 = vld [vmem:[%s186 + $0x70] sm:$0x3]
        %v202 = vld [vmem:[%s186 + $0x78] sm:$0xff]
        %v203 = vld [vmem:[%s186 + $0x80] sm:$0xff]
        %v204 = vld [vmem:[%s186 + $0x88] sm:$0x3]
        %v205 = vld [vmem:[%s186 + $0x90] sm:$0xff]
        %v206 = vld [vmem:[%s186 + $0x98] sm:$0xff]
        %v207 = vld [vmem:[%s186 + $0xa0] sm:$0x3]
        %v208 = vld [vmem:[%s186 + $0xa8] sm:$0xff]
        %v209 = vld [vmem:[%s186 + $0xb0] sm:$0xff]
        %v210 = vld [vmem:[%s186 + $0xb8] sm:$0x3]
        %v211 = vld [vmem:[%s186 + $0xc0] sm:$0xff]
        %v212 = vld [vmem:[%s186 + $0xc8] sm:$0xff]
        %v213 = vld [vmem:[%s186 + $0xd0] sm:$0x3]
        %v214 = vld [vmem:[%s186 + $0xd8] sm:$0xff]
        %v215 = vld [vmem:[%s186 + $0xe0] sm:$0xff]
        %v216 = vld [vmem:[%s186 + $0xe8] sm:$0x3]
        %v217 = vld [vmem:[%s2] sm:$0x1]
        %vm242 = vcmask 1046528
        %v243 = vrot.slane %v190, 1
        %v244 = vrot.slane %v191, 1
        %v245 = vsel %vm242, %v243, %v244
        %v246 = vrot.slane %v192, 1
        %v247 = vsel %vm242, %v244, %v246
        %v248 = vrot.slane %v193, 1
        %v249 = vrot.slane %v194, 1
        %v250 = vsel %vm242, %v248, %v249
        %v251 = vrot.slane %v195, 1
        %v252 = vsel %vm242, %v249, %v251
        %v253 = vrot.slane %v196, 1
        %v254 = vrot.slane %v197, 1
        %v255 = vsel %vm242, %v253, %v254
        %v256 = vrot.slane %v198, 1
        %v257 = vsel %vm242, %v254, %v256
        %v258 = vrot.slane %v199, 1
        %v259 = vrot.slane %v200, 1
        %v260 = vsel %vm242, %v258, %v259
        %v261 = vrot.slane %v201, 1
        %v262 = vsel %vm242, %v259, %v261
        %v263 = vrot.slane %v202, 1
        %v264 = vrot.slane %v203, 1
        %v265 = vsel %vm242, %v263, %v264
        %v266 = vrot.slane %v204, 1
        %v267 = vsel %vm242, %v264, %v266
        %v268 = vrot.slane %v205, 1
        %v269 = vrot.slane %v206, 1
        %v270 = vsel %vm242, %v268, %v269
        %v271 = vrot.slane %v207, 1
        %v272 = vsel %vm242, %v269, %v271
        %v273 = vrot.slane %v208, 1
        %v274 = vrot.slane %v209, 1
        %v275 = vsel %vm242, %v273, %v274
        %v276 = vrot.slane %v210, 1
        %v277 = vsel %vm242, %v274, %v276
        %v278 = vrot.slane %v211, 1
        %v279 = vrot.slane %v212, 1
        %v280 = vsel %vm242, %v278, %v279
        %v281 = vrot.slane %v213, 1
        %v282 = vsel %vm242, %v279, %v281
        %s283 = scalar_lea.vmem %s1, 80
        %v284 = vld [vmem:[%s283] sm:$0xff]
        %v285 = vld [vmem:[%s283 + $0x8] sm:$0xff]
        %s286 = scalar_lea.vmem %s1, 112
        %v287 = vld [vmem:[%s286] sm:$0xff]
        %v288 = vld [vmem:[%s286 + $0x8] sm:$0xff]
        %vm289 = vcmask 130048
        %v290 = vsel %vm289, %v190, 0
        %v292 = vsel %vm289, %v191, 0
        %v294 = vsel %vm289, %v193, 0
        %v296 = vsel %vm289, %v194, 0
        %v298 = vsel %vm289, %v196, 0
        %v300 = vsel %vm289, %v197, 0
        %v302 = vsel %vm289, %v199, 0
        %v304 = vsel %vm289, %v200, 0
        %v306 = vsel %vm289, %v202, 0
        %v308 = vsel %vm289, %v203, 0
        %v310 = vsel %vm289, %v205, 0
        %v312 = vsel %vm289, %v206, 0
        %v314 = vsel %vm289, %v208, 0
        %v316 = vsel %vm289, %v209, 0
        %v318 = vsel %vm289, %v211, 0
        %v320 = vsel %vm289, %v212, 0
        %322 = vmatprep.subr.mxu0 0.0
        %323 = vmatpush1.msra.mxu0 0.0
        %324 = vmatprep.subr.mxu0 0.0
        %325 = vmatpush1.msra.mxu0 0.0
        %326 = vmatprep.subr.mxu0 0.0
        %327 = vmatpush1.msra.mxu0 0.0
        %328 = vmatprep.subr.mxu0 0.0
        %329 = vmatpush1.msra.mxu0 0.0
        %330 = vmatprep.subr.mxu0 0.0
        %331 = vmatpush1.msra.mxu0 0.0
        %332 = vmatprep.subr.mxu0 0.0
        %333 = vmatpush1.msra.mxu0 0.0
        %334 = vmatprep.subr.mxu0 0.0
        %335 = vmatpush1.msra.mxu0 0.0
        %336 = vmatprep.subr.mxu0 0.0
        %337 = vmatpush1.msra.mxu0 0.0
        %338 = vmatprep.subr.mxu0 0.0
        %339 = vmatpush1.msra.mxu0 0.0
        %340 = vmatprep.subr.mxu0 0.0
        %341 = vmatpush1.msra.mxu0 0.0
        %342 = vmatprep.subr.mxu0 0.0
        %343 = vmatpush1.msra.mxu0 0.0
        %344 = vmatprep.subr.mxu0 0.0
        %345 = vmatpush1.msra.mxu0 0.0
        %346 = vmatprep.subr.mxu0 0.0
        %347 = vmatpush1.msra.mxu0 0.0
        %348 = vmatprep.subr.mxu0 0.0
        %349 = vmatpush1.msra.mxu0 0.0
        %350 = vmatprep.subr.mxu0 0.0
        %351 = vmatpush1.msra.mxu0 %v288
        %352 = vmatprep.subr.mxu0 0.0
        %353 = vmatpush1.msra.mxu0 %v287
        %354 = vmatprep.subr.mxu0 0.0
        %355 = vmatpush2.msra.mxu0 0.0
        %356 = vmatprep.subr.mxu0 0.0
        %357 = vmatpush2.msra.mxu0 0.0
        %358 = vmatprep.subr.mxu0 0.0
        %359 = vmatpush2.msra.mxu0 0.0
        %360 = vmatprep.subr.mxu0 0.0
        %361 = vmatpush2.msra.mxu0 0.0
        %362 = vmatprep.subr.mxu0 0.0
        %363 = vmatpush2.msra.mxu0 0.0
        %364 = vmatprep.subr.mxu0 0.0
        %365 = vmatpush2.msra.mxu0 0.0
        %366 = vmatprep.subr.mxu0 0.0
        %367 = vmatpush2.msra.mxu0 0.0
        %368 = vmatprep.subr.mxu0 0.0
        %369 = vmatpush2.msra.mxu0 0.0
        %370 = vmatprep.subr.mxu0 0.0
        %371 = vmatpush2.msra.mxu0 0.0
        %372 = vmatprep.subr.mxu0 0.0
        %373 = vmatpush2.msra.mxu0 0.0
        %374 = vmatprep.subr.mxu0 0.0
        %375 = vmatpush2.msra.mxu0 0.0
        %376 = vmatprep.subr.mxu0 0.0
        %377 = vmatpush2.msra.mxu0 0.0
        %378 = vmatprep.subr.mxu0 0.0
        %379 = vmatpush2.msra.mxu0 0.0
        %380 = vmatprep.subr.mxu0 0.0
        %381 = vmatpush2.msra.mxu0 0.0
        %382 = vmatprep.subr.mxu0 0.0
        %383 = vmatpush2.msra.mxu0 0.0
        %384 = vmatprep.subr.mxu0 0.0
        %385 = vmatpush2.msra.mxu0 0.0
        %386 = vmatprep.mubr.f32.mxu0 0.0
        %387 = vmatmul.mubr.f32.gmra.mxu0 %v290
        %v388 = vpop.f32.mrf.mxu0
        %v389 = vadd.f32 0.0, %v388
        %v390 = vpop.f32.mrf.mxu0
        %391 = vmatprep.mubr.f32.mxu0 0.0
        %392 = vmatmul.mubr.f32.gmra.mxu0 %v292
        %v393 = vpop.f32.mrf.mxu0
        %v394 = vadd.f32 0.0, %v393
        %v395 = vpop.f32.mrf.mxu0
        %396 = vmatprep.mubr.f32.mxu0 0.0
        %397 = vmatmul.mubr.f32.gmra.mxu0 %v294
        %v398 = vpop.f32.mrf.mxu0
        %v399 = vadd.f32 0.0, %v398
        %v400 = vpop.f32.mrf.mxu0
        %401 = vmatprep.mubr.f32.mxu0 0.0
        %402 = vmatmul.mubr.f32.gmra.mxu0 %v296
        %v403 = vpop.f32.mrf.mxu0
        %v404 = vadd.f32 0.0, %v403
        %v405 = vpop.f32.mrf.mxu0
        %406 = vmatprep.mubr.f32.mxu0 0.0
        %407 = vmatmul.mubr.f32.gmra.mxu0 %v298
        %v408 = vpop.f32.mrf.mxu0
        %v409 = vadd.f32 0.0, %v408
        %v410 = vpop.f32.mrf.mxu0
        %411 = vmatprep.mubr.f32.mxu0 0.0
        %412 = vmatmul.mubr.f32.gmra.mxu0 %v300
        %v413 = vpop.f32.mrf.mxu0
        %v414 = vadd.f32 0.0, %v413
        %v415 = vpop.f32.mrf.mxu0
        %416 = vmatprep.mubr.f32.mxu0 0.0
        %417 = vmatmul.mubr.f32.gmra.mxu0 %v302
        %v418 = vpop.f32.mrf.mxu0
        %v419 = vadd.f32 0.0, %v418
        %v420 = vpop.f32.mrf.mxu0
        %421 = vmatprep.mubr.f32.mxu0 0.0
        %422 = vmatmul.mubr.f32.gmra.mxu0 %v304
        %v423 = vpop.f32.mrf.mxu0
        %v424 = vadd.f32 0.0, %v423
        %v425 = vpop.f32.mrf.mxu0
        %426 = vmatprep.mubr.f32.mxu0 0.0
        %427 = vmatmul.mubr.f32.gmra.mxu0 %v306
        %v428 = vpop.f32.mrf.mxu0
        %v429 = vadd.f32 0.0, %v428
        %v430 = vpop.f32.mrf.mxu0
        %431 = vmatprep.mubr.f32.mxu0 0.0
        %432 = vmatmul.mubr.f32.gmra.mxu0 %v308
        %v433 = vpop.f32.mrf.mxu0
        %v434 = vadd.f32 0.0, %v433
        %v435 = vpop.f32.mrf.mxu0
        %436 = vmatprep.mubr.f32.mxu0 0.0
        %437 = vmatmul.mubr.f32.gmra.mxu0 %v310
        %v438 = vpop.f32.mrf.mxu0
        %v439 = vadd.f32 0.0, %v438
        %v440 = vpop.f32.mrf.mxu0
        %441 = vmatprep.mubr.f32.mxu0 0.0
        %442 = vmatmul.mubr.f32.gmra.mxu0 %v312
        %v443 = vpop.f32.mrf.mxu0
        %v444 = vadd.f32 0.0, %v443
        %v445 = vpop.f32.mrf.mxu0
        %446 = vmatprep.mubr.f32.mxu0 0.0
        %447 = vmatmul.mubr.f32.gmra.mxu0 %v314
        %v448 = vpop.f32.mrf.mxu0
        %v449 = vadd.f32 0.0, %v448
        %v450 = vpop.f32.mrf.mxu0
        %451 = vmatprep.mubr.f32.mxu0 0.0
        %452 = vmatmul.mubr.f32.gmra.mxu0 %v316
        %v453 = vpop.f32.mrf.mxu0
        %v454 = vadd.f32 0.0, %v453
        %v455 = vpop.f32.mrf.mxu0
        %456 = vmatprep.mubr.f32.mxu0 0.0
        %457 = vmatmul.mubr.f32.gmra.mxu0 %v318
        %v458 = vpop.f32.mrf.mxu0
        %v459 = vadd.f32 0.0, %v458
        %v460 = vpop.f32.mrf.mxu0
        %461 = vmatprep.mubr.f32.mxu0 0.0
        %462 = vmatmul.mubr.f32.gmra.mxu0 %v320
        %v463 = vpop.f32.mrf.mxu0
        %v464 = vadd.f32 0.0, %v463
        %v465 = vpop.f32.mrf.mxu0
        %466 = vdwg.mxu0
        %v467 = vsel %vm289, %v245, 0
        %v469 = vsel %vm289, %v247, 0
        %v471 = vsel %vm289, %v250, 0
        %v473 = vsel %vm289, %v252, 0
        %v475 = vsel %vm289, %v255, 0
        %v477 = vsel %vm289, %v257, 0
        %v479 = vsel %vm289, %v260, 0
        %v481 = vsel %vm289, %v262, 0
        %v483 = vsel %vm289, %v265, 0
        %v485 = vsel %vm289, %v267, 0
        %v487 = vsel %vm289, %v270, 0
        %v489 = vsel %vm289, %v272, 0
        %v491 = vsel %vm289, %v275, 0
        %v493 = vsel %vm289, %v277, 0
        %v495 = vsel %vm289, %v280, 0
        %v497 = vsel %vm289, %v282, 0
        %499 = vmatprep.subr.mxu0 0.0
        %500 = vmatpush1.msra.mxu0 0.0
        %501 = vmatprep.subr.mxu0 0.0
        %502 = vmatpush1.msra.mxu0 0.0
        %503 = vmatprep.subr.mxu0 0.0
        %504 = vmatpush1.msra.mxu0 0.0
        %505 = vmatprep.subr.mxu0 0.0
        %506 = vmatpush1.msra.mxu0 0.0
        %507 = vmatprep.subr.mxu0 0.0
        %508 = vmatpush1.msra.mxu0 0.0
        %509 = vmatprep.subr.mxu0 0.0
        %510 = vmatpush1.msra.mxu0 0.0
        %511 = vmatprep.subr.mxu0 0.0
        %512 = vmatpush1.msra.mxu0 0.0
        %513 = vmatprep.subr.mxu0 0.0
        %514 = vmatpush1.msra.mxu0 0.0
        %515 = vmatprep.subr.mxu0 0.0
        %516 = vmatpush1.msra.mxu0 0.0
        %517 = vmatprep.subr.mxu0 0.0
        %518 = vmatpush1.msra.mxu0 0.0
        %519 = vmatprep.subr.mxu0 0.0
        %520 = vmatpush1.msra.mxu0 0.0
        %521 = vmatprep.subr.mxu0 0.0
        %522 = vmatpush1.msra.mxu0 0.0
        %523 = vmatprep.subr.mxu0 0.0
        %524 = vmatpush1.msra.mxu0 0.0
        %525 = vmatprep.subr.mxu0 0.0
        %526 = vmatpush1.msra.mxu0 0.0
        %527 = vmatprep.subr.mxu0 0.0
        %528 = vmatpush1.msra.mxu0 %v285
        %529 = vmatprep.subr.mxu0 0.0
        %530 = vmatpush1.msra.mxu0 %v284
        %531 = vmatprep.subr.mxu0 0.0
        %532 = vmatpush2.msra.mxu0 0.0
        %533 = vmatprep.subr.mxu0 0.0
        %534 = vmatpush2.msra.mxu0 0.0
        %535 = vmatprep.subr.mxu0 0.0
        %536 = vmatpush2.msra.mxu0 0.0
        %537 = vmatprep.subr.mxu0 0.0
        %538 = vmatpush2.msra.mxu0 0.0
        %539 = vmatprep.subr.mxu0 0.0
        %540 = vmatpush2.msra.mxu0 0.0
        %541 = vmatprep.subr.mxu0 0.0
        %542 = vmatpush2.msra.mxu0 0.0
        %543 = vmatprep.subr.mxu0 0.0
        %544 = vmatpush2.msra.mxu0 0.0
        %545 = vmatprep.subr.mxu0 0.0
        %546 = vmatpush2.msra.mxu0 0.0
        %547 = vmatprep.subr.mxu0 0.0
        %548 = vmatpush2.msra.mxu0 0.0
        %549 = vmatprep.subr.mxu0 0.0
        %550 = vmatpush2.msra.mxu0 0.0
        %551 = vmatprep.subr.mxu0 0.0
        %552 = vmatpush2.msra.mxu0 0.0
        %553 = vmatprep.subr.mxu0 0.0
        %554 = vmatpush2.msra.mxu0 0.0
        %555 = vmatprep.subr.mxu0 0.0
        %556 = vmatpush2.msra.mxu0 0.0
        %557 = vmatprep.subr.mxu0 0.0
        %558 = vmatpush2.msra.mxu0 0.0
        %559 = vmatprep.subr.mxu0 0.0
        %560 = vmatpush2.msra.mxu0 0.0
        %561 = vmatprep.subr.mxu0 0.0
        %562 = vmatpush2.msra.mxu0 0.0
        %563 = vmatprep.mubr.f32.mxu0 0.0
        %564 = vmatmul.mubr.f32.gmra.mxu0 %v467
        %v565 = vpop.f32.mrf.mxu0
        %v566 = vadd.f32 %v389, %v565
        %v567 = vpop.f32.mrf.mxu0
        %568 = vmatprep.mubr.f32.mxu0 0.0
        %569 = vmatmul.mubr.f32.gmra.mxu0 %v469
        %v570 = vpop.f32.mrf.mxu0
        %v571 = vadd.f32 %v394, %v570
        %v572 = vpop.f32.mrf.mxu0
        %573 = vmatprep.mubr.f32.mxu0 0.0
        %574 = vmatmul.mubr.f32.gmra.mxu0 %v471
        %v575 = vpop.f32.mrf.mxu0
        %v576 = vadd.f32 %v399, %v575
        %v577 = vpop.f32.mrf.mxu0
        %578 = vmatprep.mubr.f32.mxu0 0.0
        %579 = vmatmul.mubr.f32.gmra.mxu0 %v473
        %v580 = vpop.f32.mrf.mxu0
        %v581 = vadd.f32 %v404, %v580
        %v582 = vpop.f32.mrf.mxu0
        %583 = vmatprep.mubr.f32.mxu0 0.0
        %584 = vmatmul.mubr.f32.gmra.mxu0 %v475
        %v585 = vpop.f32.mrf.mxu0
        %v586 = vadd.f32 %v409, %v585
        %v587 = vpop.f32.mrf.mxu0
        %588 = vmatprep.mubr.f32.mxu0 0.0
        %589 = vmatmul.mubr.f32.gmra.mxu0 %v477
        %v590 = vpop.f32.mrf.mxu0
        %v591 = vadd.f32 %v414, %v590
        %v592 = vpop.f32.mrf.mxu0
        %593 = vmatprep.mubr.f32.mxu0 0.0
        %594 = vmatmul.mubr.f32.gmra.mxu0 %v479
        %v595 = vpop.f32.mrf.mxu0
        %v596 = vadd.f32 %v419, %v595
        %v597 = vpop.f32.mrf.mxu0
        %598 = vmatprep.mubr.f32.mxu0 0.0
        %599 = vmatmul.mubr.f32.gmra.mxu0 %v481
        %v600 = vpop.f32.mrf.mxu0
        %v601 = vadd.f32 %v424, %v600
        %v602 = vpop.f32.mrf.mxu0
        %603 = vmatprep.mubr.f32.mxu0 0.0
        %604 = vmatmul.mubr.f32.gmra.mxu0 %v483
        %v605 = vpop.f32.mrf.mxu0
        %v606 = vadd.f32 %v429, %v605
        %v607 = vpop.f32.mrf.mxu0
        %608 = vmatprep.mubr.f32.mxu0 0.0
        %609 = vmatmul.mubr.f32.gmra.mxu0 %v485
        %v610 = vpop.f32.mrf.mxu0
        %v611 = vadd.f32 %v434, %v610
        %v612 = vpop.f32.mrf.mxu0
        %613 = vmatprep.mubr.f32.mxu0 0.0
        %614 = vmatmul.mubr.f32.gmra.mxu0 %v487
        %v615 = vpop.f32.mrf.mxu0
        %v616 = vadd.f32 %v439, %v615
        %v617 = vpop.f32.mrf.mxu0
        %618 = vmatprep.mubr.f32.mxu0 0.0
        %619 = vmatmul.mubr.f32.gmra.mxu0 %v489
        %v620 = vpop.f32.mrf.mxu0
        %v621 = vadd.f32 %v444, %v620
        %v622 = vpop.f32.mrf.mxu0
        %623 = vmatprep.mubr.f32.mxu0 0.0
        %624 = vmatmul.mubr.f32.gmra.mxu0 %v491
        %v625 = vpop.f32.mrf.mxu0
        %v626 = vadd.f32 %v449, %v625
        %v627 = vpop.f32.mrf.mxu0
        %628 = vmatprep.mubr.f32.mxu0 0.0
        %629 = vmatmul.mubr.f32.gmra.mxu0 %v493
        %v630 = vpop.f32.mrf.mxu0
        %v631 = vadd.f32 %v454, %v630
        %v632 = vpop.f32.mrf.mxu0
        %633 = vmatprep.mubr.f32.mxu0 0.0
        %634 = vmatmul.mubr.f32.gmra.mxu0 %v495
        %v635 = vpop.f32.mrf.mxu0
        %v636 = vadd.f32 %v459, %v635
        %v637 = vpop.f32.mrf.mxu0
        %638 = vmatprep.mubr.f32.mxu0 0.0
        %639 = vmatmul.mubr.f32.gmra.mxu0 %v497
        %v640 = vpop.f32.mrf.mxu0
        %v641 = vadd.f32 %v464, %v640
        %v642 = vpop.f32.mrf.mxu0
        %643 = vdwg.mxu0
        %v647 = vrot.slane %v187, 1
        %v648 = vrot.slane %v188, 1
        %v649 = vsel %vm242, %v647, %v648
        %v650 = vrot.slane %v189, 1
        %v651 = vsel %vm242, %v648, %v650
        %s652 = scalar_lea.vmem %s1, 208
        %v653 = vld [vmem:[%s652] sm:$0xff]
        %v654 = vld [vmem:[%s652 + $0x8] sm:$0xff]
        %v655 = vsel %vm289, %v649, 0
        %v657 = vsel %vm289, %v651, 0
        %659 = vmatprep.subr.mxu0 0.0
        %660 = vmatpush1.msra.mxu0 0.0
        %661 = vmatprep.subr.mxu0 0.0
        %662 = vmatpush1.msra.mxu0 0.0
        %663 = vmatprep.subr.mxu0 0.0
        %664 = vmatpush1.msra.mxu0 0.0
        %665 = vmatprep.subr.mxu0 0.0
        %666 = vmatpush1.msra.mxu0 0.0
        %667 = vmatprep.subr.mxu0 0.0
        %668 = vmatpush1.msra.mxu0 0.0
        %669 = vmatprep.subr.mxu0 0.0
        %670 = vmatpush1.msra.mxu0 0.0
        %671 = vmatprep.subr.mxu0 0.0
        %672 = vmatpush1.msra.mxu0 0.0
        %673 = vmatprep.subr.mxu0 0.0
        %674 = vmatpush1.msra.mxu0 0.0
        %675 = vmatprep.subr.mxu0 0.0
        %676 = vmatpush1.msra.mxu0 0.0
        %677 = vmatprep.subr.mxu0 0.0
        %678 = vmatpush1.msra.mxu0 0.0
        %679 = vmatprep.subr.mxu0 0.0
        %680 = vmatpush1.msra.mxu0 0.0
        %681 = vmatprep.subr.mxu0 0.0
        %682 = vmatpush1.msra.mxu0 0.0
        %683 = vmatprep.subr.mxu0 0.0
        %684 = vmatpush1.msra.mxu0 0.0
        %685 = vmatprep.subr.mxu0 0.0
        %686 = vmatpush1.msra.mxu0 0.0
        %687 = vmatprep.subr.mxu0 0.0
        %688 = vmatpush1.msra.mxu0 %v654
        %689 = vmatprep.subr.mxu0 0.0
        %690 = vmatpush1.msra.mxu0 %v653
        %691 = vmatprep.subr.mxu0 0.0
        %692 = vmatpush2.msra.mxu0 0.0
        %693 = vmatprep.subr.mxu0 0.0
        %694 = vmatpush2.msra.mxu0 0.0
        %695 = vmatprep.subr.mxu0 0.0
        %696 = vmatpush2.msra.mxu0 0.0
        %697 = vmatprep.subr.mxu0 0.0
        %698 = vmatpush2.msra.mxu0 0.0
        %699 = vmatprep.subr.mxu0 0.0
        %700 = vmatpush2.msra.mxu0 0.0
        %701 = vmatprep.subr.mxu0 0.0
        %702 = vmatpush2.msra.mxu0 0.0
        %703 = vmatprep.subr.mxu0 0.0
        %704 = vmatpush2.msra.mxu0 0.0
        %705 = vmatprep.subr.mxu0 0.0
        %706 = vmatpush2.msra.mxu0 0.0
        %707 = vmatprep.subr.mxu0 0.0
        %708 = vmatpush2.msra.mxu0 0.0
        %709 = vmatprep.subr.mxu0 0.0
        %710 = vmatpush2.msra.mxu0 0.0
        %711 = vmatprep.subr.mxu0 0.0
        %712 = vmatpush2.msra.mxu0 0.0
        %713 = vmatprep.subr.mxu0 0.0
        %714 = vmatpush2.msra.mxu0 0.0
        %715 = vmatprep.subr.mxu0 0.0
        %716 = vmatpush2.msra.mxu0 0.0
        %717 = vmatprep.subr.mxu0 0.0
        %718 = vmatpush2.msra.mxu0 0.0
        %719 = vmatprep.subr.mxu0 0.0
        %720 = vmatpush2.msra.mxu0 0.0
        %721 = vmatprep.subr.mxu0 0.0
        %722 = vmatpush2.msra.mxu0 0.0
        %723 = vmatprep.mubr.f32.mxu0 0.0
        %724 = vmatmul.mubr.f32.gmra.mxu0 %v655
        %v725 = vpop.f32.mrf.mxu0
        %v726 = vadd.f32 0.0, %v725
        %v727 = vpop.f32.mrf.mxu0
        %728 = vmatprep.mubr.f32.mxu0 0.0
        %729 = vmatmul.mubr.f32.gmra.mxu0 %v657
        %v730 = vpop.f32.mrf.mxu0
        %v731 = vadd.f32 0.0, %v730
        %v732 = vpop.f32.mrf.mxu0
        %733 = vmatprep.mubr.f32.mxu0 0.0
        %734 = vmatmul.mubr.f32.gmra.mxu0 %v467
        %v735 = vpop.f32.mrf.mxu0
        %v736 = vadd.f32 0.0, %v735
        %v737 = vpop.f32.mrf.mxu0
        %738 = vmatprep.mubr.f32.mxu0 0.0
        %739 = vmatmul.mubr.f32.gmra.mxu0 %v469
        %v740 = vpop.f32.mrf.mxu0
        %v741 = vadd.f32 0.0, %v740
        %v742 = vpop.f32.mrf.mxu0
        %743 = vmatprep.mubr.f32.mxu0 0.0
        %744 = vmatmul.mubr.f32.gmra.mxu0 %v471
        %v745 = vpop.f32.mrf.mxu0
        %v746 = vadd.f32 0.0, %v745
        %v747 = vpop.f32.mrf.mxu0
        %748 = vmatprep.mubr.f32.mxu0 0.0
        %749 = vmatmul.mubr.f32.gmra.mxu0 %v473
        %v750 = vpop.f32.mrf.mxu0
        %v751 = vadd.f32 0.0, %v750
        %v752 = vpop.f32.mrf.mxu0
        %753 = vmatprep.mubr.f32.mxu0 0.0
        %754 = vmatmul.mubr.f32.gmra.mxu0 %v475
        %v755 = vpop.f32.mrf.mxu0
        %v756 = vadd.f32 0.0, %v755
        %v757 = vpop.f32.mrf.mxu0
        %758 = vmatprep.mubr.f32.mxu0 0.0
        %759 = vmatmul.mubr.f32.gmra.mxu0 %v477
        %v760 = vpop.f32.mrf.mxu0
        %v761 = vadd.f32 0.0, %v760
        %v762 = vpop.f32.mrf.mxu0
        %763 = vmatprep.mubr.f32.mxu0 0.0
        %764 = vmatmul.mubr.f32.gmra.mxu0 %v479
        %v765 = vpop.f32.mrf.mxu0
        %v766 = vadd.f32 0.0, %v765
        %v767 = vpop.f32.mrf.mxu0
        %768 = vmatprep.mubr.f32.mxu0 0.0
        %769 = vmatmul.mubr.f32.gmra.mxu0 %v481
        %v770 = vpop.f32.mrf.mxu0
        %v771 = vadd.f32 0.0, %v770
        %v772 = vpop.f32.mrf.mxu0
        %773 = vmatprep.mubr.f32.mxu0 0.0
        %774 = vmatmul.mubr.f32.gmra.mxu0 %v483
        %v775 = vpop.f32.mrf.mxu0
        %v776 = vadd.f32 0.0, %v775
        %v777 = vpop.f32.mrf.mxu0
        %778 = vmatprep.mubr.f32.mxu0 0.0
        %779 = vmatmul.mubr.f32.gmra.mxu0 %v485
        %v780 = vpop.f32.mrf.mxu0
        %v781 = vadd.f32 0.0, %v780
        %v782 = vpop.f32.mrf.mxu0
        %783 = vmatprep.mubr.f32.mxu0 0.0
        %784 = vmatmul.mubr.f32.gmra.mxu0 %v487
        %v785 = vpop.f32.mrf.mxu0
        %v786 = vadd.f32 0.0, %v785
        %v787 = vpop.f32.mrf.mxu0
        %788 = vmatprep.mubr.f32.mxu0 0.0
        %789 = vmatmul.mubr.f32.gmra.mxu0 %v489
        %v790 = vpop.f32.mrf.mxu0
        %v791 = vadd.f32 0.0, %v790
        %v792 = vpop.f32.mrf.mxu0
        %793 = vmatprep.mubr.f32.mxu0 0.0
        %794 = vmatmul.mubr.f32.gmra.mxu0 %v491
        %v795 = vpop.f32.mrf.mxu0
        %v796 = vadd.f32 0.0, %v795
        %v797 = vpop.f32.mrf.mxu0
        %798 = vmatprep.mubr.f32.mxu0 0.0
        %799 = vmatmul.mubr.f32.gmra.mxu0 %v493
        %v800 = vpop.f32.mrf.mxu0
        %v801 = vadd.f32 0.0, %v800
        %v802 = vpop.f32.mrf.mxu0
        %803 = vdwg.mxu0
        %v804 = vadd.f32 %v566, %v726
        %v805 = vadd.f32 %v571, %v731
        %v806 = vadd.f32 %v576, %v736
        %v807 = vadd.f32 %v581, %v741
        %v808 = vadd.f32 %v586, %v746
        %v809 = vadd.f32 %v591, %v751
        %v810 = vadd.f32 %v596, %v756
        %v811 = vadd.f32 %v601, %v761
        %v812 = vadd.f32 %v606, %v766
        %v813 = vadd.f32 %v611, %v771
        %v814 = vadd.f32 %v616, %v776
        %v815 = vadd.f32 %v621, %v781
        %v816 = vadd.f32 %v626, %v786
        %v817 = vadd.f32 %v631, %v791
        %v818 = vadd.f32 %v636, %v796
        %v819 = vadd.f32 %v641, %v801
        %s820 = scalar_lea.vmem %s1, 240
        %v821 = vld [vmem:[%s820] sm:$0xff]
        %v822 = vld [vmem:[%s820 + $0x8] sm:$0xff]
        %v823 = vsel %vm289, %v187, 0
        %v825 = vsel %vm289, %v188, 0
        %827 = vmatprep.subr.mxu0 0.0
        %828 = vmatpush1.msra.mxu0 0.0
        %829 = vmatprep.subr.mxu0 0.0
        %830 = vmatpush1.msra.mxu0 0.0
        %831 = vmatprep.subr.mxu0 0.0
        %832 = vmatpush1.msra.mxu0 0.0
        %833 = vmatprep.subr.mxu0 0.0
        %834 = vmatpush1.msra.mxu0 0.0
        %835 = vmatprep.subr.mxu0 0.0
        %836 = vmatpush1.msra.mxu0 0.0
        %837 = vmatprep.subr.mxu0 0.0
        %838 = vmatpush1.msra.mxu0 0.0
        %839 = vmatprep.subr.mxu0 0.0
        %840 = vmatpush1.msra.mxu0 0.0
        %841 = vmatprep.subr.mxu0 0.0
        %842 = vmatpush1.msra.mxu0 0.0
        %843 = vmatprep.subr.mxu0 0.0
        %844 = vmatpush1.msra.mxu0 0.0
        %845 = vmatprep.subr.mxu0 0.0
        %846 = vmatpush1.msra.mxu0 0.0
        %847 = vmatprep.subr.mxu0 0.0
        %848 = vmatpush1.msra.mxu0 0.0
        %849 = vmatprep.subr.mxu0 0.0
        %850 = vmatpush1.msra.mxu0 0.0
        %851 = vmatprep.subr.mxu0 0.0
        %852 = vmatpush1.msra.mxu0 0.0
        %853 = vmatprep.subr.mxu0 0.0
        %854 = vmatpush1.msra.mxu0 0.0
        %855 = vmatprep.subr.mxu0 0.0
        %856 = vmatpush1.msra.mxu0 %v822
        %857 = vmatprep.subr.mxu0 0.0
        %858 = vmatpush1.msra.mxu0 %v821
        %859 = vmatprep.subr.mxu0 0.0
        %860 = vmatpush2.msra.mxu0 0.0
        %861 = vmatprep.subr.mxu0 0.0
        %862 = vmatpush2.msra.mxu0 0.0
        %863 = vmatprep.subr.mxu0 0.0
        %864 = vmatpush2.msra.mxu0 0.0
        %865 = vmatprep.subr.mxu0 0.0
        %866 = vmatpush2.msra.mxu0 0.0
        %867 = vmatprep.subr.mxu0 0.0
        %868 = vmatpush2.msra.mxu0 0.0
        %869 = vmatprep.subr.mxu0 0.0
        %870 = vmatpush2.msra.mxu0 0.0
        %871 = vmatprep.subr.mxu0 0.0
        %872 = vmatpush2.msra.mxu0 0.0
        %873 = vmatprep.subr.mxu0 0.0
        %874 = vmatpush2.msra.mxu0 0.0
        %875 = vmatprep.subr.mxu0 0.0
        %876 = vmatpush2.msra.mxu0 0.0
        %877 = vmatprep.subr.mxu0 0.0
        %878 = vmatpush2.msra.mxu0 0.0
        %879 = vmatprep.subr.mxu0 0.0
        %880 = vmatpush2.msra.mxu0 0.0
        %881 = vmatprep.subr.mxu0 0.0
        %882 = vmatpush2.msra.mxu0 0.0
        %883 = vmatprep.subr.mxu0 0.0
        %884 = vmatpush2.msra.mxu0 0.0
        %885 = vmatprep.subr.mxu0 0.0
        %886 = vmatpush2.msra.mxu0 0.0
        %887 = vmatprep.subr.mxu0 0.0
        %888 = vmatpush2.msra.mxu0 0.0
        %889 = vmatprep.subr.mxu0 0.0
        %890 = vmatpush2.msra.mxu0 0.0
        %891 = vmatprep.mubr.f32.mxu0 0.0
        %892 = vmatmul.mubr.f32.gmra.mxu0 %v823
        %v893 = vpop.f32.mrf.mxu0
        %v894 = vadd.f32 0.0, %v893
        %v895 = vpop.f32.mrf.mxu0
        %896 = vmatprep.mubr.f32.mxu0 0.0
        %897 = vmatmul.mubr.f32.gmra.mxu0 %v825
        %v898 = vpop.f32.mrf.mxu0
        %v899 = vadd.f32 0.0, %v898
        %v900 = vpop.f32.mrf.mxu0
        %901 = vmatprep.mubr.f32.mxu0 0.0
        %902 = vmatmul.mubr.f32.gmra.mxu0 %v290
        %v903 = vpop.f32.mrf.mxu0
        %v904 = vadd.f32 0.0, %v903
        %v905 = vpop.f32.mrf.mxu0
        %906 = vmatprep.mubr.f32.mxu0 0.0
        %907 = vmatmul.mubr.f32.gmra.mxu0 %v292
        %v908 = vpop.f32.mrf.mxu0
        %v909 = vadd.f32 0.0, %v908
        %v910 = vpop.f32.mrf.mxu0
        %911 = vmatprep.mubr.f32.mxu0 0.0
        %912 = vmatmul.mubr.f32.gmra.mxu0 %v294
        %v913 = vpop.f32.mrf.mxu0
        %v914 = vadd.f32 0.0, %v913
        %v915 = vpop.f32.mrf.mxu0
        %916 = vmatprep.mubr.f32.mxu0 0.0
        %917 = vmatmul.mubr.f32.gmra.mxu0 %v296
        %v918 = vpop.f32.mrf.mxu0
        %v919 = vadd.f32 0.0, %v918
        %v920 = vpop.f32.mrf.mxu0
        %921 = vmatprep.mubr.f32.mxu0 0.0
        %922 = vmatmul.mubr.f32.gmra.mxu0 %v298
        %v923 = vpop.f32.mrf.mxu0
        %v924 = vadd.f32 0.0, %v923
        %v925 = vpop.f32.mrf.mxu0
        %926 = vmatprep.mubr.f32.mxu0 0.0
        %927 = vmatmul.mubr.f32.gmra.mxu0 %v300
        %v928 = vpop.f32.mrf.mxu0
        %v929 = vadd.f32 0.0, %v928
        %v930 = vpop.f32.mrf.mxu0
        %931 = vmatprep.mubr.f32.mxu0 0.0
        %932 = vmatmul.mubr.f32.gmra.mxu0 %v302
        %v933 = vpop.f32.mrf.mxu0
        %v934 = vadd.f32 0.0, %v933
        %v935 = vpop.f32.mrf.mxu0
        %936 = vmatprep.mubr.f32.mxu0 0.0
        %937 = vmatmul.mubr.f32.gmra.mxu0 %v304
        %v938 = vpop.f32.mrf.mxu0
        %v939 = vadd.f32 0.0, %v938
        %v940 = vpop.f32.mrf.mxu0
        %941 = vmatprep.mubr.f32.mxu0 0.0
        %942 = vmatmul.mubr.f32.gmra.mxu0 %v306
        %v943 = vpop.f32.mrf.mxu0
        %v944 = vadd.f32 0.0, %v943
        %v945 = vpop.f32.mrf.mxu0
        %946 = vmatprep.mubr.f32.mxu0 0.0
        %947 = vmatmul.mubr.f32.gmra.mxu0 %v308
        %v948 = vpop.f32.mrf.mxu0
        %v949 = vadd.f32 0.0, %v948
        %v950 = vpop.f32.mrf.mxu0
        %951 = vmatprep.mubr.f32.mxu0 0.0
        %952 = vmatmul.mubr.f32.gmra.mxu0 %v310
        %v953 = vpop.f32.mrf.mxu0
        %v954 = vadd.f32 0.0, %v953
        %v955 = vpop.f32.mrf.mxu0
        %956 = vmatprep.mubr.f32.mxu0 0.0
        %957 = vmatmul.mubr.f32.gmra.mxu0 %v312
        %v958 = vpop.f32.mrf.mxu0
        %v959 = vadd.f32 0.0, %v958
        %v960 = vpop.f32.mrf.mxu0
        %961 = vmatprep.mubr.f32.mxu0 0.0
        %962 = vmatmul.mubr.f32.gmra.mxu0 %v314
        %v963 = vpop.f32.mrf.mxu0
        %v964 = vadd.f32 0.0, %v963
        %v965 = vpop.f32.mrf.mxu0
        %966 = vmatprep.mubr.f32.mxu0 0.0
        %967 = vmatmul.mubr.f32.gmra.mxu0 %v316
        %v968 = vpop.f32.mrf.mxu0
        %v969 = vadd.f32 0.0, %v968
        %v970 = vpop.f32.mrf.mxu0
        %971 = vdwg.mxu0
        %v972 = vadd.f32 %v804, %v894
        %v973 = vadd.f32 %v805, %v899
        %v974 = vadd.f32 %v806, %v904
        %v975 = vadd.f32 %v807, %v909
        %v976 = vadd.f32 %v808, %v914
        %v977 = vadd.f32 %v809, %v919
        %v978 = vadd.f32 %v810, %v924
        %v979 = vadd.f32 %v811, %v929
        %v980 = vadd.f32 %v812, %v934
        %v981 = vadd.f32 %v813, %v939
        %v982 = vadd.f32 %v814, %v944
        %v983 = vadd.f32 %v815, %v949
        %v984 = vadd.f32 %v816, %v954
        %v985 = vadd.f32 %v817, %v959
        %v986 = vadd.f32 %v818, %v964
        %v987 = vadd.f32 %v819, %v969
        %v989 = vlaneseq
        %v990 = vshrl.u32 %v989, 7
        %v991 = vsub.s32 0, %v990
        %v992 = vrot.slane %v217, %v991
        %v994 = vadd.f32 %v972, %v992
        %v995 = vadd.f32 %v973, %v992
        %v996 = vadd.f32 %v974, %v992
        %v997 = vadd.f32 %v975, %v992
        %v998 = vadd.f32 %v976, %v992
        %v999 = vadd.f32 %v977, %v992
        %v1000 = vadd.f32 %v978, %v992
        %v1001 = vadd.f32 %v979, %v992
        %v1002 = vadd.f32 %v980, %v992
        %v1003 = vadd.f32 %v981, %v992
        %v1004 = vadd.f32 %v982, %v992
        %v1005 = vadd.f32 %v983, %v992
        %v1006 = vadd.f32 %v984, %v992
        %v1007 = vadd.f32 %v985, %v992
        %v1008 = vadd.f32 %v986, %v992
        %v1009 = vadd.f32 %v987, %v992
        %v1010 = vmax.f32 %v994, 0.0
        %v1011 = vmax.f32 %v995, 0.0
        %v1012 = vmax.f32 %v996, 0.0
        %v1013 = vmax.f32 %v997, 0.0
        %v1014 = vmax.f32 %v998, 0.0
        %v1015 = vmax.f32 %v999, 0.0
        %v1016 = vmax.f32 %v1000, 0.0
        %v1017 = vmax.f32 %v1001, 0.0
        %v1018 = vmax.f32 %v1002, 0.0
        %v1019 = vmax.f32 %v1003, 0.0
        %v1020 = vmax.f32 %v1004, 0.0
        %v1021 = vmax.f32 %v1005, 0.0
        %v1022 = vmax.f32 %v1006, 0.0
        %v1023 = vmax.f32 %v1007, 0.0
        %v1024 = vmax.f32 %v1008, 0.0
        %v1025 = vmax.f32 %v1009, 0.0
        %vm1026 = vcmask 1045504
        %v1027 = vrot.slane %v190, 2
        %v1028 = vrot.slane %v191, 2
        %v1029 = vsel %vm1026, %v1027, %v1028
        %v1030 = vrot.slane %v192, 2
        %v1031 = vsel %vm1026, %v1028, %v1030
        %v1032 = vrot.slane %v193, 2
        %v1033 = vrot.slane %v194, 2
        %v1034 = vsel %vm1026, %v1032, %v1033
        %v1035 = vrot.slane %v195, 2
        %v1036 = vsel %vm1026, %v1033, %v1035
        %v1037 = vrot.slane %v196, 2
        %v1038 = vrot.slane %v197, 2
        %v1039 = vsel %vm1026, %v1037, %v1038
        %v1040 = vrot.slane %v198, 2
        %v1041 = vsel %vm1026, %v1038, %v1040
        %v1042 = vrot.slane %v199, 2
        %v1043 = vrot.slane %v200, 2
        %v1044 = vsel %vm1026, %v1042, %v1043
        %v1045 = vrot.slane %v201, 2
        %v1046 = vsel %vm1026, %v1043, %v1045
        %v1047 = vrot.slane %v202, 2
        %v1048 = vrot.slane %v203, 2
        %v1049 = vsel %vm1026, %v1047, %v1048
        %v1050 = vrot.slane %v204, 2
        %v1051 = vsel %vm1026, %v1048, %v1050
        %v1052 = vrot.slane %v205, 2
        %v1053 = vrot.slane %v206, 2
        %v1054 = vsel %vm1026, %v1052, %v1053
        %v1055 = vrot.slane %v207, 2
        %v1056 = vsel %vm1026, %v1053, %v1055
        %v1057 = vrot.slane %v208, 2
        %v1058 = vrot.slane %v209, 2
        %v1059 = vsel %vm1026, %v1057, %v1058
        %v1060 = vrot.slane %v210, 2
        %v1061 = vsel %vm1026, %v1058, %v1060
        %v1062 = vrot.slane %v211, 2
        %v1063 = vrot.slane %v212, 2
        %v1064 = vsel %vm1026, %v1062, %v1063
        %v1065 = vrot.slane %v213, 2
        %v1066 = vsel %vm1026, %v1063, %v1065
        %s1067 = scalar_lea.vmem %s1, 64
        %v1068 = vld [vmem:[%s1067] sm:$0xff]
        %v1069 = vld [vmem:[%s1067 + $0x8] sm:$0xff]
        %s1070 = scalar_lea.vmem %s1, 96
        %v1071 = vld [vmem:[%s1070] sm:$0xff]
        %v1072 = vld [vmem:[%s1070 + $0x8] sm:$0xff]
        %1073 = vmatprep.subr.mxu0 0.0
        %1074 = vmatpush1.msra.mxu0 0.0
        %1075 = vmatprep.subr.mxu0 0.0
        %1076 = vmatpush1.msra.mxu0 0.0
        %1077 = vmatprep.subr.mxu0 0.0
        %1078 = vmatpush1.msra.mxu0 0.0
        %1079 = vmatprep.subr.mxu0 0.0
        %1080 = vmatpush1.msra.mxu0 0.0
        %1081 = vmatprep.subr.mxu0 0.0
        %1082 = vmatpush1.msra.mxu0 0.0
        %1083 = vmatprep.subr.mxu0 0.0
        %1084 = vmatpush1.msra.mxu0 0.0
        %1085 = vmatprep.subr.mxu0 0.0
        %1086 = vmatpush1.msra.mxu0 0.0
        %1087 = vmatprep.subr.mxu0 0.0
        %1088 = vmatpush1.msra.mxu0 0.0
        %1089 = vmatprep.subr.mxu0 0.0
        %1090 = vmatpush1.msra.mxu0 0.0
        %1091 = vmatprep.subr.mxu0 0.0
        %1092 = vmatpush1.msra.mxu0 0.0
        %1093 = vmatprep.subr.mxu0 0.0
        %1094 = vmatpush1.msra.mxu0 0.0
        %1095 = vmatprep.subr.mxu0 0.0
        %1096 = vmatpush1.msra.mxu0 0.0
        %1097 = vmatprep.subr.mxu0 0.0
        %1098 = vmatpush1.msra.mxu0 0.0
        %1099 = vmatprep.subr.mxu0 0.0
        %1100 = vmatpush1.msra.mxu0 0.0
        %1101 = vmatprep.subr.mxu0 0.0
        %1102 = vmatpush1.msra.mxu0 %v1072
        %1103 = vmatprep.subr.mxu0 0.0
        %1104 = vmatpush1.msra.mxu0 %v1071
        %1105 = vmatprep.subr.mxu0 0.0
        %1106 = vmatpush2.msra.mxu0 0.0
        %1107 = vmatprep.subr.mxu0 0.0
        %1108 = vmatpush2.msra.mxu0 0.0
        %1109 = vmatprep.subr.mxu0 0.0
        %1110 = vmatpush2.msra.mxu0 0.0
        %1111 = vmatprep.subr.mxu0 0.0
        %1112 = vmatpush2.msra.mxu0 0.0
        %1113 = vmatprep.subr.mxu0 0.0
        %1114 = vmatpush2.msra.mxu0 0.0
        %1115 = vmatprep.subr.mxu0 0.0
        %1116 = vmatpush2.msra.mxu0 0.0
        %1117 = vmatprep.subr.mxu0 0.0
        %1118 = vmatpush2.msra.mxu0 0.0
        %1119 = vmatprep.subr.mxu0 0.0
        %1120 = vmatpush2.msra.mxu0 0.0
        %1121 = vmatprep.subr.mxu0 0.0
        %1122 = vmatpush2.msra.mxu0 0.0
        %1123 = vmatprep.subr.mxu0 0.0
        %1124 = vmatpush2.msra.mxu0 0.0
        %1125 = vmatprep.subr.mxu0 0.0
        %1126 = vmatpush2.msra.mxu0 0.0
        %1127 = vmatprep.subr.mxu0 0.0
        %1128 = vmatpush2.msra.mxu0 0.0
        %1129 = vmatprep.subr.mxu0 0.0
        %1130 = vmatpush2.msra.mxu0 0.0
        %1131 = vmatprep.subr.mxu0 0.0
        %1132 = vmatpush2.msra.mxu0 0.0
        %1133 = vmatprep.subr.mxu0 0.0
        %1134 = vmatpush2.msra.mxu0 0.0
        %1135 = vmatprep.subr.mxu0 0.0
        %1136 = vmatpush2.msra.mxu0 0.0
        %1137 = vmatprep.mubr.f32.mxu0 0.0
        %1138 = vmatmul.mubr.f32.gmra.mxu0 %v467
        %v1139 = vpop.f32.mrf.mxu0
        %v1140 = vadd.f32 0.0, %v1139
        %v1141 = vpop.f32.mrf.mxu0
        %1142 = vmatprep.mubr.f32.mxu0 0.0
        %1143 = vmatmul.mubr.f32.gmra.mxu0 %v469
        %v1144 = vpop.f32.mrf.mxu0
        %v1145 = vadd.f32 0.0, %v1144
        %v1146 = vpop.f32.mrf.mxu0
        %1147 = vmatprep.mubr.f32.mxu0 0.0
        %1148 = vmatmul.mubr.f32.gmra.mxu0 %v471
        %v1149 = vpop.f32.mrf.mxu0
        %v1150 = vadd.f32 0.0, %v1149
        %v1151 = vpop.f32.mrf.mxu0
        %1152 = vmatprep.mubr.f32.mxu0 0.0
        %1153 = vmatmul.mubr.f32.gmra.mxu0 %v473
        %v1154 = vpop.f32.mrf.mxu0
        %v1155 = vadd.f32 0.0, %v1154
        %v1156 = vpop.f32.mrf.mxu0
        %1157 = vmatprep.mubr.f32.mxu0 0.0
        %1158 = vmatmul.mubr.f32.gmra.mxu0 %v475
        %v1159 = vpop.f32.mrf.mxu0
        %v1160 = vadd.f32 0.0, %v1159
        %v1161 = vpop.f32.mrf.mxu0
        %1162 = vmatprep.mubr.f32.mxu0 0.0
        %1163 = vmatmul.mubr.f32.gmra.mxu0 %v477
        %v1164 = vpop.f32.mrf.mxu0
        %v1165 = vadd.f32 0.0, %v1164
        %v1166 = vpop.f32.mrf.mxu0
        %1167 = vmatprep.mubr.f32.mxu0 0.0
        %1168 = vmatmul.mubr.f32.gmra.mxu0 %v479
        %v1169 = vpop.f32.mrf.mxu0
        %v1170 = vadd.f32 0.0, %v1169
        %v1171 = vpop.f32.mrf.mxu0
        %1172 = vmatprep.mubr.f32.mxu0 0.0
        %1173 = vmatmul.mubr.f32.gmra.mxu0 %v481
        %v1174 = vpop.f32.mrf.mxu0
        %v1175 = vadd.f32 0.0, %v1174
        %v1176 = vpop.f32.mrf.mxu0
        %1177 = vmatprep.mubr.f32.mxu0 0.0
        %1178 = vmatmul.mubr.f32.gmra.mxu0 %v483
        %v1179 = vpop.f32.mrf.mxu0
        %v1180 = vadd.f32 0.0, %v1179
        %v1181 = vpop.f32.mrf.mxu0
        %1182 = vmatprep.mubr.f32.mxu0 0.0
        %1183 = vmatmul.mubr.f32.gmra.mxu0 %v485
        %v1184 = vpop.f32.mrf.mxu0
        %v1185 = vadd.f32 0.0, %v1184
        %v1186 = vpop.f32.mrf.mxu0
        %1187 = vmatprep.mubr.f32.mxu0 0.0
        %1188 = vmatmul.mubr.f32.gmra.mxu0 %v487
        %v1189 = vpop.f32.mrf.mxu0
        %v1190 = vadd.f32 0.0, %v1189
        %v1191 = vpop.f32.mrf.mxu0
        %1192 = vmatprep.mubr.f32.mxu0 0.0
        %1193 = vmatmul.mubr.f32.gmra.mxu0 %v489
        %v1194 = vpop.f32.mrf.mxu0
        %v1195 = vadd.f32 0.0, %v1194
        %v1196 = vpop.f32.mrf.mxu0
        %1197 = vmatprep.mubr.f32.mxu0 0.0
        %1198 = vmatmul.mubr.f32.gmra.mxu0 %v491
        %v1199 = vpop.f32.mrf.mxu0
        %v1200 = vadd.f32 0.0, %v1199
        %v1201 = vpop.f32.mrf.mxu0
        %1202 = vmatprep.mubr.f32.mxu0 0.0
        %1203 = vmatmul.mubr.f32.gmra.mxu0 %v493
        %v1204 = vpop.f32.mrf.mxu0
        %v1205 = vadd.f32 0.0, %v1204
        %v1206 = vpop.f32.mrf.mxu0
        %1207 = vmatprep.mubr.f32.mxu0 0.0
        %1208 = vmatmul.mubr.f32.gmra.mxu0 %v495
        %v1209 = vpop.f32.mrf.mxu0
        %v1210 = vadd.f32 0.0, %v1209
        %v1211 = vpop.f32.mrf.mxu0
        %1212 = vmatprep.mubr.f32.mxu0 0.0
        %1213 = vmatmul.mubr.f32.gmra.mxu0 %v497
        %v1214 = vpop.f32.mrf.mxu0
        %v1215 = vadd.f32 0.0, %v1214
        %v1216 = vpop.f32.mrf.mxu0
        %1217 = vdwg.mxu0
        %v1218 = vsel %vm289, %v1029, 0
        %v1220 = vsel %vm289, %v1031, 0
        %v1222 = vsel %vm289, %v1034, 0
        %v1224 = vsel %vm289, %v1036, 0
        %v1226 = vsel %vm289, %v1039, 0
        %v1228 = vsel %vm289, %v1041, 0
        %v1230 = vsel %vm289, %v1044, 0
        %v1232 = vsel %vm289, %v1046, 0
        %v1234 = vsel %vm289, %v1049, 0
        %v1236 = vsel %vm289, %v1051, 0
        %v1238 = vsel %vm289, %v1054, 0
        %v1240 = vsel %vm289, %v1056, 0
        %v1242 = vsel %vm289, %v1059, 0
        %v1244 = vsel %vm289, %v1061, 0
        %v1246 = vsel %vm289, %v1064, 0
        %v1248 = vsel %vm289, %v1066, 0
        %1250 = vmatprep.subr.mxu0 0.0
        %1251 = vmatpush1.msra.mxu0 0.0
        %1252 = vmatprep.subr.mxu0 0.0
        %1253 = vmatpush1.msra.mxu0 0.0
        %1254 = vmatprep.subr.mxu0 0.0
        %1255 = vmatpush1.msra.mxu0 0.0
        %1256 = vmatprep.subr.mxu0 0.0
        %1257 = vmatpush1.msra.mxu0 0.0
        %1258 = vmatprep.subr.mxu0 0.0
        %1259 = vmatpush1.msra.mxu0 0.0
        %1260 = vmatprep.subr.mxu0 0.0
        %1261 = vmatpush1.msra.mxu0 0.0
        %1262 = vmatprep.subr.mxu0 0.0
        %1263 = vmatpush1.msra.mxu0 0.0
        %1264 = vmatprep.subr.mxu0 0.0
        %1265 = vmatpush1.msra.mxu0 0.0
        %1266 = vmatprep.subr.mxu0 0.0
        %1267 = vmatpush1.msra.mxu0 0.0
        %1268 = vmatprep.subr.mxu0 0.0
        %1269 = vmatpush1.msra.mxu0 0.0
        %1270 = vmatprep.subr.mxu0 0.0
        %1271 = vmatpush1.msra.mxu0 0.0
        %1272 = vmatprep.subr.mxu0 0.0
        %1273 = vmatpush1.msra.mxu0 0.0
        %1274 = vmatprep.subr.mxu0 0.0
        %1275 = vmatpush1.msra.mxu0 0.0
        %1276 = vmatprep.subr.mxu0 0.0
        %1277 = vmatpush1.msra.mxu0 0.0
        %1278 = vmatprep.subr.mxu0 0.0
        %1279 = vmatpush1.msra.mxu0 %v1069
        %1280 = vmatprep.subr.mxu0 0.0
        %1281 = vmatpush1.msra.mxu0 %v1068
        %1282 = vmatprep.subr.mxu0 0.0
        %1283 = vmatpush2.msra.mxu0 0.0
        %1284 = vmatprep.subr.mxu0 0.0
        %1285 = vmatpush2.msra.mxu0 0.0
        %1286 = vmatprep.subr.mxu0 0.0
        %1287 = vmatpush2.msra.mxu0 0.0
        %1288 = vmatprep.subr.mxu0 0.0
        %1289 = vmatpush2.msra.mxu0 0.0
        %1290 = vmatprep.subr.mxu0 0.0
        %1291 = vmatpush2.msra.mxu0 0.0
        %1292 = vmatprep.subr.mxu0 0.0
        %1293 = vmatpush2.msra.mxu0 0.0
        %1294 = vmatprep.subr.mxu0 0.0
        %1295 = vmatpush2.msra.mxu0 0.0
        %1296 = vmatprep.subr.mxu0 0.0
        %1297 = vmatpush2.msra.mxu0 0.0
        %1298 = vmatprep.subr.mxu0 0.0
        %1299 = vmatpush2.msra.mxu0 0.0
        %1300 = vmatprep.subr.mxu0 0.0
        %1301 = vmatpush2.msra.mxu0 0.0
        %1302 = vmatprep.subr.mxu0 0.0
        %1303 = vmatpush2.msra.mxu0 0.0
        %1304 = vmatprep.subr.mxu0 0.0
        %1305 = vmatpush2.msra.mxu0 0.0
        %1306 = vmatprep.subr.mxu0 0.0
        %1307 = vmatpush2.msra.mxu0 0.0
        %1308 = vmatprep.subr.mxu0 0.0
        %1309 = vmatpush2.msra.mxu0 0.0
        %1310 = vmatprep.subr.mxu0 0.0
        %1311 = vmatpush2.msra.mxu0 0.0
        %1312 = vmatprep.subr.mxu0 0.0
        %1313 = vmatpush2.msra.mxu0 0.0
        %1314 = vmatprep.mubr.f32.mxu0 0.0
        %1315 = vmatmul.mubr.f32.gmra.mxu0 %v1218
        %v1316 = vpop.f32.mrf.mxu0
        %v1317 = vadd.f32 %v1140, %v1316
        %v1318 = vpop.f32.mrf.mxu0
        %1319 = vmatprep.mubr.f32.mxu0 0.0
        %1320 = vmatmul.mubr.f32.gmra.mxu0 %v1220
        %v1321 = vpop.f32.mrf.mxu0
        %v1322 = vadd.f32 %v1145, %v1321
        %v1323 = vpop.f32.mrf.mxu0
        %1324 = vmatprep.mubr.f32.mxu0 0.0
        %1325 = vmatmul.mubr.f32.gmra.mxu0 %v1222
        %v1326 = vpop.f32.mrf.mxu0
        %v1327 = vadd.f32 %v1150, %v1326
        %v1328 = vpop.f32.mrf.mxu0
        %1329 = vmatprep.mubr.f32.mxu0 0.0
        %1330 = vmatmul.mubr.f32.gmra.mxu0 %v1224
        %v1331 = vpop.f32.mrf.mxu0
        %v1332 = vadd.f32 %v1155, %v1331
        %v1333 = vpop.f32.mrf.mxu0
        %1334 = vmatprep.mubr.f32.mxu0 0.0
        %1335 = vmatmul.mubr.f32.gmra.mxu0 %v1226
        %v1336 = vpop.f32.mrf.mxu0
        %v1337 = vadd.f32 %v1160, %v1336
        %v1338 = vpop.f32.mrf.mxu0
        %1339 = vmatprep.mubr.f32.mxu0 0.0
        %1340 = vmatmul.mubr.f32.gmra.mxu0 %v1228
        %v1341 = vpop.f32.mrf.mxu0
        %v1342 = vadd.f32 %v1165, %v1341
        %v1343 = vpop.f32.mrf.mxu0
        %1344 = vmatprep.mubr.f32.mxu0 0.0
        %1345 = vmatmul.mubr.f32.gmra.mxu0 %v1230
        %v1346 = vpop.f32.mrf.mxu0
        %v1347 = vadd.f32 %v1170, %v1346
        %v1348 = vpop.f32.mrf.mxu0
        %1349 = vmatprep.mubr.f32.mxu0 0.0
        %1350 = vmatmul.mubr.f32.gmra.mxu0 %v1232
        %v1351 = vpop.f32.mrf.mxu0
        %v1352 = vadd.f32 %v1175, %v1351
        %v1353 = vpop.f32.mrf.mxu0
        %1354 = vmatprep.mubr.f32.mxu0 0.0
        %1355 = vmatmul.mubr.f32.gmra.mxu0 %v1234
        %v1356 = vpop.f32.mrf.mxu0
        %v1357 = vadd.f32 %v1180, %v1356
        %v1358 = vpop.f32.mrf.mxu0
        %1359 = vmatprep.mubr.f32.mxu0 0.0
        %1360 = vmatmul.mubr.f32.gmra.mxu0 %v1236
        %v1361 = vpop.f32.mrf.mxu0
        %v1362 = vadd.f32 %v1185, %v1361
        %v1363 = vpop.f32.mrf.mxu0
        %1364 = vmatprep.mubr.f32.mxu0 0.0
        %1365 = vmatmul.mubr.f32.gmra.mxu0 %v1238
        %v1366 = vpop.f32.mrf.mxu0
        %v1367 = vadd.f32 %v1190, %v1366
        %v1368 = vpop.f32.mrf.mxu0
        %1369 = vmatprep.mubr.f32.mxu0 0.0
        %1370 = vmatmul.mubr.f32.gmra.mxu0 %v1240
        %v1371 = vpop.f32.mrf.mxu0
        %v1372 = vadd.f32 %v1195, %v1371
        %v1373 = vpop.f32.mrf.mxu0
        %1374 = vmatprep.mubr.f32.mxu0 0.0
        %1375 = vmatmul.mubr.f32.gmra.mxu0 %v1242
        %v1376 = vpop.f32.mrf.mxu0
        %v1377 = vadd.f32 %v1200, %v1376
        %v1378 = vpop.f32.mrf.mxu0
        %1379 = vmatprep.mubr.f32.mxu0 0.0
        %1380 = vmatmul.mubr.f32.gmra.mxu0 %v1244
        %v1381 = vpop.f32.mrf.mxu0
        %v1382 = vadd.f32 %v1205, %v1381
        %v1383 = vpop.f32.mrf.mxu0
        %1384 = vmatprep.mubr.f32.mxu0 0.0
        %1385 = vmatmul.mubr.f32.gmra.mxu0 %v1246
        %v1386 = vpop.f32.mrf.mxu0
        %v1387 = vadd.f32 %v1210, %v1386
        %v1388 = vpop.f32.mrf.mxu0
        %1389 = vmatprep.mubr.f32.mxu0 0.0
        %1390 = vmatmul.mubr.f32.gmra.mxu0 %v1248
        %v1391 = vpop.f32.mrf.mxu0
        %v1392 = vadd.f32 %v1215, %v1391
        %v1393 = vpop.f32.mrf.mxu0
        %1394 = vdwg.mxu0
        %v1395 = vrot.slane %v187, 2
        %v1396 = vrot.slane %v188, 2
        %v1397 = vsel %vm1026, %v1395, %v1396
        %v1398 = vrot.slane %v189, 2
        %v1399 = vsel %vm1026, %v1396, %v1398
        %s1400 = scalar_lea.vmem %s1, 192
        %v1401 = vld [vmem:[%s1400] sm:$0xff]
        %v1402 = vld [vmem:[%s1400 + $0x8] sm:$0xff]
        %v1403 = vsel %vm289, %v1397, 0
        %v1405 = vsel %vm289, %v1399, 0
        %1407 = vmatprep.subr.mxu0 0.0
        %1408 = vmatpush1.msra.mxu0 0.0
        %1409 = vmatprep.subr.mxu0 0.0
        %1410 = vmatpush1.msra.mxu0 0.0
        %1411 = vmatprep.subr.mxu0 0.0
        %1412 = vmatpush1.msra.mxu0 0.0
        %1413 = vmatprep.subr.mxu0 0.0
        %1414 = vmatpush1.msra.mxu0 0.0
        %1415 = vmatprep.subr.mxu0 0.0
        %1416 = vmatpush1.msra.mxu0 0.0
        %1417 = vmatprep.subr.mxu0 0.0
        %1418 = vmatpush1.msra.mxu0 0.0
        %1419 = vmatprep.subr.mxu0 0.0
        %1420 = vmatpush1.msra.mxu0 0.0
        %1421 = vmatprep.subr.mxu0 0.0
        %1422 = vmatpush1.msra.mxu0 0.0
        %1423 = vmatprep.subr.mxu0 0.0
        %1424 = vmatpush1.msra.mxu0 0.0
        %1425 = vmatprep.subr.mxu0 0.0
        %1426 = vmatpush1.msra.mxu0 0.0
        %1427 = vmatprep.subr.mxu0 0.0
        %1428 = vmatpush1.msra.mxu0 0.0
        %1429 = vmatprep.subr.mxu0 0.0
        %1430 = vmatpush1.msra.mxu0 0.0
        %1431 = vmatprep.subr.mxu0 0.0
        %1432 = vmatpush1.msra.mxu0 0.0
        %1433 = vmatprep.subr.mxu0 0.0
        %1434 = vmatpush1.msra.mxu0 0.0
        %1435 = vmatprep.subr.mxu0 0.0
        %1436 = vmatpush1.msra.mxu0 %v1402
        %1437 = vmatprep.subr.mxu0 0.0
        %1438 = vmatpush1.msra.mxu0 %v1401
        %1439 = vmatprep.subr.mxu0 0.0
        %1440 = vmatpush2.msra.mxu0 0.0
        %1441 = vmatprep.subr.mxu0 0.0
        %1442 = vmatpush2.msra.mxu0 0.0
        %1443 = vmatprep.subr.mxu0 0.0
        %1444 = vmatpush2.msra.mxu0 0.0
        %1445 = vmatprep.subr.mxu0 0.0
        %1446 = vmatpush2.msra.mxu0 0.0
        %1447 = vmatprep.subr.mxu0 0.0
        %1448 = vmatpush2.msra.mxu0 0.0
        %1449 = vmatprep.subr.mxu0 0.0
        %1450 = vmatpush2.msra.mxu0 0.0
        %1451 = vmatprep.subr.mxu0 0.0
        %1452 = vmatpush2.msra.mxu0 0.0
        %1453 = vmatprep.subr.mxu0 0.0
        %1454 = vmatpush2.msra.mxu0 0.0
        %1455 = vmatprep.subr.mxu0 0.0
        %1456 = vmatpush2.msra.mxu0 0.0
        %1457 = vmatprep.subr.mxu0 0.0
        %1458 = vmatpush2.msra.mxu0 0.0
        %1459 = vmatprep.subr.mxu0 0.0
        %1460 = vmatpush2.msra.mxu0 0.0
        %1461 = vmatprep.subr.mxu0 0.0
        %1462 = vmatpush2.msra.mxu0 0.0
        %1463 = vmatprep.subr.mxu0 0.0
        %1464 = vmatpush2.msra.mxu0 0.0
        %1465 = vmatprep.subr.mxu0 0.0
        %1466 = vmatpush2.msra.mxu0 0.0
        %1467 = vmatprep.subr.mxu0 0.0
        %1468 = vmatpush2.msra.mxu0 0.0
        %1469 = vmatprep.subr.mxu0 0.0
        %1470 = vmatpush2.msra.mxu0 0.0
        %1471 = vmatprep.mubr.f32.mxu0 0.0
        %1472 = vmatmul.mubr.f32.gmra.mxu0 %v1403
        %v1473 = vpop.f32.mrf.mxu0
        %v1474 = vadd.f32 0.0, %v1473
        %v1475 = vpop.f32.mrf.mxu0
        %1476 = vmatprep.mubr.f32.mxu0 0.0
        %1477 = vmatmul.mubr.f32.gmra.mxu0 %v1405
        %v1478 = vpop.f32.mrf.mxu0
        %v1479 = vadd.f32 0.0, %v1478
        %v1480 = vpop.f32.mrf.mxu0
        %1481 = vmatprep.mubr.f32.mxu0 0.0
        %1482 = vmatmul.mubr.f32.gmra.mxu0 %v1218
        %v1483 = vpop.f32.mrf.mxu0
        %v1484 = vadd.f32 0.0, %v1483
        %v1485 = vpop.f32.mrf.mxu0
        %1486 = vmatprep.mubr.f32.mxu0 0.0
        %1487 = vmatmul.mubr.f32.gmra.mxu0 %v1220
        %v1488 = vpop.f32.mrf.mxu0
        %v1489 = vadd.f32 0.0, %v1488
        %v1490 = vpop.f32.mrf.mxu0
        %1491 = vmatprep.mubr.f32.mxu0 0.0
        %1492 = vmatmul.mubr.f32.gmra.mxu0 %v1222
        %v1493 = vpop.f32.mrf.mxu0
        %v1494 = vadd.f32 0.0, %v1493
        %v1495 = vpop.f32.mrf.mxu0
        %1496 = vmatprep.mubr.f32.mxu0 0.0
        %1497 = vmatmul.mubr.f32.gmra.mxu0 %v1224
        %v1498 = vpop.f32.mrf.mxu0
        %v1499 = vadd.f32 0.0, %v1498
        %v1500 = vpop.f32.mrf.mxu0
        %1501 = vmatprep.mubr.f32.mxu0 0.0
        %1502 = vmatmul.mubr.f32.gmra.mxu0 %v1226
        %v1503 = vpop.f32.mrf.mxu0
        %v1504 = vadd.f32 0.0, %v1503
        %v1505 = vpop.f32.mrf.mxu0
        %1506 = vmatprep.mubr.f32.mxu0 0.0
        %1507 = vmatmul.mubr.f32.gmra.mxu0 %v1228
        %v1508 = vpop.f32.mrf.mxu0
        %v1509 = vadd.f32 0.0, %v1508
        %v1510 = vpop.f32.mrf.mxu0
        %1511 = vmatprep.mubr.f32.mxu0 0.0
        %1512 = vmatmul.mubr.f32.gmra.mxu0 %v1230
        %v1513 = vpop.f32.mrf.mxu0
        %v1514 = vadd.f32 0.0, %v1513
        %v1515 = vpop.f32.mrf.mxu0
        %1516 = vmatprep.mubr.f32.mxu0 0.0
        %1517 = vmatmul.mubr.f32.gmra.mxu0 %v1232
        %v1518 = vpop.f32.mrf.mxu0
        %v1519 = vadd.f32 0.0, %v1518
        %v1520 = vpop.f32.mrf.mxu0
        %1521 = vmatprep.mubr.f32.mxu0 0.0
        %1522 = vmatmul.mubr.f32.gmra.mxu0 %v1234
        %v1523 = vpop.f32.mrf.mxu0
        %v1524 = vadd.f32 0.0, %v1523
        %v1525 = vpop.f32.mrf.mxu0
        %1526 = vmatprep.mubr.f32.mxu0 0.0
        %1527 = vmatmul.mubr.f32.gmra.mxu0 %v1236
        %v1528 = vpop.f32.mrf.mxu0
        %v1529 = vadd.f32 0.0, %v1528
        %v1530 = vpop.f32.mrf.mxu0
        %1531 = vmatprep.mubr.f32.mxu0 0.0
        %1532 = vmatmul.mubr.f32.gmra.mxu0 %v1238
        %v1533 = vpop.f32.mrf.mxu0
        %v1534 = vadd.f32 0.0, %v1533
        %v1535 = vpop.f32.mrf.mxu0
        %1536 = vmatprep.mubr.f32.mxu0 0.0
        %1537 = vmatmul.mubr.f32.gmra.mxu0 %v1240
        %v1538 = vpop.f32.mrf.mxu0
        %v1539 = vadd.f32 0.0, %v1538
        %v1540 = vpop.f32.mrf.mxu0
        %1541 = vmatprep.mubr.f32.mxu0 0.0
        %1542 = vmatmul.mubr.f32.gmra.mxu0 %v1242
        %v1543 = vpop.f32.mrf.mxu0
        %v1544 = vadd.f32 0.0, %v1543
        %v1545 = vpop.f32.mrf.mxu0
        %1546 = vmatprep.mubr.f32.mxu0 0.0
        %1547 = vmatmul.mubr.f32.gmra.mxu0 %v1244
        %v1548 = vpop.f32.mrf.mxu0
        %v1549 = vadd.f32 0.0, %v1548
        %v1550 = vpop.f32.mrf.mxu0
        %1551 = vdwg.mxu0
        %v1552 = vadd.f32 %v1317, %v1474
        %v1553 = vadd.f32 %v1322, %v1479
        %v1554 = vadd.f32 %v1327, %v1484
        %v1555 = vadd.f32 %v1332, %v1489
        %v1556 = vadd.f32 %v1337, %v1494
        %v1557 = vadd.f32 %v1342, %v1499
        %v1558 = vadd.f32 %v1347, %v1504
        %v1559 = vadd.f32 %v1352, %v1509
        %v1560 = vadd.f32 %v1357, %v1514
        %v1561 = vadd.f32 %v1362, %v1519
        %v1562 = vadd.f32 %v1367, %v1524
        %v1563 = vadd.f32 %v1372, %v1529
        %v1564 = vadd.f32 %v1377, %v1534
        %v1565 = vadd.f32 %v1382, %v1539
        %v1566 = vadd.f32 %v1387, %v1544
        %v1567 = vadd.f32 %v1392, %v1549
        %s1568 = scalar_lea.vmem %s1, 224
        %v1569 = vld [vmem:[%s1568] sm:$0xff]
        %v1570 = vld [vmem:[%s1568 + $0x8] sm:$0xff]
        %1571 = vmatprep.subr.mxu0 0.0
        %1572 = vmatpush1.msra.mxu0 0.0
        %1573 = vmatprep.subr.mxu0 0.0
        %1574 = vmatpush1.msra.mxu0 0.0
        %1575 = vmatprep.subr.mxu0 0.0
        %1576 = vmatpush1.msra.mxu0 0.0
        %1577 = vmatprep.subr.mxu0 0.0
        %1578 = vmatpush1.msra.mxu0 0.0
        %1579 = vmatprep.subr.mxu0 0.0
        %1580 = vmatpush1.msra.mxu0 0.0
        %1581 = vmatprep.subr.mxu0 0.0
        %1582 = vmatpush1.msra.mxu0 0.0
        %1583 = vmatprep.subr.mxu0 0.0
        %1584 = vmatpush1.msra.mxu0 0.0
        %1585 = vmatprep.subr.mxu0 0.0
        %1586 = vmatpush1.msra.mxu0 0.0
        %1587 = vmatprep.subr.mxu0 0.0
        %1588 = vmatpush1.msra.mxu0 0.0
        %1589 = vmatprep.subr.mxu0 0.0
        %1590 = vmatpush1.msra.mxu0 0.0
        %1591 = vmatprep.subr.mxu0 0.0
        %1592 = vmatpush1.msra.mxu0 0.0
        %1593 = vmatprep.subr.mxu0 0.0
        %1594 = vmatpush1.msra.mxu0 0.0
        %1595 = vmatprep.subr.mxu0 0.0
        %1596 = vmatpush1.msra.mxu0 0.0
        %1597 = vmatprep.subr.mxu0 0.0
        %1598 = vmatpush1.msra.mxu0 0.0
        %1599 = vmatprep.subr.mxu0 0.0
        %1600 = vmatpush1.msra.mxu0 %v1570
        %1601 = vmatprep.subr.mxu0 0.0
        %1602 = vmatpush1.msra.mxu0 %v1569
        %1603 = vmatprep.subr.mxu0 0.0
        %1604 = vmatpush2.msra.mxu0 0.0
        %1605 = vmatprep.subr.mxu0 0.0
        %1606 = vmatpush2.msra.mxu0 0.0
        %1607 = vmatprep.subr.mxu0 0.0
        %1608 = vmatpush2.msra.mxu0 0.0
        %1609 = vmatprep.subr.mxu0 0.0
        %1610 = vmatpush2.msra.mxu0 0.0
        %1611 = vmatprep.subr.mxu0 0.0
        %1612 = vmatpush2.msra.mxu0 0.0
        %1613 = vmatprep.subr.mxu0 0.0
        %1614 = vmatpush2.msra.mxu0 0.0
        %1615 = vmatprep.subr.mxu0 0.0
        %1616 = vmatpush2.msra.mxu0 0.0
        %1617 = vmatprep.subr.mxu0 0.0
        %1618 = vmatpush2.msra.mxu0 0.0
        %1619 = vmatprep.subr.mxu0 0.0
        %1620 = vmatpush2.msra.mxu0 0.0
        %1621 = vmatprep.subr.mxu0 0.0
        %1622 = vmatpush2.msra.mxu0 0.0
        %1623 = vmatprep.subr.mxu0 0.0
        %1624 = vmatpush2.msra.mxu0 0.0
        %1625 = vmatprep.subr.mxu0 0.0
        %1626 = vmatpush2.msra.mxu0 0.0
        %1627 = vmatprep.subr.mxu0 0.0
        %1628 = vmatpush2.msra.mxu0 0.0
        %1629 = vmatprep.subr.mxu0 0.0
        %1630 = vmatpush2.msra.mxu0 0.0
        %1631 = vmatprep.subr.mxu0 0.0
        %1632 = vmatpush2.msra.mxu0 0.0
        %1633 = vmatprep.subr.mxu0 0.0
        %1634 = vmatpush2.msra.mxu0 0.0
        %1635 = vmatprep.mubr.f32.mxu0 0.0
        %1636 = vmatmul.mubr.f32.gmra.mxu0 %v655
        %v1637 = vpop.f32.mrf.mxu0
        %v1638 = vadd.f32 0.0, %v1637
        %v1639 = vpop.f32.mrf.mxu0
        %1640 = vmatprep.mubr.f32.mxu0 0.0
        %1641 = vmatmul.mubr.f32.gmra.mxu0 %v657
        %v1642 = vpop.f32.mrf.mxu0
        %v1643 = vadd.f32 0.0, %v1642
        %v1644 = vpop.f32.mrf.mxu0
        %1645 = vmatprep.mubr.f32.mxu0 0.0
        %1646 = vmatmul.mubr.f32.gmra.mxu0 %v467
        %v1647 = vpop.f32.mrf.mxu0
        %v1648 = vadd.f32 0.0, %v1647
        %v1649 = vpop.f32.mrf.mxu0
        %1650 = vmatprep.mubr.f32.mxu0 0.0
        %1651 = vmatmul.mubr.f32.gmra.mxu0 %v469
        %v1652 = vpop.f32.mrf.mxu0
        %v1653 = vadd.f32 0.0, %v1652
        %v1654 = vpop.f32.mrf.mxu0
        %1655 = vmatprep.mubr.f32.mxu0 0.0
        %1656 = vmatmul.mubr.f32.gmra.mxu0 %v471
        %v1657 = vpop.f32.mrf.mxu0
        %v1658 = vadd.f32 0.0, %v1657
        %v1659 = vpop.f32.mrf.mxu0
        %1660 = vmatprep.mubr.f32.mxu0 0.0
        %1661 = vmatmul.mubr.f32.gmra.mxu0 %v473
        %v1662 = vpop.f32.mrf.mxu0
        %v1663 = vadd.f32 0.0, %v1662
        %v1664 = vpop.f32.mrf.mxu0
        %1665 = vmatprep.mubr.f32.mxu0 0.0
        %1666 = vmatmul.mubr.f32.gmra.mxu0 %v475
        %v1667 = vpop.f32.mrf.mxu0
        %v1668 = vadd.f32 0.0, %v1667
        %v1669 = vpop.f32.mrf.mxu0
        %1670 = vmatprep.mubr.f32.mxu0 0.0
        %1671 = vmatmul.mubr.f32.gmra.mxu0 %v477
        %v1672 = vpop.f32.mrf.mxu0
        %v1673 = vadd.f32 0.0, %v1672
        %v1674 = vpop.f32.mrf.mxu0
        %1675 = vmatprep.mubr.f32.mxu0 0.0
        %1676 = vmatmul.mubr.f32.gmra.mxu0 %v479
        %v1677 = vpop.f32.mrf.mxu0
        %v1678 = vadd.f32 0.0, %v1677
        %v1679 = vpop.f32.mrf.mxu0
        %1680 = vmatprep.mubr.f32.mxu0 0.0
        %1681 = vmatmul.mubr.f32.gmra.mxu0 %v481
        %v1682 = vpop.f32.mrf.mxu0
        %v1683 = vadd.f32 0.0, %v1682
        %v1684 = vpop.f32.mrf.mxu0
        %1685 = vmatprep.mubr.f32.mxu0 0.0
        %1686 = vmatmul.mubr.f32.gmra.mxu0 %v483
        %v1687 = vpop.f32.mrf.mxu0
        %v1688 = vadd.f32 0.0, %v1687
        %v1689 = vpop.f32.mrf.mxu0
        %1690 = vmatprep.mubr.f32.mxu0 0.0
        %1691 = vmatmul.mubr.f32.gmra.mxu0 %v485
        %v1692 = vpop.f32.mrf.mxu0
        %v1693 = vadd.f32 0.0, %v1692
        %v1694 = vpop.f32.mrf.mxu0
        %1695 = vmatprep.mubr.f32.mxu0 0.0
        %1696 = vmatmul.mubr.f32.gmra.mxu0 %v487
        %v1697 = vpop.f32.mrf.mxu0
        %v1698 = vadd.f32 0.0, %v1697
        %v1699 = vpop.f32.mrf.mxu0
        %1700 = vmatprep.mubr.f32.mxu0 0.0
        %1701 = vmatmul.mubr.f32.gmra.mxu0 %v489
        %v1702 = vpop.f32.mrf.mxu0
        %v1703 = vadd.f32 0.0, %v1702
        %v1704 = vpop.f32.mrf.mxu0
        %1705 = vmatprep.mubr.f32.mxu0 0.0
        %1706 = vmatmul.mubr.f32.gmra.mxu0 %v491
        %v1707 = vpop.f32.mrf.mxu0
        %v1708 = vadd.f32 0.0, %v1707
        %v1709 = vpop.f32.mrf.mxu0
        %1710 = vmatprep.mubr.f32.mxu0 0.0
        %1711 = vmatmul.mubr.f32.gmra.mxu0 %v493
        %v1712 = vpop.f32.mrf.mxu0
        %v1713 = vadd.f32 0.0, %v1712
        %v1714 = vpop.f32.mrf.mxu0
        %1715 = vdwg.mxu0
        %v1716 = vadd.f32 %v1552, %v1638
        %v1717 = vadd.f32 %v1553, %v1643
        %v1718 = vadd.f32 %v1554, %v1648
        %v1719 = vadd.f32 %v1555, %v1653
        %v1720 = vadd.f32 %v1556, %v1658
        %v1721 = vadd.f32 %v1557, %v1663
        %v1722 = vadd.f32 %v1558, %v1668
        %v1723 = vadd.f32 %v1559, %v1673
        %v1724 = vadd.f32 %v1560, %v1678
        %v1725 = vadd.f32 %v1561, %v1683
        %v1726 = vadd.f32 %v1562, %v1688
        %v1727 = vadd.f32 %v1563, %v1693
        %v1728 = vadd.f32 %v1564, %v1698
        %v1729 = vadd.f32 %v1565, %v1703
        %v1730 = vadd.f32 %v1566, %v1708
        %v1731 = vadd.f32 %v1567, %v1713
        %v1732 = vadd.f32 %v1716, %v992
        %v1733 = vadd.f32 %v1717, %v992
        %v1734 = vadd.f32 %v1718, %v992
        %v1735 = vadd.f32 %v1719, %v992
        %v1736 = vadd.f32 %v1720, %v992
        %v1737 = vadd.f32 %v1721, %v992
        %v1738 = vadd.f32 %v1722, %v992
        %v1739 = vadd.f32 %v1723, %v992
        %v1740 = vadd.f32 %v1724, %v992
        %v1741 = vadd.f32 %v1725, %v992
        %v1742 = vadd.f32 %v1726, %v992
        %v1743 = vadd.f32 %v1727, %v992
        %v1744 = vadd.f32 %v1728, %v992
        %v1745 = vadd.f32 %v1729, %v992
        %v1746 = vadd.f32 %v1730, %v992
        %v1747 = vadd.f32 %v1731, %v992
        %v1748 = vmax.f32 %v1732, 0.0
        %v1749 = vmax.f32 %v1733, 0.0
        %v1750 = vmax.f32 %v1734, 0.0
        %v1751 = vmax.f32 %v1735, 0.0
        %v1752 = vmax.f32 %v1736, 0.0
        %v1753 = vmax.f32 %v1737, 0.0
        %v1754 = vmax.f32 %v1738, 0.0
        %v1755 = vmax.f32 %v1739, 0.0
        %v1756 = vmax.f32 %v1740, 0.0
        %v1757 = vmax.f32 %v1741, 0.0
        %v1758 = vmax.f32 %v1742, 0.0
        %v1759 = vmax.f32 %v1743, 0.0
        %v1760 = vmax.f32 %v1744, 0.0
        %v1761 = vmax.f32 %v1745, 0.0
        %v1762 = vmax.f32 %v1746, 0.0
        %v1763 = vmax.f32 %v1747, 0.0
        %v1780 = vcombine.high %v1010, %v1010
        %v1782 = vunpack.c.l.s4 1966171168
        %v1783 = vunpack.c.0.s8 %v1782
        %v1784 = vlaneseq
        %v1785 = vshrl.u32 %v1784, 7
        %v1786 = vsub.s32 %v1783, %v1785
        %v1787 = vrot.slane %v1010, %v1786
        %v1789 = vunpack.c.l.s4 1966171168
        %v1790 = vunpack.c.0.s8 %v1789
        %v1791 = vlaneseq
        %v1792 = vshrl.u32 %v1791, 7
        %v1793 = vsub.s32 %v1790, %v1792
        %v1794 = vrot.slane %v1780, %v1793
        %v1795 = vcombine.high %v1787, %v1787
        %v1796 = vcombine.high %v1794, %v1794
        %v1798 = vunpack.c.l.s4 1966171168
        %v1799 = vunpack.c.0.s8 %v1798
        %v1800 = vlaneseq
        %v1801 = vshrl.u32 %v1800, 7
        %v1802 = vsub.s32 %v1799, %v1801
        %v1803 = vrot.slane %v1787, %v1802
        %v1805 = vunpack.c.l.s4 1966171168
        %v1806 = vunpack.c.0.s8 %v1805
        %v1807 = vlaneseq
        %v1808 = vshrl.u32 %v1807, 7
        %v1809 = vsub.s32 %v1806, %v1808
        %v1810 = vrot.slane %v1794, %v1809
        %v1812 = vunpack.c.l.s4 1966171168
        %v1813 = vunpack.c.0.s8 %v1812
        %v1814 = vlaneseq
        %v1815 = vshrl.u32 %v1814, 7
        %v1816 = vsub.s32 %v1813, %v1815
        %v1817 = vrot.slane %v1795, %v1816
        %v1819 = vunpack.c.l.s4 1966171168
        %v1820 = vunpack.c.0.s8 %v1819
        %v1821 = vlaneseq
        %v1822 = vshrl.u32 %v1821, 7
        %v1823 = vsub.s32 %v1820, %v1822
        %v1824 = vrot.slane %v1796, %v1823
        %v1825 = vcombine.high %v1803, %v1803
        %v1826 = vcombine.high %v1810, %v1810
        %v1827 = vcombine.high %v1817, %v1817
        %v1828 = vcombine.high %v1824, %v1824
        %v1829 = vcombine.high %v1011, %v1011
        %v1831 = vunpack.c.l.s4 1966171168
        %v1832 = vunpack.c.0.s8 %v1831
        %v1833 = vlaneseq
        %v1834 = vshrl.u32 %v1833, 7
        %v1835 = vsub.s32 %v1832, %v1834
        %v1836 = vrot.slane %v1011, %v1835
        %v1838 = vunpack.c.l.s4 1966171168
        %v1839 = vunpack.c.0.s8 %v1838
        %v1840 = vlaneseq
        %v1841 = vshrl.u32 %v1840, 7
        %v1842 = vsub.s32 %v1839, %v1841
        %v1843 = vrot.slane %v1829, %v1842
        %v1844 = vcombine.high %v1836, %v1836
        %v1845 = vcombine.high %v1843, %v1843
        %v1847 = vunpack.c.l.s4 1966171168
        %v1848 = vunpack.c.0.s8 %v1847
        %v1849 = vlaneseq
        %v1850 = vshrl.u32 %v1849, 7
        %v1851 = vsub.s32 %v1848, %v1850
        %v1852 = vrot.slane %v1836, %v1851
        %v1854 = vunpack.c.l.s4 1966171168
        %v1855 = vunpack.c.0.s8 %v1854
        %v1856 = vlaneseq
        %v1857 = vshrl.u32 %v1856, 7
        %v1858 = vsub.s32 %v1855, %v1857
        %v1859 = vrot.slane %v1843, %v1858
        %v1861 = vunpack.c.l.s4 1966171168
        %v1862 = vunpack.c.0.s8 %v1861
        %v1863 = vlaneseq
        %v1864 = vshrl.u32 %v1863, 7
        %v1865 = vsub.s32 %v1862, %v1864
        %v1866 = vrot.slane %v1844, %v1865
        %v1868 = vunpack.c.l.s4 1966171168
        %v1869 = vunpack.c.0.s8 %v1868
        %v1870 = vlaneseq
        %v1871 = vshrl.u32 %v1870, 7
        %v1872 = vsub.s32 %v1869, %v1871
        %v1873 = vrot.slane %v1845, %v1872
        %v1874 = vcombine.high %v1852, %v1852
        %v1875 = vcombine.high %v1859, %v1859
        %v1876 = vcombine.high %v1866, %v1866
        %v1877 = vcombine.high %v1873, %v1873
        %v1878 = vcombine.high %v1012, %v1012
        %v1880 = vunpack.c.l.s4 1966171168
        %v1881 = vunpack.c.0.s8 %v1880
        %v1882 = vlaneseq
        %v1883 = vshrl.u32 %v1882, 7
        %v1884 = vsub.s32 %v1881, %v1883
        %v1885 = vrot.slane %v1012, %v1884
        %v1887 = vunpack.c.l.s4 1966171168
        %v1888 = vunpack.c.0.s8 %v1887
        %v1889 = vlaneseq
        %v1890 = vshrl.u32 %v1889, 7
        %v1891 = vsub.s32 %v1888, %v1890
        %v1892 = vrot.slane %v1878, %v1891
        %v1893 = vcombine.high %v1885, %v1885
        %v1894 = vcombine.high %v1892, %v1892
        %v1896 = vunpack.c.l.s4 1966171168
        %v1897 = vunpack.c.0.s8 %v1896
        %v1898 = vlaneseq
        %v1899 = vshrl.u32 %v1898, 7
        %v1900 = vsub.s32 %v1897, %v1899
        %v1901 = vrot.slane %v1885, %v1900
        %v1903 = vunpack.c.l.s4 1966171168
        %v1904 = vunpack.c.0.s8 %v1903
        %v1905 = vlaneseq
        %v1906 = vshrl.u32 %v1905, 7
        %v1907 = vsub.s32 %v1904, %v1906
        %v1908 = vrot.slane %v1892, %v1907
        %v1910 = vunpack.c.l.s4 1966171168
        %v1911 = vunpack.c.0.s8 %v1910
        %v1912 = vlaneseq
        %v1913 = vshrl.u32 %v1912, 7
        %v1914 = vsub.s32 %v1911, %v1913
        %v1915 = vrot.slane %v1893, %v1914
        %v1917 = vunpack.c.l.s4 1966171168
        %v1918 = vunpack.c.0.s8 %v1917
        %v1919 = vlaneseq
        %v1920 = vshrl.u32 %v1919, 7
        %v1921 = vsub.s32 %v1918, %v1920
        %v1922 = vrot.slane %v1894, %v1921
        %v1923 = vcombine.high %v1901, %v1901
        %v1924 = vcombine.high %v1908, %v1908
        %v1925 = vcombine.high %v1915, %v1915
        %v1926 = vcombine.high %v1922, %v1922
        %v1927 = vcombine.high %v1013, %v1013
        %v1929 = vunpack.c.l.s4 1966171168
        %v1930 = vunpack.c.0.s8 %v1929
        %v1931 = vlaneseq
        %v1932 = vshrl.u32 %v1931, 7
        %v1933 = vsub.s32 %v1930, %v1932
        %v1934 = vrot.slane %v1013, %v1933
        %v1936 = vunpack.c.l.s4 1966171168
        %v1937 = vunpack.c.0.s8 %v1936
        %v1938 = vlaneseq
        %v1939 = vshrl.u32 %v1938, 7
        %v1940 = vsub.s32 %v1937, %v1939
        %v1941 = vrot.slane %v1927, %v1940
        %v1942 = vcombine.high %v1934, %v1934
        %v1943 = vcombine.high %v1941, %v1941
        %v1945 = vunpack.c.l.s4 1966171168
        %v1946 = vunpack.c.0.s8 %v1945
        %v1947 = vlaneseq
        %v1948 = vshrl.u32 %v1947, 7
        %v1949 = vsub.s32 %v1946, %v1948
        %v1950 = vrot.slane %v1934, %v1949
        %v1952 = vunpack.c.l.s4 1966171168
        %v1953 = vunpack.c.0.s8 %v1952
        %v1954 = vlaneseq
        %v1955 = vshrl.u32 %v1954, 7
        %v1956 = vsub.s32 %v1953, %v1955
        %v1957 = vrot.slane %v1941, %v1956
        %v1959 = vunpack.c.l.s4 1966171168
        %v1960 = vunpack.c.0.s8 %v1959
        %v1961 = vlaneseq
        %v1962 = vshrl.u32 %v1961, 7
        %v1963 = vsub.s32 %v1960, %v1962
        %v1964 = vrot.slane %v1942, %v1963
        %v1966 = vunpack.c.l.s4 1966171168
        %v1967 = vunpack.c.0.s8 %v1966
        %v1968 = vlaneseq
        %v1969 = vshrl.u32 %v1968, 7
        %v1970 = vsub.s32 %v1967, %v1969
        %v1971 = vrot.slane %v1943, %v1970
        %v1972 = vcombine.high %v1950, %v1950
        %v1973 = vcombine.high %v1957, %v1957
        %v1974 = vcombine.high %v1964, %v1964
        %v1975 = vcombine.high %v1971, %v1971
        %v1976 = vcombine.high %v1014, %v1014
        %v1978 = vunpack.c.l.s4 1966171168
        %v1979 = vunpack.c.0.s8 %v1978
        %v1980 = vlaneseq
        %v1981 = vshrl.u32 %v1980, 7
        %v1982 = vsub.s32 %v1979, %v1981
        %v1983 = vrot.slane %v1014, %v1982
        %v1985 = vunpack.c.l.s4 1966171168
        %v1986 = vunpack.c.0.s8 %v1985
        %v1987 = vlaneseq
        %v1988 = vshrl.u32 %v1987, 7
        %v1989 = vsub.s32 %v1986, %v1988
        %v1990 = vrot.slane %v1976, %v1989
        %v1991 = vcombine.high %v1983, %v1983
        %v1992 = vcombine.high %v1990, %v1990
        %v1994 = vunpack.c.l.s4 1966171168
        %v1995 = vunpack.c.0.s8 %v1994
        %v1996 = vlaneseq
        %v1997 = vshrl.u32 %v1996, 7
        %v1998 = vsub.s32 %v1995, %v1997
        %v1999 = vrot.slane %v1983, %v1998
        %v2001 = vunpack.c.l.s4 1966171168
        %v2002 = vunpack.c.0.s8 %v2001
        %v2003 = vlaneseq
        %v2004 = vshrl.u32 %v2003, 7
        %v2005 = vsub.s32 %v2002, %v2004
        %v2006 = vrot.slane %v1990, %v2005
        %v2008 = vunpack.c.l.s4 1966171168
        %v2009 = vunpack.c.0.s8 %v2008
        %v2010 = vlaneseq
        %v2011 = vshrl.u32 %v2010, 7
        %v2012 = vsub.s32 %v2009, %v2011
        %v2013 = vrot.slane %v1991, %v2012
        %v2015 = vunpack.c.l.s4 1966171168
        %v2016 = vunpack.c.0.s8 %v2015
        %v2017 = vlaneseq
        %v2018 = vshrl.u32 %v2017, 7
        %v2019 = vsub.s32 %v2016, %v2018
        %v2020 = vrot.slane %v1992, %v2019
        %v2021 = vcombine.high %v1999, %v1999
        %v2022 = vcombine.high %v2006, %v2006
        %v2023 = vcombine.high %v2013, %v2013
        %v2024 = vcombine.high %v2020, %v2020
        %v2025 = vcombine.high %v1015, %v1015
        %v2027 = vunpack.c.l.s4 1966171168
        %v2028 = vunpack.c.0.s8 %v2027
        %v2029 = vlaneseq
        %v2030 = vshrl.u32 %v2029, 7
        %v2031 = vsub.s32 %v2028, %v2030
        %v2032 = vrot.slane %v1015, %v2031
        %v2034 = vunpack.c.l.s4 1966171168
        %v2035 = vunpack.c.0.s8 %v2034
        %v2036 = vlaneseq
        %v2037 = vshrl.u32 %v2036, 7
        %v2038 = vsub.s32 %v2035, %v2037
        %v2039 = vrot.slane %v2025, %v2038
        %v2040 = vcombine.high %v2032, %v2032
        %v2041 = vcombine.high %v2039, %v2039
        %v2043 = vunpack.c.l.s4 1966171168
        %v2044 = vunpack.c.0.s8 %v2043
        %v2045 = vlaneseq
        %v2046 = vshrl.u32 %v2045, 7
        %v2047 = vsub.s32 %v2044, %v2046
        %v2048 = vrot.slane %v2032, %v2047
        %v2050 = vunpack.c.l.s4 1966171168
        %v2051 = vunpack.c.0.s8 %v2050
        %v2052 = vlaneseq
        %v2053 = vshrl.u32 %v2052, 7
        %v2054 = vsub.s32 %v2051, %v2053
        %v2055 = vrot.slane %v2039, %v2054
        %v2057 = vunpack.c.l.s4 1966171168
        %v2058 = vunpack.c.0.s8 %v2057
        %v2059 = vlaneseq
        %v2060 = vshrl.u32 %v2059, 7
        %v2061 = vsub.s32 %v2058, %v2060
        %v2062 = vrot.slane %v2040, %v2061
        %v2064 = vunpack.c.l.s4 1966171168
        %v2065 = vunpack.c.0.s8 %v2064
        %v2066 = vlaneseq
        %v2067 = vshrl.u32 %v2066, 7
        %v2068 = vsub.s32 %v2065, %v2067
        %v2069 = vrot.slane %v2041, %v2068
        %v2070 = vcombine.high %v2048, %v2048
        %v2071 = vcombine.high %v2055, %v2055
        %v2072 = vcombine.high %v2062, %v2062
        %v2073 = vcombine.high %v2069, %v2069
        %v2074 = vcombine.high %v1016, %v1016
        %v2076 = vunpack.c.l.s4 1966171168
        %v2077 = vunpack.c.0.s8 %v2076
        %v2078 = vlaneseq
        %v2079 = vshrl.u32 %v2078, 7
        %v2080 = vsub.s32 %v2077, %v2079
        %v2081 = vrot.slane %v1016, %v2080
        %v2083 = vunpack.c.l.s4 1966171168
        %v2084 = vunpack.c.0.s8 %v2083
        %v2085 = vlaneseq
        %v2086 = vshrl.u32 %v2085, 7
        %v2087 = vsub.s32 %v2084, %v2086
        %v2088 = vrot.slane %v2074, %v2087
        %v2089 = vcombine.high %v2081, %v2081
        %v2090 = vcombine.high %v2088, %v2088
        %v2092 = vunpack.c.l.s4 1966171168
        %v2093 = vunpack.c.0.s8 %v2092
        %v2094 = vlaneseq
        %v2095 = vshrl.u32 %v2094, 7
        %v2096 = vsub.s32 %v2093, %v2095
        %v2097 = vrot.slane %v2081, %v2096
        %v2099 = vunpack.c.l.s4 1966171168
        %v2100 = vunpack.c.0.s8 %v2099
        %v2101 = vlaneseq
        %v2102 = vshrl.u32 %v2101, 7
        %v2103 = vsub.s32 %v2100, %v2102
        %v2104 = vrot.slane %v2088, %v2103
        %v2106 = vunpack.c.l.s4 1966171168
        %v2107 = vunpack.c.0.s8 %v2106
        %v2108 = vlaneseq
        %v2109 = vshrl.u32 %v2108, 7
        %v2110 = vsub.s32 %v2107, %v2109
        %v2111 = vrot.slane %v2089, %v2110
        %v2113 = vunpack.c.l.s4 1966171168
        %v2114 = vunpack.c.0.s8 %v2113
        %v2115 = vlaneseq
        %v2116 = vshrl.u32 %v2115, 7
        %v2117 = vsub.s32 %v2114, %v2116
        %v2118 = vrot.slane %v2090, %v2117
        %v2119 = vcombine.high %v2097, %v2097
        %v2120 = vcombine.high %v2104, %v2104
        %v2121 = vcombine.high %v2111, %v2111
        %v2122 = vcombine.high %v2118, %v2118
        %v2123 = vcombine.high %v1017, %v1017
        %v2125 = vunpack.c.l.s4 1966171168
        %v2126 = vunpack.c.0.s8 %v2125
        %v2127 = vlaneseq
        %v2128 = vshrl.u32 %v2127, 7
        %v2129 = vsub.s32 %v2126, %v2128
        %v2130 = vrot.slane %v1017, %v2129
        %v2132 = vunpack.c.l.s4 1966171168
        %v2133 = vunpack.c.0.s8 %v2132
        %v2134 = vlaneseq
        %v2135 = vshrl.u32 %v2134, 7
        %v2136 = vsub.s32 %v2133, %v2135
        %v2137 = vrot.slane %v2123, %v2136
        %v2138 = vcombine.high %v2130, %v2130
        %v2139 = vcombine.high %v2137, %v2137
        %v2141 = vunpack.c.l.s4 1966171168
        %v2142 = vunpack.c.0.s8 %v2141
        %v2143 = vlaneseq
        %v2144 = vshrl.u32 %v2143, 7
        %v2145 = vsub.s32 %v2142, %v2144
        %v2146 = vrot.slane %v2130, %v2145
        %v2148 = vunpack.c.l.s4 1966171168
        %v2149 = vunpack.c.0.s8 %v2148
        %v2150 = vlaneseq
        %v2151 = vshrl.u32 %v2150, 7
        %v2152 = vsub.s32 %v2149, %v2151
        %v2153 = vrot.slane %v2137, %v2152
        %v2155 = vunpack.c.l.s4 1966171168
        %v2156 = vunpack.c.0.s8 %v2155
        %v2157 = vlaneseq
        %v2158 = vshrl.u32 %v2157, 7
        %v2159 = vsub.s32 %v2156, %v2158
        %v2160 = vrot.slane %v2138, %v2159
        %v2162 = vunpack.c.l.s4 1966171168
        %v2163 = vunpack.c.0.s8 %v2162
        %v2164 = vlaneseq
        %v2165 = vshrl.u32 %v2164, 7
        %v2166 = vsub.s32 %v2163, %v2165
        %v2167 = vrot.slane %v2139, %v2166
        %v2168 = vcombine.high %v2146, %v2146
        %v2169 = vcombine.high %v2153, %v2153
        %v2170 = vcombine.high %v2160, %v2160
        %v2171 = vcombine.high %v2167, %v2167
        %v2172 = vcombine.high %v1018, %v1018
        %v2174 = vunpack.c.l.s4 1966171168
        %v2175 = vunpack.c.0.s8 %v2174
        %v2176 = vlaneseq
        %v2177 = vshrl.u32 %v2176, 7
        %v2178 = vsub.s32 %v2175, %v2177
        %v2179 = vrot.slane %v1018, %v2178
        %v2181 = vunpack.c.l.s4 1966171168
        %v2182 = vunpack.c.0.s8 %v2181
        %v2183 = vlaneseq
        %v2184 = vshrl.u32 %v2183, 7
        %v2185 = vsub.s32 %v2182, %v2184
        %v2186 = vrot.slane %v2172, %v2185
        %v2187 = vcombine.high %v2179, %v2179
        %v2188 = vcombine.high %v2186, %v2186
        %v2190 = vunpack.c.l.s4 1966171168
        %v2191 = vunpack.c.0.s8 %v2190
        %v2192 = vlaneseq
        %v2193 = vshrl.u32 %v2192, 7
        %v2194 = vsub.s32 %v2191, %v2193
        %v2195 = vrot.slane %v2179, %v2194
        %v2197 = vunpack.c.l.s4 1966171168
        %v2198 = vunpack.c.0.s8 %v2197
        %v2199 = vlaneseq
        %v2200 = vshrl.u32 %v2199, 7
        %v2201 = vsub.s32 %v2198, %v2200
        %v2202 = vrot.slane %v2186, %v2201
        %v2204 = vunpack.c.l.s4 1966171168
        %v2205 = vunpack.c.0.s8 %v2204
        %v2206 = vlaneseq
        %v2207 = vshrl.u32 %v2206, 7
        %v2208 = vsub.s32 %v2205, %v2207
        %v2209 = vrot.slane %v2187, %v2208
        %v2211 = vunpack.c.l.s4 1966171168
        %v2212 = vunpack.c.0.s8 %v2211
        %v2213 = vlaneseq
        %v2214 = vshrl.u32 %v2213, 7
        %v2215 = vsub.s32 %v2212, %v2214
        %v2216 = vrot.slane %v2188, %v2215
        %v2217 = vcombine.high %v2195, %v2195
        %v2218 = vcombine.high %v2202, %v2202
        %v2219 = vcombine.high %v2209, %v2209
        %v2220 = vcombine.high %v2216, %v2216
        %v2221 = vcombine.high %v1019, %v1019
        %v2223 = vunpack.c.l.s4 1966171168
        %v2224 = vunpack.c.0.s8 %v2223
        %v2225 = vlaneseq
        %v2226 = vshrl.u32 %v2225, 7
        %v2227 = vsub.s32 %v2224, %v2226
        %v2228 = vrot.slane %v1019, %v2227
        %v2230 = vunpack.c.l.s4 1966171168
        %v2231 = vunpack.c.0.s8 %v2230
        %v2232 = vlaneseq
        %v2233 = vshrl.u32 %v2232, 7
        %v2234 = vsub.s32 %v2231, %v2233
        %v2235 = vrot.slane %v2221, %v2234
        %v2236 = vcombine.high %v2228, %v2228
        %v2237 = vcombine.high %v2235, %v2235
        %v2239 = vunpack.c.l.s4 1966171168
        %v2240 = vunpack.c.0.s8 %v2239
        %v2241 = vlaneseq
        %v2242 = vshrl.u32 %v2241, 7
        %v2243 = vsub.s32 %v2240, %v2242
        %v2244 = vrot.slane %v2228, %v2243
        %v2246 = vunpack.c.l.s4 1966171168
        %v2247 = vunpack.c.0.s8 %v2246
        %v2248 = vlaneseq
        %v2249 = vshrl.u32 %v2248, 7
        %v2250 = vsub.s32 %v2247, %v2249
        %v2251 = vrot.slane %v2235, %v2250
        %v2253 = vunpack.c.l.s4 1966171168
        %v2254 = vunpack.c.0.s8 %v2253
        %v2255 = vlaneseq
        %v2256 = vshrl.u32 %v2255, 7
        %v2257 = vsub.s32 %v2254, %v2256
        %v2258 = vrot.slane %v2236, %v2257
        %v2260 = vunpack.c.l.s4 1966171168
        %v2261 = vunpack.c.0.s8 %v2260
        %v2262 = vlaneseq
        %v2263 = vshrl.u32 %v2262, 7
        %v2264 = vsub.s32 %v2261, %v2263
        %v2265 = vrot.slane %v2237, %v2264
        %v2266 = vcombine.high %v2244, %v2244
        %v2267 = vcombine.high %v2251, %v2251
        %v2268 = vcombine.high %v2258, %v2258
        %v2269 = vcombine.high %v2265, %v2265
        %v2270 = vcombine.high %v1020, %v1020
        %v2272 = vunpack.c.l.s4 1966171168
        %v2273 = vunpack.c.0.s8 %v2272
        %v2274 = vlaneseq
        %v2275 = vshrl.u32 %v2274, 7
        %v2276 = vsub.s32 %v2273, %v2275
        %v2277 = vrot.slane %v1020, %v2276
        %v2279 = vunpack.c.l.s4 1966171168
        %v2280 = vunpack.c.0.s8 %v2279
        %v2281 = vlaneseq
        %v2282 = vshrl.u32 %v2281, 7
        %v2283 = vsub.s32 %v2280, %v2282
        %v2284 = vrot.slane %v2270, %v2283
        %v2285 = vcombine.high %v2277, %v2277
        %v2286 = vcombine.high %v2284, %v2284
        %v2288 = vunpack.c.l.s4 1966171168
        %v2289 = vunpack.c.0.s8 %v2288
        %v2290 = vlaneseq
        %v2291 = vshrl.u32 %v2290, 7
        %v2292 = vsub.s32 %v2289, %v2291
        %v2293 = vrot.slane %v2277, %v2292
        %v2295 = vunpack.c.l.s4 1966171168
        %v2296 = vunpack.c.0.s8 %v2295
        %v2297 = vlaneseq
        %v2298 = vshrl.u32 %v2297, 7
        %v2299 = vsub.s32 %v2296, %v2298
        %v2300 = vrot.slane %v2284, %v2299
        %v2302 = vunpack.c.l.s4 1966171168
        %v2303 = vunpack.c.0.s8 %v2302
        %v2304 = vlaneseq
        %v2305 = vshrl.u32 %v2304, 7
        %v2306 = vsub.s32 %v2303, %v2305
        %v2307 = vrot.slane %v2285, %v2306
        %v2309 = vunpack.c.l.s4 1966171168
        %v2310 = vunpack.c.0.s8 %v2309
        %v2311 = vlaneseq
        %v2312 = vshrl.u32 %v2311, 7
        %v2313 = vsub.s32 %v2310, %v2312
        %v2314 = vrot.slane %v2286, %v2313
        %v2315 = vcombine.high %v2293, %v2293
        %v2316 = vcombine.high %v2300, %v2300
        %v2317 = vcombine.high %v2307, %v2307
        %v2318 = vcombine.high %v2314, %v2314
        %v2319 = vcombine.high %v1021, %v1021
        %v2321 = vunpack.c.l.s4 1966171168
        %v2322 = vunpack.c.0.s8 %v2321
        %v2323 = vlaneseq
        %v2324 = vshrl.u32 %v2323, 7
        %v2325 = vsub.s32 %v2322, %v2324
        %v2326 = vrot.slane %v1021, %v2325
        %v2328 = vunpack.c.l.s4 1966171168
        %v2329 = vunpack.c.0.s8 %v2328
        %v2330 = vlaneseq
        %v2331 = vshrl.u32 %v2330, 7
        %v2332 = vsub.s32 %v2329, %v2331
        %v2333 = vrot.slane %v2319, %v2332
        %v2334 = vcombine.high %v2326, %v2326
        %v2335 = vcombine.high %v2333, %v2333
        %v2337 = vunpack.c.l.s4 1966171168
        %v2338 = vunpack.c.0.s8 %v2337
        %v2339 = vlaneseq
        %v2340 = vshrl.u32 %v2339, 7
        %v2341 = vsub.s32 %v2338, %v2340
        %v2342 = vrot.slane %v2326, %v2341
        %v2344 = vunpack.c.l.s4 1966171168
        %v2345 = vunpack.c.0.s8 %v2344
        %v2346 = vlaneseq
        %v2347 = vshrl.u32 %v2346, 7
        %v2348 = vsub.s32 %v2345, %v2347
        %v2349 = vrot.slane %v2333, %v2348
        %v2351 = vunpack.c.l.s4 1966171168
        %v2352 = vunpack.c.0.s8 %v2351
        %v2353 = vlaneseq
        %v2354 = vshrl.u32 %v2353, 7
        %v2355 = vsub.s32 %v2352, %v2354
        %v2356 = vrot.slane %v2334, %v2355
        %v2358 = vunpack.c.l.s4 1966171168
        %v2359 = vunpack.c.0.s8 %v2358
        %v2360 = vlaneseq
        %v2361 = vshrl.u32 %v2360, 7
        %v2362 = vsub.s32 %v2359, %v2361
        %v2363 = vrot.slane %v2335, %v2362
        %v2364 = vcombine.high %v2342, %v2342
        %v2365 = vcombine.high %v2349, %v2349
        %v2366 = vcombine.high %v2356, %v2356
        %v2367 = vcombine.high %v2363, %v2363
        %v2368 = vcombine.high %v1022, %v1022
        %v2370 = vunpack.c.l.s4 1966171168
        %v2371 = vunpack.c.0.s8 %v2370
        %v2372 = vlaneseq
        %v2373 = vshrl.u32 %v2372, 7
        %v2374 = vsub.s32 %v2371, %v2373
        %v2375 = vrot.slane %v1022, %v2374
        %v2377 = vunpack.c.l.s4 1966171168
        %v2378 = vunpack.c.0.s8 %v2377
        %v2379 = vlaneseq
        %v2380 = vshrl.u32 %v2379, 7
        %v2381 = vsub.s32 %v2378, %v2380
        %v2382 = vrot.slane %v2368, %v2381
        %v2383 = vcombine.high %v2375, %v2375
        %v2384 = vcombine.high %v2382, %v2382
        %v2386 = vunpack.c.l.s4 1966171168
        %v2387 = vunpack.c.0.s8 %v2386
        %v2388 = vlaneseq
        %v2389 = vshrl.u32 %v2388, 7
        %v2390 = vsub.s32 %v2387, %v2389
        %v2391 = vrot.slane %v2375, %v2390
        %v2393 = vunpack.c.l.s4 1966171168
        %v2394 = vunpack.c.0.s8 %v2393
        %v2395 = vlaneseq
        %v2396 = vshrl.u32 %v2395, 7
        %v2397 = vsub.s32 %v2394, %v2396
        %v2398 = vrot.slane %v2382, %v2397
        %v2400 = vunpack.c.l.s4 1966171168
        %v2401 = vunpack.c.0.s8 %v2400
        %v2402 = vlaneseq
        %v2403 = vshrl.u32 %v2402, 7
        %v2404 = vsub.s32 %v2401, %v2403
        %v2405 = vrot.slane %v2383, %v2404
        %v2407 = vunpack.c.l.s4 1966171168
        %v2408 = vunpack.c.0.s8 %v2407
        %v2409 = vlaneseq
        %v2410 = vshrl.u32 %v2409, 7
        %v2411 = vsub.s32 %v2408, %v2410
        %v2412 = vrot.slane %v2384, %v2411
        %v2413 = vcombine.high %v2391, %v2391
        %v2414 = vcombine.high %v2398, %v2398
        %v2415 = vcombine.high %v2405, %v2405
        %v2416 = vcombine.high %v2412, %v2412
        %v2417 = vcombine.high %v1023, %v1023
        %v2419 = vunpack.c.l.s4 1966171168
        %v2420 = vunpack.c.0.s8 %v2419
        %v2421 = vlaneseq
        %v2422 = vshrl.u32 %v2421, 7
        %v2423 = vsub.s32 %v2420, %v2422
        %v2424 = vrot.slane %v1023, %v2423
        %v2426 = vunpack.c.l.s4 1966171168
        %v2427 = vunpack.c.0.s8 %v2426
        %v2428 = vlaneseq
        %v2429 = vshrl.u32 %v2428, 7
        %v2430 = vsub.s32 %v2427, %v2429
        %v2431 = vrot.slane %v2417, %v2430
        %v2432 = vcombine.high %v2424, %v2424
        %v2433 = vcombine.high %v2431, %v2431
        %v2435 = vunpack.c.l.s4 1966171168
        %v2436 = vunpack.c.0.s8 %v2435
        %v2437 = vlaneseq
        %v2438 = vshrl.u32 %v2437, 7
        %v2439 = vsub.s32 %v2436, %v2438
        %v2440 = vrot.slane %v2424, %v2439
        %v2442 = vunpack.c.l.s4 1966171168
        %v2443 = vunpack.c.0.s8 %v2442
        %v2444 = vlaneseq
        %v2445 = vshrl.u32 %v2444, 7
        %v2446 = vsub.s32 %v2443, %v2445
        %v2447 = vrot.slane %v2431, %v2446
        %v2449 = vunpack.c.l.s4 1966171168
        %v2450 = vunpack.c.0.s8 %v2449
        %v2451 = vlaneseq
        %v2452 = vshrl.u32 %v2451, 7
        %v2453 = vsub.s32 %v2450, %v2452
        %v2454 = vrot.slane %v2432, %v2453
        %v2456 = vunpack.c.l.s4 1966171168
        %v2457 = vunpack.c.0.s8 %v2456
        %v2458 = vlaneseq
        %v2459 = vshrl.u32 %v2458, 7
        %v2460 = vsub.s32 %v2457, %v2459
        %v2461 = vrot.slane %v2433, %v2460
        %v2462 = vcombine.high %v2440, %v2440
        %v2463 = vcombine.high %v2447, %v2447
        %v2464 = vcombine.high %v2454, %v2454
        %v2465 = vcombine.high %v2461, %v2461
        %v2466 = vcombine.high %v1024, %v1024
        %v2468 = vunpack.c.l.s4 1966171168
        %v2469 = vunpack.c.0.s8 %v2468
        %v2470 = vlaneseq
        %v2471 = vshrl.u32 %v2470, 7
        %v2472 = vsub.s32 %v2469, %v2471
        %v2473 = vrot.slane %v1024, %v2472
        %v2475 = vunpack.c.l.s4 1966171168
        %v2476 = vunpack.c.0.s8 %v2475
        %v2477 = vlaneseq
        %v2478 = vshrl.u32 %v2477, 7
        %v2479 = vsub.s32 %v2476, %v2478
        %v2480 = vrot.slane %v2466, %v2479
        %v2481 = vcombine.high %v2473, %v2473
        %v2482 = vcombine.high %v2480, %v2480
        %v2484 = vunpack.c.l.s4 1966171168
        %v2485 = vunpack.c.0.s8 %v2484
        %v2486 = vlaneseq
        %v2487 = vshrl.u32 %v2486, 7
        %v2488 = vsub.s32 %v2485, %v2487
        %v2489 = vrot.slane %v2473, %v2488
        %v2491 = vunpack.c.l.s4 1966171168
        %v2492 = vunpack.c.0.s8 %v2491
        %v2493 = vlaneseq
        %v2494 = vshrl.u32 %v2493, 7
        %v2495 = vsub.s32 %v2492, %v2494
        %v2496 = vrot.slane %v2480, %v2495
        %v2498 = vunpack.c.l.s4 1966171168
        %v2499 = vunpack.c.0.s8 %v2498
        %v2500 = vlaneseq
        %v2501 = vshrl.u32 %v2500, 7
        %v2502 = vsub.s32 %v2499, %v2501
        %v2503 = vrot.slane %v2481, %v2502
        %v2505 = vunpack.c.l.s4 1966171168
        %v2506 = vunpack.c.0.s8 %v2505
        %v2507 = vlaneseq
        %v2508 = vshrl.u32 %v2507, 7
        %v2509 = vsub.s32 %v2506, %v2508
        %v2510 = vrot.slane %v2482, %v2509
        %v2511 = vcombine.high %v2489, %v2489
        %v2512 = vcombine.high %v2496, %v2496
        %v2513 = vcombine.high %v2503, %v2503
        %v2514 = vcombine.high %v2510, %v2510
        %v2515 = vcombine.high %v1025, %v1025
        %v2517 = vunpack.c.l.s4 1966171168
        %v2518 = vunpack.c.0.s8 %v2517
        %v2519 = vlaneseq
        %v2520 = vshrl.u32 %v2519, 7
        %v2521 = vsub.s32 %v2518, %v2520
        %v2522 = vrot.slane %v1025, %v2521
        %v2524 = vunpack.c.l.s4 1966171168
        %v2525 = vunpack.c.0.s8 %v2524
        %v2526 = vlaneseq
        %v2527 = vshrl.u32 %v2526, 7
        %v2528 = vsub.s32 %v2525, %v2527
        %v2529 = vrot.slane %v2515, %v2528
        %v2530 = vcombine.high %v2522, %v2522
        %v2531 = vcombine.high %v2529, %v2529
        %v2533 = vunpack.c.l.s4 1966171168
        %v2534 = vunpack.c.0.s8 %v2533
        %v2535 = vlaneseq
        %v2536 = vshrl.u32 %v2535, 7
        %v2537 = vsub.s32 %v2534, %v2536
        %v2538 = vrot.slane %v2522, %v2537
        %v2540 = vunpack.c.l.s4 1966171168
        %v2541 = vunpack.c.0.s8 %v2540
        %v2542 = vlaneseq
        %v2543 = vshrl.u32 %v2542, 7
        %v2544 = vsub.s32 %v2541, %v2543
        %v2545 = vrot.slane %v2529, %v2544
        %v2547 = vunpack.c.l.s4 1966171168
        %v2548 = vunpack.c.0.s8 %v2547
        %v2549 = vlaneseq
        %v2550 = vshrl.u32 %v2549, 7
        %v2551 = vsub.s32 %v2548, %v2550
        %v2552 = vrot.slane %v2530, %v2551
        %v2554 = vunpack.c.l.s4 1966171168
        %v2555 = vunpack.c.0.s8 %v2554
        %v2556 = vlaneseq
        %v2557 = vshrl.u32 %v2556, 7
        %v2558 = vsub.s32 %v2555, %v2557
        %v2559 = vrot.slane %v2531, %v2558
        %v2560 = vcombine.high %v2538, %v2538
        %v2561 = vcombine.high %v2545, %v2545
        %v2562 = vcombine.high %v2552, %v2552
        %v2563 = vcombine.high %v2559, %v2559
        %v2708 = vcombine.high %v1748, %v1748
        %v2710 = vunpack.c.l.s4 1966171168
        %v2711 = vunpack.c.0.s8 %v2710
        %v2712 = vlaneseq
        %v2713 = vshrl.u32 %v2712, 7
        %v2714 = vsub.s32 %v2711, %v2713
        %v2715 = vrot.slane %v1748, %v2714
        %v2717 = vunpack.c.l.s4 1966171168
        %v2718 = vunpack.c.0.s8 %v2717
        %v2719 = vlaneseq
        %v2720 = vshrl.u32 %v2719, 7
        %v2721 = vsub.s32 %v2718, %v2720
        %v2722 = vrot.slane %v2708, %v2721
        %v2723 = vcombine.high %v2715, %v2715
        %v2724 = vcombine.high %v2722, %v2722
        %v2726 = vunpack.c.l.s4 1966171168
        %v2727 = vunpack.c.0.s8 %v2726
        %v2728 = vlaneseq
        %v2729 = vshrl.u32 %v2728, 7
        %v2730 = vsub.s32 %v2727, %v2729
        %v2731 = vrot.slane %v2715, %v2730
        %v2733 = vunpack.c.l.s4 1966171168
        %v2734 = vunpack.c.0.s8 %v2733
        %v2735 = vlaneseq
        %v2736 = vshrl.u32 %v2735, 7
        %v2737 = vsub.s32 %v2734, %v2736
        %v2738 = vrot.slane %v2722, %v2737
        %v2740 = vunpack.c.l.s4 1966171168
        %v2741 = vunpack.c.0.s8 %v2740
        %v2742 = vlaneseq
        %v2743 = vshrl.u32 %v2742, 7
        %v2744 = vsub.s32 %v2741, %v2743
        %v2745 = vrot.slane %v2723, %v2744
        %v2747 = vunpack.c.l.s4 1966171168
        %v2748 = vunpack.c.0.s8 %v2747
        %v2749 = vlaneseq
        %v2750 = vshrl.u32 %v2749, 7
        %v2751 = vsub.s32 %v2748, %v2750
        %v2752 = vrot.slane %v2724, %v2751
        %v2753 = vcombine.high %v2731, %v2731
        %v2754 = vcombine.high %v2738, %v2738
        %v2755 = vcombine.high %v2745, %v2745
        %v2756 = vcombine.high %v2752, %v2752
        %v2757 = vcombine.high %v1749, %v1749
        %v2759 = vunpack.c.l.s4 1966171168
        %v2760 = vunpack.c.0.s8 %v2759
        %v2761 = vlaneseq
        %v2762 = vshrl.u32 %v2761, 7
        %v2763 = vsub.s32 %v2760, %v2762
        %v2764 = vrot.slane %v1749, %v2763
        %v2766 = vunpack.c.l.s4 1966171168
        %v2767 = vunpack.c.0.s8 %v2766
        %v2768 = vlaneseq
        %v2769 = vshrl.u32 %v2768, 7
        %v2770 = vsub.s32 %v2767, %v2769
        %v2771 = vrot.slane %v2757, %v2770
        %v2772 = vcombine.high %v2764, %v2764
        %v2773 = vcombine.high %v2771, %v2771
        %v2775 = vunpack.c.l.s4 1966171168
        %v2776 = vunpack.c.0.s8 %v2775
        %v2777 = vlaneseq
        %v2778 = vshrl.u32 %v2777, 7
        %v2779 = vsub.s32 %v2776, %v2778
        %v2780 = vrot.slane %v2764, %v2779
        %v2782 = vunpack.c.l.s4 1966171168
        %v2783 = vunpack.c.0.s8 %v2782
        %v2784 = vlaneseq
        %v2785 = vshrl.u32 %v2784, 7
        %v2786 = vsub.s32 %v2783, %v2785
        %v2787 = vrot.slane %v2771, %v2786
        %v2789 = vunpack.c.l.s4 1966171168
        %v2790 = vunpack.c.0.s8 %v2789
        %v2791 = vlaneseq
        %v2792 = vshrl.u32 %v2791, 7
        %v2793 = vsub.s32 %v2790, %v2792
        %v2794 = vrot.slane %v2772, %v2793
        %v2796 = vunpack.c.l.s4 1966171168
        %v2797 = vunpack.c.0.s8 %v2796
        %v2798 = vlaneseq
        %v2799 = vshrl.u32 %v2798, 7
        %v2800 = vsub.s32 %v2797, %v2799
        %v2801 = vrot.slane %v2773, %v2800
        %v2802 = vcombine.high %v2780, %v2780
        %v2803 = vcombine.high %v2787, %v2787
        %v2804 = vcombine.high %v2794, %v2794
        %v2805 = vcombine.high %v2801, %v2801
        %v2806 = vcombine.high %v1750, %v1750
        %v2808 = vunpack.c.l.s4 1966171168
        %v2809 = vunpack.c.0.s8 %v2808
        %v2810 = vlaneseq
        %v2811 = vshrl.u32 %v2810, 7
        %v2812 = vsub.s32 %v2809, %v2811
        %v2813 = vrot.slane %v1750, %v2812
        %v2815 = vunpack.c.l.s4 1966171168
        %v2816 = vunpack.c.0.s8 %v2815
        %v2817 = vlaneseq
        %v2818 = vshrl.u32 %v2817, 7
        %v2819 = vsub.s32 %v2816, %v2818
        %v2820 = vrot.slane %v2806, %v2819
        %v2821 = vcombine.high %v2813, %v2813
        %v2822 = vcombine.high %v2820, %v2820
        %v2824 = vunpack.c.l.s4 1966171168
        %v2825 = vunpack.c.0.s8 %v2824
        %v2826 = vlaneseq
        %v2827 = vshrl.u32 %v2826, 7
        %v2828 = vsub.s32 %v2825, %v2827
        %v2829 = vrot.slane %v2813, %v2828
        %v2831 = vunpack.c.l.s4 1966171168
        %v2832 = vunpack.c.0.s8 %v2831
        %v2833 = vlaneseq
        %v2834 = vshrl.u32 %v2833, 7
        %v2835 = vsub.s32 %v2832, %v2834
        %v2836 = vrot.slane %v2820, %v2835
        %v2838 = vunpack.c.l.s4 1966171168
        %v2839 = vunpack.c.0.s8 %v2838
        %v2840 = vlaneseq
        %v2841 = vshrl.u32 %v2840, 7
        %v2842 = vsub.s32 %v2839, %v2841
        %v2843 = vrot.slane %v2821, %v2842
        %v2845 = vunpack.c.l.s4 1966171168
        %v2846 = vunpack.c.0.s8 %v2845
        %v2847 = vlaneseq
        %v2848 = vshrl.u32 %v2847, 7
        %v2849 = vsub.s32 %v2846, %v2848
        %v2850 = vrot.slane %v2822, %v2849
        %v2851 = vcombine.high %v2829, %v2829
        %v2852 = vcombine.high %v2836, %v2836
        %v2853 = vcombine.high %v2843, %v2843
        %v2854 = vcombine.high %v2850, %v2850
        %v2855 = vcombine.high %v1751, %v1751
        %v2857 = vunpack.c.l.s4 1966171168
        %v2858 = vunpack.c.0.s8 %v2857
        %v2859 = vlaneseq
        %v2860 = vshrl.u32 %v2859, 7
        %v2861 = vsub.s32 %v2858, %v2860
        %v2862 = vrot.slane %v1751, %v2861
        %v2864 = vunpack.c.l.s4 1966171168
        %v2865 = vunpack.c.0.s8 %v2864
        %v2866 = vlaneseq
        %v2867 = vshrl.u32 %v2866, 7
        %v2868 = vsub.s32 %v2865, %v2867
        %v2869 = vrot.slane %v2855, %v2868
        %v2870 = vcombine.high %v2862, %v2862
        %v2871 = vcombine.high %v2869, %v2869
        %v2873 = vunpack.c.l.s4 1966171168
        %v2874 = vunpack.c.0.s8 %v2873
        %v2875 = vlaneseq
        %v2876 = vshrl.u32 %v2875, 7
        %v2877 = vsub.s32 %v2874, %v2876
        %v2878 = vrot.slane %v2862, %v2877
        %v2880 = vunpack.c.l.s4 1966171168
        %v2881 = vunpack.c.0.s8 %v2880
        %v2882 = vlaneseq
        %v2883 = vshrl.u32 %v2882, 7
        %v2884 = vsub.s32 %v2881, %v2883
        %v2885 = vrot.slane %v2869, %v2884
        %v2887 = vunpack.c.l.s4 1966171168
        %v2888 = vunpack.c.0.s8 %v2887
        %v2889 = vlaneseq
        %v2890 = vshrl.u32 %v2889, 7
        %v2891 = vsub.s32 %v2888, %v2890
        %v2892 = vrot.slane %v2870, %v2891
        %v2894 = vunpack.c.l.s4 1966171168
        %v2895 = vunpack.c.0.s8 %v2894
        %v2896 = vlaneseq
        %v2897 = vshrl.u32 %v2896, 7
        %v2898 = vsub.s32 %v2895, %v2897
        %v2899 = vrot.slane %v2871, %v2898
        %v2900 = vcombine.high %v2878, %v2878
        %v2901 = vcombine.high %v2885, %v2885
        %v2902 = vcombine.high %v2892, %v2892
        %v2903 = vcombine.high %v2899, %v2899
        %v2904 = vcombine.high %v1752, %v1752
        %v2906 = vunpack.c.l.s4 1966171168
        %v2907 = vunpack.c.0.s8 %v2906
        %v2908 = vlaneseq
        %v2909 = vshrl.u32 %v2908, 7
        %v2910 = vsub.s32 %v2907, %v2909
        %v2911 = vrot.slane %v1752, %v2910
        %v2913 = vunpack.c.l.s4 1966171168
        %v2914 = vunpack.c.0.s8 %v2913
        %v2915 = vlaneseq
        %v2916 = vshrl.u32 %v2915, 7
        %v2917 = vsub.s32 %v2914, %v2916
        %v2918 = vrot.slane %v2904, %v2917
        %v2919 = vcombine.high %v2911, %v2911
        %v2920 = vcombine.high %v2918, %v2918
        %v2922 = vunpack.c.l.s4 1966171168
        %v2923 = vunpack.c.0.s8 %v2922
        %v2924 = vlaneseq
        %v2925 = vshrl.u32 %v2924, 7
        %v2926 = vsub.s32 %v2923, %v2925
        %v2927 = vrot.slane %v2911, %v2926
        %v2929 = vunpack.c.l.s4 1966171168
        %v2930 = vunpack.c.0.s8 %v2929
        %v2931 = vlaneseq
        %v2932 = vshrl.u32 %v2931, 7
        %v2933 = vsub.s32 %v2930, %v2932
        %v2934 = vrot.slane %v2918, %v2933
        %v2936 = vunpack.c.l.s4 1966171168
        %v2937 = vunpack.c.0.s8 %v2936
        %v2938 = vlaneseq
        %v2939 = vshrl.u32 %v2938, 7
        %v2940 = vsub.s32 %v2937, %v2939
        %v2941 = vrot.slane %v2919, %v2940
        %v2943 = vunpack.c.l.s4 1966171168
        %v2944 = vunpack.c.0.s8 %v2943
        %v2945 = vlaneseq
        %v2946 = vshrl.u32 %v2945, 7
        %v2947 = vsub.s32 %v2944, %v2946
        %v2948 = vrot.slane %v2920, %v2947
        %v2949 = vcombine.high %v2927, %v2927
        %v2950 = vcombine.high %v2934, %v2934
        %v2951 = vcombine.high %v2941, %v2941
        %v2952 = vcombine.high %v2948, %v2948
        %v2953 = vcombine.high %v1753, %v1753
        %v2955 = vunpack.c.l.s4 1966171168
        %v2956 = vunpack.c.0.s8 %v2955
        %v2957 = vlaneseq
        %v2958 = vshrl.u32 %v2957, 7
        %v2959 = vsub.s32 %v2956, %v2958
        %v2960 = vrot.slane %v1753, %v2959
        %v2962 = vunpack.c.l.s4 1966171168
        %v2963 = vunpack.c.0.s8 %v2962
        %v2964 = vlaneseq
        %v2965 = vshrl.u32 %v2964, 7
        %v2966 = vsub.s32 %v2963, %v2965
        %v2967 = vrot.slane %v2953, %v2966
        %v2968 = vcombine.high %v2960, %v2960
        %v2969 = vcombine.high %v2967, %v2967
        %v2971 = vunpack.c.l.s4 1966171168
        %v2972 = vunpack.c.0.s8 %v2971
        %v2973 = vlaneseq
        %v2974 = vshrl.u32 %v2973, 7
        %v2975 = vsub.s32 %v2972, %v2974
        %v2976 = vrot.slane %v2960, %v2975
        %v2978 = vunpack.c.l.s4 1966171168
        %v2979 = vunpack.c.0.s8 %v2978
        %v2980 = vlaneseq
        %v2981 = vshrl.u32 %v2980, 7
        %v2982 = vsub.s32 %v2979, %v2981
        %v2983 = vrot.slane %v2967, %v2982
        %v2985 = vunpack.c.l.s4 1966171168
        %v2986 = vunpack.c.0.s8 %v2985
        %v2987 = vlaneseq
        %v2988 = vshrl.u32 %v2987, 7
        %v2989 = vsub.s32 %v2986, %v2988
        %v2990 = vrot.slane %v2968, %v2989
        %v2992 = vunpack.c.l.s4 1966171168
        %v2993 = vunpack.c.0.s8 %v2992
        %v2994 = vlaneseq
        %v2995 = vshrl.u32 %v2994, 7
        %v2996 = vsub.s32 %v2993, %v2995
        %v2997 = vrot.slane %v2969, %v2996
        %v2998 = vcombine.high %v2976, %v2976
        %v2999 = vcombine.high %v2983, %v2983
        %v3000 = vcombine.high %v2990, %v2990
        %v3001 = vcombine.high %v2997, %v2997
        %v3002 = vcombine.high %v1754, %v1754
        %v3004 = vunpack.c.l.s4 1966171168
        %v3005 = vunpack.c.0.s8 %v3004
        %v3006 = vlaneseq
        %v3007 = vshrl.u32 %v3006, 7
        %v3008 = vsub.s32 %v3005, %v3007
        %v3009 = vrot.slane %v1754, %v3008
        %v3011 = vunpack.c.l.s4 1966171168
        %v3012 = vunpack.c.0.s8 %v3011
        %v3013 = vlaneseq
        %v3014 = vshrl.u32 %v3013, 7
        %v3015 = vsub.s32 %v3012, %v3014
        %v3016 = vrot.slane %v3002, %v3015
        %v3017 = vcombine.high %v3009, %v3009
        %v3018 = vcombine.high %v3016, %v3016
        %v3020 = vunpack.c.l.s4 1966171168
        %v3021 = vunpack.c.0.s8 %v3020
        %v3022 = vlaneseq
        %v3023 = vshrl.u32 %v3022, 7
        %v3024 = vsub.s32 %v3021, %v3023
        %v3025 = vrot.slane %v3009, %v3024
        %v3027 = vunpack.c.l.s4 1966171168
        %v3028 = vunpack.c.0.s8 %v3027
        %v3029 = vlaneseq
        %v3030 = vshrl.u32 %v3029, 7
        %v3031 = vsub.s32 %v3028, %v3030
        %v3032 = vrot.slane %v3016, %v3031
        %v3034 = vunpack.c.l.s4 1966171168
        %v3035 = vunpack.c.0.s8 %v3034
        %v3036 = vlaneseq
        %v3037 = vshrl.u32 %v3036, 7
        %v3038 = vsub.s32 %v3035, %v3037
        %v3039 = vrot.slane %v3017, %v3038
        %v3041 = vunpack.c.l.s4 1966171168
        %v3042 = vunpack.c.0.s8 %v3041
        %v3043 = vlaneseq
        %v3044 = vshrl.u32 %v3043, 7
        %v3045 = vsub.s32 %v3042, %v3044
        %v3046 = vrot.slane %v3018, %v3045
        %v3047 = vcombine.high %v3025, %v3025
        %v3048 = vcombine.high %v3032, %v3032
        %v3049 = vcombine.high %v3039, %v3039
        %v3050 = vcombine.high %v3046, %v3046
        %v3051 = vcombine.high %v1755, %v1755
        %v3053 = vunpack.c.l.s4 1966171168
        %v3054 = vunpack.c.0.s8 %v3053
        %v3055 = vlaneseq
        %v3056 = vshrl.u32 %v3055, 7
        %v3057 = vsub.s32 %v3054, %v3056
        %v3058 = vrot.slane %v1755, %v3057
        %v3060 = vunpack.c.l.s4 1966171168
        %v3061 = vunpack.c.0.s8 %v3060
        %v3062 = vlaneseq
        %v3063 = vshrl.u32 %v3062, 7
        %v3064 = vsub.s32 %v3061, %v3063
        %v3065 = vrot.slane %v3051, %v3064
        %v3066 = vcombine.high %v3058, %v3058
        %v3067 = vcombine.high %v3065, %v3065
        %v3069 = vunpack.c.l.s4 1966171168
        %v3070 = vunpack.c.0.s8 %v3069
        %v3071 = vlaneseq
        %v3072 = vshrl.u32 %v3071, 7
        %v3073 = vsub.s32 %v3070, %v3072
        %v3074 = vrot.slane %v3058, %v3073
        %v3076 = vunpack.c.l.s4 1966171168
        %v3077 = vunpack.c.0.s8 %v3076
        %v3078 = vlaneseq
        %v3079 = vshrl.u32 %v3078, 7
        %v3080 = vsub.s32 %v3077, %v3079
        %v3081 = vrot.slane %v3065, %v3080
        %v3083 = vunpack.c.l.s4 1966171168
        %v3084 = vunpack.c.0.s8 %v3083
        %v3085 = vlaneseq
        %v3086 = vshrl.u32 %v3085, 7
        %v3087 = vsub.s32 %v3084, %v3086
        %v3088 = vrot.slane %v3066, %v3087
        %v3090 = vunpack.c.l.s4 1966171168
        %v3091 = vunpack.c.0.s8 %v3090
        %v3092 = vlaneseq
        %v3093 = vshrl.u32 %v3092, 7
        %v3094 = vsub.s32 %v3091, %v3093
        %v3095 = vrot.slane %v3067, %v3094
        %v3096 = vcombine.high %v3074, %v3074
        %v3097 = vcombine.high %v3081, %v3081
        %v3098 = vcombine.high %v3088, %v3088
        %v3099 = vcombine.high %v3095, %v3095
        %v3100 = vcombine.high %v1756, %v1756
        %v3102 = vunpack.c.l.s4 1966171168
        %v3103 = vunpack.c.0.s8 %v3102
        %v3104 = vlaneseq
        %v3105 = vshrl.u32 %v3104, 7
        %v3106 = vsub.s32 %v3103, %v3105
        %v3107 = vrot.slane %v1756, %v3106
        %v3109 = vunpack.c.l.s4 1966171168
        %v3110 = vunpack.c.0.s8 %v3109
        %v3111 = vlaneseq
        %v3112 = vshrl.u32 %v3111, 7
        %v3113 = vsub.s32 %v3110, %v3112
        %v3114 = vrot.slane %v3100, %v3113
        %v3115 = vcombine.high %v3107, %v3107
        %v3116 = vcombine.high %v3114, %v3114
        %v3118 = vunpack.c.l.s4 1966171168
        %v3119 = vunpack.c.0.s8 %v3118
        %v3120 = vlaneseq
        %v3121 = vshrl.u32 %v3120, 7
        %v3122 = vsub.s32 %v3119, %v3121
        %v3123 = vrot.slane %v3107, %v3122
        %v3125 = vunpack.c.l.s4 1966171168
        %v3126 = vunpack.c.0.s8 %v3125
        %v3127 = vlaneseq
        %v3128 = vshrl.u32 %v3127, 7
        %v3129 = vsub.s32 %v3126, %v3128
        %v3130 = vrot.slane %v3114, %v3129
        %v3132 = vunpack.c.l.s4 1966171168
        %v3133 = vunpack.c.0.s8 %v3132
        %v3134 = vlaneseq
        %v3135 = vshrl.u32 %v3134, 7
        %v3136 = vsub.s32 %v3133, %v3135
        %v3137 = vrot.slane %v3115, %v3136
        %v3139 = vunpack.c.l.s4 1966171168
        %v3140 = vunpack.c.0.s8 %v3139
        %v3141 = vlaneseq
        %v3142 = vshrl.u32 %v3141, 7
        %v3143 = vsub.s32 %v3140, %v3142
        %v3144 = vrot.slane %v3116, %v3143
        %v3145 = vcombine.high %v3123, %v3123
        %v3146 = vcombine.high %v3130, %v3130
        %v3147 = vcombine.high %v3137, %v3137
        %v3148 = vcombine.high %v3144, %v3144
        %v3149 = vcombine.high %v1757, %v1757
        %v3151 = vunpack.c.l.s4 1966171168
        %v3152 = vunpack.c.0.s8 %v3151
        %v3153 = vlaneseq
        %v3154 = vshrl.u32 %v3153, 7
        %v3155 = vsub.s32 %v3152, %v3154
        %v3156 = vrot.slane %v1757, %v3155
        %v3158 = vunpack.c.l.s4 1966171168
        %v3159 = vunpack.c.0.s8 %v3158
        %v3160 = vlaneseq
        %v3161 = vshrl.u32 %v3160, 7
        %v3162 = vsub.s32 %v3159, %v3161
        %v3163 = vrot.slane %v3149, %v3162
        %v3164 = vcombine.high %v3156, %v3156
        %v3165 = vcombine.high %v3163, %v3163
        %v3167 = vunpack.c.l.s4 1966171168
        %v3168 = vunpack.c.0.s8 %v3167
        %v3169 = vlaneseq
        %v3170 = vshrl.u32 %v3169, 7
        %v3171 = vsub.s32 %v3168, %v3170
        %v3172 = vrot.slane %v3156, %v3171
        %v3174 = vunpack.c.l.s4 1966171168
        %v3175 = vunpack.c.0.s8 %v3174
        %v3176 = vlaneseq
        %v3177 = vshrl.u32 %v3176, 7
        %v3178 = vsub.s32 %v3175, %v3177
        %v3179 = vrot.slane %v3163, %v3178
        %v3181 = vunpack.c.l.s4 1966171168
        %v3182 = vunpack.c.0.s8 %v3181
        %v3183 = vlaneseq
        %v3184 = vshrl.u32 %v3183, 7
        %v3185 = vsub.s32 %v3182, %v3184
        %v3186 = vrot.slane %v3164, %v3185
        %v3188 = vunpack.c.l.s4 1966171168
        %v3189 = vunpack.c.0.s8 %v3188
        %v3190 = vlaneseq
        %v3191 = vshrl.u32 %v3190, 7
        %v3192 = vsub.s32 %v3189, %v3191
        %v3193 = vrot.slane %v3165, %v3192
        %v3194 = vcombine.high %v3172, %v3172
        %v3195 = vcombine.high %v3179, %v3179
        %v3196 = vcombine.high %v3186, %v3186
        %v3197 = vcombine.high %v3193, %v3193
        %v3198 = vcombine.high %v1758, %v1758
        %v3200 = vunpack.c.l.s4 1966171168
        %v3201 = vunpack.c.0.s8 %v3200
        %v3202 = vlaneseq
        %v3203 = vshrl.u32 %v3202, 7
        %v3204 = vsub.s32 %v3201, %v3203
        %v3205 = vrot.slane %v1758, %v3204
        %v3207 = vunpack.c.l.s4 1966171168
        %v3208 = vunpack.c.0.s8 %v3207
        %v3209 = vlaneseq
        %v3210 = vshrl.u32 %v3209, 7
        %v3211 = vsub.s32 %v3208, %v3210
        %v3212 = vrot.slane %v3198, %v3211
        %v3213 = vcombine.high %v3205, %v3205
        %v3214 = vcombine.high %v3212, %v3212
        %v3216 = vunpack.c.l.s4 1966171168
        %v3217 = vunpack.c.0.s8 %v3216
        %v3218 = vlaneseq
        %v3219 = vshrl.u32 %v3218, 7
        %v3220 = vsub.s32 %v3217, %v3219
        %v3221 = vrot.slane %v3205, %v3220
        %v3223 = vunpack.c.l.s4 1966171168
        %v3224 = vunpack.c.0.s8 %v3223
        %v3225 = vlaneseq
        %v3226 = vshrl.u32 %v3225, 7
        %v3227 = vsub.s32 %v3224, %v3226
        %v3228 = vrot.slane %v3212, %v3227
        %v3230 = vunpack.c.l.s4 1966171168
        %v3231 = vunpack.c.0.s8 %v3230
        %v3232 = vlaneseq
        %v3233 = vshrl.u32 %v3232, 7
        %v3234 = vsub.s32 %v3231, %v3233
        %v3235 = vrot.slane %v3213, %v3234
        %v3237 = vunpack.c.l.s4 1966171168
        %v3238 = vunpack.c.0.s8 %v3237
        %v3239 = vlaneseq
        %v3240 = vshrl.u32 %v3239, 7
        %v3241 = vsub.s32 %v3238, %v3240
        %v3242 = vrot.slane %v3214, %v3241
        %v3243 = vcombine.high %v3221, %v3221
        %v3244 = vcombine.high %v3228, %v3228
        %v3245 = vcombine.high %v3235, %v3235
        %v3246 = vcombine.high %v3242, %v3242
        %v3247 = vcombine.high %v1759, %v1759
        %v3249 = vunpack.c.l.s4 1966171168
        %v3250 = vunpack.c.0.s8 %v3249
        %v3251 = vlaneseq
        %v3252 = vshrl.u32 %v3251, 7
        %v3253 = vsub.s32 %v3250, %v3252
        %v3254 = vrot.slane %v1759, %v3253
        %v3256 = vunpack.c.l.s4 1966171168
        %v3257 = vunpack.c.0.s8 %v3256
        %v3258 = vlaneseq
        %v3259 = vshrl.u32 %v3258, 7
        %v3260 = vsub.s32 %v3257, %v3259
        %v3261 = vrot.slane %v3247, %v3260
        %v3262 = vcombine.high %v3254, %v3254
        %v3263 = vcombine.high %v3261, %v3261
        %v3265 = vunpack.c.l.s4 1966171168
        %v3266 = vunpack.c.0.s8 %v3265
        %v3267 = vlaneseq
        %v3268 = vshrl.u32 %v3267, 7
        %v3269 = vsub.s32 %v3266, %v3268
        %v3270 = vrot.slane %v3254, %v3269
        %v3272 = vunpack.c.l.s4 1966171168
        %v3273 = vunpack.c.0.s8 %v3272
        %v3274 = vlaneseq
        %v3275 = vshrl.u32 %v3274, 7
        %v3276 = vsub.s32 %v3273, %v3275
        %v3277 = vrot.slane %v3261, %v3276
        %v3279 = vunpack.c.l.s4 1966171168
        %v3280 = vunpack.c.0.s8 %v3279
        %v3281 = vlaneseq
        %v3282 = vshrl.u32 %v3281, 7
        %v3283 = vsub.s32 %v3280, %v3282
        %v3284 = vrot.slane %v3262, %v3283
        %v3286 = vunpack.c.l.s4 1966171168
        %v3287 = vunpack.c.0.s8 %v3286
        %v3288 = vlaneseq
        %v3289 = vshrl.u32 %v3288, 7
        %v3290 = vsub.s32 %v3287, %v3289
        %v3291 = vrot.slane %v3263, %v3290
        %v3292 = vcombine.high %v3270, %v3270
        %v3293 = vcombine.high %v3277, %v3277
        %v3294 = vcombine.high %v3284, %v3284
        %v3295 = vcombine.high %v3291, %v3291
        %v3296 = vcombine.high %v1760, %v1760
        %v3298 = vunpack.c.l.s4 1966171168
        %v3299 = vunpack.c.0.s8 %v3298
        %v3300 = vlaneseq
        %v3301 = vshrl.u32 %v3300, 7
        %v3302 = vsub.s32 %v3299, %v3301
        %v3303 = vrot.slane %v1760, %v3302
        %v3305 = vunpack.c.l.s4 1966171168
        %v3306 = vunpack.c.0.s8 %v3305
        %v3307 = vlaneseq
        %v3308 = vshrl.u32 %v3307, 7
        %v3309 = vsub.s32 %v3306, %v3308
        %v3310 = vrot.slane %v3296, %v3309
        %v3311 = vcombine.high %v3303, %v3303
        %v3312 = vcombine.high %v3310, %v3310
        %v3314 = vunpack.c.l.s4 1966171168
        %v3315 = vunpack.c.0.s8 %v3314
        %v3316 = vlaneseq
        %v3317 = vshrl.u32 %v3316, 7
        %v3318 = vsub.s32 %v3315, %v3317
        %v3319 = vrot.slane %v3303, %v3318
        %v3321 = vunpack.c.l.s4 1966171168
        %v3322 = vunpack.c.0.s8 %v3321
        %v3323 = vlaneseq
        %v3324 = vshrl.u32 %v3323, 7
        %v3325 = vsub.s32 %v3322, %v3324
        %v3326 = vrot.slane %v3310, %v3325
        %v3328 = vunpack.c.l.s4 1966171168
        %v3329 = vunpack.c.0.s8 %v3328
        %v3330 = vlaneseq
        %v3331 = vshrl.u32 %v3330, 7
        %v3332 = vsub.s32 %v3329, %v3331
        %v3333 = vrot.slane %v3311, %v3332
        %v3335 = vunpack.c.l.s4 1966171168
        %v3336 = vunpack.c.0.s8 %v3335
        %v3337 = vlaneseq
        %v3338 = vshrl.u32 %v3337, 7
        %v3339 = vsub.s32 %v3336, %v3338
        %v3340 = vrot.slane %v3312, %v3339
        %v3341 = vcombine.high %v3319, %v3319
        %v3342 = vcombine.high %v3326, %v3326
        %v3343 = vcombine.high %v3333, %v3333
        %v3344 = vcombine.high %v3340, %v3340
        %v3345 = vcombine.high %v1761, %v1761
        %v3347 = vunpack.c.l.s4 1966171168
        %v3348 = vunpack.c.0.s8 %v3347
        %v3349 = vlaneseq
        %v3350 = vshrl.u32 %v3349, 7
        %v3351 = vsub.s32 %v3348, %v3350
        %v3352 = vrot.slane %v1761, %v3351
        %v3354 = vunpack.c.l.s4 1966171168
        %v3355 = vunpack.c.0.s8 %v3354
        %v3356 = vlaneseq
        %v3357 = vshrl.u32 %v3356, 7
        %v3358 = vsub.s32 %v3355, %v3357
        %v3359 = vrot.slane %v3345, %v3358
        %v3360 = vcombine.high %v3352, %v3352
        %v3361 = vcombine.high %v3359, %v3359
        %v3363 = vunpack.c.l.s4 1966171168
        %v3364 = vunpack.c.0.s8 %v3363
        %v3365 = vlaneseq
        %v3366 = vshrl.u32 %v3365, 7
        %v3367 = vsub.s32 %v3364, %v3366
        %v3368 = vrot.slane %v3352, %v3367
        %v3370 = vunpack.c.l.s4 1966171168
        %v3371 = vunpack.c.0.s8 %v3370
        %v3372 = vlaneseq
        %v3373 = vshrl.u32 %v3372, 7
        %v3374 = vsub.s32 %v3371, %v3373
        %v3375 = vrot.slane %v3359, %v3374
        %v3377 = vunpack.c.l.s4 1966171168
        %v3378 = vunpack.c.0.s8 %v3377
        %v3379 = vlaneseq
        %v3380 = vshrl.u32 %v3379, 7
        %v3381 = vsub.s32 %v3378, %v3380
        %v3382 = vrot.slane %v3360, %v3381
        %v3384 = vunpack.c.l.s4 1966171168
        %v3385 = vunpack.c.0.s8 %v3384
        %v3386 = vlaneseq
        %v3387 = vshrl.u32 %v3386, 7
        %v3388 = vsub.s32 %v3385, %v3387
        %v3389 = vrot.slane %v3361, %v3388
        %v3390 = vcombine.high %v3368, %v3368
        %v3391 = vcombine.high %v3375, %v3375
        %v3392 = vcombine.high %v3382, %v3382
        %v3393 = vcombine.high %v3389, %v3389
        %v3394 = vcombine.high %v1762, %v1762
        %v3396 = vunpack.c.l.s4 1966171168
        %v3397 = vunpack.c.0.s8 %v3396
        %v3398 = vlaneseq
        %v3399 = vshrl.u32 %v3398, 7
        %v3400 = vsub.s32 %v3397, %v3399
        %v3401 = vrot.slane %v1762, %v3400
        %v3403 = vunpack.c.l.s4 1966171168
        %v3404 = vunpack.c.0.s8 %v3403
        %v3405 = vlaneseq
        %v3406 = vshrl.u32 %v3405, 7
        %v3407 = vsub.s32 %v3404, %v3406
        %v3408 = vrot.slane %v3394, %v3407
        %v3409 = vcombine.high %v3401, %v3401
        %v3410 = vcombine.high %v3408, %v3408
        %v3412 = vunpack.c.l.s4 1966171168
        %v3413 = vunpack.c.0.s8 %v3412
        %v3414 = vlaneseq
        %v3415 = vshrl.u32 %v3414, 7
        %v3416 = vsub.s32 %v3413, %v3415
        %v3417 = vrot.slane %v3401, %v3416
        %v3419 = vunpack.c.l.s4 1966171168
        %v3420 = vunpack.c.0.s8 %v3419
        %v3421 = vlaneseq
        %v3422 = vshrl.u32 %v3421, 7
        %v3423 = vsub.s32 %v3420, %v3422
        %v3424 = vrot.slane %v3408, %v3423
        %v3426 = vunpack.c.l.s4 1966171168
        %v3427 = vunpack.c.0.s8 %v3426
        %v3428 = vlaneseq
        %v3429 = vshrl.u32 %v3428, 7
        %v3430 = vsub.s32 %v3427, %v3429
        %v3431 = vrot.slane %v3409, %v3430
        %v3433 = vunpack.c.l.s4 1966171168
        %v3434 = vunpack.c.0.s8 %v3433
        %v3435 = vlaneseq
        %v3436 = vshrl.u32 %v3435, 7
        %v3437 = vsub.s32 %v3434, %v3436
        %v3438 = vrot.slane %v3410, %v3437
        %v3439 = vcombine.high %v3417, %v3417
        %v3440 = vcombine.high %v3424, %v3424
        %v3441 = vcombine.high %v3431, %v3431
        %v3442 = vcombine.high %v3438, %v3438
        %v3443 = vcombine.high %v1763, %v1763
        %v3445 = vunpack.c.l.s4 1966171168
        %v3446 = vunpack.c.0.s8 %v3445
        %v3447 = vlaneseq
        %v3448 = vshrl.u32 %v3447, 7
        %v3449 = vsub.s32 %v3446, %v3448
        %v3450 = vrot.slane %v1763, %v3449
        %v3452 = vunpack.c.l.s4 1966171168
        %v3453 = vunpack.c.0.s8 %v3452
        %v3454 = vlaneseq
        %v3455 = vshrl.u32 %v3454, 7
        %v3456 = vsub.s32 %v3453, %v3455
        %v3457 = vrot.slane %v3443, %v3456
        %v3458 = vcombine.high %v3450, %v3450
        %v3459 = vcombine.high %v3457, %v3457
        %v3461 = vunpack.c.l.s4 1966171168
        %v3462 = vunpack.c.0.s8 %v3461
        %v3463 = vlaneseq
        %v3464 = vshrl.u32 %v3463, 7
        %v3465 = vsub.s32 %v3462, %v3464
        %v3466 = vrot.slane %v3450, %v3465
        %v3468 = vunpack.c.l.s4 1966171168
        %v3469 = vunpack.c.0.s8 %v3468
        %v3470 = vlaneseq
        %v3471 = vshrl.u32 %v3470, 7
        %v3472 = vsub.s32 %v3469, %v3471
        %v3473 = vrot.slane %v3457, %v3472
        %v3475 = vunpack.c.l.s4 1966171168
        %v3476 = vunpack.c.0.s8 %v3475
        %v3477 = vlaneseq
        %v3478 = vshrl.u32 %v3477, 7
        %v3479 = vsub.s32 %v3476, %v3478
        %v3480 = vrot.slane %v3458, %v3479
        %v3482 = vunpack.c.l.s4 1966171168
        %v3483 = vunpack.c.0.s8 %v3482
        %v3484 = vlaneseq
        %v3485 = vshrl.u32 %v3484, 7
        %v3486 = vsub.s32 %v3483, %v3485
        %v3487 = vrot.slane %v3459, %v3486
        %v3488 = vcombine.high %v3466, %v3466
        %v3489 = vcombine.high %v3473, %v3473
        %v3490 = vcombine.high %v3480, %v3480
        %v3491 = vcombine.high %v3487, %v3487
        %v3492 = vlaneseq
        %v3493 = vshrl.u32 %v3492, 7
        %v3494 = vsub.s32 0, %v3493
        %v3495 = vrot.slane %v2731, %v3494
        %v3496 = vlaneseq
        %v3497 = vshrl.u32 %v3496, 7
        %v3498 = vsub.s32 0, %v3497
        %v3499 = vrot.slane %v2745, %v3498
        %v3500 = vlaneseq
        %v3501 = vshrl.u32 %v3500, 7
        %v3502 = vsub.s32 0, %v3501
        %v3503 = vrot.slane %v2753, %v3502
        %v3504 = vlaneseq
        %v3505 = vshrl.u32 %v3504, 7
        %v3506 = vsub.s32 0, %v3505
        %v3507 = vrot.slane %v2755, %v3506
        %v3508 = vlaneseq
        %v3509 = vshrl.u32 %v3508, 7
        %v3510 = vsub.s32 0, %v3509
        %v3511 = vrot.slane %v2738, %v3510
        %v3512 = vlaneseq
        %v3513 = vshrl.u32 %v3512, 7
        %v3514 = vsub.s32 0, %v3513
        %v3515 = vrot.slane %v2752, %v3514
        %v3516 = vlaneseq
        %v3517 = vshrl.u32 %v3516, 7
        %v3518 = vsub.s32 0, %v3517
        %v3519 = vrot.slane %v2754, %v3518
        %v3520 = vlaneseq
        %v3521 = vshrl.u32 %v3520, 7
        %v3522 = vsub.s32 0, %v3521
        %v3523 = vrot.slane %v2756, %v3522
        %v3524 = vlaneseq
        %v3525 = vshrl.u32 %v3524, 7
        %v3526 = vsub.s32 0, %v3525
        %v3527 = vrot.slane %v2780, %v3526
        %v3528 = vlaneseq
        %v3529 = vshrl.u32 %v3528, 7
        %v3530 = vsub.s32 0, %v3529
        %v3531 = vrot.slane %v2794, %v3530
        %v3532 = vlaneseq
        %v3533 = vshrl.u32 %v3532, 7
        %v3534 = vsub.s32 0, %v3533
        %v3535 = vrot.slane %v2802, %v3534
        %v3536 = vlaneseq
        %v3537 = vshrl.u32 %v3536, 7
        %v3538 = vsub.s32 0, %v3537
        %v3539 = vrot.slane %v2804, %v3538
        %v3540 = vlaneseq
        %v3541 = vshrl.u32 %v3540, 7
        %v3542 = vsub.s32 0, %v3541
        %v3543 = vrot.slane %v2787, %v3542
        %v3544 = vlaneseq
        %v3545 = vshrl.u32 %v3544, 7
        %v3546 = vsub.s32 0, %v3545
        %v3547 = vrot.slane %v2801, %v3546
        %v3548 = vlaneseq
        %v3549 = vshrl.u32 %v3548, 7
        %v3550 = vsub.s32 0, %v3549
        %v3551 = vrot.slane %v2803, %v3550
        %v3552 = vlaneseq
        %v3553 = vshrl.u32 %v3552, 7
        %v3554 = vsub.s32 0, %v3553
        %v3555 = vrot.slane %v2805, %v3554
        %v3556 = vlaneseq
        %v3557 = vshrl.u32 %v3556, 7
        %v3558 = vsub.s32 0, %v3557
        %v3559 = vrot.slane %v2829, %v3558
        %v3560 = vlaneseq
        %v3561 = vshrl.u32 %v3560, 7
        %v3562 = vsub.s32 0, %v3561
        %v3563 = vrot.slane %v2843, %v3562
        %v3564 = vlaneseq
        %v3565 = vshrl.u32 %v3564, 7
        %v3566 = vsub.s32 0, %v3565
        %v3567 = vrot.slane %v2851, %v3566
        %v3568 = vlaneseq
        %v3569 = vshrl.u32 %v3568, 7
        %v3570 = vsub.s32 0, %v3569
        %v3571 = vrot.slane %v2853, %v3570
        %v3572 = vlaneseq
        %v3573 = vshrl.u32 %v3572, 7
        %v3574 = vsub.s32 0, %v3573
        %v3575 = vrot.slane %v2836, %v3574
        %v3576 = vlaneseq
        %v3577 = vshrl.u32 %v3576, 7
        %v3578 = vsub.s32 0, %v3577
        %v3579 = vrot.slane %v2850, %v3578
        %v3580 = vlaneseq
        %v3581 = vshrl.u32 %v3580, 7
        %v3582 = vsub.s32 0, %v3581
        %v3583 = vrot.slane %v2852, %v3582
        %v3584 = vlaneseq
        %v3585 = vshrl.u32 %v3584, 7
        %v3586 = vsub.s32 0, %v3585
        %v3587 = vrot.slane %v2854, %v3586
        %v3588 = vlaneseq
        %v3589 = vshrl.u32 %v3588, 7
        %v3590 = vsub.s32 0, %v3589
        %v3591 = vrot.slane %v2878, %v3590
        %v3592 = vlaneseq
        %v3593 = vshrl.u32 %v3592, 7
        %v3594 = vsub.s32 0, %v3593
        %v3595 = vrot.slane %v2892, %v3594
        %v3596 = vlaneseq
        %v3597 = vshrl.u32 %v3596, 7
        %v3598 = vsub.s32 0, %v3597
        %v3599 = vrot.slane %v2900, %v3598
        %v3600 = vlaneseq
        %v3601 = vshrl.u32 %v3600, 7
        %v3602 = vsub.s32 0, %v3601
        %v3603 = vrot.slane %v2902, %v3602
        %v3604 = vlaneseq
        %v3605 = vshrl.u32 %v3604, 7
        %v3606 = vsub.s32 0, %v3605
        %v3607 = vrot.slane %v2885, %v3606
        %v3608 = vlaneseq
        %v3609 = vshrl.u32 %v3608, 7
        %v3610 = vsub.s32 0, %v3609
        %v3611 = vrot.slane %v2899, %v3610
        %v3612 = vlaneseq
        %v3613 = vshrl.u32 %v3612, 7
        %v3614 = vsub.s32 0, %v3613
        %v3615 = vrot.slane %v2901, %v3614
        %v3616 = vlaneseq
        %v3617 = vshrl.u32 %v3616, 7
        %v3618 = vsub.s32 0, %v3617
        %v3619 = vrot.slane %v2903, %v3618
        %v3620 = vlaneseq
        %v3621 = vshrl.u32 %v3620, 7
        %v3622 = vsub.s32 0, %v3621
        %v3623 = vrot.slane %v2927, %v3622
        %v3624 = vlaneseq
        %v3625 = vshrl.u32 %v3624, 7
        %v3626 = vsub.s32 0, %v3625
        %v3627 = vrot.slane %v2941, %v3626
        %v3628 = vlaneseq
        %v3629 = vshrl.u32 %v3628, 7
        %v3630 = vsub.s32 0, %v3629
        %v3631 = vrot.slane %v2949, %v3630
        %v3632 = vlaneseq
        %v3633 = vshrl.u32 %v3632, 7
        %v3634 = vsub.s32 0, %v3633
        %v3635 = vrot.slane %v2951, %v3634
        %v3636 = vlaneseq
        %v3637 = vshrl.u32 %v3636, 7
        %v3638 = vsub.s32 0, %v3637
        %v3639 = vrot.slane %v2934, %v3638
        %v3640 = vlaneseq
        %v3641 = vshrl.u32 %v3640, 7
        %v3642 = vsub.s32 0, %v3641
        %v3643 = vrot.slane %v2948, %v3642
        %v3644 = vlaneseq
        %v3645 = vshrl.u32 %v3644, 7
        %v3646 = vsub.s32 0, %v3645
        %v3647 = vrot.slane %v2950, %v3646
        %v3648 = vlaneseq
        %v3649 = vshrl.u32 %v3648, 7
        %v3650 = vsub.s32 0, %v3649
        %v3651 = vrot.slane %v2952, %v3650
        %v3652 = vlaneseq
        %v3653 = vshrl.u32 %v3652, 7
        %v3654 = vsub.s32 0, %v3653
        %v3655 = vrot.slane %v2976, %v3654
        %v3656 = vlaneseq
        %v3657 = vshrl.u32 %v3656, 7
        %v3658 = vsub.s32 0, %v3657
        %v3659 = vrot.slane %v2990, %v3658
        %v3660 = vlaneseq
        %v3661 = vshrl.u32 %v3660, 7
        %v3662 = vsub.s32 0, %v3661
        %v3663 = vrot.slane %v2998, %v3662
        %v3664 = vlaneseq
        %v3665 = vshrl.u32 %v3664, 7
        %v3666 = vsub.s32 0, %v3665
        %v3667 = vrot.slane %v3000, %v3666
        %v3668 = vlaneseq
        %v3669 = vshrl.u32 %v3668, 7
        %v3670 = vsub.s32 0, %v3669
        %v3671 = vrot.slane %v2983, %v3670
        %v3672 = vlaneseq
        %v3673 = vshrl.u32 %v3672, 7
        %v3674 = vsub.s32 0, %v3673
        %v3675 = vrot.slane %v2997, %v3674
        %v3676 = vlaneseq
        %v3677 = vshrl.u32 %v3676, 7
        %v3678 = vsub.s32 0, %v3677
        %v3679 = vrot.slane %v2999, %v3678
        %v3680 = vlaneseq
        %v3681 = vshrl.u32 %v3680, 7
        %v3682 = vsub.s32 0, %v3681
        %v3683 = vrot.slane %v3001, %v3682
        %v3684 = vlaneseq
        %v3685 = vshrl.u32 %v3684, 7
        %v3686 = vsub.s32 0, %v3685
        %v3687 = vrot.slane %v3025, %v3686
        %v3688 = vlaneseq
        %v3689 = vshrl.u32 %v3688, 7
        %v3690 = vsub.s32 0, %v3689
        %v3691 = vrot.slane %v3039, %v3690
        %v3692 = vlaneseq
        %v3693 = vshrl.u32 %v3692, 7
        %v3694 = vsub.s32 0, %v3693
        %v3695 = vrot.slane %v3047, %v3694
        %v3696 = vlaneseq
        %v3697 = vshrl.u32 %v3696, 7
        %v3698 = vsub.s32 0, %v3697
        %v3699 = vrot.slane %v3049, %v3698
        %v3700 = vlaneseq
        %v3701 = vshrl.u32 %v3700, 7
        %v3702 = vsub.s32 0, %v3701
        %v3703 = vrot.slane %v3032, %v3702
        %v3704 = vlaneseq
        %v3705 = vshrl.u32 %v3704, 7
        %v3706 = vsub.s32 0, %v3705
        %v3707 = vrot.slane %v3046, %v3706
        %v3708 = vlaneseq
        %v3709 = vshrl.u32 %v3708, 7
        %v3710 = vsub.s32 0, %v3709
        %v3711 = vrot.slane %v3048, %v3710
        %v3712 = vlaneseq
        %v3713 = vshrl.u32 %v3712, 7
        %v3714 = vsub.s32 0, %v3713
        %v3715 = vrot.slane %v3050, %v3714
        %v3716 = vlaneseq
        %v3717 = vshrl.u32 %v3716, 7
        %v3718 = vsub.s32 0, %v3717
        %v3719 = vrot.slane %v3074, %v3718
        %v3720 = vlaneseq
        %v3721 = vshrl.u32 %v3720, 7
        %v3722 = vsub.s32 0, %v3721
        %v3723 = vrot.slane %v3088, %v3722
        %v3724 = vlaneseq
        %v3725 = vshrl.u32 %v3724, 7
        %v3726 = vsub.s32 0, %v3725
        %v3727 = vrot.slane %v3096, %v3726
        %v3728 = vlaneseq
        %v3729 = vshrl.u32 %v3728, 7
        %v3730 = vsub.s32 0, %v3729
        %v3731 = vrot.slane %v3098, %v3730
        %v3732 = vlaneseq
        %v3733 = vshrl.u32 %v3732, 7
        %v3734 = vsub.s32 0, %v3733
        %v3735 = vrot.slane %v3081, %v3734
        %v3736 = vlaneseq
        %v3737 = vshrl.u32 %v3736, 7
        %v3738 = vsub.s32 0, %v3737
        %v3739 = vrot.slane %v3095, %v3738
        %v3740 = vlaneseq
        %v3741 = vshrl.u32 %v3740, 7
        %v3742 = vsub.s32 0, %v3741
        %v3743 = vrot.slane %v3097, %v3742
        %v3744 = vlaneseq
        %v3745 = vshrl.u32 %v3744, 7
        %v3746 = vsub.s32 0, %v3745
        %v3747 = vrot.slane %v3099, %v3746
        %v3748 = vlaneseq
        %v3749 = vshrl.u32 %v3748, 7
        %v3750 = vsub.s32 0, %v3749
        %v3751 = vrot.slane %v3123, %v3750
        %v3752 = vlaneseq
        %v3753 = vshrl.u32 %v3752, 7
        %v3754 = vsub.s32 0, %v3753
        %v3755 = vrot.slane %v3137, %v3754
        %v3756 = vlaneseq
        %v3757 = vshrl.u32 %v3756, 7
        %v3758 = vsub.s32 0, %v3757
        %v3759 = vrot.slane %v3145, %v3758
        %v3760 = vlaneseq
        %v3761 = vshrl.u32 %v3760, 7
        %v3762 = vsub.s32 0, %v3761
        %v3763 = vrot.slane %v3147, %v3762
        %v3764 = vlaneseq
        %v3765 = vshrl.u32 %v3764, 7
        %v3766 = vsub.s32 0, %v3765
        %v3767 = vrot.slane %v3130, %v3766
        %v3768 = vlaneseq
        %v3769 = vshrl.u32 %v3768, 7
        %v3770 = vsub.s32 0, %v3769
        %v3771 = vrot.slane %v3144, %v3770
        %v3772 = vlaneseq
        %v3773 = vshrl.u32 %v3772, 7
        %v3774 = vsub.s32 0, %v3773
        %v3775 = vrot.slane %v3146, %v3774
        %v3776 = vlaneseq
        %v3777 = vshrl.u32 %v3776, 7
        %v3778 = vsub.s32 0, %v3777
        %v3779 = vrot.slane %v3148, %v3778
        %v3780 = vlaneseq
        %v3781 = vshrl.u32 %v3780, 7
        %v3782 = vsub.s32 0, %v3781
        %v3783 = vrot.slane %v3172, %v3782
        %v3784 = vlaneseq
        %v3785 = vshrl.u32 %v3784, 7
        %v3786 = vsub.s32 0, %v3785
        %v3787 = vrot.slane %v3186, %v3786
        %v3788 = vlaneseq
        %v3789 = vshrl.u32 %v3788, 7
        %v3790 = vsub.s32 0, %v3789
        %v3791 = vrot.slane %v3194, %v3790
        %v3792 = vlaneseq
        %v3793 = vshrl.u32 %v3792, 7
        %v3794 = vsub.s32 0, %v3793
        %v3795 = vrot.slane %v3196, %v3794
        %v3796 = vlaneseq
        %v3797 = vshrl.u32 %v3796, 7
        %v3798 = vsub.s32 0, %v3797
        %v3799 = vrot.slane %v3179, %v3798
        %v3800 = vlaneseq
        %v3801 = vshrl.u32 %v3800, 7
        %v3802 = vsub.s32 0, %v3801
        %v3803 = vrot.slane %v3193, %v3802
        %v3804 = vlaneseq
        %v3805 = vshrl.u32 %v3804, 7
        %v3806 = vsub.s32 0, %v3805
        %v3807 = vrot.slane %v3195, %v3806
        %v3808 = vlaneseq
        %v3809 = vshrl.u32 %v3808, 7
        %v3810 = vsub.s32 0, %v3809
        %v3811 = vrot.slane %v3197, %v3810
        %v3812 = vlaneseq
        %v3813 = vshrl.u32 %v3812, 7
        %v3814 = vsub.s32 0, %v3813
        %v3815 = vrot.slane %v3221, %v3814
        %v3816 = vlaneseq
        %v3817 = vshrl.u32 %v3816, 7
        %v3818 = vsub.s32 0, %v3817
        %v3819 = vrot.slane %v3235, %v3818
        %v3820 = vlaneseq
        %v3821 = vshrl.u32 %v3820, 7
        %v3822 = vsub.s32 0, %v3821
        %v3823 = vrot.slane %v3243, %v3822
        %v3824 = vlaneseq
        %v3825 = vshrl.u32 %v3824, 7
        %v3826 = vsub.s32 0, %v3825
        %v3827 = vrot.slane %v3245, %v3826
        %v3828 = vlaneseq
        %v3829 = vshrl.u32 %v3828, 7
        %v3830 = vsub.s32 0, %v3829
        %v3831 = vrot.slane %v3228, %v3830
        %v3832 = vlaneseq
        %v3833 = vshrl.u32 %v3832, 7
        %v3834 = vsub.s32 0, %v3833
        %v3835 = vrot.slane %v3242, %v3834
        %v3836 = vlaneseq
        %v3837 = vshrl.u32 %v3836, 7
        %v3838 = vsub.s32 0, %v3837
        %v3839 = vrot.slane %v3244, %v3838
        %v3840 = vlaneseq
        %v3841 = vshrl.u32 %v3840, 7
        %v3842 = vsub.s32 0, %v3841
        %v3843 = vrot.slane %v3246, %v3842
        %v3844 = vlaneseq
        %v3845 = vshrl.u32 %v3844, 7
        %v3846 = vsub.s32 0, %v3845
        %v3847 = vrot.slane %v3270, %v3846
        %v3848 = vlaneseq
        %v3849 = vshrl.u32 %v3848, 7
        %v3850 = vsub.s32 0, %v3849
        %v3851 = vrot.slane %v3284, %v3850
        %v3852 = vlaneseq
        %v3853 = vshrl.u32 %v3852, 7
        %v3854 = vsub.s32 0, %v3853
        %v3855 = vrot.slane %v3292, %v3854
        %v3856 = vlaneseq
        %v3857 = vshrl.u32 %v3856, 7
        %v3858 = vsub.s32 0, %v3857
        %v3859 = vrot.slane %v3294, %v3858
        %v3860 = vlaneseq
        %v3861 = vshrl.u32 %v3860, 7
        %v3862 = vsub.s32 0, %v3861
        %v3863 = vrot.slane %v3277, %v3862
        %v3864 = vlaneseq
        %v3865 = vshrl.u32 %v3864, 7
        %v3866 = vsub.s32 0, %v3865
        %v3867 = vrot.slane %v3291, %v3866
        %v3868 = vlaneseq
        %v3869 = vshrl.u32 %v3868, 7
        %v3870 = vsub.s32 0, %v3869
        %v3871 = vrot.slane %v3293, %v3870
        %v3872 = vlaneseq
        %v3873 = vshrl.u32 %v3872, 7
        %v3874 = vsub.s32 0, %v3873
        %v3875 = vrot.slane %v3295, %v3874
        %v3876 = vlaneseq
        %v3877 = vshrl.u32 %v3876, 7
        %v3878 = vsub.s32 0, %v3877
        %v3879 = vrot.slane %v3319, %v3878
        %v3880 = vlaneseq
        %v3881 = vshrl.u32 %v3880, 7
        %v3882 = vsub.s32 0, %v3881
        %v3883 = vrot.slane %v3333, %v3882
        %v3884 = vlaneseq
        %v3885 = vshrl.u32 %v3884, 7
        %v3886 = vsub.s32 0, %v3885
        %v3887 = vrot.slane %v3341, %v3886
        %v3888 = vlaneseq
        %v3889 = vshrl.u32 %v3888, 7
        %v3890 = vsub.s32 0, %v3889
        %v3891 = vrot.slane %v3343, %v3890
        %v3892 = vlaneseq
        %v3893 = vshrl.u32 %v3892, 7
        %v3894 = vsub.s32 0, %v3893
        %v3895 = vrot.slane %v3326, %v3894
        %v3896 = vlaneseq
        %v3897 = vshrl.u32 %v3896, 7
        %v3898 = vsub.s32 0, %v3897
        %v3899 = vrot.slane %v3340, %v3898
        %v3900 = vlaneseq
        %v3901 = vshrl.u32 %v3900, 7
        %v3902 = vsub.s32 0, %v3901
        %v3903 = vrot.slane %v3342, %v3902
        %v3904 = vlaneseq
        %v3905 = vshrl.u32 %v3904, 7
        %v3906 = vsub.s32 0, %v3905
        %v3907 = vrot.slane %v3344, %v3906
        %v3908 = vlaneseq
        %v3909 = vshrl.u32 %v3908, 7
        %v3910 = vsub.s32 0, %v3909
        %v3911 = vrot.slane %v3368, %v3910
        %v3912 = vlaneseq
        %v3913 = vshrl.u32 %v3912, 7
        %v3914 = vsub.s32 0, %v3913
        %v3915 = vrot.slane %v3382, %v3914
        %v3916 = vlaneseq
        %v3917 = vshrl.u32 %v3916, 7
        %v3918 = vsub.s32 0, %v3917
        %v3919 = vrot.slane %v3390, %v3918
        %v3920 = vlaneseq
        %v3921 = vshrl.u32 %v3920, 7
        %v3922 = vsub.s32 0, %v3921
        %v3923 = vrot.slane %v3392, %v3922
        %v3924 = vlaneseq
        %v3925 = vshrl.u32 %v3924, 7
        %v3926 = vsub.s32 0, %v3925
        %v3927 = vrot.slane %v3375, %v3926
        %v3928 = vlaneseq
        %v3929 = vshrl.u32 %v3928, 7
        %v3930 = vsub.s32 0, %v3929
        %v3931 = vrot.slane %v3389, %v3930
        %v3932 = vlaneseq
        %v3933 = vshrl.u32 %v3932, 7
        %v3934 = vsub.s32 0, %v3933
        %v3935 = vrot.slane %v3391, %v3934
        %v3936 = vlaneseq
        %v3937 = vshrl.u32 %v3936, 7
        %v3938 = vsub.s32 0, %v3937
        %v3939 = vrot.slane %v3393, %v3938
        %v3940 = vlaneseq
        %v3941 = vshrl.u32 %v3940, 7
        %v3942 = vsub.s32 0, %v3941
        %v3943 = vrot.slane %v3417, %v3942
        %v3944 = vlaneseq
        %v3945 = vshrl.u32 %v3944, 7
        %v3946 = vsub.s32 0, %v3945
        %v3947 = vrot.slane %v3431, %v3946
        %v3948 = vlaneseq
        %v3949 = vshrl.u32 %v3948, 7
        %v3950 = vsub.s32 0, %v3949
        %v3951 = vrot.slane %v3439, %v3950
        %v3952 = vlaneseq
        %v3953 = vshrl.u32 %v3952, 7
        %v3954 = vsub.s32 0, %v3953
        %v3955 = vrot.slane %v3441, %v3954
        %v3956 = vlaneseq
        %v3957 = vshrl.u32 %v3956, 7
        %v3958 = vsub.s32 0, %v3957
        %v3959 = vrot.slane %v3424, %v3958
        %v3960 = vlaneseq
        %v3961 = vshrl.u32 %v3960, 7
        %v3962 = vsub.s32 0, %v3961
        %v3963 = vrot.slane %v3438, %v3962
        %v3964 = vlaneseq
        %v3965 = vshrl.u32 %v3964, 7
        %v3966 = vsub.s32 0, %v3965
        %v3967 = vrot.slane %v3440, %v3966
        %v3968 = vlaneseq
        %v3969 = vshrl.u32 %v3968, 7
        %v3970 = vsub.s32 0, %v3969
        %v3971 = vrot.slane %v3442, %v3970
        %v3972 = vlaneseq
        %v3973 = vshrl.u32 %v3972, 7
        %v3974 = vsub.s32 0, %v3973
        %v3975 = vrot.slane %v3466, %v3974
        %v3976 = vlaneseq
        %v3977 = vshrl.u32 %v3976, 7
        %v3978 = vsub.s32 0, %v3977
        %v3979 = vrot.slane %v3480, %v3978
        %v3980 = vlaneseq
        %v3981 = vshrl.u32 %v3980, 7
        %v3982 = vsub.s32 0, %v3981
        %v3983 = vrot.slane %v3488, %v3982
        %v3984 = vlaneseq
        %v3985 = vshrl.u32 %v3984, 7
        %v3986 = vsub.s32 0, %v3985
        %v3987 = vrot.slane %v3490, %v3986
        %v3988 = vlaneseq
        %v3989 = vshrl.u32 %v3988, 7
        %v3990 = vsub.s32 0, %v3989
        %v3991 = vrot.slane %v3473, %v3990
        %v3992 = vlaneseq
        %v3993 = vshrl.u32 %v3992, 7
        %v3994 = vsub.s32 0, %v3993
        %v3995 = vrot.slane %v3487, %v3994
        %v3996 = vlaneseq
        %v3997 = vshrl.u32 %v3996, 7
        %v3998 = vsub.s32 0, %v3997
        %v3999 = vrot.slane %v3489, %v3998
        %v4000 = vlaneseq
        %v4001 = vshrl.u32 %v4000, 7
        %v4002 = vsub.s32 0, %v4001
        %v4003 = vrot.slane %v3491, %v4002
        %vm4132 = vcmask 1040384
        %v4133 = vsel %vm4132, %v1803, %v3495
        %v4134 = vsel %vm4132, %v1817, %v3499
        %v4135 = vsel %vm4132, %v1825, %v3503
        %v4136 = vsel %vm4132, %v1827, %v3507
        %v4137 = vsel %vm4132, %v1810, %v3511
        %v4138 = vsel %vm4132, %v1824, %v3515
        %v4139 = vsel %vm4132, %v1826, %v3519
        %v4140 = vsel %vm4132, %v1828, %v3523
        %v4141 = vsel %vm4132, %v1852, %v3527
        %v4142 = vsel %vm4132, %v1866, %v3531
        %v4143 = vsel %vm4132, %v1874, %v3535
        %v4144 = vsel %vm4132, %v1876, %v3539
        %v4145 = vsel %vm4132, %v1859, %v3543
        %v4146 = vsel %vm4132, %v1873, %v3547
        %v4147 = vsel %vm4132, %v1875, %v3551
        %v4148 = vsel %vm4132, %v1877, %v3555
        %v4149 = vsel %vm4132, %v1901, %v3559
        %v4150 = vsel %vm4132, %v1915, %v3563
        %v4151 = vsel %vm4132, %v1923, %v3567
        %v4152 = vsel %vm4132, %v1925, %v3571
        %v4153 = vsel %vm4132, %v1908, %v3575
        %v4154 = vsel %vm4132, %v1922, %v3579
        %v4155 = vsel %vm4132, %v1924, %v3583
        %v4156 = vsel %vm4132, %v1926, %v3587
        %v4157 = vsel %vm4132, %v1950, %v3591
        %v4158 = vsel %vm4132, %v1964, %v3595
        %v4159 = vsel %vm4132, %v1972, %v3599
        %v4160 = vsel %vm4132, %v1974, %v3603
        %v4161 = vsel %vm4132, %v1957, %v3607
        %v4162 = vsel %vm4132, %v1971, %v3611
        %v4163 = vsel %vm4132, %v1973, %v3615
        %v4164 = vsel %vm4132, %v1975, %v3619
        %v4165 = vsel %vm4132, %v1999, %v3623
        %v4166 = vsel %vm4132, %v2013, %v3627
        %v4167 = vsel %vm4132, %v2021, %v3631
        %v4168 = vsel %vm4132, %v2023, %v3635
        %v4169 = vsel %vm4132, %v2006, %v3639
        %v4170 = vsel %vm4132, %v2020, %v3643
        %v4171 = vsel %vm4132, %v2022, %v3647
        %v4172 = vsel %vm4132, %v2024, %v3651
        %v4173 = vsel %vm4132, %v2048, %v3655
        %v4174 = vsel %vm4132, %v2062, %v3659
        %v4175 = vsel %vm4132, %v2070, %v3663
        %v4176 = vsel %vm4132, %v2072, %v3667
        %v4177 = vsel %vm4132, %v2055, %v3671
        %v4178 = vsel %vm4132, %v2069, %v3675
        %v4179 = vsel %vm4132, %v2071, %v3679
        %v4180 = vsel %vm4132, %v2073, %v3683
        %v4181 = vsel %vm4132, %v2097, %v3687
        %v4182 = vsel %vm4132, %v2111, %v3691
        %v4183 = vsel %vm4132, %v2119, %v3695
        %v4184 = vsel %vm4132, %v2121, %v3699
        %v4185 = vsel %vm4132, %v2104, %v3703
        %v4186 = vsel %vm4132, %v2118, %v3707
        %v4187 = vsel %vm4132, %v2120, %v3711
        %v4188 = vsel %vm4132, %v2122, %v3715
        %v4189 = vsel %vm4132, %v2146, %v3719
        %v4190 = vsel %vm4132, %v2160, %v3723
        %v4191 = vsel %vm4132, %v2168, %v3727
        %v4192 = vsel %vm4132, %v2170, %v3731
        %v4193 = vsel %vm4132, %v2153, %v3735
        %v4194 = vsel %vm4132, %v2167, %v3739
        %v4195 = vsel %vm4132, %v2169, %v3743
        %v4196 = vsel %vm4132, %v2171, %v3747
        %v4197 = vsel %vm4132, %v2195, %v3751
        %v4198 = vsel %vm4132, %v2209, %v3755
        %v4199 = vsel %vm4132, %v2217, %v3759
        %v4200 = vsel %vm4132, %v2219, %v3763
        %v4201 = vsel %vm4132, %v2202, %v3767
        %v4202 = vsel %vm4132, %v2216, %v3771
        %v4203 = vsel %vm4132, %v2218, %v3775
        %v4204 = vsel %vm4132, %v2220, %v3779
        %v4205 = vsel %vm4132, %v2244, %v3783
        %v4206 = vsel %vm4132, %v2258, %v3787
        %v4207 = vsel %vm4132, %v2266, %v3791
        %v4208 = vsel %vm4132, %v2268, %v3795
        %v4209 = vsel %vm4132, %v2251, %v3799
        %v4210 = vsel %vm4132, %v2265, %v3803
        %v4211 = vsel %vm4132, %v2267, %v3807
        %v4212 = vsel %vm4132, %v2269, %v3811
        %v4213 = vsel %vm4132, %v2293, %v3815
        %v4214 = vsel %vm4132, %v2307, %v3819
        %v4215 = vsel %vm4132, %v2315, %v3823
        %v4216 = vsel %vm4132, %v2317, %v3827
        %v4217 = vsel %vm4132, %v2300, %v3831
        %v4218 = vsel %vm4132, %v2314, %v3835
        %v4219 = vsel %vm4132, %v2316, %v3839
        %v4220 = vsel %vm4132, %v2318, %v3843
        %v4221 = vsel %vm4132, %v2342, %v3847
        %v4222 = vsel %vm4132, %v2356, %v3851
        %v4223 = vsel %vm4132, %v2364, %v3855
        %v4224 = vsel %vm4132, %v2366, %v3859
        %v4225 = vsel %vm4132, %v2349, %v3863
        %v4226 = vsel %vm4132, %v2363, %v3867
        %v4227 = vsel %vm4132, %v2365, %v3871
        %v4228 = vsel %vm4132, %v2367, %v3875
        %v4229 = vsel %vm4132, %v2391, %v3879
        %v4230 = vsel %vm4132, %v2405, %v3883
        %v4231 = vsel %vm4132, %v2413, %v3887
        %v4232 = vsel %vm4132, %v2415, %v3891
        %v4233 = vsel %vm4132, %v2398, %v3895
        %v4234 = vsel %vm4132, %v2412, %v3899
        %v4235 = vsel %vm4132, %v2414, %v3903
        %v4236 = vsel %vm4132, %v2416, %v3907
        %v4237 = vsel %vm4132, %v2440, %v3911
        %v4238 = vsel %vm4132, %v2454, %v3915
        %v4239 = vsel %vm4132, %v2462, %v3919
        %v4240 = vsel %vm4132, %v2464, %v3923
        %v4241 = vsel %vm4132, %v2447, %v3927
        %v4242 = vsel %vm4132, %v2461, %v3931
        %v4243 = vsel %vm4132, %v2463, %v3935
        %v4244 = vsel %vm4132, %v2465, %v3939
        %v4245 = vsel %vm4132, %v2489, %v3943
        %v4246 = vsel %vm4132, %v2503, %v3947
        %v4247 = vsel %vm4132, %v2511, %v3951
        %v4248 = vsel %vm4132, %v2513, %v3955
        %v4249 = vsel %vm4132, %v2496, %v3959
        %v4250 = vsel %vm4132, %v2510, %v3963
        %v4251 = vsel %vm4132, %v2512, %v3967
        %v4252 = vsel %vm4132, %v2514, %v3971
        %v4253 = vsel %vm4132, %v2538, %v3975
        %v4254 = vsel %vm4132, %v2552, %v3979
        %v4255 = vsel %vm4132, %v2560, %v3983
        %v4256 = vsel %vm4132, %v2562, %v3987
        %v4257 = vsel %vm4132, %v2545, %v3991
        %v4258 = vsel %vm4132, %v2559, %v3995
        %v4259 = vsel %vm4132, %v2561, %v3999
        %v4260 = vsel %vm4132, %v2563, %v4003
        %v4264 = vrot.slane %v214, 1
        %v4265 = vrot.slane %v215, 1
        %v4266 = vsel %vm242, %v4264, %v4265
        %v4267 = vrot.slane %v216, 1
        %v4268 = vsel %vm242, %v4265, %v4267
        %s4269 = scalar_lea.vmem %s1, 16
        %v4270 = vld [vmem:[%s4269] sm:$0xff]
        %v4271 = vld [vmem:[%s4269 + $0x8] sm:$0xff]
        %s4272 = scalar_lea.vmem %s1, 48
        %v4273 = vld [vmem:[%s4272] sm:$0xff]
        %v4274 = vld [vmem:[%s4272 + $0x8] sm:$0xff]
        %v4275 = vsel %vm289, %v214, 0
        %v4277 = vsel %vm289, %v215, 0
        %4279 = vmatprep.subr.mxu0 0.0
        %4280 = vmatpush1.msra.mxu0 0.0
        %4281 = vmatprep.subr.mxu0 0.0
        %4282 = vmatpush1.msra.mxu0 0.0
        %4283 = vmatprep.subr.mxu0 0.0
        %4284 = vmatpush1.msra.mxu0 0.0
        %4285 = vmatprep.subr.mxu0 0.0
        %4286 = vmatpush1.msra.mxu0 0.0
        %4287 = vmatprep.subr.mxu0 0.0
        %4288 = vmatpush1.msra.mxu0 0.0
        %4289 = vmatprep.subr.mxu0 0.0
        %4290 = vmatpush1.msra.mxu0 0.0
        %4291 = vmatprep.subr.mxu0 0.0
        %4292 = vmatpush1.msra.mxu0 0.0
        %4293 = vmatprep.subr.mxu0 0.0
        %4294 = vmatpush1.msra.mxu0 0.0
        %4295 = vmatprep.subr.mxu0 0.0
        %4296 = vmatpush1.msra.mxu0 0.0
        %4297 = vmatprep.subr.mxu0 0.0
        %4298 = vmatpush1.msra.mxu0 0.0
        %4299 = vmatprep.subr.mxu0 0.0
        %4300 = vmatpush1.msra.mxu0 0.0
        %4301 = vmatprep.subr.mxu0 0.0
        %4302 = vmatpush1.msra.mxu0 0.0
        %4303 = vmatprep.subr.mxu0 0.0
        %4304 = vmatpush1.msra.mxu0 0.0
        %4305 = vmatprep.subr.mxu0 0.0
        %4306 = vmatpush1.msra.mxu0 0.0
        %4307 = vmatprep.subr.mxu0 0.0
        %4308 = vmatpush1.msra.mxu0 %v4274
        %4309 = vmatprep.subr.mxu0 0.0
        %4310 = vmatpush1.msra.mxu0 %v4273
        %4311 = vmatprep.subr.mxu0 0.0
        %4312 = vmatpush2.msra.mxu0 0.0
        %4313 = vmatprep.subr.mxu0 0.0
        %4314 = vmatpush2.msra.mxu0 0.0
        %4315 = vmatprep.subr.mxu0 0.0
        %4316 = vmatpush2.msra.mxu0 0.0
        %4317 = vmatprep.subr.mxu0 0.0
        %4318 = vmatpush2.msra.mxu0 0.0
        %4319 = vmatprep.subr.mxu0 0.0
        %4320 = vmatpush2.msra.mxu0 0.0
        %4321 = vmatprep.subr.mxu0 0.0
        %4322 = vmatpush2.msra.mxu0 0.0
        %4323 = vmatprep.subr.mxu0 0.0
        %4324 = vmatpush2.msra.mxu0 0.0
        %4325 = vmatprep.subr.mxu0 0.0
        %4326 = vmatpush2.msra.mxu0 0.0
        %4327 = vmatprep.subr.mxu0 0.0
        %4328 = vmatpush2.msra.mxu0 0.0
        %4329 = vmatprep.subr.mxu0 0.0
        %4330 = vmatpush2.msra.mxu0 0.0
        %4331 = vmatprep.subr.mxu0 0.0
        %4332 = vmatpush2.msra.mxu0 0.0
        %4333 = vmatprep.subr.mxu0 0.0
        %4334 = vmatpush2.msra.mxu0 0.0
        %4335 = vmatprep.subr.mxu0 0.0
        %4336 = vmatpush2.msra.mxu0 0.0
        %4337 = vmatprep.subr.mxu0 0.0
        %4338 = vmatpush2.msra.mxu0 0.0
        %4339 = vmatprep.subr.mxu0 0.0
        %4340 = vmatpush2.msra.mxu0 0.0
        %4341 = vmatprep.subr.mxu0 0.0
        %4342 = vmatpush2.msra.mxu0 0.0
        %4343 = vmatprep.mubr.f32.mxu0 0.0
        %4344 = vmatmul.mubr.f32.gmra.mxu0 %v294
        %v4345 = vpop.f32.mrf.mxu0
        %v4346 = vadd.f32 0.0, %v4345
        %v4347 = vpop.f32.mrf.mxu0
        %4348 = vmatprep.mubr.f32.mxu0 0.0
        %4349 = vmatmul.mubr.f32.gmra.mxu0 %v296
        %v4350 = vpop.f32.mrf.mxu0
        %v4351 = vadd.f32 0.0, %v4350
        %v4352 = vpop.f32.mrf.mxu0
        %4353 = vmatprep.mubr.f32.mxu0 0.0
        %4354 = vmatmul.mubr.f32.gmra.mxu0 %v298
        %v4355 = vpop.f32.mrf.mxu0
        %v4356 = vadd.f32 0.0, %v4355
        %v4357 = vpop.f32.mrf.mxu0
        %4358 = vmatprep.mubr.f32.mxu0 0.0
        %4359 = vmatmul.mubr.f32.gmra.mxu0 %v300
        %v4360 = vpop.f32.mrf.mxu0
        %v4361 = vadd.f32 0.0, %v4360
        %v4362 = vpop.f32.mrf.mxu0
        %4363 = vmatprep.mubr.f32.mxu0 0.0
        %4364 = vmatmul.mubr.f32.gmra.mxu0 %v302
        %v4365 = vpop.f32.mrf.mxu0
        %v4366 = vadd.f32 0.0, %v4365
        %v4367 = vpop.f32.mrf.mxu0
        %4368 = vmatprep.mubr.f32.mxu0 0.0
        %4369 = vmatmul.mubr.f32.gmra.mxu0 %v304
        %v4370 = vpop.f32.mrf.mxu0
        %v4371 = vadd.f32 0.0, %v4370
        %v4372 = vpop.f32.mrf.mxu0
        %4373 = vmatprep.mubr.f32.mxu0 0.0
        %4374 = vmatmul.mubr.f32.gmra.mxu0 %v306
        %v4375 = vpop.f32.mrf.mxu0
        %v4376 = vadd.f32 0.0, %v4375
        %v4377 = vpop.f32.mrf.mxu0
        %4378 = vmatprep.mubr.f32.mxu0 0.0
        %4379 = vmatmul.mubr.f32.gmra.mxu0 %v308
        %v4380 = vpop.f32.mrf.mxu0
        %v4381 = vadd.f32 0.0, %v4380
        %v4382 = vpop.f32.mrf.mxu0
        %4383 = vmatprep.mubr.f32.mxu0 0.0
        %4384 = vmatmul.mubr.f32.gmra.mxu0 %v310
        %v4385 = vpop.f32.mrf.mxu0
        %v4386 = vadd.f32 0.0, %v4385
        %v4387 = vpop.f32.mrf.mxu0
        %4388 = vmatprep.mubr.f32.mxu0 0.0
        %4389 = vmatmul.mubr.f32.gmra.mxu0 %v312
        %v4390 = vpop.f32.mrf.mxu0
        %v4391 = vadd.f32 0.0, %v4390
        %v4392 = vpop.f32.mrf.mxu0
        %4393 = vmatprep.mubr.f32.mxu0 0.0
        %4394 = vmatmul.mubr.f32.gmra.mxu0 %v314
        %v4395 = vpop.f32.mrf.mxu0
        %v4396 = vadd.f32 0.0, %v4395
        %v4397 = vpop.f32.mrf.mxu0
        %4398 = vmatprep.mubr.f32.mxu0 0.0
        %4399 = vmatmul.mubr.f32.gmra.mxu0 %v316
        %v4400 = vpop.f32.mrf.mxu0
        %v4401 = vadd.f32 0.0, %v4400
        %v4402 = vpop.f32.mrf.mxu0
        %4403 = vmatprep.mubr.f32.mxu0 0.0
        %4404 = vmatmul.mubr.f32.gmra.mxu0 %v318
        %v4405 = vpop.f32.mrf.mxu0
        %v4406 = vadd.f32 0.0, %v4405
        %v4407 = vpop.f32.mrf.mxu0
        %4408 = vmatprep.mubr.f32.mxu0 0.0
        %4409 = vmatmul.mubr.f32.gmra.mxu0 %v320
        %v4410 = vpop.f32.mrf.mxu0
        %v4411 = vadd.f32 0.0, %v4410
        %v4412 = vpop.f32.mrf.mxu0
        %4413 = vmatprep.mubr.f32.mxu0 0.0
        %4414 = vmatmul.mubr.f32.gmra.mxu0 %v4275
        %v4415 = vpop.f32.mrf.mxu0
        %v4416 = vadd.f32 0.0, %v4415
        %v4417 = vpop.f32.mrf.mxu0
        %4418 = vmatprep.mubr.f32.mxu0 0.0
        %4419 = vmatmul.mubr.f32.gmra.mxu0 %v4277
        %v4420 = vpop.f32.mrf.mxu0
        %v4421 = vadd.f32 0.0, %v4420
        %v4422 = vpop.f32.mrf.mxu0
        %4423 = vdwg.mxu0
        %v4424 = vsel %vm289, %v4266, 0
        %v4426 = vsel %vm289, %v4268, 0
        %4428 = vmatprep.subr.mxu0 0.0
        %4429 = vmatpush1.msra.mxu0 0.0
        %4430 = vmatprep.subr.mxu0 0.0
        %4431 = vmatpush1.msra.mxu0 0.0
        %4432 = vmatprep.subr.mxu0 0.0
        %4433 = vmatpush1.msra.mxu0 0.0
        %4434 = vmatprep.subr.mxu0 0.0
        %4435 = vmatpush1.msra.mxu0 0.0
        %4436 = vmatprep.subr.mxu0 0.0
        %4437 = vmatpush1.msra.mxu0 0.0
        %4438 = vmatprep.subr.mxu0 0.0
        %4439 = vmatpush1.msra.mxu0 0.0
        %4440 = vmatprep.subr.mxu0 0.0
        %4441 = vmatpush1.msra.mxu0 0.0
        %4442 = vmatprep.subr.mxu0 0.0
        %4443 = vmatpush1.msra.mxu0 0.0
        %4444 = vmatprep.subr.mxu0 0.0
        %4445 = vmatpush1.msra.mxu0 0.0
        %4446 = vmatprep.subr.mxu0 0.0
        %4447 = vmatpush1.msra.mxu0 0.0
        %4448 = vmatprep.subr.mxu0 0.0
        %4449 = vmatpush1.msra.mxu0 0.0
        %4450 = vmatprep.subr.mxu0 0.0
        %4451 = vmatpush1.msra.mxu0 0.0
        %4452 = vmatprep.subr.mxu0 0.0
        %4453 = vmatpush1.msra.mxu0 0.0
        %4454 = vmatprep.subr.mxu0 0.0
        %4455 = vmatpush1.msra.mxu0 0.0
        %4456 = vmatprep.subr.mxu0 0.0
        %4457 = vmatpush1.msra.mxu0 %v4271
        %4458 = vmatprep.subr.mxu0 0.0
        %4459 = vmatpush1.msra.mxu0 %v4270
        %4460 = vmatprep.subr.mxu0 0.0
        %4461 = vmatpush2.msra.mxu0 0.0
        %4462 = vmatprep.subr.mxu0 0.0
        %4463 = vmatpush2.msra.mxu0 0.0
        %4464 = vmatprep.subr.mxu0 0.0
        %4465 = vmatpush2.msra.mxu0 0.0
        %4466 = vmatprep.subr.mxu0 0.0
        %4467 = vmatpush2.msra.mxu0 0.0
        %4468 = vmatprep.subr.mxu0 0.0
        %4469 = vmatpush2.msra.mxu0 0.0
        %4470 = vmatprep.subr.mxu0 0.0
        %4471 = vmatpush2.msra.mxu0 0.0
        %4472 = vmatprep.subr.mxu0 0.0
        %4473 = vmatpush2.msra.mxu0 0.0
        %4474 = vmatprep.subr.mxu0 0.0
        %4475 = vmatpush2.msra.mxu0 0.0
        %4476 = vmatprep.subr.mxu0 0.0
        %4477 = vmatpush2.msra.mxu0 0.0
        %4478 = vmatprep.subr.mxu0 0.0
        %4479 = vmatpush2.msra.mxu0 0.0
        %4480 = vmatprep.subr.mxu0 0.0
        %4481 = vmatpush2.msra.mxu0 0.0
        %4482 = vmatprep.subr.mxu0 0.0
        %4483 = vmatpush2.msra.mxu0 0.0
        %4484 = vmatprep.subr.mxu0 0.0
        %4485 = vmatpush2.msra.mxu0 0.0
        %4486 = vmatprep.subr.mxu0 0.0
        %4487 = vmatpush2.msra.mxu0 0.0
        %4488 = vmatprep.subr.mxu0 0.0
        %4489 = vmatpush2.msra.mxu0 0.0
        %4490 = vmatprep.subr.mxu0 0.0
        %4491 = vmatpush2.msra.mxu0 0.0
        %4492 = vmatprep.mubr.f32.mxu0 0.0
        %4493 = vmatmul.mubr.f32.gmra.mxu0 %v471
        %v4494 = vpop.f32.mrf.mxu0
        %v4495 = vadd.f32 %v4346, %v4494
        %v4496 = vpop.f32.mrf.mxu0
        %4497 = vmatprep.mubr.f32.mxu0 0.0
        %4498 = vmatmul.mubr.f32.gmra.mxu0 %v473
        %v4499 = vpop.f32.mrf.mxu0
        %v4500 = vadd.f32 %v4351, %v4499
        %v4501 = vpop.f32.mrf.mxu0
        %4502 = vmatprep.mubr.f32.mxu0 0.0
        %4503 = vmatmul.mubr.f32.gmra.mxu0 %v475
        %v4504 = vpop.f32.mrf.mxu0
        %v4505 = vadd.f32 %v4356, %v4504
        %v4506 = vpop.f32.mrf.mxu0
        %4507 = vmatprep.mubr.f32.mxu0 0.0
        %4508 = vmatmul.mubr.f32.gmra.mxu0 %v477
        %v4509 = vpop.f32.mrf.mxu0
        %v4510 = vadd.f32 %v4361, %v4509
        %v4511 = vpop.f32.mrf.mxu0
        %4512 = vmatprep.mubr.f32.mxu0 0.0
        %4513 = vmatmul.mubr.f32.gmra.mxu0 %v479
        %v4514 = vpop.f32.mrf.mxu0
        %v4515 = vadd.f32 %v4366, %v4514
        %v4516 = vpop.f32.mrf.mxu0
        %4517 = vmatprep.mubr.f32.mxu0 0.0
        %4518 = vmatmul.mubr.f32.gmra.mxu0 %v481
        %v4519 = vpop.f32.mrf.mxu0
        %v4520 = vadd.f32 %v4371, %v4519
        %v4521 = vpop.f32.mrf.mxu0
        %4522 = vmatprep.mubr.f32.mxu0 0.0
        %4523 = vmatmul.mubr.f32.gmra.mxu0 %v483
        %v4524 = vpop.f32.mrf.mxu0
        %v4525 = vadd.f32 %v4376, %v4524
        %v4526 = vpop.f32.mrf.mxu0
        %4527 = vmatprep.mubr.f32.mxu0 0.0
        %4528 = vmatmul.mubr.f32.gmra.mxu0 %v485
        %v4529 = vpop.f32.mrf.mxu0
        %v4530 = vadd.f32 %v4381, %v4529
        %v4531 = vpop.f32.mrf.mxu0
        %4532 = vmatprep.mubr.f32.mxu0 0.0
        %4533 = vmatmul.mubr.f32.gmra.mxu0 %v487
        %v4534 = vpop.f32.mrf.mxu0
        %v4535 = vadd.f32 %v4386, %v4534
        %v4536 = vpop.f32.mrf.mxu0
        %4537 = vmatprep.mubr.f32.mxu0 0.0
        %4538 = vmatmul.mubr.f32.gmra.mxu0 %v489
        %v4539 = vpop.f32.mrf.mxu0
        %v4540 = vadd.f32 %v4391, %v4539
        %v4541 = vpop.f32.mrf.mxu0
        %4542 = vmatprep.mubr.f32.mxu0 0.0
        %4543 = vmatmul.mubr.f32.gmra.mxu0 %v491
        %v4544 = vpop.f32.mrf.mxu0
        %v4545 = vadd.f32 %v4396, %v4544
        %v4546 = vpop.f32.mrf.mxu0
        %4547 = vmatprep.mubr.f32.mxu0 0.0
        %4548 = vmatmul.mubr.f32.gmra.mxu0 %v493
        %v4549 = vpop.f32.mrf.mxu0
        %v4550 = vadd.f32 %v4401, %v4549
        %v4551 = vpop.f32.mrf.mxu0
        %4552 = vmatprep.mubr.f32.mxu0 0.0
        %4553 = vmatmul.mubr.f32.gmra.mxu0 %v495
        %v4554 = vpop.f32.mrf.mxu0
        %v4555 = vadd.f32 %v4406, %v4554
        %v4556 = vpop.f32.mrf.mxu0
        %4557 = vmatprep.mubr.f32.mxu0 0.0
        %4558 = vmatmul.mubr.f32.gmra.mxu0 %v497
        %v4559 = vpop.f32.mrf.mxu0
        %v4560 = vadd.f32 %v4411, %v4559
        %v4561 = vpop.f32.mrf.mxu0
        %4562 = vmatprep.mubr.f32.mxu0 0.0
        %4563 = vmatmul.mubr.f32.gmra.mxu0 %v4424
        %v4564 = vpop.f32.mrf.mxu0
        %v4565 = vadd.f32 %v4416, %v4564
        %v4566 = vpop.f32.mrf.mxu0
        %4567 = vmatprep.mubr.f32.mxu0 0.0
        %4568 = vmatmul.mubr.f32.gmra.mxu0 %v4426
        %v4569 = vpop.f32.mrf.mxu0
        %v4570 = vadd.f32 %v4421, %v4569
        %v4571 = vpop.f32.mrf.mxu0
        %4572 = vdwg.mxu0
        %s4573 = scalar_lea.vmem %s1, 144
        %v4574 = vld [vmem:[%s4573] sm:$0xff]
        %v4575 = vld [vmem:[%s4573 + $0x8] sm:$0xff]
        %4576 = vmatprep.subr.mxu0 0.0
        %4577 = vmatpush1.msra.mxu0 0.0
        %4578 = vmatprep.subr.mxu0 0.0
        %4579 = vmatpush1.msra.mxu0 0.0
        %4580 = vmatprep.subr.mxu0 0.0
        %4581 = vmatpush1.msra.mxu0 0.0
        %4582 = vmatprep.subr.mxu0 0.0
        %4583 = vmatpush1.msra.mxu0 0.0
        %4584 = vmatprep.subr.mxu0 0.0
        %4585 = vmatpush1.msra.mxu0 0.0
        %4586 = vmatprep.subr.mxu0 0.0
        %4587 = vmatpush1.msra.mxu0 0.0
        %4588 = vmatprep.subr.mxu0 0.0
        %4589 = vmatpush1.msra.mxu0 0.0
        %4590 = vmatprep.subr.mxu0 0.0
        %4591 = vmatpush1.msra.mxu0 0.0
        %4592 = vmatprep.subr.mxu0 0.0
        %4593 = vmatpush1.msra.mxu0 0.0
        %4594 = vmatprep.subr.mxu0 0.0
        %4595 = vmatpush1.msra.mxu0 0.0
        %4596 = vmatprep.subr.mxu0 0.0
        %4597 = vmatpush1.msra.mxu0 0.0
        %4598 = vmatprep.subr.mxu0 0.0
        %4599 = vmatpush1.msra.mxu0 0.0
        %4600 = vmatprep.subr.mxu0 0.0
        %4601 = vmatpush1.msra.mxu0 0.0
        %4602 = vmatprep.subr.mxu0 0.0
        %4603 = vmatpush1.msra.mxu0 0.0
        %4604 = vmatprep.subr.mxu0 0.0
        %4605 = vmatpush1.msra.mxu0 %v4575
        %4606 = vmatprep.subr.mxu0 0.0
        %4607 = vmatpush1.msra.mxu0 %v4574
        %4608 = vmatprep.subr.mxu0 0.0
        %4609 = vmatpush2.msra.mxu0 0.0
        %4610 = vmatprep.subr.mxu0 0.0
        %4611 = vmatpush2.msra.mxu0 0.0
        %4612 = vmatprep.subr.mxu0 0.0
        %4613 = vmatpush2.msra.mxu0 0.0
        %4614 = vmatprep.subr.mxu0 0.0
        %4615 = vmatpush2.msra.mxu0 0.0
        %4616 = vmatprep.subr.mxu0 0.0
        %4617 = vmatpush2.msra.mxu0 0.0
        %4618 = vmatprep.subr.mxu0 0.0
        %4619 = vmatpush2.msra.mxu0 0.0
        %4620 = vmatprep.subr.mxu0 0.0
        %4621 = vmatpush2.msra.mxu0 0.0
        %4622 = vmatprep.subr.mxu0 0.0
        %4623 = vmatpush2.msra.mxu0 0.0
        %4624 = vmatprep.subr.mxu0 0.0
        %4625 = vmatpush2.msra.mxu0 0.0
        %4626 = vmatprep.subr.mxu0 0.0
        %4627 = vmatpush2.msra.mxu0 0.0
        %4628 = vmatprep.subr.mxu0 0.0
        %4629 = vmatpush2.msra.mxu0 0.0
        %4630 = vmatprep.subr.mxu0 0.0
        %4631 = vmatpush2.msra.mxu0 0.0
        %4632 = vmatprep.subr.mxu0 0.0
        %4633 = vmatpush2.msra.mxu0 0.0
        %4634 = vmatprep.subr.mxu0 0.0
        %4635 = vmatpush2.msra.mxu0 0.0
        %4636 = vmatprep.subr.mxu0 0.0
        %4637 = vmatpush2.msra.mxu0 0.0
        %4638 = vmatprep.subr.mxu0 0.0
        %4639 = vmatpush2.msra.mxu0 0.0
        %4640 = vmatprep.mubr.f32.mxu0 0.0
        %4641 = vmatmul.mubr.f32.gmra.mxu0 %v467
        %v4642 = vpop.f32.mrf.mxu0
        %v4643 = vadd.f32 0.0, %v4642
        %v4644 = vpop.f32.mrf.mxu0
        %4645 = vmatprep.mubr.f32.mxu0 0.0
        %4646 = vmatmul.mubr.f32.gmra.mxu0 %v469
        %v4647 = vpop.f32.mrf.mxu0
        %v4648 = vadd.f32 0.0, %v4647
        %v4649 = vpop.f32.mrf.mxu0
        %4650 = vmatprep.mubr.f32.mxu0 0.0
        %4651 = vmatmul.mubr.f32.gmra.mxu0 %v471
        %v4652 = vpop.f32.mrf.mxu0
        %v4653 = vadd.f32 0.0, %v4652
        %v4654 = vpop.f32.mrf.mxu0
        %4655 = vmatprep.mubr.f32.mxu0 0.0
        %4656 = vmatmul.mubr.f32.gmra.mxu0 %v473
        %v4657 = vpop.f32.mrf.mxu0
        %v4658 = vadd.f32 0.0, %v4657
        %v4659 = vpop.f32.mrf.mxu0
        %4660 = vmatprep.mubr.f32.mxu0 0.0
        %4661 = vmatmul.mubr.f32.gmra.mxu0 %v475
        %v4662 = vpop.f32.mrf.mxu0
        %v4663 = vadd.f32 0.0, %v4662
        %v4664 = vpop.f32.mrf.mxu0
        %4665 = vmatprep.mubr.f32.mxu0 0.0
        %4666 = vmatmul.mubr.f32.gmra.mxu0 %v477
        %v4667 = vpop.f32.mrf.mxu0
        %v4668 = vadd.f32 0.0, %v4667
        %v4669 = vpop.f32.mrf.mxu0
        %4670 = vmatprep.mubr.f32.mxu0 0.0
        %4671 = vmatmul.mubr.f32.gmra.mxu0 %v479
        %v4672 = vpop.f32.mrf.mxu0
        %v4673 = vadd.f32 0.0, %v4672
        %v4674 = vpop.f32.mrf.mxu0
        %4675 = vmatprep.mubr.f32.mxu0 0.0
        %4676 = vmatmul.mubr.f32.gmra.mxu0 %v481
        %v4677 = vpop.f32.mrf.mxu0
        %v4678 = vadd.f32 0.0, %v4677
        %v4679 = vpop.f32.mrf.mxu0
        %4680 = vmatprep.mubr.f32.mxu0 0.0
        %4681 = vmatmul.mubr.f32.gmra.mxu0 %v483
        %v4682 = vpop.f32.mrf.mxu0
        %v4683 = vadd.f32 0.0, %v4682
        %v4684 = vpop.f32.mrf.mxu0
        %4685 = vmatprep.mubr.f32.mxu0 0.0
        %4686 = vmatmul.mubr.f32.gmra.mxu0 %v485
        %v4687 = vpop.f32.mrf.mxu0
        %v4688 = vadd.f32 0.0, %v4687
        %v4689 = vpop.f32.mrf.mxu0
        %4690 = vmatprep.mubr.f32.mxu0 0.0
        %4691 = vmatmul.mubr.f32.gmra.mxu0 %v487
        %v4692 = vpop.f32.mrf.mxu0
        %v4693 = vadd.f32 0.0, %v4692
        %v4694 = vpop.f32.mrf.mxu0
        %4695 = vmatprep.mubr.f32.mxu0 0.0
        %4696 = vmatmul.mubr.f32.gmra.mxu0 %v489
        %v4697 = vpop.f32.mrf.mxu0
        %v4698 = vadd.f32 0.0, %v4697
        %v4699 = vpop.f32.mrf.mxu0
        %4700 = vmatprep.mubr.f32.mxu0 0.0
        %4701 = vmatmul.mubr.f32.gmra.mxu0 %v491
        %v4702 = vpop.f32.mrf.mxu0
        %v4703 = vadd.f32 0.0, %v4702
        %v4704 = vpop.f32.mrf.mxu0
        %4705 = vmatprep.mubr.f32.mxu0 0.0
        %4706 = vmatmul.mubr.f32.gmra.mxu0 %v493
        %v4707 = vpop.f32.mrf.mxu0
        %v4708 = vadd.f32 0.0, %v4707
        %v4709 = vpop.f32.mrf.mxu0
        %4710 = vmatprep.mubr.f32.mxu0 0.0
        %4711 = vmatmul.mubr.f32.gmra.mxu0 %v495
        %v4712 = vpop.f32.mrf.mxu0
        %v4713 = vadd.f32 0.0, %v4712
        %v4714 = vpop.f32.mrf.mxu0
        %4715 = vmatprep.mubr.f32.mxu0 0.0
        %4716 = vmatmul.mubr.f32.gmra.mxu0 %v497
        %v4717 = vpop.f32.mrf.mxu0
        %v4718 = vadd.f32 0.0, %v4717
        %v4719 = vpop.f32.mrf.mxu0
        %4720 = vdwg.mxu0
        %v4721 = vadd.f32 %v4495, %v4643
        %v4722 = vadd.f32 %v4500, %v4648
        %v4723 = vadd.f32 %v4505, %v4653
        %v4724 = vadd.f32 %v4510, %v4658
        %v4725 = vadd.f32 %v4515, %v4663
        %v4726 = vadd.f32 %v4520, %v4668
        %v4727 = vadd.f32 %v4525, %v4673
        %v4728 = vadd.f32 %v4530, %v4678
        %v4729 = vadd.f32 %v4535, %v4683
        %v4730 = vadd.f32 %v4540, %v4688
        %v4731 = vadd.f32 %v4545, %v4693
        %v4732 = vadd.f32 %v4550, %v4698
        %v4733 = vadd.f32 %v4555, %v4703
        %v4734 = vadd.f32 %v4560, %v4708
        %v4735 = vadd.f32 %v4565, %v4713
        %v4736 = vadd.f32 %v4570, %v4718
        %s4737 = scalar_lea.vmem %s1, 176
        %v4738 = vld [vmem:[%s4737] sm:$0xff]
        %v4739 = vld [vmem:[%s4737 + $0x8] sm:$0xff]
        %4740 = vmatprep.subr.mxu0 0.0
        %4741 = vmatpush1.msra.mxu0 0.0
        %4742 = vmatprep.subr.mxu0 0.0
        %4743 = vmatpush1.msra.mxu0 0.0
        %4744 = vmatprep.subr.mxu0 0.0
        %4745 = vmatpush1.msra.mxu0 0.0
        %4746 = vmatprep.subr.mxu0 0.0
        %4747 = vmatpush1.msra.mxu0 0.0
        %4748 = vmatprep.subr.mxu0 0.0
        %4749 = vmatpush1.msra.mxu0 0.0
        %4750 = vmatprep.subr.mxu0 0.0
        %4751 = vmatpush1.msra.mxu0 0.0
        %4752 = vmatprep.subr.mxu0 0.0
        %4753 = vmatpush1.msra.mxu0 0.0
        %4754 = vmatprep.subr.mxu0 0.0
        %4755 = vmatpush1.msra.mxu0 0.0
        %4756 = vmatprep.subr.mxu0 0.0
        %4757 = vmatpush1.msra.mxu0 0.0
        %4758 = vmatprep.subr.mxu0 0.0
        %4759 = vmatpush1.msra.mxu0 0.0
        %4760 = vmatprep.subr.mxu0 0.0
        %4761 = vmatpush1.msra.mxu0 0.0
        %4762 = vmatprep.subr.mxu0 0.0
        %4763 = vmatpush1.msra.mxu0 0.0
        %4764 = vmatprep.subr.mxu0 0.0
        %4765 = vmatpush1.msra.mxu0 0.0
        %4766 = vmatprep.subr.mxu0 0.0
        %4767 = vmatpush1.msra.mxu0 0.0
        %4768 = vmatprep.subr.mxu0 0.0
        %4769 = vmatpush1.msra.mxu0 %v4739
        %4770 = vmatprep.subr.mxu0 0.0
        %4771 = vmatpush1.msra.mxu0 %v4738
        %4772 = vmatprep.subr.mxu0 0.0
        %4773 = vmatpush2.msra.mxu0 0.0
        %4774 = vmatprep.subr.mxu0 0.0
        %4775 = vmatpush2.msra.mxu0 0.0
        %4776 = vmatprep.subr.mxu0 0.0
        %4777 = vmatpush2.msra.mxu0 0.0
        %4778 = vmatprep.subr.mxu0 0.0
        %4779 = vmatpush2.msra.mxu0 0.0
        %4780 = vmatprep.subr.mxu0 0.0
        %4781 = vmatpush2.msra.mxu0 0.0
        %4782 = vmatprep.subr.mxu0 0.0
        %4783 = vmatpush2.msra.mxu0 0.0
        %4784 = vmatprep.subr.mxu0 0.0
        %4785 = vmatpush2.msra.mxu0 0.0
        %4786 = vmatprep.subr.mxu0 0.0
        %4787 = vmatpush2.msra.mxu0 0.0
        %4788 = vmatprep.subr.mxu0 0.0
        %4789 = vmatpush2.msra.mxu0 0.0
        %4790 = vmatprep.subr.mxu0 0.0
        %4791 = vmatpush2.msra.mxu0 0.0
        %4792 = vmatprep.subr.mxu0 0.0
        %4793 = vmatpush2.msra.mxu0 0.0
        %4794 = vmatprep.subr.mxu0 0.0
        %4795 = vmatpush2.msra.mxu0 0.0
        %4796 = vmatprep.subr.mxu0 0.0
        %4797 = vmatpush2.msra.mxu0 0.0
        %4798 = vmatprep.subr.mxu0 0.0
        %4799 = vmatpush2.msra.mxu0 0.0
        %4800 = vmatprep.subr.mxu0 0.0
        %4801 = vmatpush2.msra.mxu0 0.0
        %4802 = vmatprep.subr.mxu0 0.0
        %4803 = vmatpush2.msra.mxu0 0.0
        %4804 = vmatprep.mubr.f32.mxu0 0.0
        %4805 = vmatmul.mubr.f32.gmra.mxu0 %v290
        %v4806 = vpop.f32.mrf.mxu0
        %v4807 = vadd.f32 0.0, %v4806
        %v4808 = vpop.f32.mrf.mxu0
        %4809 = vmatprep.mubr.f32.mxu0 0.0
        %4810 = vmatmul.mubr.f32.gmra.mxu0 %v292
        %v4811 = vpop.f32.mrf.mxu0
        %v4812 = vadd.f32 0.0, %v4811
        %v4813 = vpop.f32.mrf.mxu0
        %4814 = vmatprep.mubr.f32.mxu0 0.0
        %4815 = vmatmul.mubr.f32.gmra.mxu0 %v294
        %v4816 = vpop.f32.mrf.mxu0
        %v4817 = vadd.f32 0.0, %v4816
        %v4818 = vpop.f32.mrf.mxu0
        %4819 = vmatprep.mubr.f32.mxu0 0.0
        %4820 = vmatmul.mubr.f32.gmra.mxu0 %v296
        %v4821 = vpop.f32.mrf.mxu0
        %v4822 = vadd.f32 0.0, %v4821
        %v4823 = vpop.f32.mrf.mxu0
        %4824 = vmatprep.mubr.f32.mxu0 0.0
        %4825 = vmatmul.mubr.f32.gmra.mxu0 %v298
        %v4826 = vpop.f32.mrf.mxu0
        %v4827 = vadd.f32 0.0, %v4826
        %v4828 = vpop.f32.mrf.mxu0
        %4829 = vmatprep.mubr.f32.mxu0 0.0
        %4830 = vmatmul.mubr.f32.gmra.mxu0 %v300
        %v4831 = vpop.f32.mrf.mxu0
        %v4832 = vadd.f32 0.0, %v4831
        %v4833 = vpop.f32.mrf.mxu0
        %4834 = vmatprep.mubr.f32.mxu0 0.0
        %4835 = vmatmul.mubr.f32.gmra.mxu0 %v302
        %v4836 = vpop.f32.mrf.mxu0
        %v4837 = vadd.f32 0.0, %v4836
        %v4838 = vpop.f32.mrf.mxu0
        %4839 = vmatprep.mubr.f32.mxu0 0.0
        %4840 = vmatmul.mubr.f32.gmra.mxu0 %v304
        %v4841 = vpop.f32.mrf.mxu0
        %v4842 = vadd.f32 0.0, %v4841
        %v4843 = vpop.f32.mrf.mxu0
        %4844 = vmatprep.mubr.f32.mxu0 0.0
        %4845 = vmatmul.mubr.f32.gmra.mxu0 %v306
        %v4846 = vpop.f32.mrf.mxu0
        %v4847 = vadd.f32 0.0, %v4846
        %v4848 = vpop.f32.mrf.mxu0
        %4849 = vmatprep.mubr.f32.mxu0 0.0
        %4850 = vmatmul.mubr.f32.gmra.mxu0 %v308
        %v4851 = vpop.f32.mrf.mxu0
        %v4852 = vadd.f32 0.0, %v4851
        %v4853 = vpop.f32.mrf.mxu0
        %4854 = vmatprep.mubr.f32.mxu0 0.0
        %4855 = vmatmul.mubr.f32.gmra.mxu0 %v310
        %v4856 = vpop.f32.mrf.mxu0
        %v4857 = vadd.f32 0.0, %v4856
        %v4858 = vpop.f32.mrf.mxu0
        %4859 = vmatprep.mubr.f32.mxu0 0.0
        %4860 = vmatmul.mubr.f32.gmra.mxu0 %v312
        %v4861 = vpop.f32.mrf.mxu0
        %v4862 = vadd.f32 0.0, %v4861
        %v4863 = vpop.f32.mrf.mxu0
        %4864 = vmatprep.mubr.f32.mxu0 0.0
        %4865 = vmatmul.mubr.f32.gmra.mxu0 %v314
        %v4866 = vpop.f32.mrf.mxu0
        %v4867 = vadd.f32 0.0, %v4866
        %v4868 = vpop.f32.mrf.mxu0
        %4869 = vmatprep.mubr.f32.mxu0 0.0
        %4870 = vmatmul.mubr.f32.gmra.mxu0 %v316
        %v4871 = vpop.f32.mrf.mxu0
        %v4872 = vadd.f32 0.0, %v4871
        %v4873 = vpop.f32.mrf.mxu0
        %4874 = vmatprep.mubr.f32.mxu0 0.0
        %4875 = vmatmul.mubr.f32.gmra.mxu0 %v318
        %v4876 = vpop.f32.mrf.mxu0
        %v4877 = vadd.f32 0.0, %v4876
        %v4878 = vpop.f32.mrf.mxu0
        %4879 = vmatprep.mubr.f32.mxu0 0.0
        %4880 = vmatmul.mubr.f32.gmra.mxu0 %v320
        %v4881 = vpop.f32.mrf.mxu0
        %v4882 = vadd.f32 0.0, %v4881
        %v4883 = vpop.f32.mrf.mxu0
        %4884 = vdwg.mxu0
        %v4885 = vadd.f32 %v4721, %v4807
        %v4886 = vadd.f32 %v4722, %v4812
        %v4887 = vadd.f32 %v4723, %v4817
        %v4888 = vadd.f32 %v4724, %v4822
        %v4889 = vadd.f32 %v4725, %v4827
        %v4890 = vadd.f32 %v4726, %v4832
        %v4891 = vadd.f32 %v4727, %v4837
        %v4892 = vadd.f32 %v4728, %v4842
        %v4893 = vadd.f32 %v4729, %v4847
        %v4894 = vadd.f32 %v4730, %v4852
        %v4895 = vadd.f32 %v4731, %v4857
        %v4896 = vadd.f32 %v4732, %v4862
        %v4897 = vadd.f32 %v4733, %v4867
        %v4898 = vadd.f32 %v4734, %v4872
        %v4899 = vadd.f32 %v4735, %v4877
        %v4900 = vadd.f32 %v4736, %v4882
        %v4901 = vadd.f32 %v4885, %v992
        %v4902 = vadd.f32 %v4886, %v992
        %v4903 = vadd.f32 %v4887, %v992
        %v4904 = vadd.f32 %v4888, %v992
        %v4905 = vadd.f32 %v4889, %v992
        %v4906 = vadd.f32 %v4890, %v992
        %v4907 = vadd.f32 %v4891, %v992
        %v4908 = vadd.f32 %v4892, %v992
        %v4909 = vadd.f32 %v4893, %v992
        %v4910 = vadd.f32 %v4894, %v992
        %v4911 = vadd.f32 %v4895, %v992
        %v4912 = vadd.f32 %v4896, %v992
        %v4913 = vadd.f32 %v4897, %v992
        %v4914 = vadd.f32 %v4898, %v992
        %v4915 = vadd.f32 %v4899, %v992
        %v4916 = vadd.f32 %v4900, %v992
        %v4917 = vmax.f32 %v4901, 0.0
        %v4918 = vmax.f32 %v4902, 0.0
        %v4919 = vmax.f32 %v4903, 0.0
        %v4920 = vmax.f32 %v4904, 0.0
        %v4921 = vmax.f32 %v4905, 0.0
        %v4922 = vmax.f32 %v4906, 0.0
        %v4923 = vmax.f32 %v4907, 0.0
        %v4924 = vmax.f32 %v4908, 0.0
        %v4925 = vmax.f32 %v4909, 0.0
        %v4926 = vmax.f32 %v4910, 0.0
        %v4927 = vmax.f32 %v4911, 0.0
        %v4928 = vmax.f32 %v4912, 0.0
        %v4929 = vmax.f32 %v4913, 0.0
        %v4930 = vmax.f32 %v4914, 0.0
        %v4931 = vmax.f32 %v4915, 0.0
        %v4932 = vmax.f32 %v4916, 0.0
        %v4933 = vrot.slane %v214, 2
        %v4934 = vrot.slane %v215, 2
        %v4935 = vsel %vm1026, %v4933, %v4934
        %v4936 = vrot.slane %v216, 2
        %v4937 = vsel %vm1026, %v4934, %v4936
        %v4938 = vld [vmem:[%s1] sm:$0xff]
        %v4939 = vld [vmem:[%s1 + $0x8] sm:$0xff]
        %s4940 = scalar_lea.vmem %s1, 32
        %v4941 = vld [vmem:[%s4940] sm:$0xff]
        %v4942 = vld [vmem:[%s4940 + $0x8] sm:$0xff]
        %4943 = vmatprep.subr.mxu0 0.0
        %4944 = vmatpush1.msra.mxu0 0.0
        %4945 = vmatprep.subr.mxu0 0.0
        %4946 = vmatpush1.msra.mxu0 0.0
        %4947 = vmatprep.subr.mxu0 0.0
        %4948 = vmatpush1.msra.mxu0 0.0
        %4949 = vmatprep.subr.mxu0 0.0
        %4950 = vmatpush1.msra.mxu0 0.0
        %4951 = vmatprep.subr.mxu0 0.0
        %4952 = vmatpush1.msra.mxu0 0.0
        %4953 = vmatprep.subr.mxu0 0.0
        %4954 = vmatpush1.msra.mxu0 0.0
        %4955 = vmatprep.subr.mxu0 0.0
        %4956 = vmatpush1.msra.mxu0 0.0
        %4957 = vmatprep.subr.mxu0 0.0
        %4958 = vmatpush1.msra.mxu0 0.0
        %4959 = vmatprep.subr.mxu0 0.0
        %4960 = vmatpush1.msra.mxu0 0.0
        %4961 = vmatprep.subr.mxu0 0.0
        %4962 = vmatpush1.msra.mxu0 0.0
        %4963 = vmatprep.subr.mxu0 0.0
        %4964 = vmatpush1.msra.mxu0 0.0
        %4965 = vmatprep.subr.mxu0 0.0
        %4966 = vmatpush1.msra.mxu0 0.0
        %4967 = vmatprep.subr.mxu0 0.0
        %4968 = vmatpush1.msra.mxu0 0.0
        %4969 = vmatprep.subr.mxu0 0.0
        %4970 = vmatpush1.msra.mxu0 0.0
        %4971 = vmatprep.subr.mxu0 0.0
        %4972 = vmatpush1.msra.mxu0 %v4942
        %4973 = vmatprep.subr.mxu0 0.0
        %4974 = vmatpush1.msra.mxu0 %v4941
        %4975 = vmatprep.subr.mxu0 0.0
        %4976 = vmatpush2.msra.mxu0 0.0
        %4977 = vmatprep.subr.mxu0 0.0
        %4978 = vmatpush2.msra.mxu0 0.0
        %4979 = vmatprep.subr.mxu0 0.0
        %4980 = vmatpush2.msra.mxu0 0.0
        %4981 = vmatprep.subr.mxu0 0.0
        %4982 = vmatpush2.msra.mxu0 0.0
        %4983 = vmatprep.subr.mxu0 0.0
        %4984 = vmatpush2.msra.mxu0 0.0
        %4985 = vmatprep.subr.mxu0 0.0
        %4986 = vmatpush2.msra.mxu0 0.0
        %4987 = vmatprep.subr.mxu0 0.0
        %4988 = vmatpush2.msra.mxu0 0.0
        %4989 = vmatprep.subr.mxu0 0.0
        %4990 = vmatpush2.msra.mxu0 0.0
        %4991 = vmatprep.subr.mxu0 0.0
        %4992 = vmatpush2.msra.mxu0 0.0
        %4993 = vmatprep.subr.mxu0 0.0
        %4994 = vmatpush2.msra.mxu0 0.0
        %4995 = vmatprep.subr.mxu0 0.0
        %4996 = vmatpush2.msra.mxu0 0.0
        %4997 = vmatprep.subr.mxu0 0.0
        %4998 = vmatpush2.msra.mxu0 0.0
        %4999 = vmatprep.subr.mxu0 0.0
        %5000 = vmatpush2.msra.mxu0 0.0
        %5001 = vmatprep.subr.mxu0 0.0
        %5002 = vmatpush2.msra.mxu0 0.0
        %5003 = vmatprep.subr.mxu0 0.0
        %5004 = vmatpush2.msra.mxu0 0.0
        %5005 = vmatprep.subr.mxu0 0.0
        %5006 = vmatpush2.msra.mxu0 0.0
        %5007 = vmatprep.mubr.f32.mxu0 0.0
        %5008 = vmatmul.mubr.f32.gmra.mxu0 %v471
        %v5009 = vpop.f32.mrf.mxu0
        %v5010 = vadd.f32 0.0, %v5009
        %v5011 = vpop.f32.mrf.mxu0
        %5012 = vmatprep.mubr.f32.mxu0 0.0
        %5013 = vmatmul.mubr.f32.gmra.mxu0 %v473
        %v5014 = vpop.f32.mrf.mxu0
        %v5015 = vadd.f32 0.0, %v5014
        %v5016 = vpop.f32.mrf.mxu0
        %5017 = vmatprep.mubr.f32.mxu0 0.0
        %5018 = vmatmul.mubr.f32.gmra.mxu0 %v475
        %v5019 = vpop.f32.mrf.mxu0
        %v5020 = vadd.f32 0.0, %v5019
        %v5021 = vpop.f32.mrf.mxu0
        %5022 = vmatprep.mubr.f32.mxu0 0.0
        %5023 = vmatmul.mubr.f32.gmra.mxu0 %v477
        %v5024 = vpop.f32.mrf.mxu0
        %v5025 = vadd.f32 0.0, %v5024
        %v5026 = vpop.f32.mrf.mxu0
        %5027 = vmatprep.mubr.f32.mxu0 0.0
        %5028 = vmatmul.mubr.f32.gmra.mxu0 %v479
        %v5029 = vpop.f32.mrf.mxu0
        %v5030 = vadd.f32 0.0, %v5029
        %v5031 = vpop.f32.mrf.mxu0
        %5032 = vmatprep.mubr.f32.mxu0 0.0
        %5033 = vmatmul.mubr.f32.gmra.mxu0 %v481
        %v5034 = vpop.f32.mrf.mxu0
        %v5035 = vadd.f32 0.0, %v5034
        %v5036 = vpop.f32.mrf.mxu0
        %5037 = vmatprep.mubr.f32.mxu0 0.0
        %5038 = vmatmul.mubr.f32.gmra.mxu0 %v483
        %v5039 = vpop.f32.mrf.mxu0
        %v5040 = vadd.f32 0.0, %v5039
        %v5041 = vpop.f32.mrf.mxu0
        %5042 = vmatprep.mubr.f32.mxu0 0.0
        %5043 = vmatmul.mubr.f32.gmra.mxu0 %v485
        %v5044 = vpop.f32.mrf.mxu0
        %v5045 = vadd.f32 0.0, %v5044
        %v5046 = vpop.f32.mrf.mxu0
        %5047 = vmatprep.mubr.f32.mxu0 0.0
        %5048 = vmatmul.mubr.f32.gmra.mxu0 %v487
        %v5049 = vpop.f32.mrf.mxu0
        %v5050 = vadd.f32 0.0, %v5049
        %v5051 = vpop.f32.mrf.mxu0
        %5052 = vmatprep.mubr.f32.mxu0 0.0
        %5053 = vmatmul.mubr.f32.gmra.mxu0 %v489
        %v5054 = vpop.f32.mrf.mxu0
        %v5055 = vadd.f32 0.0, %v5054
        %v5056 = vpop.f32.mrf.mxu0
        %5057 = vmatprep.mubr.f32.mxu0 0.0
        %5058 = vmatmul.mubr.f32.gmra.mxu0 %v491
        %v5059 = vpop.f32.mrf.mxu0
        %v5060 = vadd.f32 0.0, %v5059
        %v5061 = vpop.f32.mrf.mxu0
        %5062 = vmatprep.mubr.f32.mxu0 0.0
        %5063 = vmatmul.mubr.f32.gmra.mxu0 %v493
        %v5064 = vpop.f32.mrf.mxu0
        %v5065 = vadd.f32 0.0, %v5064
        %v5066 = vpop.f32.mrf.mxu0
        %5067 = vmatprep.mubr.f32.mxu0 0.0
        %5068 = vmatmul.mubr.f32.gmra.mxu0 %v495
        %v5069 = vpop.f32.mrf.mxu0
        %v5070 = vadd.f32 0.0, %v5069
        %v5071 = vpop.f32.mrf.mxu0
        %5072 = vmatprep.mubr.f32.mxu0 0.0
        %5073 = vmatmul.mubr.f32.gmra.mxu0 %v497
        %v5074 = vpop.f32.mrf.mxu0
        %v5075 = vadd.f32 0.0, %v5074
        %v5076 = vpop.f32.mrf.mxu0
        %5077 = vmatprep.mubr.f32.mxu0 0.0
        %5078 = vmatmul.mubr.f32.gmra.mxu0 %v4424
        %v5079 = vpop.f32.mrf.mxu0
        %v5080 = vadd.f32 0.0, %v5079
        %v5081 = vpop.f32.mrf.mxu0
        %5082 = vmatprep.mubr.f32.mxu0 0.0
        %5083 = vmatmul.mubr.f32.gmra.mxu0 %v4426
        %v5084 = vpop.f32.mrf.mxu0
        %v5085 = vadd.f32 0.0, %v5084
        %v5086 = vpop.f32.mrf.mxu0
        %5087 = vdwg.mxu0
        %v5088 = vsel %vm289, %v4935, 0
        %v5090 = vsel %vm289, %v4937, 0
        %5092 = vmatprep.subr.mxu0 0.0
        %5093 = vmatpush1.msra.mxu0 0.0
        %5094 = vmatprep.subr.mxu0 0.0
        %5095 = vmatpush1.msra.mxu0 0.0
        %5096 = vmatprep.subr.mxu0 0.0
        %5097 = vmatpush1.msra.mxu0 0.0
        %5098 = vmatprep.subr.mxu0 0.0
        %5099 = vmatpush1.msra.mxu0 0.0
        %5100 = vmatprep.subr.mxu0 0.0
        %5101 = vmatpush1.msra.mxu0 0.0
        %5102 = vmatprep.subr.mxu0 0.0
        %5103 = vmatpush1.msra.mxu0 0.0
        %5104 = vmatprep.subr.mxu0 0.0
        %5105 = vmatpush1.msra.mxu0 0.0
        %5106 = vmatprep.subr.mxu0 0.0
        %5107 = vmatpush1.msra.mxu0 0.0
        %5108 = vmatprep.subr.mxu0 0.0
        %5109 = vmatpush1.msra.mxu0 0.0
        %5110 = vmatprep.subr.mxu0 0.0
        %5111 = vmatpush1.msra.mxu0 0.0
        %5112 = vmatprep.subr.mxu0 0.0
        %5113 = vmatpush1.msra.mxu0 0.0
        %5114 = vmatprep.subr.mxu0 0.0
        %5115 = vmatpush1.msra.mxu0 0.0
        %5116 = vmatprep.subr.mxu0 0.0
        %5117 = vmatpush1.msra.mxu0 0.0
        %5118 = vmatprep.subr.mxu0 0.0
        %5119 = vmatpush1.msra.mxu0 0.0
        %5120 = vmatprep.subr.mxu0 0.0
        %5121 = vmatpush1.msra.mxu0 %v4939
        %5122 = vmatprep.subr.mxu0 0.0
        %5123 = vmatpush1.msra.mxu0 %v4938
        %5124 = vmatprep.subr.mxu0 0.0
        %5125 = vmatpush2.msra.mxu0 0.0
        %5126 = vmatprep.subr.mxu0 0.0
        %5127 = vmatpush2.msra.mxu0 0.0
        %5128 = vmatprep.subr.mxu0 0.0
        %5129 = vmatpush2.msra.mxu0 0.0
        %5130 = vmatprep.subr.mxu0 0.0
        %5131 = vmatpush2.msra.mxu0 0.0
        %5132 = vmatprep.subr.mxu0 0.0
        %5133 = vmatpush2.msra.mxu0 0.0
        %5134 = vmatprep.subr.mxu0 0.0
        %5135 = vmatpush2.msra.mxu0 0.0
        %5136 = vmatprep.subr.mxu0 0.0
        %5137 = vmatpush2.msra.mxu0 0.0
        %5138 = vmatprep.subr.mxu0 0.0
        %5139 = vmatpush2.msra.mxu0 0.0
        %5140 = vmatprep.subr.mxu0 0.0
        %5141 = vmatpush2.msra.mxu0 0.0
        %5142 = vmatprep.subr.mxu0 0.0
        %5143 = vmatpush2.msra.mxu0 0.0
        %5144 = vmatprep.subr.mxu0 0.0
        %5145 = vmatpush2.msra.mxu0 0.0
        %5146 = vmatprep.subr.mxu0 0.0
        %5147 = vmatpush2.msra.mxu0 0.0
        %5148 = vmatprep.subr.mxu0 0.0
        %5149 = vmatpush2.msra.mxu0 0.0
        %5150 = vmatprep.subr.mxu0 0.0
        %5151 = vmatpush2.msra.mxu0 0.0
        %5152 = vmatprep.subr.mxu0 0.0
        %5153 = vmatpush2.msra.mxu0 0.0
        %5154 = vmatprep.subr.mxu0 0.0
        %5155 = vmatpush2.msra.mxu0 0.0
        %5156 = vmatprep.mubr.f32.mxu0 0.0
        %5157 = vmatmul.mubr.f32.gmra.mxu0 %v1222
        %v5158 = vpop.f32.mrf.mxu0
        %v5159 = vadd.f32 %v5010, %v5158
        %v5160 = vpop.f32.mrf.mxu0
        %5161 = vmatprep.mubr.f32.mxu0 0.0
        %5162 = vmatmul.mubr.f32.gmra.mxu0 %v1224
        %v5163 = vpop.f32.mrf.mxu0
        %v5164 = vadd.f32 %v5015, %v5163
        %v5165 = vpop.f32.mrf.mxu0
        %5166 = vmatprep.mubr.f32.mxu0 0.0
        %5167 = vmatmul.mubr.f32.gmra.mxu0 %v1226
        %v5168 = vpop.f32.mrf.mxu0
        %v5169 = vadd.f32 %v5020, %v5168
        %v5170 = vpop.f32.mrf.mxu0
        %5171 = vmatprep.mubr.f32.mxu0 0.0
        %5172 = vmatmul.mubr.f32.gmra.mxu0 %v1228
        %v5173 = vpop.f32.mrf.mxu0
        %v5174 = vadd.f32 %v5025, %v5173
        %v5175 = vpop.f32.mrf.mxu0
        %5176 = vmatprep.mubr.f32.mxu0 0.0
        %5177 = vmatmul.mubr.f32.gmra.mxu0 %v1230
        %v5178 = vpop.f32.mrf.mxu0
        %v5179 = vadd.f32 %v5030, %v5178
        %v5180 = vpop.f32.mrf.mxu0
        %5181 = vmatprep.mubr.f32.mxu0 0.0
        %5182 = vmatmul.mubr.f32.gmra.mxu0 %v1232
        %v5183 = vpop.f32.mrf.mxu0
        %v5184 = vadd.f32 %v5035, %v5183
        %v5185 = vpop.f32.mrf.mxu0
        %5186 = vmatprep.mubr.f32.mxu0 0.0
        %5187 = vmatmul.mubr.f32.gmra.mxu0 %v1234
        %v5188 = vpop.f32.mrf.mxu0
        %v5189 = vadd.f32 %v5040, %v5188
        %v5190 = vpop.f32.mrf.mxu0
        %5191 = vmatprep.mubr.f32.mxu0 0.0
        %5192 = vmatmul.mubr.f32.gmra.mxu0 %v1236
        %v5193 = vpop.f32.mrf.mxu0
        %v5194 = vadd.f32 %v5045, %v5193
        %v5195 = vpop.f32.mrf.mxu0
        %5196 = vmatprep.mubr.f32.mxu0 0.0
        %5197 = vmatmul.mubr.f32.gmra.mxu0 %v1238
        %v5198 = vpop.f32.mrf.mxu0
        %v5199 = vadd.f32 %v5050, %v5198
        %v5200 = vpop.f32.mrf.mxu0
        %5201 = vmatprep.mubr.f32.mxu0 0.0
        %5202 = vmatmul.mubr.f32.gmra.mxu0 %v1240
        %v5203 = vpop.f32.mrf.mxu0
        %v5204 = vadd.f32 %v5055, %v5203
        %v5205 = vpop.f32.mrf.mxu0
        %5206 = vmatprep.mubr.f32.mxu0 0.0
        %5207 = vmatmul.mubr.f32.gmra.mxu0 %v1242
        %v5208 = vpop.f32.mrf.mxu0
        %v5209 = vadd.f32 %v5060, %v5208
        %v5210 = vpop.f32.mrf.mxu0
        %5211 = vmatprep.mubr.f32.mxu0 0.0
        %5212 = vmatmul.mubr.f32.gmra.mxu0 %v1244
        %v5213 = vpop.f32.mrf.mxu0
        %v5214 = vadd.f32 %v5065, %v5213
        %v5215 = vpop.f32.mrf.mxu0
        %5216 = vmatprep.mubr.f32.mxu0 0.0
        %5217 = vmatmul.mubr.f32.gmra.mxu0 %v1246
        %v5218 = vpop.f32.mrf.mxu0
        %v5219 = vadd.f32 %v5070, %v5218
        %v5220 = vpop.f32.mrf.mxu0
        %5221 = vmatprep.mubr.f32.mxu0 0.0
        %5222 = vmatmul.mubr.f32.gmra.mxu0 %v1248
        %v5223 = vpop.f32.mrf.mxu0
        %v5224 = vadd.f32 %v5075, %v5223
        %v5225 = vpop.f32.mrf.mxu0
        %5226 = vmatprep.mubr.f32.mxu0 0.0
        %5227 = vmatmul.mubr.f32.gmra.mxu0 %v5088
        %v5228 = vpop.f32.mrf.mxu0
        %v5229 = vadd.f32 %v5080, %v5228
        %v5230 = vpop.f32.mrf.mxu0
        %5231 = vmatprep.mubr.f32.mxu0 0.0
        %5232 = vmatmul.mubr.f32.gmra.mxu0 %v5090
        %v5233 = vpop.f32.mrf.mxu0
        %v5234 = vadd.f32 %v5085, %v5233
        %v5235 = vpop.f32.mrf.mxu0
        %5236 = vdwg.mxu0
        %s5237 = scalar_lea.vmem %s1, 128
        %v5238 = vld [vmem:[%s5237] sm:$0xff]
        %v5239 = vld [vmem:[%s5237 + $0x8] sm:$0xff]
        %5240 = vmatprep.subr.mxu0 0.0
        %5241 = vmatpush1.msra.mxu0 0.0
        %5242 = vmatprep.subr.mxu0 0.0
        %5243 = vmatpush1.msra.mxu0 0.0
        %5244 = vmatprep.subr.mxu0 0.0
        %5245 = vmatpush1.msra.mxu0 0.0
        %5246 = vmatprep.subr.mxu0 0.0
        %5247 = vmatpush1.msra.mxu0 0.0
        %5248 = vmatprep.subr.mxu0 0.0
        %5249 = vmatpush1.msra.mxu0 0.0
        %5250 = vmatprep.subr.mxu0 0.0
        %5251 = vmatpush1.msra.mxu0 0.0
        %5252 = vmatprep.subr.mxu0 0.0
        %5253 = vmatpush1.msra.mxu0 0.0
        %5254 = vmatprep.subr.mxu0 0.0
        %5255 = vmatpush1.msra.mxu0 0.0
        %5256 = vmatprep.subr.mxu0 0.0
        %5257 = vmatpush1.msra.mxu0 0.0
        %5258 = vmatprep.subr.mxu0 0.0
        %5259 = vmatpush1.msra.mxu0 0.0
        %5260 = vmatprep.subr.mxu0 0.0
        %5261 = vmatpush1.msra.mxu0 0.0
        %5262 = vmatprep.subr.mxu0 0.0
        %5263 = vmatpush1.msra.mxu0 0.0
        %5264 = vmatprep.subr.mxu0 0.0
        %5265 = vmatpush1.msra.mxu0 0.0
        %5266 = vmatprep.subr.mxu0 0.0
        %5267 = vmatpush1.msra.mxu0 0.0
        %5268 = vmatprep.subr.mxu0 0.0
        %5269 = vmatpush1.msra.mxu0 %v5239
        %5270 = vmatprep.subr.mxu0 0.0
        %5271 = vmatpush1.msra.mxu0 %v5238
        %5272 = vmatprep.subr.mxu0 0.0
        %5273 = vmatpush2.msra.mxu0 0.0
        %5274 = vmatprep.subr.mxu0 0.0
        %5275 = vmatpush2.msra.mxu0 0.0
        %5276 = vmatprep.subr.mxu0 0.0
        %5277 = vmatpush2.msra.mxu0 0.0
        %5278 = vmatprep.subr.mxu0 0.0
        %5279 = vmatpush2.msra.mxu0 0.0
        %5280 = vmatprep.subr.mxu0 0.0
        %5281 = vmatpush2.msra.mxu0 0.0
        %5282 = vmatprep.subr.mxu0 0.0
        %5283 = vmatpush2.msra.mxu0 0.0
        %5284 = vmatprep.subr.mxu0 0.0
        %5285 = vmatpush2.msra.mxu0 0.0
        %5286 = vmatprep.subr.mxu0 0.0
        %5287 = vmatpush2.msra.mxu0 0.0
        %5288 = vmatprep.subr.mxu0 0.0
        %5289 = vmatpush2.msra.mxu0 0.0
        %5290 = vmatprep.subr.mxu0 0.0
        %5291 = vmatpush2.msra.mxu0 0.0
        %5292 = vmatprep.subr.mxu0 0.0
        %5293 = vmatpush2.msra.mxu0 0.0
        %5294 = vmatprep.subr.mxu0 0.0
        %5295 = vmatpush2.msra.mxu0 0.0
        %5296 = vmatprep.subr.mxu0 0.0
        %5297 = vmatpush2.msra.mxu0 0.0
        %5298 = vmatprep.subr.mxu0 0.0
        %5299 = vmatpush2.msra.mxu0 0.0
        %5300 = vmatprep.subr.mxu0 0.0
        %5301 = vmatpush2.msra.mxu0 0.0
        %5302 = vmatprep.subr.mxu0 0.0
        %5303 = vmatpush2.msra.mxu0 0.0
        %5304 = vmatprep.mubr.f32.mxu0 0.0
        %5305 = vmatmul.mubr.f32.gmra.mxu0 %v1218
        %v5306 = vpop.f32.mrf.mxu0
        %v5307 = vadd.f32 0.0, %v5306
        %v5308 = vpop.f32.mrf.mxu0
        %5309 = vmatprep.mubr.f32.mxu0 0.0
        %5310 = vmatmul.mubr.f32.gmra.mxu0 %v1220
        %v5311 = vpop.f32.mrf.mxu0
        %v5312 = vadd.f32 0.0, %v5311
        %v5313 = vpop.f32.mrf.mxu0
        %5314 = vmatprep.mubr.f32.mxu0 0.0
        %5315 = vmatmul.mubr.f32.gmra.mxu0 %v1222
        %v5316 = vpop.f32.mrf.mxu0
        %v5317 = vadd.f32 0.0, %v5316
        %v5318 = vpop.f32.mrf.mxu0
        %5319 = vmatprep.mubr.f32.mxu0 0.0
        %5320 = vmatmul.mubr.f32.gmra.mxu0 %v1224
        %v5321 = vpop.f32.mrf.mxu0
        %v5322 = vadd.f32 0.0, %v5321
        %v5323 = vpop.f32.mrf.mxu0
        %5324 = vmatprep.mubr.f32.mxu0 0.0
        %5325 = vmatmul.mubr.f32.gmra.mxu0 %v1226
        %v5326 = vpop.f32.mrf.mxu0
        %v5327 = vadd.f32 0.0, %v5326
        %v5328 = vpop.f32.mrf.mxu0
        %5329 = vmatprep.mubr.f32.mxu0 0.0
        %5330 = vmatmul.mubr.f32.gmra.mxu0 %v1228
        %v5331 = vpop.f32.mrf.mxu0
        %v5332 = vadd.f32 0.0, %v5331
        %v5333 = vpop.f32.mrf.mxu0
        %5334 = vmatprep.mubr.f32.mxu0 0.0
        %5335 = vmatmul.mubr.f32.gmra.mxu0 %v1230
        %v5336 = vpop.f32.mrf.mxu0
        %v5337 = vadd.f32 0.0, %v5336
        %v5338 = vpop.f32.mrf.mxu0
        %5339 = vmatprep.mubr.f32.mxu0 0.0
        %5340 = vmatmul.mubr.f32.gmra.mxu0 %v1232
        %v5341 = vpop.f32.mrf.mxu0
        %v5342 = vadd.f32 0.0, %v5341
        %v5343 = vpop.f32.mrf.mxu0
        %5344 = vmatprep.mubr.f32.mxu0 0.0
        %5345 = vmatmul.mubr.f32.gmra.mxu0 %v1234
        %v5346 = vpop.f32.mrf.mxu0
        %v5347 = vadd.f32 0.0, %v5346
        %v5348 = vpop.f32.mrf.mxu0
        %5349 = vmatprep.mubr.f32.mxu0 0.0
        %5350 = vmatmul.mubr.f32.gmra.mxu0 %v1236
        %v5351 = vpop.f32.mrf.mxu0
        %v5352 = vadd.f32 0.0, %v5351
        %v5353 = vpop.f32.mrf.mxu0
        %5354 = vmatprep.mubr.f32.mxu0 0.0
        %5355 = vmatmul.mubr.f32.gmra.mxu0 %v1238
        %v5356 = vpop.f32.mrf.mxu0
        %v5357 = vadd.f32 0.0, %v5356
        %v5358 = vpop.f32.mrf.mxu0
        %5359 = vmatprep.mubr.f32.mxu0 0.0
        %5360 = vmatmul.mubr.f32.gmra.mxu0 %v1240
        %v5361 = vpop.f32.mrf.mxu0
        %v5362 = vadd.f32 0.0, %v5361
        %v5363 = vpop.f32.mrf.mxu0
        %5364 = vmatprep.mubr.f32.mxu0 0.0
        %5365 = vmatmul.mubr.f32.gmra.mxu0 %v1242
        %v5366 = vpop.f32.mrf.mxu0
        %v5367 = vadd.f32 0.0, %v5366
        %v5368 = vpop.f32.mrf.mxu0
        %5369 = vmatprep.mubr.f32.mxu0 0.0
        %5370 = vmatmul.mubr.f32.gmra.mxu0 %v1244
        %v5371 = vpop.f32.mrf.mxu0
        %v5372 = vadd.f32 0.0, %v5371
        %v5373 = vpop.f32.mrf.mxu0
        %5374 = vmatprep.mubr.f32.mxu0 0.0
        %5375 = vmatmul.mubr.f32.gmra.mxu0 %v1246
        %v5376 = vpop.f32.mrf.mxu0
        %v5377 = vadd.f32 0.0, %v5376
        %v5378 = vpop.f32.mrf.mxu0
        %5379 = vmatprep.mubr.f32.mxu0 0.0
        %5380 = vmatmul.mubr.f32.gmra.mxu0 %v1248
        %v5381 = vpop.f32.mrf.mxu0
        %v5382 = vadd.f32 0.0, %v5381
        %v5383 = vpop.f32.mrf.mxu0
        %5384 = vdwg.mxu0
        %v5385 = vadd.f32 %v5159, %v5307
        %v5386 = vadd.f32 %v5164, %v5312
        %v5387 = vadd.f32 %v5169, %v5317
        %v5388 = vadd.f32 %v5174, %v5322
        %v5389 = vadd.f32 %v5179, %v5327
        %v5390 = vadd.f32 %v5184, %v5332
        %v5391 = vadd.f32 %v5189, %v5337
        %v5392 = vadd.f32 %v5194, %v5342
        %v5393 = vadd.f32 %v5199, %v5347
        %v5394 = vadd.f32 %v5204, %v5352
        %v5395 = vadd.f32 %v5209, %v5357
        %v5396 = vadd.f32 %v5214, %v5362
        %v5397 = vadd.f32 %v5219, %v5367
        %v5398 = vadd.f32 %v5224, %v5372
        %v5399 = vadd.f32 %v5229, %v5377
        %v5400 = vadd.f32 %v5234, %v5382
        %s5401 = scalar_lea.vmem %s1, 160
        %v5402 = vld [vmem:[%s5401] sm:$0xff]
        %v5403 = vld [vmem:[%s5401 + $0x8] sm:$0xff]
        %5404 = vmatprep.subr.mxu0 0.0
        %5405 = vmatpush1.msra.mxu0 0.0
        %5406 = vmatprep.subr.mxu0 0.0
        %5407 = vmatpush1.msra.mxu0 0.0
        %5408 = vmatprep.subr.mxu0 0.0
        %5409 = vmatpush1.msra.mxu0 0.0
        %5410 = vmatprep.subr.mxu0 0.0
        %5411 = vmatpush1.msra.mxu0 0.0
        %5412 = vmatprep.subr.mxu0 0.0
        %5413 = vmatpush1.msra.mxu0 0.0
        %5414 = vmatprep.subr.mxu0 0.0
        %5415 = vmatpush1.msra.mxu0 0.0
        %5416 = vmatprep.subr.mxu0 0.0
        %5417 = vmatpush1.msra.mxu0 0.0
        %5418 = vmatprep.subr.mxu0 0.0
        %5419 = vmatpush1.msra.mxu0 0.0
        %5420 = vmatprep.subr.mxu0 0.0
        %5421 = vmatpush1.msra.mxu0 0.0
        %5422 = vmatprep.subr.mxu0 0.0
        %5423 = vmatpush1.msra.mxu0 0.0
        %5424 = vmatprep.subr.mxu0 0.0
        %5425 = vmatpush1.msra.mxu0 0.0
        %5426 = vmatprep.subr.mxu0 0.0
        %5427 = vmatpush1.msra.mxu0 0.0
        %5428 = vmatprep.subr.mxu0 0.0
        %5429 = vmatpush1.msra.mxu0 0.0
        %5430 = vmatprep.subr.mxu0 0.0
        %5431 = vmatpush1.msra.mxu0 0.0
        %5432 = vmatprep.subr.mxu0 0.0
        %5433 = vmatpush1.msra.mxu0 %v5403
        %5434 = vmatprep.subr.mxu0 0.0
        %5435 = vmatpush1.msra.mxu0 %v5402
        %5436 = vmatprep.subr.mxu0 0.0
        %5437 = vmatpush2.msra.mxu0 0.0
        %5438 = vmatprep.subr.mxu0 0.0
        %5439 = vmatpush2.msra.mxu0 0.0
        %5440 = vmatprep.subr.mxu0 0.0
        %5441 = vmatpush2.msra.mxu0 0.0
        %5442 = vmatprep.subr.mxu0 0.0
        %5443 = vmatpush2.msra.mxu0 0.0
        %5444 = vmatprep.subr.mxu0 0.0
        %5445 = vmatpush2.msra.mxu0 0.0
        %5446 = vmatprep.subr.mxu0 0.0
        %5447 = vmatpush2.msra.mxu0 0.0
        %5448 = vmatprep.subr.mxu0 0.0
        %5449 = vmatpush2.msra.mxu0 0.0
        %5450 = vmatprep.subr.mxu0 0.0
        %5451 = vmatpush2.msra.mxu0 0.0
        %5452 = vmatprep.subr.mxu0 0.0
        %5453 = vmatpush2.msra.mxu0 0.0
        %5454 = vmatprep.subr.mxu0 0.0
        %5455 = vmatpush2.msra.mxu0 0.0
        %5456 = vmatprep.subr.mxu0 0.0
        %5457 = vmatpush2.msra.mxu0 0.0
        %5458 = vmatprep.subr.mxu0 0.0
        %5459 = vmatpush2.msra.mxu0 0.0
        %5460 = vmatprep.subr.mxu0 0.0
        %5461 = vmatpush2.msra.mxu0 0.0
        %5462 = vmatprep.subr.mxu0 0.0
        %5463 = vmatpush2.msra.mxu0 0.0
        %5464 = vmatprep.subr.mxu0 0.0
        %5465 = vmatpush2.msra.mxu0 0.0
        %5466 = vmatprep.subr.mxu0 0.0
        %5467 = vmatpush2.msra.mxu0 0.0
        %5468 = vmatprep.mubr.f32.mxu0 0.0
        %5469 = vmatmul.mubr.f32.gmra.mxu0 %v467
        %v5470 = vpop.f32.mrf.mxu0
        %v5471 = vadd.f32 0.0, %v5470
        %v5472 = vpop.f32.mrf.mxu0
        %5473 = vmatprep.mubr.f32.mxu0 0.0
        %5474 = vmatmul.mubr.f32.gmra.mxu0 %v469
        %v5475 = vpop.f32.mrf.mxu0
        %v5476 = vadd.f32 0.0, %v5475
        %v5477 = vpop.f32.mrf.mxu0
        %5478 = vmatprep.mubr.f32.mxu0 0.0
        %5479 = vmatmul.mubr.f32.gmra.mxu0 %v471
        %v5480 = vpop.f32.mrf.mxu0
        %v5481 = vadd.f32 0.0, %v5480
        %v5482 = vpop.f32.mrf.mxu0
        %5483 = vmatprep.mubr.f32.mxu0 0.0
        %5484 = vmatmul.mubr.f32.gmra.mxu0 %v473
        %v5485 = vpop.f32.mrf.mxu0
        %v5486 = vadd.f32 0.0, %v5485
        %v5487 = vpop.f32.mrf.mxu0
        %5488 = vmatprep.mubr.f32.mxu0 0.0
        %5489 = vmatmul.mubr.f32.gmra.mxu0 %v475
        %v5490 = vpop.f32.mrf.mxu0
        %v5491 = vadd.f32 0.0, %v5490
        %v5492 = vpop.f32.mrf.mxu0
        %5493 = vmatprep.mubr.f32.mxu0 0.0
        %5494 = vmatmul.mubr.f32.gmra.mxu0 %v477
        %v5495 = vpop.f32.mrf.mxu0
        %v5496 = vadd.f32 0.0, %v5495
        %v5497 = vpop.f32.mrf.mxu0
        %5498 = vmatprep.mubr.f32.mxu0 0.0
        %5499 = vmatmul.mubr.f32.gmra.mxu0 %v479
        %v5500 = vpop.f32.mrf.mxu0
        %v5501 = vadd.f32 0.0, %v5500
        %v5502 = vpop.f32.mrf.mxu0
        %5503 = vmatprep.mubr.f32.mxu0 0.0
        %5504 = vmatmul.mubr.f32.gmra.mxu0 %v481
        %v5505 = vpop.f32.mrf.mxu0
        %v5506 = vadd.f32 0.0, %v5505
        %v5507 = vpop.f32.mrf.mxu0
        %5508 = vmatprep.mubr.f32.mxu0 0.0
        %5509 = vmatmul.mubr.f32.gmra.mxu0 %v483
        %v5510 = vpop.f32.mrf.mxu0
        %v5511 = vadd.f32 0.0, %v5510
        %v5512 = vpop.f32.mrf.mxu0
        %5513 = vmatprep.mubr.f32.mxu0 0.0
        %5514 = vmatmul.mubr.f32.gmra.mxu0 %v485
        %v5515 = vpop.f32.mrf.mxu0
        %v5516 = vadd.f32 0.0, %v5515
        %v5517 = vpop.f32.mrf.mxu0
        %5518 = vmatprep.mubr.f32.mxu0 0.0
        %5519 = vmatmul.mubr.f32.gmra.mxu0 %v487
        %v5520 = vpop.f32.mrf.mxu0
        %v5521 = vadd.f32 0.0, %v5520
        %v5522 = vpop.f32.mrf.mxu0
        %5523 = vmatprep.mubr.f32.mxu0 0.0
        %5524 = vmatmul.mubr.f32.gmra.mxu0 %v489
        %v5525 = vpop.f32.mrf.mxu0
        %v5526 = vadd.f32 0.0, %v5525
        %v5527 = vpop.f32.mrf.mxu0
        %5528 = vmatprep.mubr.f32.mxu0 0.0
        %5529 = vmatmul.mubr.f32.gmra.mxu0 %v491
        %v5530 = vpop.f32.mrf.mxu0
        %v5531 = vadd.f32 0.0, %v5530
        %v5532 = vpop.f32.mrf.mxu0
        %5533 = vmatprep.mubr.f32.mxu0 0.0
        %5534 = vmatmul.mubr.f32.gmra.mxu0 %v493
        %v5535 = vpop.f32.mrf.mxu0
        %v5536 = vadd.f32 0.0, %v5535
        %v5537 = vpop.f32.mrf.mxu0
        %5538 = vmatprep.mubr.f32.mxu0 0.0
        %5539 = vmatmul.mubr.f32.gmra.mxu0 %v495
        %v5540 = vpop.f32.mrf.mxu0
        %v5541 = vadd.f32 0.0, %v5540
        %v5542 = vpop.f32.mrf.mxu0
        %5543 = vmatprep.mubr.f32.mxu0 0.0
        %5544 = vmatmul.mubr.f32.gmra.mxu0 %v497
        %v5545 = vpop.f32.mrf.mxu0
        %v5546 = vadd.f32 0.0, %v5545
        %v5547 = vpop.f32.mrf.mxu0
        %5548 = vdwg.mxu0
        %v5549 = vadd.f32 %v5385, %v5471
        %v5550 = vadd.f32 %v5386, %v5476
        %v5551 = vadd.f32 %v5387, %v5481
        %v5552 = vadd.f32 %v5388, %v5486
        %v5553 = vadd.f32 %v5389, %v5491
        %v5554 = vadd.f32 %v5390, %v5496
        %v5555 = vadd.f32 %v5391, %v5501
        %v5556 = vadd.f32 %v5392, %v5506
        %v5557 = vadd.f32 %v5393, %v5511
        %v5558 = vadd.f32 %v5394, %v5516
        %v5559 = vadd.f32 %v5395, %v5521
        %v5560 = vadd.f32 %v5396, %v5526
        %v5561 = vadd.f32 %v5397, %v5531
        %v5562 = vadd.f32 %v5398, %v5536
        %v5563 = vadd.f32 %v5399, %v5541
        %v5564 = vadd.f32 %v5400, %v5546
        %v5565 = vadd.f32 %v5549, %v992
        %v5566 = vadd.f32 %v5550, %v992
        %v5567 = vadd.f32 %v5551, %v992
        %v5568 = vadd.f32 %v5552, %v992
        %v5569 = vadd.f32 %v5553, %v992
        %v5570 = vadd.f32 %v5554, %v992
        %v5571 = vadd.f32 %v5555, %v992
        %v5572 = vadd.f32 %v5556, %v992
        %v5573 = vadd.f32 %v5557, %v992
        %v5574 = vadd.f32 %v5558, %v992
        %v5575 = vadd.f32 %v5559, %v992
        %v5576 = vadd.f32 %v5560, %v992
        %v5577 = vadd.f32 %v5561, %v992
        %v5578 = vadd.f32 %v5562, %v992
        %v5579 = vadd.f32 %v5563, %v992
        %v5580 = vadd.f32 %v5564, %v992
        %v5581 = vmax.f32 %v5565, 0.0
        %v5582 = vmax.f32 %v5566, 0.0
        %v5583 = vmax.f32 %v5567, 0.0
        %v5584 = vmax.f32 %v5568, 0.0
        %v5585 = vmax.f32 %v5569, 0.0
        %v5586 = vmax.f32 %v5570, 0.0
        %v5587 = vmax.f32 %v5571, 0.0
        %v5588 = vmax.f32 %v5572, 0.0
        %v5589 = vmax.f32 %v5573, 0.0
        %v5590 = vmax.f32 %v5574, 0.0
        %v5591 = vmax.f32 %v5575, 0.0
        %v5592 = vmax.f32 %v5576, 0.0
        %v5593 = vmax.f32 %v5577, 0.0
        %v5594 = vmax.f32 %v5578, 0.0
        %v5595 = vmax.f32 %v5579, 0.0
        %v5596 = vmax.f32 %v5580, 0.0
        %v5613 = vcombine.high %v4917, %v4917
        %v5615 = vunpack.c.l.s4 1966171168
        %v5616 = vunpack.c.0.s8 %v5615
        %v5617 = vlaneseq
        %v5618 = vshrl.u32 %v5617, 7
        %v5619 = vsub.s32 %v5616, %v5618
        %v5620 = vrot.slane %v4917, %v5619
        %v5622 = vunpack.c.l.s4 1966171168
        %v5623 = vunpack.c.0.s8 %v5622
        %v5624 = vlaneseq
        %v5625 = vshrl.u32 %v5624, 7
        %v5626 = vsub.s32 %v5623, %v5625
        %v5627 = vrot.slane %v5613, %v5626
        %v5628 = vcombine.high %v5620, %v5620
        %v5629 = vcombine.high %v5627, %v5627
        %v5631 = vunpack.c.l.s4 1966171168
        %v5632 = vunpack.c.0.s8 %v5631
        %v5633 = vlaneseq
        %v5634 = vshrl.u32 %v5633, 7
        %v5635 = vsub.s32 %v5632, %v5634
        %v5636 = vrot.slane %v5620, %v5635
        %v5638 = vunpack.c.l.s4 1966171168
        %v5639 = vunpack.c.0.s8 %v5638
        %v5640 = vlaneseq
        %v5641 = vshrl.u32 %v5640, 7
        %v5642 = vsub.s32 %v5639, %v5641
        %v5643 = vrot.slane %v5627, %v5642
        %v5645 = vunpack.c.l.s4 1966171168
        %v5646 = vunpack.c.0.s8 %v5645
        %v5647 = vlaneseq
        %v5648 = vshrl.u32 %v5647, 7
        %v5649 = vsub.s32 %v5646, %v5648
        %v5650 = vrot.slane %v5628, %v5649
        %v5652 = vunpack.c.l.s4 1966171168
        %v5653 = vunpack.c.0.s8 %v5652
        %v5654 = vlaneseq
        %v5655 = vshrl.u32 %v5654, 7
        %v5656 = vsub.s32 %v5653, %v5655
        %v5657 = vrot.slane %v5629, %v5656
        %v5658 = vcombine.high %v5636, %v5636
        %v5659 = vcombine.high %v5643, %v5643
        %v5660 = vcombine.high %v5650, %v5650
        %v5661 = vcombine.high %v5657, %v5657
        %v5662 = vcombine.high %v4918, %v4918
        %v5664 = vunpack.c.l.s4 1966171168
        %v5665 = vunpack.c.0.s8 %v5664
        %v5666 = vlaneseq
        %v5667 = vshrl.u32 %v5666, 7
        %v5668 = vsub.s32 %v5665, %v5667
        %v5669 = vrot.slane %v4918, %v5668
        %v5671 = vunpack.c.l.s4 1966171168
        %v5672 = vunpack.c.0.s8 %v5671
        %v5673 = vlaneseq
        %v5674 = vshrl.u32 %v5673, 7
        %v5675 = vsub.s32 %v5672, %v5674
        %v5676 = vrot.slane %v5662, %v5675
        %v5677 = vcombine.high %v5669, %v5669
        %v5678 = vcombine.high %v5676, %v5676
        %v5680 = vunpack.c.l.s4 1966171168
        %v5681 = vunpack.c.0.s8 %v5680
        %v5682 = vlaneseq
        %v5683 = vshrl.u32 %v5682, 7
        %v5684 = vsub.s32 %v5681, %v5683
        %v5685 = vrot.slane %v5669, %v5684
        %v5687 = vunpack.c.l.s4 1966171168
        %v5688 = vunpack.c.0.s8 %v5687
        %v5689 = vlaneseq
        %v5690 = vshrl.u32 %v5689, 7
        %v5691 = vsub.s32 %v5688, %v5690
        %v5692 = vrot.slane %v5676, %v5691
        %v5694 = vunpack.c.l.s4 1966171168
        %v5695 = vunpack.c.0.s8 %v5694
        %v5696 = vlaneseq
        %v5697 = vshrl.u32 %v5696, 7
        %v5698 = vsub.s32 %v5695, %v5697
        %v5699 = vrot.slane %v5677, %v5698
        %v5701 = vunpack.c.l.s4 1966171168
        %v5702 = vunpack.c.0.s8 %v5701
        %v5703 = vlaneseq
        %v5704 = vshrl.u32 %v5703, 7
        %v5705 = vsub.s32 %v5702, %v5704
        %v5706 = vrot.slane %v5678, %v5705
        %v5707 = vcombine.high %v5685, %v5685
        %v5708 = vcombine.high %v5692, %v5692
        %v5709 = vcombine.high %v5699, %v5699
        %v5710 = vcombine.high %v5706, %v5706
        %v5711 = vcombine.high %v4919, %v4919
        %v5713 = vunpack.c.l.s4 1966171168
        %v5714 = vunpack.c.0.s8 %v5713
        %v5715 = vlaneseq
        %v5716 = vshrl.u32 %v5715, 7
        %v5717 = vsub.s32 %v5714, %v5716
        %v5718 = vrot.slane %v4919, %v5717
        %v5720 = vunpack.c.l.s4 1966171168
        %v5721 = vunpack.c.0.s8 %v5720
        %v5722 = vlaneseq
        %v5723 = vshrl.u32 %v5722, 7
        %v5724 = vsub.s32 %v5721, %v5723
        %v5725 = vrot.slane %v5711, %v5724
        %v5726 = vcombine.high %v5718, %v5718
        %v5727 = vcombine.high %v5725, %v5725
        %v5729 = vunpack.c.l.s4 1966171168
        %v5730 = vunpack.c.0.s8 %v5729
        %v5731 = vlaneseq
        %v5732 = vshrl.u32 %v5731, 7
        %v5733 = vsub.s32 %v5730, %v5732
        %v5734 = vrot.slane %v5718, %v5733
        %v5736 = vunpack.c.l.s4 1966171168
        %v5737 = vunpack.c.0.s8 %v5736
        %v5738 = vlaneseq
        %v5739 = vshrl.u32 %v5738, 7
        %v5740 = vsub.s32 %v5737, %v5739
        %v5741 = vrot.slane %v5725, %v5740
        %v5743 = vunpack.c.l.s4 1966171168
        %v5744 = vunpack.c.0.s8 %v5743
        %v5745 = vlaneseq
        %v5746 = vshrl.u32 %v5745, 7
        %v5747 = vsub.s32 %v5744, %v5746
        %v5748 = vrot.slane %v5726, %v5747
        %v5750 = vunpack.c.l.s4 1966171168
        %v5751 = vunpack.c.0.s8 %v5750
        %v5752 = vlaneseq
        %v5753 = vshrl.u32 %v5752, 7
        %v5754 = vsub.s32 %v5751, %v5753
        %v5755 = vrot.slane %v5727, %v5754
        %v5756 = vcombine.high %v5734, %v5734
        %v5757 = vcombine.high %v5741, %v5741
        %v5758 = vcombine.high %v5748, %v5748
        %v5759 = vcombine.high %v5755, %v5755
        %v5760 = vcombine.high %v4920, %v4920
        %v5762 = vunpack.c.l.s4 1966171168
        %v5763 = vunpack.c.0.s8 %v5762
        %v5764 = vlaneseq
        %v5765 = vshrl.u32 %v5764, 7
        %v5766 = vsub.s32 %v5763, %v5765
        %v5767 = vrot.slane %v4920, %v5766
        %v5769 = vunpack.c.l.s4 1966171168
        %v5770 = vunpack.c.0.s8 %v5769
        %v5771 = vlaneseq
        %v5772 = vshrl.u32 %v5771, 7
        %v5773 = vsub.s32 %v5770, %v5772
        %v5774 = vrot.slane %v5760, %v5773
        %v5775 = vcombine.high %v5767, %v5767
        %v5776 = vcombine.high %v5774, %v5774
        %v5778 = vunpack.c.l.s4 1966171168
        %v5779 = vunpack.c.0.s8 %v5778
        %v5780 = vlaneseq
        %v5781 = vshrl.u32 %v5780, 7
        %v5782 = vsub.s32 %v5779, %v5781
        %v5783 = vrot.slane %v5767, %v5782
        %v5785 = vunpack.c.l.s4 1966171168
        %v5786 = vunpack.c.0.s8 %v5785
        %v5787 = vlaneseq
        %v5788 = vshrl.u32 %v5787, 7
        %v5789 = vsub.s32 %v5786, %v5788
        %v5790 = vrot.slane %v5774, %v5789
        %v5792 = vunpack.c.l.s4 1966171168
        %v5793 = vunpack.c.0.s8 %v5792
        %v5794 = vlaneseq
        %v5795 = vshrl.u32 %v5794, 7
        %v5796 = vsub.s32 %v5793, %v5795
        %v5797 = vrot.slane %v5775, %v5796
        %v5799 = vunpack.c.l.s4 1966171168
        %v5800 = vunpack.c.0.s8 %v5799
        %v5801 = vlaneseq
        %v5802 = vshrl.u32 %v5801, 7
        %v5803 = vsub.s32 %v5800, %v5802
        %v5804 = vrot.slane %v5776, %v5803
        %v5805 = vcombine.high %v5783, %v5783
        %v5806 = vcombine.high %v5790, %v5790
        %v5807 = vcombine.high %v5797, %v5797
        %v5808 = vcombine.high %v5804, %v5804
        %v5809 = vcombine.high %v4921, %v4921
        %v5811 = vunpack.c.l.s4 1966171168
        %v5812 = vunpack.c.0.s8 %v5811
        %v5813 = vlaneseq
        %v5814 = vshrl.u32 %v5813, 7
        %v5815 = vsub.s32 %v5812, %v5814
        %v5816 = vrot.slane %v4921, %v5815
        %v5818 = vunpack.c.l.s4 1966171168
        %v5819 = vunpack.c.0.s8 %v5818
        %v5820 = vlaneseq
        %v5821 = vshrl.u32 %v5820, 7
        %v5822 = vsub.s32 %v5819, %v5821
        %v5823 = vrot.slane %v5809, %v5822
        %v5824 = vcombine.high %v5816, %v5816
        %v5825 = vcombine.high %v5823, %v5823
        %v5827 = vunpack.c.l.s4 1966171168
        %v5828 = vunpack.c.0.s8 %v5827
        %v5829 = vlaneseq
        %v5830 = vshrl.u32 %v5829, 7
        %v5831 = vsub.s32 %v5828, %v5830
        %v5832 = vrot.slane %v5816, %v5831
        %v5834 = vunpack.c.l.s4 1966171168
        %v5835 = vunpack.c.0.s8 %v5834
        %v5836 = vlaneseq
        %v5837 = vshrl.u32 %v5836, 7
        %v5838 = vsub.s32 %v5835, %v5837
        %v5839 = vrot.slane %v5823, %v5838
        %v5841 = vunpack.c.l.s4 1966171168
        %v5842 = vunpack.c.0.s8 %v5841
        %v5843 = vlaneseq
        %v5844 = vshrl.u32 %v5843, 7
        %v5845 = vsub.s32 %v5842, %v5844
        %v5846 = vrot.slane %v5824, %v5845
        %v5848 = vunpack.c.l.s4 1966171168
        %v5849 = vunpack.c.0.s8 %v5848
        %v5850 = vlaneseq
        %v5851 = vshrl.u32 %v5850, 7
        %v5852 = vsub.s32 %v5849, %v5851
        %v5853 = vrot.slane %v5825, %v5852
        %v5854 = vcombine.high %v5832, %v5832
        %v5855 = vcombine.high %v5839, %v5839
        %v5856 = vcombine.high %v5846, %v5846
        %v5857 = vcombine.high %v5853, %v5853
        %v5858 = vcombine.high %v4922, %v4922
        %v5860 = vunpack.c.l.s4 1966171168
        %v5861 = vunpack.c.0.s8 %v5860
        %v5862 = vlaneseq
        %v5863 = vshrl.u32 %v5862, 7
        %v5864 = vsub.s32 %v5861, %v5863
        %v5865 = vrot.slane %v4922, %v5864
        %v5867 = vunpack.c.l.s4 1966171168
        %v5868 = vunpack.c.0.s8 %v5867
        %v5869 = vlaneseq
        %v5870 = vshrl.u32 %v5869, 7
        %v5871 = vsub.s32 %v5868, %v5870
        %v5872 = vrot.slane %v5858, %v5871
        %v5873 = vcombine.high %v5865, %v5865
        %v5874 = vcombine.high %v5872, %v5872
        %v5876 = vunpack.c.l.s4 1966171168
        %v5877 = vunpack.c.0.s8 %v5876
        %v5878 = vlaneseq
        %v5879 = vshrl.u32 %v5878, 7
        %v5880 = vsub.s32 %v5877, %v5879
        %v5881 = vrot.slane %v5865, %v5880
        %v5883 = vunpack.c.l.s4 1966171168
        %v5884 = vunpack.c.0.s8 %v5883
        %v5885 = vlaneseq
        %v5886 = vshrl.u32 %v5885, 7
        %v5887 = vsub.s32 %v5884, %v5886
        %v5888 = vrot.slane %v5872, %v5887
        %v5890 = vunpack.c.l.s4 1966171168
        %v5891 = vunpack.c.0.s8 %v5890
        %v5892 = vlaneseq
        %v5893 = vshrl.u32 %v5892, 7
        %v5894 = vsub.s32 %v5891, %v5893
        %v5895 = vrot.slane %v5873, %v5894
        %v5897 = vunpack.c.l.s4 1966171168
        %v5898 = vunpack.c.0.s8 %v5897
        %v5899 = vlaneseq
        %v5900 = vshrl.u32 %v5899, 7
        %v5901 = vsub.s32 %v5898, %v5900
        %v5902 = vrot.slane %v5874, %v5901
        %v5903 = vcombine.high %v5881, %v5881
        %v5904 = vcombine.high %v5888, %v5888
        %v5905 = vcombine.high %v5895, %v5895
        %v5906 = vcombine.high %v5902, %v5902
        %v5907 = vcombine.high %v4923, %v4923
        %v5909 = vunpack.c.l.s4 1966171168
        %v5910 = vunpack.c.0.s8 %v5909
        %v5911 = vlaneseq
        %v5912 = vshrl.u32 %v5911, 7
        %v5913 = vsub.s32 %v5910, %v5912
        %v5914 = vrot.slane %v4923, %v5913
        %v5916 = vunpack.c.l.s4 1966171168
        %v5917 = vunpack.c.0.s8 %v5916
        %v5918 = vlaneseq
        %v5919 = vshrl.u32 %v5918, 7
        %v5920 = vsub.s32 %v5917, %v5919
        %v5921 = vrot.slane %v5907, %v5920
        %v5922 = vcombine.high %v5914, %v5914
        %v5923 = vcombine.high %v5921, %v5921
        %v5925 = vunpack.c.l.s4 1966171168
        %v5926 = vunpack.c.0.s8 %v5925
        %v5927 = vlaneseq
        %v5928 = vshrl.u32 %v5927, 7
        %v5929 = vsub.s32 %v5926, %v5928
        %v5930 = vrot.slane %v5914, %v5929
        %v5932 = vunpack.c.l.s4 1966171168
        %v5933 = vunpack.c.0.s8 %v5932
        %v5934 = vlaneseq
        %v5935 = vshrl.u32 %v5934, 7
        %v5936 = vsub.s32 %v5933, %v5935
        %v5937 = vrot.slane %v5921, %v5936
        %v5939 = vunpack.c.l.s4 1966171168
        %v5940 = vunpack.c.0.s8 %v5939
        %v5941 = vlaneseq
        %v5942 = vshrl.u32 %v5941, 7
        %v5943 = vsub.s32 %v5940, %v5942
        %v5944 = vrot.slane %v5922, %v5943
        %v5946 = vunpack.c.l.s4 1966171168
        %v5947 = vunpack.c.0.s8 %v5946
        %v5948 = vlaneseq
        %v5949 = vshrl.u32 %v5948, 7
        %v5950 = vsub.s32 %v5947, %v5949
        %v5951 = vrot.slane %v5923, %v5950
        %v5952 = vcombine.high %v5930, %v5930
        %v5953 = vcombine.high %v5937, %v5937
        %v5954 = vcombine.high %v5944, %v5944
        %v5955 = vcombine.high %v5951, %v5951
        %v5956 = vcombine.high %v4924, %v4924
        %v5958 = vunpack.c.l.s4 1966171168
        %v5959 = vunpack.c.0.s8 %v5958
        %v5960 = vlaneseq
        %v5961 = vshrl.u32 %v5960, 7
        %v5962 = vsub.s32 %v5959, %v5961
        %v5963 = vrot.slane %v4924, %v5962
        %v5965 = vunpack.c.l.s4 1966171168
        %v5966 = vunpack.c.0.s8 %v5965
        %v5967 = vlaneseq
        %v5968 = vshrl.u32 %v5967, 7
        %v5969 = vsub.s32 %v5966, %v5968
        %v5970 = vrot.slane %v5956, %v5969
        %v5971 = vcombine.high %v5963, %v5963
        %v5972 = vcombine.high %v5970, %v5970
        %v5974 = vunpack.c.l.s4 1966171168
        %v5975 = vunpack.c.0.s8 %v5974
        %v5976 = vlaneseq
        %v5977 = vshrl.u32 %v5976, 7
        %v5978 = vsub.s32 %v5975, %v5977
        %v5979 = vrot.slane %v5963, %v5978
        %v5981 = vunpack.c.l.s4 1966171168
        %v5982 = vunpack.c.0.s8 %v5981
        %v5983 = vlaneseq
        %v5984 = vshrl.u32 %v5983, 7
        %v5985 = vsub.s32 %v5982, %v5984
        %v5986 = vrot.slane %v5970, %v5985
        %v5988 = vunpack.c.l.s4 1966171168
        %v5989 = vunpack.c.0.s8 %v5988
        %v5990 = vlaneseq
        %v5991 = vshrl.u32 %v5990, 7
        %v5992 = vsub.s32 %v5989, %v5991
        %v5993 = vrot.slane %v5971, %v5992
        %v5995 = vunpack.c.l.s4 1966171168
        %v5996 = vunpack.c.0.s8 %v5995
        %v5997 = vlaneseq
        %v5998 = vshrl.u32 %v5997, 7
        %v5999 = vsub.s32 %v5996, %v5998
        %v6000 = vrot.slane %v5972, %v5999
        %v6001 = vcombine.high %v5979, %v5979
        %v6002 = vcombine.high %v5986, %v5986
        %v6003 = vcombine.high %v5993, %v5993
        %v6004 = vcombine.high %v6000, %v6000
        %v6005 = vcombine.high %v4925, %v4925
        %v6007 = vunpack.c.l.s4 1966171168
        %v6008 = vunpack.c.0.s8 %v6007
        %v6009 = vlaneseq
        %v6010 = vshrl.u32 %v6009, 7
        %v6011 = vsub.s32 %v6008, %v6010
        %v6012 = vrot.slane %v4925, %v6011
        %v6014 = vunpack.c.l.s4 1966171168
        %v6015 = vunpack.c.0.s8 %v6014
        %v6016 = vlaneseq
        %v6017 = vshrl.u32 %v6016, 7
        %v6018 = vsub.s32 %v6015, %v6017
        %v6019 = vrot.slane %v6005, %v6018
        %v6020 = vcombine.high %v6012, %v6012
        %v6021 = vcombine.high %v6019, %v6019
        %v6023 = vunpack.c.l.s4 1966171168
        %v6024 = vunpack.c.0.s8 %v6023
        %v6025 = vlaneseq
        %v6026 = vshrl.u32 %v6025, 7
        %v6027 = vsub.s32 %v6024, %v6026
        %v6028 = vrot.slane %v6012, %v6027
        %v6030 = vunpack.c.l.s4 1966171168
        %v6031 = vunpack.c.0.s8 %v6030
        %v6032 = vlaneseq
        %v6033 = vshrl.u32 %v6032, 7
        %v6034 = vsub.s32 %v6031, %v6033
        %v6035 = vrot.slane %v6019, %v6034
        %v6037 = vunpack.c.l.s4 1966171168
        %v6038 = vunpack.c.0.s8 %v6037
        %v6039 = vlaneseq
        %v6040 = vshrl.u32 %v6039, 7
        %v6041 = vsub.s32 %v6038, %v6040
        %v6042 = vrot.slane %v6020, %v6041
        %v6044 = vunpack.c.l.s4 1966171168
        %v6045 = vunpack.c.0.s8 %v6044
        %v6046 = vlaneseq
        %v6047 = vshrl.u32 %v6046, 7
        %v6048 = vsub.s32 %v6045, %v6047
        %v6049 = vrot.slane %v6021, %v6048
        %v6050 = vcombine.high %v6028, %v6028
        %v6051 = vcombine.high %v6035, %v6035
        %v6052 = vcombine.high %v6042, %v6042
        %v6053 = vcombine.high %v6049, %v6049
        %v6054 = vcombine.high %v4926, %v4926
        %v6056 = vunpack.c.l.s4 1966171168
        %v6057 = vunpack.c.0.s8 %v6056
        %v6058 = vlaneseq
        %v6059 = vshrl.u32 %v6058, 7
        %v6060 = vsub.s32 %v6057, %v6059
        %v6061 = vrot.slane %v4926, %v6060
        %v6063 = vunpack.c.l.s4 1966171168
        %v6064 = vunpack.c.0.s8 %v6063
        %v6065 = vlaneseq
        %v6066 = vshrl.u32 %v6065, 7
        %v6067 = vsub.s32 %v6064, %v6066
        %v6068 = vrot.slane %v6054, %v6067
        %v6069 = vcombine.high %v6061, %v6061
        %v6070 = vcombine.high %v6068, %v6068
        %v6072 = vunpack.c.l.s4 1966171168
        %v6073 = vunpack.c.0.s8 %v6072
        %v6074 = vlaneseq
        %v6075 = vshrl.u32 %v6074, 7
        %v6076 = vsub.s32 %v6073, %v6075
        %v6077 = vrot.slane %v6061, %v6076
        %v6079 = vunpack.c.l.s4 1966171168
        %v6080 = vunpack.c.0.s8 %v6079
        %v6081 = vlaneseq
        %v6082 = vshrl.u32 %v6081, 7
        %v6083 = vsub.s32 %v6080, %v6082
        %v6084 = vrot.slane %v6068, %v6083
        %v6086 = vunpack.c.l.s4 1966171168
        %v6087 = vunpack.c.0.s8 %v6086
        %v6088 = vlaneseq
        %v6089 = vshrl.u32 %v6088, 7
        %v6090 = vsub.s32 %v6087, %v6089
        %v6091 = vrot.slane %v6069, %v6090
        %v6093 = vunpack.c.l.s4 1966171168
        %v6094 = vunpack.c.0.s8 %v6093
        %v6095 = vlaneseq
        %v6096 = vshrl.u32 %v6095, 7
        %v6097 = vsub.s32 %v6094, %v6096
        %v6098 = vrot.slane %v6070, %v6097
        %v6099 = vcombine.high %v6077, %v6077
        %v6100 = vcombine.high %v6084, %v6084
        %v6101 = vcombine.high %v6091, %v6091
        %v6102 = vcombine.high %v6098, %v6098
        %v6103 = vcombine.high %v4927, %v4927
        %v6105 = vunpack.c.l.s4 1966171168
        %v6106 = vunpack.c.0.s8 %v6105
        %v6107 = vlaneseq
        %v6108 = vshrl.u32 %v6107, 7
        %v6109 = vsub.s32 %v6106, %v6108
        %v6110 = vrot.slane %v4927, %v6109
        %v6112 = vunpack.c.l.s4 1966171168
        %v6113 = vunpack.c.0.s8 %v6112
        %v6114 = vlaneseq
        %v6115 = vshrl.u32 %v6114, 7
        %v6116 = vsub.s32 %v6113, %v6115
        %v6117 = vrot.slane %v6103, %v6116
        %v6118 = vcombine.high %v6110, %v6110
        %v6119 = vcombine.high %v6117, %v6117
        %v6121 = vunpack.c.l.s4 1966171168
        %v6122 = vunpack.c.0.s8 %v6121
        %v6123 = vlaneseq
        %v6124 = vshrl.u32 %v6123, 7
        %v6125 = vsub.s32 %v6122, %v6124
        %v6126 = vrot.slane %v6110, %v6125
        %v6128 = vunpack.c.l.s4 1966171168
        %v6129 = vunpack.c.0.s8 %v6128
        %v6130 = vlaneseq
        %v6131 = vshrl.u32 %v6130, 7
        %v6132 = vsub.s32 %v6129, %v6131
        %v6133 = vrot.slane %v6117, %v6132
        %v6135 = vunpack.c.l.s4 1966171168
        %v6136 = vunpack.c.0.s8 %v6135
        %v6137 = vlaneseq
        %v6138 = vshrl.u32 %v6137, 7
        %v6139 = vsub.s32 %v6136, %v6138
        %v6140 = vrot.slane %v6118, %v6139
        %v6142 = vunpack.c.l.s4 1966171168
        %v6143 = vunpack.c.0.s8 %v6142
        %v6144 = vlaneseq
        %v6145 = vshrl.u32 %v6144, 7
        %v6146 = vsub.s32 %v6143, %v6145
        %v6147 = vrot.slane %v6119, %v6146
        %v6148 = vcombine.high %v6126, %v6126
        %v6149 = vcombine.high %v6133, %v6133
        %v6150 = vcombine.high %v6140, %v6140
        %v6151 = vcombine.high %v6147, %v6147
        %v6152 = vcombine.high %v4928, %v4928
        %v6154 = vunpack.c.l.s4 1966171168
        %v6155 = vunpack.c.0.s8 %v6154
        %v6156 = vlaneseq
        %v6157 = vshrl.u32 %v6156, 7
        %v6158 = vsub.s32 %v6155, %v6157
        %v6159 = vrot.slane %v4928, %v6158
        %v6161 = vunpack.c.l.s4 1966171168
        %v6162 = vunpack.c.0.s8 %v6161
        %v6163 = vlaneseq
        %v6164 = vshrl.u32 %v6163, 7
        %v6165 = vsub.s32 %v6162, %v6164
        %v6166 = vrot.slane %v6152, %v6165
        %v6167 = vcombine.high %v6159, %v6159
        %v6168 = vcombine.high %v6166, %v6166
        %v6170 = vunpack.c.l.s4 1966171168
        %v6171 = vunpack.c.0.s8 %v6170
        %v6172 = vlaneseq
        %v6173 = vshrl.u32 %v6172, 7
        %v6174 = vsub.s32 %v6171, %v6173
        %v6175 = vrot.slane %v6159, %v6174
        %v6177 = vunpack.c.l.s4 1966171168
        %v6178 = vunpack.c.0.s8 %v6177
        %v6179 = vlaneseq
        %v6180 = vshrl.u32 %v6179, 7
        %v6181 = vsub.s32 %v6178, %v6180
        %v6182 = vrot.slane %v6166, %v6181
        %v6184 = vunpack.c.l.s4 1966171168
        %v6185 = vunpack.c.0.s8 %v6184
        %v6186 = vlaneseq
        %v6187 = vshrl.u32 %v6186, 7
        %v6188 = vsub.s32 %v6185, %v6187
        %v6189 = vrot.slane %v6167, %v6188
        %v6191 = vunpack.c.l.s4 1966171168
        %v6192 = vunpack.c.0.s8 %v6191
        %v6193 = vlaneseq
        %v6194 = vshrl.u32 %v6193, 7
        %v6195 = vsub.s32 %v6192, %v6194
        %v6196 = vrot.slane %v6168, %v6195
        %v6197 = vcombine.high %v6175, %v6175
        %v6198 = vcombine.high %v6182, %v6182
        %v6199 = vcombine.high %v6189, %v6189
        %v6200 = vcombine.high %v6196, %v6196
        %v6201 = vcombine.high %v4929, %v4929
        %v6203 = vunpack.c.l.s4 1966171168
        %v6204 = vunpack.c.0.s8 %v6203
        %v6205 = vlaneseq
        %v6206 = vshrl.u32 %v6205, 7
        %v6207 = vsub.s32 %v6204, %v6206
        %v6208 = vrot.slane %v4929, %v6207
        %v6210 = vunpack.c.l.s4 1966171168
        %v6211 = vunpack.c.0.s8 %v6210
        %v6212 = vlaneseq
        %v6213 = vshrl.u32 %v6212, 7
        %v6214 = vsub.s32 %v6211, %v6213
        %v6215 = vrot.slane %v6201, %v6214
        %v6216 = vcombine.high %v6208, %v6208
        %v6217 = vcombine.high %v6215, %v6215
        %v6219 = vunpack.c.l.s4 1966171168
        %v6220 = vunpack.c.0.s8 %v6219
        %v6221 = vlaneseq
        %v6222 = vshrl.u32 %v6221, 7
        %v6223 = vsub.s32 %v6220, %v6222
        %v6224 = vrot.slane %v6208, %v6223
        %v6226 = vunpack.c.l.s4 1966171168
        %v6227 = vunpack.c.0.s8 %v6226
        %v6228 = vlaneseq
        %v6229 = vshrl.u32 %v6228, 7
        %v6230 = vsub.s32 %v6227, %v6229
        %v6231 = vrot.slane %v6215, %v6230
        %v6233 = vunpack.c.l.s4 1966171168
        %v6234 = vunpack.c.0.s8 %v6233
        %v6235 = vlaneseq
        %v6236 = vshrl.u32 %v6235, 7
        %v6237 = vsub.s32 %v6234, %v6236
        %v6238 = vrot.slane %v6216, %v6237
        %v6240 = vunpack.c.l.s4 1966171168
        %v6241 = vunpack.c.0.s8 %v6240
        %v6242 = vlaneseq
        %v6243 = vshrl.u32 %v6242, 7
        %v6244 = vsub.s32 %v6241, %v6243
        %v6245 = vrot.slane %v6217, %v6244
        %v6246 = vcombine.high %v6224, %v6224
        %v6247 = vcombine.high %v6231, %v6231
        %v6248 = vcombine.high %v6238, %v6238
        %v6249 = vcombine.high %v6245, %v6245
        %v6250 = vcombine.high %v4930, %v4930
        %v6252 = vunpack.c.l.s4 1966171168
        %v6253 = vunpack.c.0.s8 %v6252
        %v6254 = vlaneseq
        %v6255 = vshrl.u32 %v6254, 7
        %v6256 = vsub.s32 %v6253, %v6255
        %v6257 = vrot.slane %v4930, %v6256
        %v6259 = vunpack.c.l.s4 1966171168
        %v6260 = vunpack.c.0.s8 %v6259
        %v6261 = vlaneseq
        %v6262 = vshrl.u32 %v6261, 7
        %v6263 = vsub.s32 %v6260, %v6262
        %v6264 = vrot.slane %v6250, %v6263
        %v6265 = vcombine.high %v6257, %v6257
        %v6266 = vcombine.high %v6264, %v6264
        %v6268 = vunpack.c.l.s4 1966171168
        %v6269 = vunpack.c.0.s8 %v6268
        %v6270 = vlaneseq
        %v6271 = vshrl.u32 %v6270, 7
        %v6272 = vsub.s32 %v6269, %v6271
        %v6273 = vrot.slane %v6257, %v6272
        %v6275 = vunpack.c.l.s4 1966171168
        %v6276 = vunpack.c.0.s8 %v6275
        %v6277 = vlaneseq
        %v6278 = vshrl.u32 %v6277, 7
        %v6279 = vsub.s32 %v6276, %v6278
        %v6280 = vrot.slane %v6264, %v6279
        %v6282 = vunpack.c.l.s4 1966171168
        %v6283 = vunpack.c.0.s8 %v6282
        %v6284 = vlaneseq
        %v6285 = vshrl.u32 %v6284, 7
        %v6286 = vsub.s32 %v6283, %v6285
        %v6287 = vrot.slane %v6265, %v6286
        %v6289 = vunpack.c.l.s4 1966171168
        %v6290 = vunpack.c.0.s8 %v6289
        %v6291 = vlaneseq
        %v6292 = vshrl.u32 %v6291, 7
        %v6293 = vsub.s32 %v6290, %v6292
        %v6294 = vrot.slane %v6266, %v6293
        %v6295 = vcombine.high %v6273, %v6273
        %v6296 = vcombine.high %v6280, %v6280
        %v6297 = vcombine.high %v6287, %v6287
        %v6298 = vcombine.high %v6294, %v6294
        %v6299 = vcombine.high %v4931, %v4931
        %v6301 = vunpack.c.l.s4 1966171168
        %v6302 = vunpack.c.0.s8 %v6301
        %v6303 = vlaneseq
        %v6304 = vshrl.u32 %v6303, 7
        %v6305 = vsub.s32 %v6302, %v6304
        %v6306 = vrot.slane %v4931, %v6305
        %v6308 = vunpack.c.l.s4 1966171168
        %v6309 = vunpack.c.0.s8 %v6308
        %v6310 = vlaneseq
        %v6311 = vshrl.u32 %v6310, 7
        %v6312 = vsub.s32 %v6309, %v6311
        %v6313 = vrot.slane %v6299, %v6312
        %v6314 = vcombine.high %v6306, %v6306
        %v6315 = vcombine.high %v6313, %v6313
        %v6317 = vunpack.c.l.s4 1966171168
        %v6318 = vunpack.c.0.s8 %v6317
        %v6319 = vlaneseq
        %v6320 = vshrl.u32 %v6319, 7
        %v6321 = vsub.s32 %v6318, %v6320
        %v6322 = vrot.slane %v6306, %v6321
        %v6324 = vunpack.c.l.s4 1966171168
        %v6325 = vunpack.c.0.s8 %v6324
        %v6326 = vlaneseq
        %v6327 = vshrl.u32 %v6326, 7
        %v6328 = vsub.s32 %v6325, %v6327
        %v6329 = vrot.slane %v6313, %v6328
        %v6331 = vunpack.c.l.s4 1966171168
        %v6332 = vunpack.c.0.s8 %v6331
        %v6333 = vlaneseq
        %v6334 = vshrl.u32 %v6333, 7
        %v6335 = vsub.s32 %v6332, %v6334
        %v6336 = vrot.slane %v6314, %v6335
        %v6338 = vunpack.c.l.s4 1966171168
        %v6339 = vunpack.c.0.s8 %v6338
        %v6340 = vlaneseq
        %v6341 = vshrl.u32 %v6340, 7
        %v6342 = vsub.s32 %v6339, %v6341
        %v6343 = vrot.slane %v6315, %v6342
        %v6344 = vcombine.high %v6322, %v6322
        %v6345 = vcombine.high %v6329, %v6329
        %v6346 = vcombine.high %v6336, %v6336
        %v6347 = vcombine.high %v6343, %v6343
        %v6348 = vcombine.high %v4932, %v4932
        %v6350 = vunpack.c.l.s4 1966171168
        %v6351 = vunpack.c.0.s8 %v6350
        %v6352 = vlaneseq
        %v6353 = vshrl.u32 %v6352, 7
        %v6354 = vsub.s32 %v6351, %v6353
        %v6355 = vrot.slane %v4932, %v6354
        %v6357 = vunpack.c.l.s4 1966171168
        %v6358 = vunpack.c.0.s8 %v6357
        %v6359 = vlaneseq
        %v6360 = vshrl.u32 %v6359, 7
        %v6361 = vsub.s32 %v6358, %v6360
        %v6362 = vrot.slane %v6348, %v6361
        %v6363 = vcombine.high %v6355, %v6355
        %v6364 = vcombine.high %v6362, %v6362
        %v6366 = vunpack.c.l.s4 1966171168
        %v6367 = vunpack.c.0.s8 %v6366
        %v6368 = vlaneseq
        %v6369 = vshrl.u32 %v6368, 7
        %v6370 = vsub.s32 %v6367, %v6369
        %v6371 = vrot.slane %v6355, %v6370
        %v6373 = vunpack.c.l.s4 1966171168
        %v6374 = vunpack.c.0.s8 %v6373
        %v6375 = vlaneseq
        %v6376 = vshrl.u32 %v6375, 7
        %v6377 = vsub.s32 %v6374, %v6376
        %v6378 = vrot.slane %v6362, %v6377
        %v6380 = vunpack.c.l.s4 1966171168
        %v6381 = vunpack.c.0.s8 %v6380
        %v6382 = vlaneseq
        %v6383 = vshrl.u32 %v6382, 7
        %v6384 = vsub.s32 %v6381, %v6383
        %v6385 = vrot.slane %v6363, %v6384
        %v6387 = vunpack.c.l.s4 1966171168
        %v6388 = vunpack.c.0.s8 %v6387
        %v6389 = vlaneseq
        %v6390 = vshrl.u32 %v6389, 7
        %v6391 = vsub.s32 %v6388, %v6390
        %v6392 = vrot.slane %v6364, %v6391
        %v6393 = vcombine.high %v6371, %v6371
        %v6394 = vcombine.high %v6378, %v6378
        %v6395 = vcombine.high %v6385, %v6385
        %v6396 = vcombine.high %v6392, %v6392
        %v6541 = vcombine.high %v5581, %v5581
        %v6543 = vunpack.c.l.s4 1966171168
        %v6544 = vunpack.c.0.s8 %v6543
        %v6545 = vlaneseq
        %v6546 = vshrl.u32 %v6545, 7
        %v6547 = vsub.s32 %v6544, %v6546
        %v6548 = vrot.slane %v5581, %v6547
        %v6550 = vunpack.c.l.s4 1966171168
        %v6551 = vunpack.c.0.s8 %v6550
        %v6552 = vlaneseq
        %v6553 = vshrl.u32 %v6552, 7
        %v6554 = vsub.s32 %v6551, %v6553
        %v6555 = vrot.slane %v6541, %v6554
        %v6556 = vcombine.high %v6548, %v6548
        %v6557 = vcombine.high %v6555, %v6555
        %v6559 = vunpack.c.l.s4 1966171168
        %v6560 = vunpack.c.0.s8 %v6559
        %v6561 = vlaneseq
        %v6562 = vshrl.u32 %v6561, 7
        %v6563 = vsub.s32 %v6560, %v6562
        %v6564 = vrot.slane %v6548, %v6563
        %v6566 = vunpack.c.l.s4 1966171168
        %v6567 = vunpack.c.0.s8 %v6566
        %v6568 = vlaneseq
        %v6569 = vshrl.u32 %v6568, 7
        %v6570 = vsub.s32 %v6567, %v6569
        %v6571 = vrot.slane %v6555, %v6570
        %v6573 = vunpack.c.l.s4 1966171168
        %v6574 = vunpack.c.0.s8 %v6573
        %v6575 = vlaneseq
        %v6576 = vshrl.u32 %v6575, 7
        %v6577 = vsub.s32 %v6574, %v6576
        %v6578 = vrot.slane %v6556, %v6577
        %v6580 = vunpack.c.l.s4 1966171168
        %v6581 = vunpack.c.0.s8 %v6580
        %v6582 = vlaneseq
        %v6583 = vshrl.u32 %v6582, 7
        %v6584 = vsub.s32 %v6581, %v6583
        %v6585 = vrot.slane %v6557, %v6584
        %v6586 = vcombine.high %v6564, %v6564
        %v6587 = vcombine.high %v6571, %v6571
        %v6588 = vcombine.high %v6578, %v6578
        %v6589 = vcombine.high %v6585, %v6585
        %v6590 = vcombine.high %v5582, %v5582
        %v6592 = vunpack.c.l.s4 1966171168
        %v6593 = vunpack.c.0.s8 %v6592
        %v6594 = vlaneseq
        %v6595 = vshrl.u32 %v6594, 7
        %v6596 = vsub.s32 %v6593, %v6595
        %v6597 = vrot.slane %v5582, %v6596
        %v6599 = vunpack.c.l.s4 1966171168
        %v6600 = vunpack.c.0.s8 %v6599
        %v6601 = vlaneseq
        %v6602 = vshrl.u32 %v6601, 7
        %v6603 = vsub.s32 %v6600, %v6602
        %v6604 = vrot.slane %v6590, %v6603
        %v6605 = vcombine.high %v6597, %v6597
        %v6606 = vcombine.high %v6604, %v6604
        %v6608 = vunpack.c.l.s4 1966171168
        %v6609 = vunpack.c.0.s8 %v6608
        %v6610 = vlaneseq
        %v6611 = vshrl.u32 %v6610, 7
        %v6612 = vsub.s32 %v6609, %v6611
        %v6613 = vrot.slane %v6597, %v6612
        %v6615 = vunpack.c.l.s4 1966171168
        %v6616 = vunpack.c.0.s8 %v6615
        %v6617 = vlaneseq
        %v6618 = vshrl.u32 %v6617, 7
        %v6619 = vsub.s32 %v6616, %v6618
        %v6620 = vrot.slane %v6604, %v6619
        %v6622 = vunpack.c.l.s4 1966171168
        %v6623 = vunpack.c.0.s8 %v6622
        %v6624 = vlaneseq
        %v6625 = vshrl.u32 %v6624, 7
        %v6626 = vsub.s32 %v6623, %v6625
        %v6627 = vrot.slane %v6605, %v6626
        %v6629 = vunpack.c.l.s4 1966171168
        %v6630 = vunpack.c.0.s8 %v6629
        %v6631 = vlaneseq
        %v6632 = vshrl.u32 %v6631, 7
        %v6633 = vsub.s32 %v6630, %v6632
        %v6634 = vrot.slane %v6606, %v6633
        %v6635 = vcombine.high %v6613, %v6613
        %v6636 = vcombine.high %v6620, %v6620
        %v6637 = vcombine.high %v6627, %v6627
        %v6638 = vcombine.high %v6634, %v6634
        %v6639 = vcombine.high %v5583, %v5583
        %v6641 = vunpack.c.l.s4 1966171168
        %v6642 = vunpack.c.0.s8 %v6641
        %v6643 = vlaneseq
        %v6644 = vshrl.u32 %v6643, 7
        %v6645 = vsub.s32 %v6642, %v6644
        %v6646 = vrot.slane %v5583, %v6645
        %v6648 = vunpack.c.l.s4 1966171168
        %v6649 = vunpack.c.0.s8 %v6648
        %v6650 = vlaneseq
        %v6651 = vshrl.u32 %v6650, 7
        %v6652 = vsub.s32 %v6649, %v6651
        %v6653 = vrot.slane %v6639, %v6652
        %v6654 = vcombine.high %v6646, %v6646
        %v6655 = vcombine.high %v6653, %v6653
        %v6657 = vunpack.c.l.s4 1966171168
        %v6658 = vunpack.c.0.s8 %v6657
        %v6659 = vlaneseq
        %v6660 = vshrl.u32 %v6659, 7
        %v6661 = vsub.s32 %v6658, %v6660
        %v6662 = vrot.slane %v6646, %v6661
        %v6664 = vunpack.c.l.s4 1966171168
        %v6665 = vunpack.c.0.s8 %v6664
        %v6666 = vlaneseq
        %v6667 = vshrl.u32 %v6666, 7
        %v6668 = vsub.s32 %v6665, %v6667
        %v6669 = vrot.slane %v6653, %v6668
        %v6671 = vunpack.c.l.s4 1966171168
        %v6672 = vunpack.c.0.s8 %v6671
        %v6673 = vlaneseq
        %v6674 = vshrl.u32 %v6673, 7
        %v6675 = vsub.s32 %v6672, %v6674
        %v6676 = vrot.slane %v6654, %v6675
        %v6678 = vunpack.c.l.s4 1966171168
        %v6679 = vunpack.c.0.s8 %v6678
        %v6680 = vlaneseq
        %v6681 = vshrl.u32 %v6680, 7
        %v6682 = vsub.s32 %v6679, %v6681
        %v6683 = vrot.slane %v6655, %v6682
        %v6684 = vcombine.high %v6662, %v6662
        %v6685 = vcombine.high %v6669, %v6669
        %v6686 = vcombine.high %v6676, %v6676
        %v6687 = vcombine.high %v6683, %v6683
        %v6688 = vcombine.high %v5584, %v5584
        %v6690 = vunpack.c.l.s4 1966171168
        %v6691 = vunpack.c.0.s8 %v6690
        %v6692 = vlaneseq
        %v6693 = vshrl.u32 %v6692, 7
        %v6694 = vsub.s32 %v6691, %v6693
        %v6695 = vrot.slane %v5584, %v6694
        %v6697 = vunpack.c.l.s4 1966171168
        %v6698 = vunpack.c.0.s8 %v6697
        %v6699 = vlaneseq
        %v6700 = vshrl.u32 %v6699, 7
        %v6701 = vsub.s32 %v6698, %v6700
        %v6702 = vrot.slane %v6688, %v6701
        %v6703 = vcombine.high %v6695, %v6695
        %v6704 = vcombine.high %v6702, %v6702
        %v6706 = vunpack.c.l.s4 1966171168
        %v6707 = vunpack.c.0.s8 %v6706
        %v6708 = vlaneseq
        %v6709 = vshrl.u32 %v6708, 7
        %v6710 = vsub.s32 %v6707, %v6709
        %v6711 = vrot.slane %v6695, %v6710
        %v6713 = vunpack.c.l.s4 1966171168
        %v6714 = vunpack.c.0.s8 %v6713
        %v6715 = vlaneseq
        %v6716 = vshrl.u32 %v6715, 7
        %v6717 = vsub.s32 %v6714, %v6716
        %v6718 = vrot.slane %v6702, %v6717
        %v6720 = vunpack.c.l.s4 1966171168
        %v6721 = vunpack.c.0.s8 %v6720
        %v6722 = vlaneseq
        %v6723 = vshrl.u32 %v6722, 7
        %v6724 = vsub.s32 %v6721, %v6723
        %v6725 = vrot.slane %v6703, %v6724
        %v6727 = vunpack.c.l.s4 1966171168
        %v6728 = vunpack.c.0.s8 %v6727
        %v6729 = vlaneseq
        %v6730 = vshrl.u32 %v6729, 7
        %v6731 = vsub.s32 %v6728, %v6730
        %v6732 = vrot.slane %v6704, %v6731
        %v6733 = vcombine.high %v6711, %v6711
        %v6734 = vcombine.high %v6718, %v6718
        %v6735 = vcombine.high %v6725, %v6725
        %v6736 = vcombine.high %v6732, %v6732
        %v6737 = vcombine.high %v5585, %v5585
        %v6739 = vunpack.c.l.s4 1966171168
        %v6740 = vunpack.c.0.s8 %v6739
        %v6741 = vlaneseq
        %v6742 = vshrl.u32 %v6741, 7
        %v6743 = vsub.s32 %v6740, %v6742
        %v6744 = vrot.slane %v5585, %v6743
        %v6746 = vunpack.c.l.s4 1966171168
        %v6747 = vunpack.c.0.s8 %v6746
        %v6748 = vlaneseq
        %v6749 = vshrl.u32 %v6748, 7
        %v6750 = vsub.s32 %v6747, %v6749
        %v6751 = vrot.slane %v6737, %v6750
        %v6752 = vcombine.high %v6744, %v6744
        %v6753 = vcombine.high %v6751, %v6751
        %v6755 = vunpack.c.l.s4 1966171168
        %v6756 = vunpack.c.0.s8 %v6755
        %v6757 = vlaneseq
        %v6758 = vshrl.u32 %v6757, 7
        %v6759 = vsub.s32 %v6756, %v6758
        %v6760 = vrot.slane %v6744, %v6759
        %v6762 = vunpack.c.l.s4 1966171168
        %v6763 = vunpack.c.0.s8 %v6762
        %v6764 = vlaneseq
        %v6765 = vshrl.u32 %v6764, 7
        %v6766 = vsub.s32 %v6763, %v6765
        %v6767 = vrot.slane %v6751, %v6766
        %v6769 = vunpack.c.l.s4 1966171168
        %v6770 = vunpack.c.0.s8 %v6769
        %v6771 = vlaneseq
        %v6772 = vshrl.u32 %v6771, 7
        %v6773 = vsub.s32 %v6770, %v6772
        %v6774 = vrot.slane %v6752, %v6773
        %v6776 = vunpack.c.l.s4 1966171168
        %v6777 = vunpack.c.0.s8 %v6776
        %v6778 = vlaneseq
        %v6779 = vshrl.u32 %v6778, 7
        %v6780 = vsub.s32 %v6777, %v6779
        %v6781 = vrot.slane %v6753, %v6780
        %v6782 = vcombine.high %v6760, %v6760
        %v6783 = vcombine.high %v6767, %v6767
        %v6784 = vcombine.high %v6774, %v6774
        %v6785 = vcombine.high %v6781, %v6781
        %v6786 = vcombine.high %v5586, %v5586
        %v6788 = vunpack.c.l.s4 1966171168
        %v6789 = vunpack.c.0.s8 %v6788
        %v6790 = vlaneseq
        %v6791 = vshrl.u32 %v6790, 7
        %v6792 = vsub.s32 %v6789, %v6791
        %v6793 = vrot.slane %v5586, %v6792
        %v6795 = vunpack.c.l.s4 1966171168
        %v6796 = vunpack.c.0.s8 %v6795
        %v6797 = vlaneseq
        %v6798 = vshrl.u32 %v6797, 7
        %v6799 = vsub.s32 %v6796, %v6798
        %v6800 = vrot.slane %v6786, %v6799
        %v6801 = vcombine.high %v6793, %v6793
        %v6802 = vcombine.high %v6800, %v6800
        %v6804 = vunpack.c.l.s4 1966171168
        %v6805 = vunpack.c.0.s8 %v6804
        %v6806 = vlaneseq
        %v6807 = vshrl.u32 %v6806, 7
        %v6808 = vsub.s32 %v6805, %v6807
        %v6809 = vrot.slane %v6793, %v6808
        %v6811 = vunpack.c.l.s4 1966171168
        %v6812 = vunpack.c.0.s8 %v6811
        %v6813 = vlaneseq
        %v6814 = vshrl.u32 %v6813, 7
        %v6815 = vsub.s32 %v6812, %v6814
        %v6816 = vrot.slane %v6800, %v6815
        %v6818 = vunpack.c.l.s4 1966171168
        %v6819 = vunpack.c.0.s8 %v6818
        %v6820 = vlaneseq
        %v6821 = vshrl.u32 %v6820, 7
        %v6822 = vsub.s32 %v6819, %v6821
        %v6823 = vrot.slane %v6801, %v6822
        %v6825 = vunpack.c.l.s4 1966171168
        %v6826 = vunpack.c.0.s8 %v6825
        %v6827 = vlaneseq
        %v6828 = vshrl.u32 %v6827, 7
        %v6829 = vsub.s32 %v6826, %v6828
        %v6830 = vrot.slane %v6802, %v6829
        %v6831 = vcombine.high %v6809, %v6809
        %v6832 = vcombine.high %v6816, %v6816
        %v6833 = vcombine.high %v6823, %v6823
        %v6834 = vcombine.high %v6830, %v6830
        %v6835 = vcombine.high %v5587, %v5587
        %v6837 = vunpack.c.l.s4 1966171168
        %v6838 = vunpack.c.0.s8 %v6837
        %v6839 = vlaneseq
        %v6840 = vshrl.u32 %v6839, 7
        %v6841 = vsub.s32 %v6838, %v6840
        %v6842 = vrot.slane %v5587, %v6841
        %v6844 = vunpack.c.l.s4 1966171168
        %v6845 = vunpack.c.0.s8 %v6844
        %v6846 = vlaneseq
        %v6847 = vshrl.u32 %v6846, 7
        %v6848 = vsub.s32 %v6845, %v6847
        %v6849 = vrot.slane %v6835, %v6848
        %v6850 = vcombine.high %v6842, %v6842
        %v6851 = vcombine.high %v6849, %v6849
        %v6853 = vunpack.c.l.s4 1966171168
        %v6854 = vunpack.c.0.s8 %v6853
        %v6855 = vlaneseq
        %v6856 = vshrl.u32 %v6855, 7
        %v6857 = vsub.s32 %v6854, %v6856
        %v6858 = vrot.slane %v6842, %v6857
        %v6860 = vunpack.c.l.s4 1966171168
        %v6861 = vunpack.c.0.s8 %v6860
        %v6862 = vlaneseq
        %v6863 = vshrl.u32 %v6862, 7
        %v6864 = vsub.s32 %v6861, %v6863
        %v6865 = vrot.slane %v6849, %v6864
        %v6867 = vunpack.c.l.s4 1966171168
        %v6868 = vunpack.c.0.s8 %v6867
        %v6869 = vlaneseq
        %v6870 = vshrl.u32 %v6869, 7
        %v6871 = vsub.s32 %v6868, %v6870
        %v6872 = vrot.slane %v6850, %v6871
        %v6874 = vunpack.c.l.s4 1966171168
        %v6875 = vunpack.c.0.s8 %v6874
        %v6876 = vlaneseq
        %v6877 = vshrl.u32 %v6876, 7
        %v6878 = vsub.s32 %v6875, %v6877
        %v6879 = vrot.slane %v6851, %v6878
        %v6880 = vcombine.high %v6858, %v6858
        %v6881 = vcombine.high %v6865, %v6865
        %v6882 = vcombine.high %v6872, %v6872
        %v6883 = vcombine.high %v6879, %v6879
        %v6884 = vcombine.high %v5588, %v5588
        %v6886 = vunpack.c.l.s4 1966171168
        %v6887 = vunpack.c.0.s8 %v6886
        %v6888 = vlaneseq
        %v6889 = vshrl.u32 %v6888, 7
        %v6890 = vsub.s32 %v6887, %v6889
        %v6891 = vrot.slane %v5588, %v6890
        %v6893 = vunpack.c.l.s4 1966171168
        %v6894 = vunpack.c.0.s8 %v6893
        %v6895 = vlaneseq
        %v6896 = vshrl.u32 %v6895, 7
        %v6897 = vsub.s32 %v6894, %v6896
        %v6898 = vrot.slane %v6884, %v6897
        %v6899 = vcombine.high %v6891, %v6891
        %v6900 = vcombine.high %v6898, %v6898
        %v6902 = vunpack.c.l.s4 1966171168
        %v6903 = vunpack.c.0.s8 %v6902
        %v6904 = vlaneseq
        %v6905 = vshrl.u32 %v6904, 7
        %v6906 = vsub.s32 %v6903, %v6905
        %v6907 = vrot.slane %v6891, %v6906
        %v6909 = vunpack.c.l.s4 1966171168
        %v6910 = vunpack.c.0.s8 %v6909
        %v6911 = vlaneseq
        %v6912 = vshrl.u32 %v6911, 7
        %v6913 = vsub.s32 %v6910, %v6912
        %v6914 = vrot.slane %v6898, %v6913
        %v6916 = vunpack.c.l.s4 1966171168
        %v6917 = vunpack.c.0.s8 %v6916
        %v6918 = vlaneseq
        %v6919 = vshrl.u32 %v6918, 7
        %v6920 = vsub.s32 %v6917, %v6919
        %v6921 = vrot.slane %v6899, %v6920
        %v6923 = vunpack.c.l.s4 1966171168
        %v6924 = vunpack.c.0.s8 %v6923
        %v6925 = vlaneseq
        %v6926 = vshrl.u32 %v6925, 7
        %v6927 = vsub.s32 %v6924, %v6926
        %v6928 = vrot.slane %v6900, %v6927
        %v6929 = vcombine.high %v6907, %v6907
        %v6930 = vcombine.high %v6914, %v6914
        %v6931 = vcombine.high %v6921, %v6921
        %v6932 = vcombine.high %v6928, %v6928
        %v6933 = vcombine.high %v5589, %v5589
        %v6935 = vunpack.c.l.s4 1966171168
        %v6936 = vunpack.c.0.s8 %v6935
        %v6937 = vlaneseq
        %v6938 = vshrl.u32 %v6937, 7
        %v6939 = vsub.s32 %v6936, %v6938
        %v6940 = vrot.slane %v5589, %v6939
        %v6942 = vunpack.c.l.s4 1966171168
        %v6943 = vunpack.c.0.s8 %v6942
        %v6944 = vlaneseq
        %v6945 = vshrl.u32 %v6944, 7
        %v6946 = vsub.s32 %v6943, %v6945
        %v6947 = vrot.slane %v6933, %v6946
        %v6948 = vcombine.high %v6940, %v6940
        %v6949 = vcombine.high %v6947, %v6947
        %v6951 = vunpack.c.l.s4 1966171168
        %v6952 = vunpack.c.0.s8 %v6951
        %v6953 = vlaneseq
        %v6954 = vshrl.u32 %v6953, 7
        %v6955 = vsub.s32 %v6952, %v6954
        %v6956 = vrot.slane %v6940, %v6955
        %v6958 = vunpack.c.l.s4 1966171168
        %v6959 = vunpack.c.0.s8 %v6958
        %v6960 = vlaneseq
        %v6961 = vshrl.u32 %v6960, 7
        %v6962 = vsub.s32 %v6959, %v6961
        %v6963 = vrot.slane %v6947, %v6962
        %v6965 = vunpack.c.l.s4 1966171168
        %v6966 = vunpack.c.0.s8 %v6965
        %v6967 = vlaneseq
        %v6968 = vshrl.u32 %v6967, 7
        %v6969 = vsub.s32 %v6966, %v6968
        %v6970 = vrot.slane %v6948, %v6969
        %v6972 = vunpack.c.l.s4 1966171168
        %v6973 = vunpack.c.0.s8 %v6972
        %v6974 = vlaneseq
        %v6975 = vshrl.u32 %v6974, 7
        %v6976 = vsub.s32 %v6973, %v6975
        %v6977 = vrot.slane %v6949, %v6976
        %v6978 = vcombine.high %v6956, %v6956
        %v6979 = vcombine.high %v6963, %v6963
        %v6980 = vcombine.high %v6970, %v6970
        %v6981 = vcombine.high %v6977, %v6977
        %v6982 = vcombine.high %v5590, %v5590
        %v6984 = vunpack.c.l.s4 1966171168
        %v6985 = vunpack.c.0.s8 %v6984
        %v6986 = vlaneseq
        %v6987 = vshrl.u32 %v6986, 7
        %v6988 = vsub.s32 %v6985, %v6987
        %v6989 = vrot.slane %v5590, %v6988
        %v6991 = vunpack.c.l.s4 1966171168
        %v6992 = vunpack.c.0.s8 %v6991
        %v6993 = vlaneseq
        %v6994 = vshrl.u32 %v6993, 7
        %v6995 = vsub.s32 %v6992, %v6994
        %v6996 = vrot.slane %v6982, %v6995
        %v6997 = vcombine.high %v6989, %v6989
        %v6998 = vcombine.high %v6996, %v6996
        %v7000 = vunpack.c.l.s4 1966171168
        %v7001 = vunpack.c.0.s8 %v7000
        %v7002 = vlaneseq
        %v7003 = vshrl.u32 %v7002, 7
        %v7004 = vsub.s32 %v7001, %v7003
        %v7005 = vrot.slane %v6989, %v7004
        %v7007 = vunpack.c.l.s4 1966171168
        %v7008 = vunpack.c.0.s8 %v7007
        %v7009 = vlaneseq
        %v7010 = vshrl.u32 %v7009, 7
        %v7011 = vsub.s32 %v7008, %v7010
        %v7012 = vrot.slane %v6996, %v7011
        %v7014 = vunpack.c.l.s4 1966171168
        %v7015 = vunpack.c.0.s8 %v7014
        %v7016 = vlaneseq
        %v7017 = vshrl.u32 %v7016, 7
        %v7018 = vsub.s32 %v7015, %v7017
        %v7019 = vrot.slane %v6997, %v7018
        %v7021 = vunpack.c.l.s4 1966171168
        %v7022 = vunpack.c.0.s8 %v7021
        %v7023 = vlaneseq
        %v7024 = vshrl.u32 %v7023, 7
        %v7025 = vsub.s32 %v7022, %v7024
        %v7026 = vrot.slane %v6998, %v7025
        %v7027 = vcombine.high %v7005, %v7005
        %v7028 = vcombine.high %v7012, %v7012
        %v7029 = vcombine.high %v7019, %v7019
        %v7030 = vcombine.high %v7026, %v7026
        %v7031 = vcombine.high %v5591, %v5591
        %v7033 = vunpack.c.l.s4 1966171168
        %v7034 = vunpack.c.0.s8 %v7033
        %v7035 = vlaneseq
        %v7036 = vshrl.u32 %v7035, 7
        %v7037 = vsub.s32 %v7034, %v7036
        %v7038 = vrot.slane %v5591, %v7037
        %v7040 = vunpack.c.l.s4 1966171168
        %v7041 = vunpack.c.0.s8 %v7040
        %v7042 = vlaneseq
        %v7043 = vshrl.u32 %v7042, 7
        %v7044 = vsub.s32 %v7041, %v7043
        %v7045 = vrot.slane %v7031, %v7044
        %v7046 = vcombine.high %v7038, %v7038
        %v7047 = vcombine.high %v7045, %v7045
        %v7049 = vunpack.c.l.s4 1966171168
        %v7050 = vunpack.c.0.s8 %v7049
        %v7051 = vlaneseq
        %v7052 = vshrl.u32 %v7051, 7
        %v7053 = vsub.s32 %v7050, %v7052
        %v7054 = vrot.slane %v7038, %v7053
        %v7056 = vunpack.c.l.s4 1966171168
        %v7057 = vunpack.c.0.s8 %v7056
        %v7058 = vlaneseq
        %v7059 = vshrl.u32 %v7058, 7
        %v7060 = vsub.s32 %v7057, %v7059
        %v7061 = vrot.slane %v7045, %v7060
        %v7063 = vunpack.c.l.s4 1966171168
        %v7064 = vunpack.c.0.s8 %v7063
        %v7065 = vlaneseq
        %v7066 = vshrl.u32 %v7065, 7
        %v7067 = vsub.s32 %v7064, %v7066
        %v7068 = vrot.slane %v7046, %v7067
        %v7070 = vunpack.c.l.s4 1966171168
        %v7071 = vunpack.c.0.s8 %v7070
        %v7072 = vlaneseq
        %v7073 = vshrl.u32 %v7072, 7
        %v7074 = vsub.s32 %v7071, %v7073
        %v7075 = vrot.slane %v7047, %v7074
        %v7076 = vcombine.high %v7054, %v7054
        %v7077 = vcombine.high %v7061, %v7061
        %v7078 = vcombine.high %v7068, %v7068
        %v7079 = vcombine.high %v7075, %v7075
        %v7080 = vcombine.high %v5592, %v5592
        %v7082 = vunpack.c.l.s4 1966171168
        %v7083 = vunpack.c.0.s8 %v7082
        %v7084 = vlaneseq
        %v7085 = vshrl.u32 %v7084, 7
        %v7086 = vsub.s32 %v7083, %v7085
        %v7087 = vrot.slane %v5592, %v7086
        %v7089 = vunpack.c.l.s4 1966171168
        %v7090 = vunpack.c.0.s8 %v7089
        %v7091 = vlaneseq
        %v7092 = vshrl.u32 %v7091, 7
        %v7093 = vsub.s32 %v7090, %v7092
        %v7094 = vrot.slane %v7080, %v7093
        %v7095 = vcombine.high %v7087, %v7087
        %v7096 = vcombine.high %v7094, %v7094
        %v7098 = vunpack.c.l.s4 1966171168
        %v7099 = vunpack.c.0.s8 %v7098
        %v7100 = vlaneseq
        %v7101 = vshrl.u32 %v7100, 7
        %v7102 = vsub.s32 %v7099, %v7101
        %v7103 = vrot.slane %v7087, %v7102
        %v7105 = vunpack.c.l.s4 1966171168
        %v7106 = vunpack.c.0.s8 %v7105
        %v7107 = vlaneseq
        %v7108 = vshrl.u32 %v7107, 7
        %v7109 = vsub.s32 %v7106, %v7108
        %v7110 = vrot.slane %v7094, %v7109
        %v7112 = vunpack.c.l.s4 1966171168
        %v7113 = vunpack.c.0.s8 %v7112
        %v7114 = vlaneseq
        %v7115 = vshrl.u32 %v7114, 7
        %v7116 = vsub.s32 %v7113, %v7115
        %v7117 = vrot.slane %v7095, %v7116
        %v7119 = vunpack.c.l.s4 1966171168
        %v7120 = vunpack.c.0.s8 %v7119
        %v7121 = vlaneseq
        %v7122 = vshrl.u32 %v7121, 7
        %v7123 = vsub.s32 %v7120, %v7122
        %v7124 = vrot.slane %v7096, %v7123
        %v7125 = vcombine.high %v7103, %v7103
        %v7126 = vcombine.high %v7110, %v7110
        %v7127 = vcombine.high %v7117, %v7117
        %v7128 = vcombine.high %v7124, %v7124
        %v7129 = vcombine.high %v5593, %v5593
        %v7131 = vunpack.c.l.s4 1966171168
        %v7132 = vunpack.c.0.s8 %v7131
        %v7133 = vlaneseq
        %v7134 = vshrl.u32 %v7133, 7
        %v7135 = vsub.s32 %v7132, %v7134
        %v7136 = vrot.slane %v5593, %v7135
        %v7138 = vunpack.c.l.s4 1966171168
        %v7139 = vunpack.c.0.s8 %v7138
        %v7140 = vlaneseq
        %v7141 = vshrl.u32 %v7140, 7
        %v7142 = vsub.s32 %v7139, %v7141
        %v7143 = vrot.slane %v7129, %v7142
        %v7144 = vcombine.high %v7136, %v7136
        %v7145 = vcombine.high %v7143, %v7143
        %v7147 = vunpack.c.l.s4 1966171168
        %v7148 = vunpack.c.0.s8 %v7147
        %v7149 = vlaneseq
        %v7150 = vshrl.u32 %v7149, 7
        %v7151 = vsub.s32 %v7148, %v7150
        %v7152 = vrot.slane %v7136, %v7151
        %v7154 = vunpack.c.l.s4 1966171168
        %v7155 = vunpack.c.0.s8 %v7154
        %v7156 = vlaneseq
        %v7157 = vshrl.u32 %v7156, 7
        %v7158 = vsub.s32 %v7155, %v7157
        %v7159 = vrot.slane %v7143, %v7158
        %v7161 = vunpack.c.l.s4 1966171168
        %v7162 = vunpack.c.0.s8 %v7161
        %v7163 = vlaneseq
        %v7164 = vshrl.u32 %v7163, 7
        %v7165 = vsub.s32 %v7162, %v7164
        %v7166 = vrot.slane %v7144, %v7165
        %v7168 = vunpack.c.l.s4 1966171168
        %v7169 = vunpack.c.0.s8 %v7168
        %v7170 = vlaneseq
        %v7171 = vshrl.u32 %v7170, 7
        %v7172 = vsub.s32 %v7169, %v7171
        %v7173 = vrot.slane %v7145, %v7172
        %v7174 = vcombine.high %v7152, %v7152
        %v7175 = vcombine.high %v7159, %v7159
        %v7176 = vcombine.high %v7166, %v7166
        %v7177 = vcombine.high %v7173, %v7173
        %v7178 = vcombine.high %v5594, %v5594
        %v7180 = vunpack.c.l.s4 1966171168
        %v7181 = vunpack.c.0.s8 %v7180
        %v7182 = vlaneseq
        %v7183 = vshrl.u32 %v7182, 7
        %v7184 = vsub.s32 %v7181, %v7183
        %v7185 = vrot.slane %v5594, %v7184
        %v7187 = vunpack.c.l.s4 1966171168
        %v7188 = vunpack.c.0.s8 %v7187
        %v7189 = vlaneseq
        %v7190 = vshrl.u32 %v7189, 7
        %v7191 = vsub.s32 %v7188, %v7190
        %v7192 = vrot.slane %v7178, %v7191
        %v7193 = vcombine.high %v7185, %v7185
        %v7194 = vcombine.high %v7192, %v7192
        %v7196 = vunpack.c.l.s4 1966171168
        %v7197 = vunpack.c.0.s8 %v7196
        %v7198 = vlaneseq
        %v7199 = vshrl.u32 %v7198, 7
        %v7200 = vsub.s32 %v7197, %v7199
        %v7201 = vrot.slane %v7185, %v7200
        %v7203 = vunpack.c.l.s4 1966171168
        %v7204 = vunpack.c.0.s8 %v7203
        %v7205 = vlaneseq
        %v7206 = vshrl.u32 %v7205, 7
        %v7207 = vsub.s32 %v7204, %v7206
        %v7208 = vrot.slane %v7192, %v7207
        %v7210 = vunpack.c.l.s4 1966171168
        %v7211 = vunpack.c.0.s8 %v7210
        %v7212 = vlaneseq
        %v7213 = vshrl.u32 %v7212, 7
        %v7214 = vsub.s32 %v7211, %v7213
        %v7215 = vrot.slane %v7193, %v7214
        %v7217 = vunpack.c.l.s4 1966171168
        %v7218 = vunpack.c.0.s8 %v7217
        %v7219 = vlaneseq
        %v7220 = vshrl.u32 %v7219, 7
        %v7221 = vsub.s32 %v7218, %v7220
        %v7222 = vrot.slane %v7194, %v7221
        %v7223 = vcombine.high %v7201, %v7201
        %v7224 = vcombine.high %v7208, %v7208
        %v7225 = vcombine.high %v7215, %v7215
        %v7226 = vcombine.high %v7222, %v7222
        %v7227 = vcombine.high %v5595, %v5595
        %v7229 = vunpack.c.l.s4 1966171168
        %v7230 = vunpack.c.0.s8 %v7229
        %v7231 = vlaneseq
        %v7232 = vshrl.u32 %v7231, 7
        %v7233 = vsub.s32 %v7230, %v7232
        %v7234 = vrot.slane %v5595, %v7233
        %v7236 = vunpack.c.l.s4 1966171168
        %v7237 = vunpack.c.0.s8 %v7236
        %v7238 = vlaneseq
        %v7239 = vshrl.u32 %v7238, 7
        %v7240 = vsub.s32 %v7237, %v7239
        %v7241 = vrot.slane %v7227, %v7240
        %v7242 = vcombine.high %v7234, %v7234
        %v7243 = vcombine.high %v7241, %v7241
        %v7245 = vunpack.c.l.s4 1966171168
        %v7246 = vunpack.c.0.s8 %v7245
        %v7247 = vlaneseq
        %v7248 = vshrl.u32 %v7247, 7
        %v7249 = vsub.s32 %v7246, %v7248
        %v7250 = vrot.slane %v7234, %v7249
        %v7252 = vunpack.c.l.s4 1966171168
        %v7253 = vunpack.c.0.s8 %v7252
        %v7254 = vlaneseq
        %v7255 = vshrl.u32 %v7254, 7
        %v7256 = vsub.s32 %v7253, %v7255
        %v7257 = vrot.slane %v7241, %v7256
        %v7259 = vunpack.c.l.s4 1966171168
        %v7260 = vunpack.c.0.s8 %v7259
        %v7261 = vlaneseq
        %v7262 = vshrl.u32 %v7261, 7
        %v7263 = vsub.s32 %v7260, %v7262
        %v7264 = vrot.slane %v7242, %v7263
        %v7266 = vunpack.c.l.s4 1966171168
        %v7267 = vunpack.c.0.s8 %v7266
        %v7268 = vlaneseq
        %v7269 = vshrl.u32 %v7268, 7
        %v7270 = vsub.s32 %v7267, %v7269
        %v7271 = vrot.slane %v7243, %v7270
        %v7272 = vcombine.high %v7250, %v7250
        %v7273 = vcombine.high %v7257, %v7257
        %v7274 = vcombine.high %v7264, %v7264
        %v7275 = vcombine.high %v7271, %v7271
        %v7276 = vcombine.high %v5596, %v5596
        %v7278 = vunpack.c.l.s4 1966171168
        %v7279 = vunpack.c.0.s8 %v7278
        %v7280 = vlaneseq
        %v7281 = vshrl.u32 %v7280, 7
        %v7282 = vsub.s32 %v7279, %v7281
        %v7283 = vrot.slane %v5596, %v7282
        %v7285 = vunpack.c.l.s4 1966171168
        %v7286 = vunpack.c.0.s8 %v7285
        %v7287 = vlaneseq
        %v7288 = vshrl.u32 %v7287, 7
        %v7289 = vsub.s32 %v7286, %v7288
        %v7290 = vrot.slane %v7276, %v7289
        %v7291 = vcombine.high %v7283, %v7283
        %v7292 = vcombine.high %v7290, %v7290
        %v7294 = vunpack.c.l.s4 1966171168
        %v7295 = vunpack.c.0.s8 %v7294
        %v7296 = vlaneseq
        %v7297 = vshrl.u32 %v7296, 7
        %v7298 = vsub.s32 %v7295, %v7297
        %v7299 = vrot.slane %v7283, %v7298
        %v7301 = vunpack.c.l.s4 1966171168
        %v7302 = vunpack.c.0.s8 %v7301
        %v7303 = vlaneseq
        %v7304 = vshrl.u32 %v7303, 7
        %v7305 = vsub.s32 %v7302, %v7304
        %v7306 = vrot.slane %v7290, %v7305
        %v7308 = vunpack.c.l.s4 1966171168
        %v7309 = vunpack.c.0.s8 %v7308
        %v7310 = vlaneseq
        %v7311 = vshrl.u32 %v7310, 7
        %v7312 = vsub.s32 %v7309, %v7311
        %v7313 = vrot.slane %v7291, %v7312
        %v7315 = vunpack.c.l.s4 1966171168
        %v7316 = vunpack.c.0.s8 %v7315
        %v7317 = vlaneseq
        %v7318 = vshrl.u32 %v7317, 7
        %v7319 = vsub.s32 %v7316, %v7318
        %v7320 = vrot.slane %v7292, %v7319
        %v7321 = vcombine.high %v7299, %v7299
        %v7322 = vcombine.high %v7306, %v7306
        %v7323 = vcombine.high %v7313, %v7313
        %v7324 = vcombine.high %v7320, %v7320
        %v7325 = vlaneseq
        %v7326 = vshrl.u32 %v7325, 7
        %v7327 = vsub.s32 0, %v7326
        %v7328 = vrot.slane %v6564, %v7327
        %v7329 = vlaneseq
        %v7330 = vshrl.u32 %v7329, 7
        %v7331 = vsub.s32 0, %v7330
        %v7332 = vrot.slane %v6578, %v7331
        %v7333 = vlaneseq
        %v7334 = vshrl.u32 %v7333, 7
        %v7335 = vsub.s32 0, %v7334
        %v7336 = vrot.slane %v6586, %v7335
        %v7337 = vlaneseq
        %v7338 = vshrl.u32 %v7337, 7
        %v7339 = vsub.s32 0, %v7338
        %v7340 = vrot.slane %v6588, %v7339
        %v7341 = vlaneseq
        %v7342 = vshrl.u32 %v7341, 7
        %v7343 = vsub.s32 0, %v7342
        %v7344 = vrot.slane %v6571, %v7343
        %v7345 = vlaneseq
        %v7346 = vshrl.u32 %v7345, 7
        %v7347 = vsub.s32 0, %v7346
        %v7348 = vrot.slane %v6585, %v7347
        %v7349 = vlaneseq
        %v7350 = vshrl.u32 %v7349, 7
        %v7351 = vsub.s32 0, %v7350
        %v7352 = vrot.slane %v6587, %v7351
        %v7353 = vlaneseq
        %v7354 = vshrl.u32 %v7353, 7
        %v7355 = vsub.s32 0, %v7354
        %v7356 = vrot.slane %v6589, %v7355
        %v7357 = vlaneseq
        %v7358 = vshrl.u32 %v7357, 7
        %v7359 = vsub.s32 0, %v7358
        %v7360 = vrot.slane %v6613, %v7359
        %v7361 = vlaneseq
        %v7362 = vshrl.u32 %v7361, 7
        %v7363 = vsub.s32 0, %v7362
        %v7364 = vrot.slane %v6627, %v7363
        %v7365 = vlaneseq
        %v7366 = vshrl.u32 %v7365, 7
        %v7367 = vsub.s32 0, %v7366
        %v7368 = vrot.slane %v6635, %v7367
        %v7369 = vlaneseq
        %v7370 = vshrl.u32 %v7369, 7
        %v7371 = vsub.s32 0, %v7370
        %v7372 = vrot.slane %v6637, %v7371
        %v7373 = vlaneseq
        %v7374 = vshrl.u32 %v7373, 7
        %v7375 = vsub.s32 0, %v7374
        %v7376 = vrot.slane %v6620, %v7375
        %v7377 = vlaneseq
        %v7378 = vshrl.u32 %v7377, 7
        %v7379 = vsub.s32 0, %v7378
        %v7380 = vrot.slane %v6634, %v7379
        %v7381 = vlaneseq
        %v7382 = vshrl.u32 %v7381, 7
        %v7383 = vsub.s32 0, %v7382
        %v7384 = vrot.slane %v6636, %v7383
        %v7385 = vlaneseq
        %v7386 = vshrl.u32 %v7385, 7
        %v7387 = vsub.s32 0, %v7386
        %v7388 = vrot.slane %v6638, %v7387
        %v7389 = vlaneseq
        %v7390 = vshrl.u32 %v7389, 7
        %v7391 = vsub.s32 0, %v7390
        %v7392 = vrot.slane %v6662, %v7391
        %v7393 = vlaneseq
        %v7394 = vshrl.u32 %v7393, 7
        %v7395 = vsub.s32 0, %v7394
        %v7396 = vrot.slane %v6676, %v7395
        %v7397 = vlaneseq
        %v7398 = vshrl.u32 %v7397, 7
        %v7399 = vsub.s32 0, %v7398
        %v7400 = vrot.slane %v6684, %v7399
        %v7401 = vlaneseq
        %v7402 = vshrl.u32 %v7401, 7
        %v7403 = vsub.s32 0, %v7402
        %v7404 = vrot.slane %v6686, %v7403
        %v7405 = vlaneseq
        %v7406 = vshrl.u32 %v7405, 7
        %v7407 = vsub.s32 0, %v7406
        %v7408 = vrot.slane %v6669, %v7407
        %v7409 = vlaneseq
        %v7410 = vshrl.u32 %v7409, 7
        %v7411 = vsub.s32 0, %v7410
        %v7412 = vrot.slane %v6683, %v7411
        %v7413 = vlaneseq
        %v7414 = vshrl.u32 %v7413, 7
        %v7415 = vsub.s32 0, %v7414
        %v7416 = vrot.slane %v6685, %v7415
        %v7417 = vlaneseq
        %v7418 = vshrl.u32 %v7417, 7
        %v7419 = vsub.s32 0, %v7418
        %v7420 = vrot.slane %v6687, %v7419
        %v7421 = vlaneseq
        %v7422 = vshrl.u32 %v7421, 7
        %v7423 = vsub.s32 0, %v7422
        %v7424 = vrot.slane %v6711, %v7423
        %v7425 = vlaneseq
        %v7426 = vshrl.u32 %v7425, 7
        %v7427 = vsub.s32 0, %v7426
        %v7428 = vrot.slane %v6725, %v7427
        %v7429 = vlaneseq
        %v7430 = vshrl.u32 %v7429, 7
        %v7431 = vsub.s32 0, %v7430
        %v7432 = vrot.slane %v6733, %v7431
        %v7433 = vlaneseq
        %v7434 = vshrl.u32 %v7433, 7
        %v7435 = vsub.s32 0, %v7434
        %v7436 = vrot.slane %v6735, %v7435
        %v7437 = vlaneseq
        %v7438 = vshrl.u32 %v7437, 7
        %v7439 = vsub.s32 0, %v7438
        %v7440 = vrot.slane %v6718, %v7439
        %v7441 = vlaneseq
        %v7442 = vshrl.u32 %v7441, 7
        %v7443 = vsub.s32 0, %v7442
        %v7444 = vrot.slane %v6732, %v7443
        %v7445 = vlaneseq
        %v7446 = vshrl.u32 %v7445, 7
        %v7447 = vsub.s32 0, %v7446
        %v7448 = vrot.slane %v6734, %v7447
        %v7449 = vlaneseq
        %v7450 = vshrl.u32 %v7449, 7
        %v7451 = vsub.s32 0, %v7450
        %v7452 = vrot.slane %v6736, %v7451
        %v7453 = vlaneseq
        %v7454 = vshrl.u32 %v7453, 7
        %v7455 = vsub.s32 0, %v7454
        %v7456 = vrot.slane %v6760, %v7455
        %v7457 = vlaneseq
        %v7458 = vshrl.u32 %v7457, 7
        %v7459 = vsub.s32 0, %v7458
        %v7460 = vrot.slane %v6774, %v7459
        %v7461 = vlaneseq
        %v7462 = vshrl.u32 %v7461, 7
        %v7463 = vsub.s32 0, %v7462
        %v7464 = vrot.slane %v6782, %v7463
        %v7465 = vlaneseq
        %v7466 = vshrl.u32 %v7465, 7
        %v7467 = vsub.s32 0, %v7466
        %v7468 = vrot.slane %v6784, %v7467
        %v7469 = vlaneseq
        %v7470 = vshrl.u32 %v7469, 7
        %v7471 = vsub.s32 0, %v7470
        %v7472 = vrot.slane %v6767, %v7471
        %v7473 = vlaneseq
        %v7474 = vshrl.u32 %v7473, 7
        %v7475 = vsub.s32 0, %v7474
        %v7476 = vrot.slane %v6781, %v7475
        %v7477 = vlaneseq
        %v7478 = vshrl.u32 %v7477, 7
        %v7479 = vsub.s32 0, %v7478
        %v7480 = vrot.slane %v6783, %v7479
        %v7481 = vlaneseq
        %v7482 = vshrl.u32 %v7481, 7
        %v7483 = vsub.s32 0, %v7482
        %v7484 = vrot.slane %v6785, %v7483
        %v7485 = vlaneseq
        %v7486 = vshrl.u32 %v7485, 7
        %v7487 = vsub.s32 0, %v7486
        %v7488 = vrot.slane %v6809, %v7487
        %v7489 = vlaneseq
        %v7490 = vshrl.u32 %v7489, 7
        %v7491 = vsub.s32 0, %v7490
        %v7492 = vrot.slane %v6823, %v7491
        %v7493 = vlaneseq
        %v7494 = vshrl.u32 %v7493, 7
        %v7495 = vsub.s32 0, %v7494
        %v7496 = vrot.slane %v6831, %v7495
        %v7497 = vlaneseq
        %v7498 = vshrl.u32 %v7497, 7
        %v7499 = vsub.s32 0, %v7498
        %v7500 = vrot.slane %v6833, %v7499
        %v7501 = vlaneseq
        %v7502 = vshrl.u32 %v7501, 7
        %v7503 = vsub.s32 0, %v7502
        %v7504 = vrot.slane %v6816, %v7503
        %v7505 = vlaneseq
        %v7506 = vshrl.u32 %v7505, 7
        %v7507 = vsub.s32 0, %v7506
        %v7508 = vrot.slane %v6830, %v7507
        %v7509 = vlaneseq
        %v7510 = vshrl.u32 %v7509, 7
        %v7511 = vsub.s32 0, %v7510
        %v7512 = vrot.slane %v6832, %v7511
        %v7513 = vlaneseq
        %v7514 = vshrl.u32 %v7513, 7
        %v7515 = vsub.s32 0, %v7514
        %v7516 = vrot.slane %v6834, %v7515
        %v7517 = vlaneseq
        %v7518 = vshrl.u32 %v7517, 7
        %v7519 = vsub.s32 0, %v7518
        %v7520 = vrot.slane %v6858, %v7519
        %v7521 = vlaneseq
        %v7522 = vshrl.u32 %v7521, 7
        %v7523 = vsub.s32 0, %v7522
        %v7524 = vrot.slane %v6872, %v7523
        %v7525 = vlaneseq
        %v7526 = vshrl.u32 %v7525, 7
        %v7527 = vsub.s32 0, %v7526
        %v7528 = vrot.slane %v6880, %v7527
        %v7529 = vlaneseq
        %v7530 = vshrl.u32 %v7529, 7
        %v7531 = vsub.s32 0, %v7530
        %v7532 = vrot.slane %v6882, %v7531
        %v7533 = vlaneseq
        %v7534 = vshrl.u32 %v7533, 7
        %v7535 = vsub.s32 0, %v7534
        %v7536 = vrot.slane %v6865, %v7535
        %v7537 = vlaneseq
        %v7538 = vshrl.u32 %v7537, 7
        %v7539 = vsub.s32 0, %v7538
        %v7540 = vrot.slane %v6879, %v7539
        %v7541 = vlaneseq
        %v7542 = vshrl.u32 %v7541, 7
        %v7543 = vsub.s32 0, %v7542
        %v7544 = vrot.slane %v6881, %v7543
        %v7545 = vlaneseq
        %v7546 = vshrl.u32 %v7545, 7
        %v7547 = vsub.s32 0, %v7546
        %v7548 = vrot.slane %v6883, %v7547
        %v7549 = vlaneseq
        %v7550 = vshrl.u32 %v7549, 7
        %v7551 = vsub.s32 0, %v7550
        %v7552 = vrot.slane %v6907, %v7551
        %v7553 = vlaneseq
        %v7554 = vshrl.u32 %v7553, 7
        %v7555 = vsub.s32 0, %v7554
        %v7556 = vrot.slane %v6921, %v7555
        %v7557 = vlaneseq
        %v7558 = vshrl.u32 %v7557, 7
        %v7559 = vsub.s32 0, %v7558
        %v7560 = vrot.slane %v6929, %v7559
        %v7561 = vlaneseq
        %v7562 = vshrl.u32 %v7561, 7
        %v7563 = vsub.s32 0, %v7562
        %v7564 = vrot.slane %v6931, %v7563
        %v7565 = vlaneseq
        %v7566 = vshrl.u32 %v7565, 7
        %v7567 = vsub.s32 0, %v7566
        %v7568 = vrot.slane %v6914, %v7567
        %v7569 = vlaneseq
        %v7570 = vshrl.u32 %v7569, 7
        %v7571 = vsub.s32 0, %v7570
        %v7572 = vrot.slane %v6928, %v7571
        %v7573 = vlaneseq
        %v7574 = vshrl.u32 %v7573, 7
        %v7575 = vsub.s32 0, %v7574
        %v7576 = vrot.slane %v6930, %v7575
        %v7577 = vlaneseq
        %v7578 = vshrl.u32 %v7577, 7
        %v7579 = vsub.s32 0, %v7578
        %v7580 = vrot.slane %v6932, %v7579
        %v7581 = vlaneseq
        %v7582 = vshrl.u32 %v7581, 7
        %v7583 = vsub.s32 0, %v7582
        %v7584 = vrot.slane %v6956, %v7583
        %v7585 = vlaneseq
        %v7586 = vshrl.u32 %v7585, 7
        %v7587 = vsub.s32 0, %v7586
        %v7588 = vrot.slane %v6970, %v7587
        %v7589 = vlaneseq
        %v7590 = vshrl.u32 %v7589, 7
        %v7591 = vsub.s32 0, %v7590
        %v7592 = vrot.slane %v6978, %v7591
        %v7593 = vlaneseq
        %v7594 = vshrl.u32 %v7593, 7
        %v7595 = vsub.s32 0, %v7594
        %v7596 = vrot.slane %v6980, %v7595
        %v7597 = vlaneseq
        %v7598 = vshrl.u32 %v7597, 7
        %v7599 = vsub.s32 0, %v7598
        %v7600 = vrot.slane %v6963, %v7599
        %v7601 = vlaneseq
        %v7602 = vshrl.u32 %v7601, 7
        %v7603 = vsub.s32 0, %v7602
        %v7604 = vrot.slane %v6977, %v7603
        %v7605 = vlaneseq
        %v7606 = vshrl.u32 %v7605, 7
        %v7607 = vsub.s32 0, %v7606
        %v7608 = vrot.slane %v6979, %v7607
        %v7609 = vlaneseq
        %v7610 = vshrl.u32 %v7609, 7
        %v7611 = vsub.s32 0, %v7610
        %v7612 = vrot.slane %v6981, %v7611
        %v7613 = vlaneseq
        %v7614 = vshrl.u32 %v7613, 7
        %v7615 = vsub.s32 0, %v7614
        %v7616 = vrot.slane %v7005, %v7615
        %v7617 = vlaneseq
        %v7618 = vshrl.u32 %v7617, 7
        %v7619 = vsub.s32 0, %v7618
        %v7620 = vrot.slane %v7019, %v7619
        %v7621 = vlaneseq
        %v7622 = vshrl.u32 %v7621, 7
        %v7623 = vsub.s32 0, %v7622
        %v7624 = vrot.slane %v7027, %v7623
        %v7625 = vlaneseq
        %v7626 = vshrl.u32 %v7625, 7
        %v7627 = vsub.s32 0, %v7626
        %v7628 = vrot.slane %v7029, %v7627
        %v7629 = vlaneseq
        %v7630 = vshrl.u32 %v7629, 7
        %v7631 = vsub.s32 0, %v7630
        %v7632 = vrot.slane %v7012, %v7631
        %v7633 = vlaneseq
        %v7634 = vshrl.u32 %v7633, 7
        %v7635 = vsub.s32 0, %v7634
        %v7636 = vrot.slane %v7026, %v7635
        %v7637 = vlaneseq
        %v7638 = vshrl.u32 %v7637, 7
        %v7639 = vsub.s32 0, %v7638
        %v7640 = vrot.slane %v7028, %v7639
        %v7641 = vlaneseq
        %v7642 = vshrl.u32 %v7641, 7
        %v7643 = vsub.s32 0, %v7642
        %v7644 = vrot.slane %v7030, %v7643
        %v7645 = vlaneseq
        %v7646 = vshrl.u32 %v7645, 7
        %v7647 = vsub.s32 0, %v7646
        %v7648 = vrot.slane %v7054, %v7647
        %v7649 = vlaneseq
        %v7650 = vshrl.u32 %v7649, 7
        %v7651 = vsub.s32 0, %v7650
        %v7652 = vrot.slane %v7068, %v7651
        %v7653 = vlaneseq
        %v7654 = vshrl.u32 %v7653, 7
        %v7655 = vsub.s32 0, %v7654
        %v7656 = vrot.slane %v7076, %v7655
        %v7657 = vlaneseq
        %v7658 = vshrl.u32 %v7657, 7
        %v7659 = vsub.s32 0, %v7658
        %v7660 = vrot.slane %v7078, %v7659
        %v7661 = vlaneseq
        %v7662 = vshrl.u32 %v7661, 7
        %v7663 = vsub.s32 0, %v7662
        %v7664 = vrot.slane %v7061, %v7663
        %v7665 = vlaneseq
        %v7666 = vshrl.u32 %v7665, 7
        %v7667 = vsub.s32 0, %v7666
        %v7668 = vrot.slane %v7075, %v7667
        %v7669 = vlaneseq
        %v7670 = vshrl.u32 %v7669, 7
        %v7671 = vsub.s32 0, %v7670
        %v7672 = vrot.slane %v7077, %v7671
        %v7673 = vlaneseq
        %v7674 = vshrl.u32 %v7673, 7
        %v7675 = vsub.s32 0, %v7674
        %v7676 = vrot.slane %v7079, %v7675
        %v7677 = vlaneseq
        %v7678 = vshrl.u32 %v7677, 7
        %v7679 = vsub.s32 0, %v7678
        %v7680 = vrot.slane %v7103, %v7679
        %v7681 = vlaneseq
        %v7682 = vshrl.u32 %v7681, 7
        %v7683 = vsub.s32 0, %v7682
        %v7684 = vrot.slane %v7117, %v7683
        %v7685 = vlaneseq
        %v7686 = vshrl.u32 %v7685, 7
        %v7687 = vsub.s32 0, %v7686
        %v7688 = vrot.slane %v7125, %v7687
        %v7689 = vlaneseq
        %v7690 = vshrl.u32 %v7689, 7
        %v7691 = vsub.s32 0, %v7690
        %v7692 = vrot.slane %v7127, %v7691
        %v7693 = vlaneseq
        %v7694 = vshrl.u32 %v7693, 7
        %v7695 = vsub.s32 0, %v7694
        %v7696 = vrot.slane %v7110, %v7695
        %v7697 = vlaneseq
        %v7698 = vshrl.u32 %v7697, 7
        %v7699 = vsub.s32 0, %v7698
        %v7700 = vrot.slane %v7124, %v7699
        %v7701 = vlaneseq
        %v7702 = vshrl.u32 %v7701, 7
        %v7703 = vsub.s32 0, %v7702
        %v7704 = vrot.slane %v7126, %v7703
        %v7705 = vlaneseq
        %v7706 = vshrl.u32 %v7705, 7
        %v7707 = vsub.s32 0, %v7706
        %v7708 = vrot.slane %v7128, %v7707
        %v7709 = vlaneseq
        %v7710 = vshrl.u32 %v7709, 7
        %v7711 = vsub.s32 0, %v7710
        %v7712 = vrot.slane %v7152, %v7711
        %v7713 = vlaneseq
        %v7714 = vshrl.u32 %v7713, 7
        %v7715 = vsub.s32 0, %v7714
        %v7716 = vrot.slane %v7166, %v7715
        %v7717 = vlaneseq
        %v7718 = vshrl.u32 %v7717, 7
        %v7719 = vsub.s32 0, %v7718
        %v7720 = vrot.slane %v7174, %v7719
        %v7721 = vlaneseq
        %v7722 = vshrl.u32 %v7721, 7
        %v7723 = vsub.s32 0, %v7722
        %v7724 = vrot.slane %v7176, %v7723
        %v7725 = vlaneseq
        %v7726 = vshrl.u32 %v7725, 7
        %v7727 = vsub.s32 0, %v7726
        %v7728 = vrot.slane %v7159, %v7727
        %v7729 = vlaneseq
        %v7730 = vshrl.u32 %v7729, 7
        %v7731 = vsub.s32 0, %v7730
        %v7732 = vrot.slane %v7173, %v7731
        %v7733 = vlaneseq
        %v7734 = vshrl.u32 %v7733, 7
        %v7735 = vsub.s32 0, %v7734
        %v7736 = vrot.slane %v7175, %v7735
        %v7737 = vlaneseq
        %v7738 = vshrl.u32 %v7737, 7
        %v7739 = vsub.s32 0, %v7738
        %v7740 = vrot.slane %v7177, %v7739
        %v7741 = vlaneseq
        %v7742 = vshrl.u32 %v7741, 7
        %v7743 = vsub.s32 0, %v7742
        %v7744 = vrot.slane %v7201, %v7743
        %v7745 = vlaneseq
        %v7746 = vshrl.u32 %v7745, 7
        %v7747 = vsub.s32 0, %v7746
        %v7748 = vrot.slane %v7215, %v7747
        %v7749 = vlaneseq
        %v7750 = vshrl.u32 %v7749, 7
        %v7751 = vsub.s32 0, %v7750
        %v7752 = vrot.slane %v7223, %v7751
        %v7753 = vlaneseq
        %v7754 = vshrl.u32 %v7753, 7
        %v7755 = vsub.s32 0, %v7754
        %v7756 = vrot.slane %v7225, %v7755
        %v7757 = vlaneseq
        %v7758 = vshrl.u32 %v7757, 7
        %v7759 = vsub.s32 0, %v7758
        %v7760 = vrot.slane %v7208, %v7759
        %v7761 = vlaneseq
        %v7762 = vshrl.u32 %v7761, 7
        %v7763 = vsub.s32 0, %v7762
        %v7764 = vrot.slane %v7222, %v7763
        %v7765 = vlaneseq
        %v7766 = vshrl.u32 %v7765, 7
        %v7767 = vsub.s32 0, %v7766
        %v7768 = vrot.slane %v7224, %v7767
        %v7769 = vlaneseq
        %v7770 = vshrl.u32 %v7769, 7
        %v7771 = vsub.s32 0, %v7770
        %v7772 = vrot.slane %v7226, %v7771
        %v7773 = vlaneseq
        %v7774 = vshrl.u32 %v7773, 7
        %v7775 = vsub.s32 0, %v7774
        %v7776 = vrot.slane %v7250, %v7775
        %v7777 = vlaneseq
        %v7778 = vshrl.u32 %v7777, 7
        %v7779 = vsub.s32 0, %v7778
        %v7780 = vrot.slane %v7264, %v7779
        %v7781 = vlaneseq
        %v7782 = vshrl.u32 %v7781, 7
        %v7783 = vsub.s32 0, %v7782
        %v7784 = vrot.slane %v7272, %v7783
        %v7785 = vlaneseq
        %v7786 = vshrl.u32 %v7785, 7
        %v7787 = vsub.s32 0, %v7786
        %v7788 = vrot.slane %v7274, %v7787
        %v7789 = vlaneseq
        %v7790 = vshrl.u32 %v7789, 7
        %v7791 = vsub.s32 0, %v7790
        %v7792 = vrot.slane %v7257, %v7791
        %v7793 = vlaneseq
        %v7794 = vshrl.u32 %v7793, 7
        %v7795 = vsub.s32 0, %v7794
        %v7796 = vrot.slane %v7271, %v7795
        %v7797 = vlaneseq
        %v7798 = vshrl.u32 %v7797, 7
        %v7799 = vsub.s32 0, %v7798
        %v7800 = vrot.slane %v7273, %v7799
        %v7801 = vlaneseq
        %v7802 = vshrl.u32 %v7801, 7
        %v7803 = vsub.s32 0, %v7802
        %v7804 = vrot.slane %v7275, %v7803
        %v7805 = vlaneseq
        %v7806 = vshrl.u32 %v7805, 7
        %v7807 = vsub.s32 0, %v7806
        %v7808 = vrot.slane %v7299, %v7807
        %v7809 = vlaneseq
        %v7810 = vshrl.u32 %v7809, 7
        %v7811 = vsub.s32 0, %v7810
        %v7812 = vrot.slane %v7313, %v7811
        %v7813 = vlaneseq
        %v7814 = vshrl.u32 %v7813, 7
        %v7815 = vsub.s32 0, %v7814
        %v7816 = vrot.slane %v7321, %v7815
        %v7817 = vlaneseq
        %v7818 = vshrl.u32 %v7817, 7
        %v7819 = vsub.s32 0, %v7818
        %v7820 = vrot.slane %v7323, %v7819
        %v7821 = vlaneseq
        %v7822 = vshrl.u32 %v7821, 7
        %v7823 = vsub.s32 0, %v7822
        %v7824 = vrot.slane %v7306, %v7823
        %v7825 = vlaneseq
        %v7826 = vshrl.u32 %v7825, 7
        %v7827 = vsub.s32 0, %v7826
        %v7828 = vrot.slane %v7320, %v7827
        %v7829 = vlaneseq
        %v7830 = vshrl.u32 %v7829, 7
        %v7831 = vsub.s32 0, %v7830
        %v7832 = vrot.slane %v7322, %v7831
        %v7833 = vlaneseq
        %v7834 = vshrl.u32 %v7833, 7
        %v7835 = vsub.s32 0, %v7834
        %v7836 = vrot.slane %v7324, %v7835
        %v7965 = vsel %vm4132, %v5636, %v7328
        %v7966 = vsel %vm4132, %v5650, %v7332
        %v7967 = vsel %vm4132, %v5658, %v7336
        %v7968 = vsel %vm4132, %v5660, %v7340
        %v7969 = vsel %vm4132, %v5643, %v7344
        %v7970 = vsel %vm4132, %v5657, %v7348
        %v7971 = vsel %vm4132, %v5659, %v7352
        %v7972 = vsel %vm4132, %v5661, %v7356
        %v7973 = vsel %vm4132, %v5685, %v7360
        %v7974 = vsel %vm4132, %v5699, %v7364
        %v7975 = vsel %vm4132, %v5707, %v7368
        %v7976 = vsel %vm4132, %v5709, %v7372
        %v7977 = vsel %vm4132, %v5692, %v7376
        %v7978 = vsel %vm4132, %v5706, %v7380
        %v7979 = vsel %vm4132, %v5708, %v7384
        %v7980 = vsel %vm4132, %v5710, %v7388
        %v7981 = vsel %vm4132, %v5734, %v7392
        %v7982 = vsel %vm4132, %v5748, %v7396
        %v7983 = vsel %vm4132, %v5756, %v7400
        %v7984 = vsel %vm4132, %v5758, %v7404
        %v7985 = vsel %vm4132, %v5741, %v7408
        %v7986 = vsel %vm4132, %v5755, %v7412
        %v7987 = vsel %vm4132, %v5757, %v7416
        %v7988 = vsel %vm4132, %v5759, %v7420
        %v7989 = vsel %vm4132, %v5783, %v7424
        %v7990 = vsel %vm4132, %v5797, %v7428
        %v7991 = vsel %vm4132, %v5805, %v7432
        %v7992 = vsel %vm4132, %v5807, %v7436
        %v7993 = vsel %vm4132, %v5790, %v7440
        %v7994 = vsel %vm4132, %v5804, %v7444
        %v7995 = vsel %vm4132, %v5806, %v7448
        %v7996 = vsel %vm4132, %v5808, %v7452
        %v7997 = vsel %vm4132, %v5832, %v7456
        %v7998 = vsel %vm4132, %v5846, %v7460
        %v7999 = vsel %vm4132, %v5854, %v7464
        %v8000 = vsel %vm4132, %v5856, %v7468
        %v8001 = vsel %vm4132, %v5839, %v7472
        %v8002 = vsel %vm4132, %v5853, %v7476
        %v8003 = vsel %vm4132, %v5855, %v7480
        %v8004 = vsel %vm4132, %v5857, %v7484
        %v8005 = vsel %vm4132, %v5881, %v7488
        %v8006 = vsel %vm4132, %v5895, %v7492
        %v8007 = vsel %vm4132, %v5903, %v7496
        %v8008 = vsel %vm4132, %v5905, %v7500
        %v8009 = vsel %vm4132, %v5888, %v7504
        %v8010 = vsel %vm4132, %v5902, %v7508
        %v8011 = vsel %vm4132, %v5904, %v7512
        %v8012 = vsel %vm4132, %v5906, %v7516
        %v8013 = vsel %vm4132, %v5930, %v7520
        %v8014 = vsel %vm4132, %v5944, %v7524
        %v8015 = vsel %vm4132, %v5952, %v7528
        %v8016 = vsel %vm4132, %v5954, %v7532
        %v8017 = vsel %vm4132, %v5937, %v7536
        %v8018 = vsel %vm4132, %v5951, %v7540
        %v8019 = vsel %vm4132, %v5953, %v7544
        %v8020 = vsel %vm4132, %v5955, %v7548
        %v8021 = vsel %vm4132, %v5979, %v7552
        %v8022 = vsel %vm4132, %v5993, %v7556
        %v8023 = vsel %vm4132, %v6001, %v7560
        %v8024 = vsel %vm4132, %v6003, %v7564
        %v8025 = vsel %vm4132, %v5986, %v7568
        %v8026 = vsel %vm4132, %v6000, %v7572
        %v8027 = vsel %vm4132, %v6002, %v7576
        %v8028 = vsel %vm4132, %v6004, %v7580
        %v8029 = vsel %vm4132, %v6028, %v7584
        %v8030 = vsel %vm4132, %v6042, %v7588
        %v8031 = vsel %vm4132, %v6050, %v7592
        %v8032 = vsel %vm4132, %v6052, %v7596
        %v8033 = vsel %vm4132, %v6035, %v7600
        %v8034 = vsel %vm4132, %v6049, %v7604
        %v8035 = vsel %vm4132, %v6051, %v7608
        %v8036 = vsel %vm4132, %v6053, %v7612
        %v8037 = vsel %vm4132, %v6077, %v7616
        %v8038 = vsel %vm4132, %v6091, %v7620
        %v8039 = vsel %vm4132, %v6099, %v7624
        %v8040 = vsel %vm4132, %v6101, %v7628
        %v8041 = vsel %vm4132, %v6084, %v7632
        %v8042 = vsel %vm4132, %v6098, %v7636
        %v8043 = vsel %vm4132, %v6100, %v7640
        %v8044 = vsel %vm4132, %v6102, %v7644
        %v8045 = vsel %vm4132, %v6126, %v7648
        %v8046 = vsel %vm4132, %v6140, %v7652
        %v8047 = vsel %vm4132, %v6148, %v7656
        %v8048 = vsel %vm4132, %v6150, %v7660
        %v8049 = vsel %vm4132, %v6133, %v7664
        %v8050 = vsel %vm4132, %v6147, %v7668
        %v8051 = vsel %vm4132, %v6149, %v7672
        %v8052 = vsel %vm4132, %v6151, %v7676
        %v8053 = vsel %vm4132, %v6175, %v7680
        %v8054 = vsel %vm4132, %v6189, %v7684
        %v8055 = vsel %vm4132, %v6197, %v7688
        %v8056 = vsel %vm4132, %v6199, %v7692
        %v8057 = vsel %vm4132, %v6182, %v7696
        %v8058 = vsel %vm4132, %v6196, %v7700
        %v8059 = vsel %vm4132, %v6198, %v7704
        %v8060 = vsel %vm4132, %v6200, %v7708
        %v8061 = vsel %vm4132, %v6224, %v7712
        %v8062 = vsel %vm4132, %v6238, %v7716
        %v8063 = vsel %vm4132, %v6246, %v7720
        %v8064 = vsel %vm4132, %v6248, %v7724
        %v8065 = vsel %vm4132, %v6231, %v7728
        %v8066 = vsel %vm4132, %v6245, %v7732
        %v8067 = vsel %vm4132, %v6247, %v7736
        %v8068 = vsel %vm4132, %v6249, %v7740
        %v8069 = vsel %vm4132, %v6273, %v7744
        %v8070 = vsel %vm4132, %v6287, %v7748
        %v8071 = vsel %vm4132, %v6295, %v7752
        %v8072 = vsel %vm4132, %v6297, %v7756
        %v8073 = vsel %vm4132, %v6280, %v7760
        %v8074 = vsel %vm4132, %v6294, %v7764
        %v8075 = vsel %vm4132, %v6296, %v7768
        %v8076 = vsel %vm4132, %v6298, %v7772
        %v8077 = vsel %vm4132, %v6322, %v7776
        %v8078 = vsel %vm4132, %v6336, %v7780
        %v8079 = vsel %vm4132, %v6344, %v7784
        %v8080 = vsel %vm4132, %v6346, %v7788
        %v8081 = vsel %vm4132, %v6329, %v7792
        %v8082 = vsel %vm4132, %v6343, %v7796
        %v8083 = vsel %vm4132, %v6345, %v7800
        %v8084 = vsel %vm4132, %v6347, %v7804
        %v8085 = vsel %vm4132, %v6371, %v7808
        %v8086 = vsel %vm4132, %v6385, %v7812
        %v8087 = vsel %vm4132, %v6393, %v7816
        %v8088 = vsel %vm4132, %v6395, %v7820
        %v8089 = vsel %vm4132, %v6378, %v7824
        %v8090 = vsel %vm4132, %v6392, %v7828
        %v8091 = vsel %vm4132, %v6394, %v7832
        %v8092 = vsel %vm4132, %v6396, %v7836
        %v8349 = vcombine.low %v4133, %v4134
        %v8350 = vcombine.low %v4135, %v4136
        %v8352 = vunpack.c.l.s4 1983009808
        %v8353 = vunpack.c.0.s8 %v8352
        %v8354 = vlaneseq
        %v8355 = vshrl.u32 %v8354, 7
        %v8356 = vsub.s32 %v8353, %v8355
        %v8357 = vrot.slane %v8349, %v8356
        %v8359 = vunpack.c.l.s4 1983009808
        %v8360 = vunpack.c.0.s8 %v8359
        %v8361 = vlaneseq
        %v8362 = vshrl.u32 %v8361, 7
        %v8363 = vsub.s32 %v8360, %v8362
        %v8364 = vrot.slane %v8350, %v8363
        %v8365 = vcombine.low %v8357, %v8364
        %v8366 = vcombine.low %v4137, %v4138
        %v8367 = vcombine.low %v4139, %v4140
        %v8369 = vunpack.c.l.s4 1983009808
        %v8370 = vunpack.c.0.s8 %v8369
        %v8371 = vlaneseq
        %v8372 = vshrl.u32 %v8371, 7
        %v8373 = vsub.s32 %v8370, %v8372
        %v8374 = vrot.slane %v8366, %v8373
        %v8376 = vunpack.c.l.s4 1983009808
        %v8377 = vunpack.c.0.s8 %v8376
        %v8378 = vlaneseq
        %v8379 = vshrl.u32 %v8378, 7
        %v8380 = vsub.s32 %v8377, %v8379
        %v8381 = vrot.slane %v8367, %v8380
        %v8382 = vcombine.low %v8374, %v8381
        %v8383 = vcombine.low %v4141, %v4142
        %v8384 = vcombine.low %v4143, %v4144
        %v8386 = vunpack.c.l.s4 1983009808
        %v8387 = vunpack.c.0.s8 %v8386
        %v8388 = vlaneseq
        %v8389 = vshrl.u32 %v8388, 7
        %v8390 = vsub.s32 %v8387, %v8389
        %v8391 = vrot.slane %v8383, %v8390
        %v8393 = vunpack.c.l.s4 1983009808
        %v8394 = vunpack.c.0.s8 %v8393
        %v8395 = vlaneseq
        %v8396 = vshrl.u32 %v8395, 7
        %v8397 = vsub.s32 %v8394, %v8396
        %v8398 = vrot.slane %v8384, %v8397
        %v8399 = vcombine.low %v8391, %v8398
        %v8400 = vcombine.low %v4145, %v4146
        %v8401 = vcombine.low %v4147, %v4148
        %v8403 = vunpack.c.l.s4 1983009808
        %v8404 = vunpack.c.0.s8 %v8403
        %v8405 = vlaneseq
        %v8406 = vshrl.u32 %v8405, 7
        %v8407 = vsub.s32 %v8404, %v8406
        %v8408 = vrot.slane %v8400, %v8407
        %v8410 = vunpack.c.l.s4 1983009808
        %v8411 = vunpack.c.0.s8 %v8410
        %v8412 = vlaneseq
        %v8413 = vshrl.u32 %v8412, 7
        %v8414 = vsub.s32 %v8411, %v8413
        %v8415 = vrot.slane %v8401, %v8414
        %v8416 = vcombine.low %v8408, %v8415
        %v8417 = vcombine.low %v7965, %v7966
        %v8418 = vcombine.low %v7967, %v7968
        %v8420 = vunpack.c.l.s4 1983009808
        %v8421 = vunpack.c.0.s8 %v8420
        %v8422 = vlaneseq
        %v8423 = vshrl.u32 %v8422, 7
        %v8424 = vsub.s32 %v8421, %v8423
        %v8425 = vrot.slane %v8417, %v8424
        %v8427 = vunpack.c.l.s4 1983009808
        %v8428 = vunpack.c.0.s8 %v8427
        %v8429 = vlaneseq
        %v8430 = vshrl.u32 %v8429, 7
        %v8431 = vsub.s32 %v8428, %v8430
        %v8432 = vrot.slane %v8418, %v8431
        %v8433 = vcombine.low %v8425, %v8432
        %v8434 = vcombine.low %v7969, %v7970
        %v8435 = vcombine.low %v7971, %v7972
        %v8437 = vunpack.c.l.s4 1983009808
        %v8438 = vunpack.c.0.s8 %v8437
        %v8439 = vlaneseq
        %v8440 = vshrl.u32 %v8439, 7
        %v8441 = vsub.s32 %v8438, %v8440
        %v8442 = vrot.slane %v8434, %v8441
        %v8444 = vunpack.c.l.s4 1983009808
        %v8445 = vunpack.c.0.s8 %v8444
        %v8446 = vlaneseq
        %v8447 = vshrl.u32 %v8446, 7
        %v8448 = vsub.s32 %v8445, %v8447
        %v8449 = vrot.slane %v8435, %v8448
        %v8450 = vcombine.low %v8442, %v8449
        %v8451 = vcombine.low %v7973, %v7974
        %v8452 = vcombine.low %v7975, %v7976
        %v8454 = vunpack.c.l.s4 1983009808
        %v8455 = vunpack.c.0.s8 %v8454
        %v8456 = vlaneseq
        %v8457 = vshrl.u32 %v8456, 7
        %v8458 = vsub.s32 %v8455, %v8457
        %v8459 = vrot.slane %v8451, %v8458
        %v8461 = vunpack.c.l.s4 1983009808
        %v8462 = vunpack.c.0.s8 %v8461
        %v8463 = vlaneseq
        %v8464 = vshrl.u32 %v8463, 7
        %v8465 = vsub.s32 %v8462, %v8464
        %v8466 = vrot.slane %v8452, %v8465
        %v8467 = vcombine.low %v8459, %v8466
        %v8468 = vcombine.low %v7977, %v7978
        %v8469 = vcombine.low %v7979, %v7980
        %v8471 = vunpack.c.l.s4 1983009808
        %v8472 = vunpack.c.0.s8 %v8471
        %v8473 = vlaneseq
        %v8474 = vshrl.u32 %v8473, 7
        %v8475 = vsub.s32 %v8472, %v8474
        %v8476 = vrot.slane %v8468, %v8475
        %v8478 = vunpack.c.l.s4 1983009808
        %v8479 = vunpack.c.0.s8 %v8478
        %v8480 = vlaneseq
        %v8481 = vshrl.u32 %v8480, 7
        %v8482 = vsub.s32 %v8479, %v8481
        %v8483 = vrot.slane %v8469, %v8482
        %v8484 = vcombine.low %v8476, %v8483
        %v8485 = vcombine.low %v4149, %v4150
        %v8486 = vcombine.low %v4151, %v4152
        %v8488 = vunpack.c.l.s4 1983009808
        %v8489 = vunpack.c.0.s8 %v8488
        %v8490 = vlaneseq
        %v8491 = vshrl.u32 %v8490, 7
        %v8492 = vsub.s32 %v8489, %v8491
        %v8493 = vrot.slane %v8485, %v8492
        %v8495 = vunpack.c.l.s4 1983009808
        %v8496 = vunpack.c.0.s8 %v8495
        %v8497 = vlaneseq
        %v8498 = vshrl.u32 %v8497, 7
        %v8499 = vsub.s32 %v8496, %v8498
        %v8500 = vrot.slane %v8486, %v8499
        %v8501 = vcombine.low %v8493, %v8500
        %v8502 = vcombine.low %v4153, %v4154
        %v8503 = vcombine.low %v4155, %v4156
        %v8505 = vunpack.c.l.s4 1983009808
        %v8506 = vunpack.c.0.s8 %v8505
        %v8507 = vlaneseq
        %v8508 = vshrl.u32 %v8507, 7
        %v8509 = vsub.s32 %v8506, %v8508
        %v8510 = vrot.slane %v8502, %v8509
        %v8512 = vunpack.c.l.s4 1983009808
        %v8513 = vunpack.c.0.s8 %v8512
        %v8514 = vlaneseq
        %v8515 = vshrl.u32 %v8514, 7
        %v8516 = vsub.s32 %v8513, %v8515
        %v8517 = vrot.slane %v8503, %v8516
        %v8518 = vcombine.low %v8510, %v8517
        %v8519 = vcombine.low %v4157, %v4158
        %v8520 = vcombine.low %v4159, %v4160
        %v8522 = vunpack.c.l.s4 1983009808
        %v8523 = vunpack.c.0.s8 %v8522
        %v8524 = vlaneseq
        %v8525 = vshrl.u32 %v8524, 7
        %v8526 = vsub.s32 %v8523, %v8525
        %v8527 = vrot.slane %v8519, %v8526
        %v8529 = vunpack.c.l.s4 1983009808
        %v8530 = vunpack.c.0.s8 %v8529
        %v8531 = vlaneseq
        %v8532 = vshrl.u32 %v8531, 7
        %v8533 = vsub.s32 %v8530, %v8532
        %v8534 = vrot.slane %v8520, %v8533
        %v8535 = vcombine.low %v8527, %v8534
        %v8536 = vcombine.low %v4161, %v4162
        %v8537 = vcombine.low %v4163, %v4164
        %v8539 = vunpack.c.l.s4 1983009808
        %v8540 = vunpack.c.0.s8 %v8539
        %v8541 = vlaneseq
        %v8542 = vshrl.u32 %v8541, 7
        %v8543 = vsub.s32 %v8540, %v8542
        %v8544 = vrot.slane %v8536, %v8543
        %v8546 = vunpack.c.l.s4 1983009808
        %v8547 = vunpack.c.0.s8 %v8546
        %v8548 = vlaneseq
        %v8549 = vshrl.u32 %v8548, 7
        %v8550 = vsub.s32 %v8547, %v8549
        %v8551 = vrot.slane %v8537, %v8550
        %v8552 = vcombine.low %v8544, %v8551
        %v8553 = vcombine.low %v7981, %v7982
        %v8554 = vcombine.low %v7983, %v7984
        %v8556 = vunpack.c.l.s4 1983009808
        %v8557 = vunpack.c.0.s8 %v8556
        %v8558 = vlaneseq
        %v8559 = vshrl.u32 %v8558, 7
        %v8560 = vsub.s32 %v8557, %v8559
        %v8561 = vrot.slane %v8553, %v8560
        %v8563 = vunpack.c.l.s4 1983009808
        %v8564 = vunpack.c.0.s8 %v8563
        %v8565 = vlaneseq
        %v8566 = vshrl.u32 %v8565, 7
        %v8567 = vsub.s32 %v8564, %v8566
        %v8568 = vrot.slane %v8554, %v8567
        %v8569 = vcombine.low %v8561, %v8568
        %v8570 = vcombine.low %v7985, %v7986
        %v8571 = vcombine.low %v7987, %v7988
        %v8573 = vunpack.c.l.s4 1983009808
        %v8574 = vunpack.c.0.s8 %v8573
        %v8575 = vlaneseq
        %v8576 = vshrl.u32 %v8575, 7
        %v8577 = vsub.s32 %v8574, %v8576
        %v8578 = vrot.slane %v8570, %v8577
        %v8580 = vunpack.c.l.s4 1983009808
        %v8581 = vunpack.c.0.s8 %v8580
        %v8582 = vlaneseq
        %v8583 = vshrl.u32 %v8582, 7
        %v8584 = vsub.s32 %v8581, %v8583
        %v8585 = vrot.slane %v8571, %v8584
        %v8586 = vcombine.low %v8578, %v8585
        %v8587 = vcombine.low %v7989, %v7990
        %v8588 = vcombine.low %v7991, %v7992
        %v8590 = vunpack.c.l.s4 1983009808
        %v8591 = vunpack.c.0.s8 %v8590
        %v8592 = vlaneseq
        %v8593 = vshrl.u32 %v8592, 7
        %v8594 = vsub.s32 %v8591, %v8593
        %v8595 = vrot.slane %v8587, %v8594
        %v8597 = vunpack.c.l.s4 1983009808
        %v8598 = vunpack.c.0.s8 %v8597
        %v8599 = vlaneseq
        %v8600 = vshrl.u32 %v8599, 7
        %v8601 = vsub.s32 %v8598, %v8600
        %v8602 = vrot.slane %v8588, %v8601
        %v8603 = vcombine.low %v8595, %v8602
        %v8604 = vcombine.low %v7993, %v7994
        %v8605 = vcombine.low %v7995, %v7996
        %v8607 = vunpack.c.l.s4 1983009808
        %v8608 = vunpack.c.0.s8 %v8607
        %v8609 = vlaneseq
        %v8610 = vshrl.u32 %v8609, 7
        %v8611 = vsub.s32 %v8608, %v8610
        %v8612 = vrot.slane %v8604, %v8611
        %v8614 = vunpack.c.l.s4 1983009808
        %v8615 = vunpack.c.0.s8 %v8614
        %v8616 = vlaneseq
        %v8617 = vshrl.u32 %v8616, 7
        %v8618 = vsub.s32 %v8615, %v8617
        %v8619 = vrot.slane %v8605, %v8618
        %v8620 = vcombine.low %v8612, %v8619
        %v8621 = vcombine.low %v4165, %v4166
        %v8622 = vcombine.low %v4167, %v4168
        %v8624 = vunpack.c.l.s4 1983009808
        %v8625 = vunpack.c.0.s8 %v8624
        %v8626 = vlaneseq
        %v8627 = vshrl.u32 %v8626, 7
        %v8628 = vsub.s32 %v8625, %v8627
        %v8629 = vrot.slane %v8621, %v8628
        %v8631 = vunpack.c.l.s4 1983009808
        %v8632 = vunpack.c.0.s8 %v8631
        %v8633 = vlaneseq
        %v8634 = vshrl.u32 %v8633, 7
        %v8635 = vsub.s32 %v8632, %v8634
        %v8636 = vrot.slane %v8622, %v8635
        %v8637 = vcombine.low %v8629, %v8636
        %v8638 = vcombine.low %v4169, %v4170
        %v8639 = vcombine.low %v4171, %v4172
        %v8641 = vunpack.c.l.s4 1983009808
        %v8642 = vunpack.c.0.s8 %v8641
        %v8643 = vlaneseq
        %v8644 = vshrl.u32 %v8643, 7
        %v8645 = vsub.s32 %v8642, %v8644
        %v8646 = vrot.slane %v8638, %v8645
        %v8648 = vunpack.c.l.s4 1983009808
        %v8649 = vunpack.c.0.s8 %v8648
        %v8650 = vlaneseq
        %v8651 = vshrl.u32 %v8650, 7
        %v8652 = vsub.s32 %v8649, %v8651
        %v8653 = vrot.slane %v8639, %v8652
        %v8654 = vcombine.low %v8646, %v8653
        %v8655 = vcombine.low %v4173, %v4174
        %v8656 = vcombine.low %v4175, %v4176
        %v8658 = vunpack.c.l.s4 1983009808
        %v8659 = vunpack.c.0.s8 %v8658
        %v8660 = vlaneseq
        %v8661 = vshrl.u32 %v8660, 7
        %v8662 = vsub.s32 %v8659, %v8661
        %v8663 = vrot.slane %v8655, %v8662
        %v8665 = vunpack.c.l.s4 1983009808
        %v8666 = vunpack.c.0.s8 %v8665
        %v8667 = vlaneseq
        %v8668 = vshrl.u32 %v8667, 7
        %v8669 = vsub.s32 %v8666, %v8668
        %v8670 = vrot.slane %v8656, %v8669
        %v8671 = vcombine.low %v8663, %v8670
        %v8672 = vcombine.low %v4177, %v4178
        %v8673 = vcombine.low %v4179, %v4180
        %v8675 = vunpack.c.l.s4 1983009808
        %v8676 = vunpack.c.0.s8 %v8675
        %v8677 = vlaneseq
        %v8678 = vshrl.u32 %v8677, 7
        %v8679 = vsub.s32 %v8676, %v8678
        %v8680 = vrot.slane %v8672, %v8679
        %v8682 = vunpack.c.l.s4 1983009808
        %v8683 = vunpack.c.0.s8 %v8682
        %v8684 = vlaneseq
        %v8685 = vshrl.u32 %v8684, 7
        %v8686 = vsub.s32 %v8683, %v8685
        %v8687 = vrot.slane %v8673, %v8686
        %v8688 = vcombine.low %v8680, %v8687
        %v8689 = vcombine.low %v7997, %v7998
        %v8690 = vcombine.low %v7999, %v8000
        %v8692 = vunpack.c.l.s4 1983009808
        %v8693 = vunpack.c.0.s8 %v8692
        %v8694 = vlaneseq
        %v8695 = vshrl.u32 %v8694, 7
        %v8696 = vsub.s32 %v8693, %v8695
        %v8697 = vrot.slane %v8689, %v8696
        %v8699 = vunpack.c.l.s4 1983009808
        %v8700 = vunpack.c.0.s8 %v8699
        %v8701 = vlaneseq
        %v8702 = vshrl.u32 %v8701, 7
        %v8703 = vsub.s32 %v8700, %v8702
        %v8704 = vrot.slane %v8690, %v8703
        %v8705 = vcombine.low %v8697, %v8704
        %v8706 = vcombine.low %v8001, %v8002
        %v8707 = vcombine.low %v8003, %v8004
        %v8709 = vunpack.c.l.s4 1983009808
        %v8710 = vunpack.c.0.s8 %v8709
        %v8711 = vlaneseq
        %v8712 = vshrl.u32 %v8711, 7
        %v8713 = vsub.s32 %v8710, %v8712
        %v8714 = vrot.slane %v8706, %v8713
        %v8716 = vunpack.c.l.s4 1983009808
        %v8717 = vunpack.c.0.s8 %v8716
        %v8718 = vlaneseq
        %v8719 = vshrl.u32 %v8718, 7
        %v8720 = vsub.s32 %v8717, %v8719
        %v8721 = vrot.slane %v8707, %v8720
        %v8722 = vcombine.low %v8714, %v8721
        %v8723 = vcombine.low %v8005, %v8006
        %v8724 = vcombine.low %v8007, %v8008
        %v8726 = vunpack.c.l.s4 1983009808
        %v8727 = vunpack.c.0.s8 %v8726
        %v8728 = vlaneseq
        %v8729 = vshrl.u32 %v8728, 7
        %v8730 = vsub.s32 %v8727, %v8729
        %v8731 = vrot.slane %v8723, %v8730
        %v8733 = vunpack.c.l.s4 1983009808
        %v8734 = vunpack.c.0.s8 %v8733
        %v8735 = vlaneseq
        %v8736 = vshrl.u32 %v8735, 7
        %v8737 = vsub.s32 %v8734, %v8736
        %v8738 = vrot.slane %v8724, %v8737
        %v8739 = vcombine.low %v8731, %v8738
        %v8740 = vcombine.low %v8009, %v8010
        %v8741 = vcombine.low %v8011, %v8012
        %v8743 = vunpack.c.l.s4 1983009808
        %v8744 = vunpack.c.0.s8 %v8743
        %v8745 = vlaneseq
        %v8746 = vshrl.u32 %v8745, 7
        %v8747 = vsub.s32 %v8744, %v8746
        %v8748 = vrot.slane %v8740, %v8747
        %v8750 = vunpack.c.l.s4 1983009808
        %v8751 = vunpack.c.0.s8 %v8750
        %v8752 = vlaneseq
        %v8753 = vshrl.u32 %v8752, 7
        %v8754 = vsub.s32 %v8751, %v8753
        %v8755 = vrot.slane %v8741, %v8754
        %v8756 = vcombine.low %v8748, %v8755
        %v8757 = vcombine.low %v4181, %v4182
        %v8758 = vcombine.low %v4183, %v4184
        %v8760 = vunpack.c.l.s4 1983009808
        %v8761 = vunpack.c.0.s8 %v8760
        %v8762 = vlaneseq
        %v8763 = vshrl.u32 %v8762, 7
        %v8764 = vsub.s32 %v8761, %v8763
        %v8765 = vrot.slane %v8757, %v8764
        %v8767 = vunpack.c.l.s4 1983009808
        %v8768 = vunpack.c.0.s8 %v8767
        %v8769 = vlaneseq
        %v8770 = vshrl.u32 %v8769, 7
        %v8771 = vsub.s32 %v8768, %v8770
        %v8772 = vrot.slane %v8758, %v8771
        %v8773 = vcombine.low %v8765, %v8772
        %v8774 = vcombine.low %v4185, %v4186
        %v8775 = vcombine.low %v4187, %v4188
        %v8777 = vunpack.c.l.s4 1983009808
        %v8778 = vunpack.c.0.s8 %v8777
        %v8779 = vlaneseq
        %v8780 = vshrl.u32 %v8779, 7
        %v8781 = vsub.s32 %v8778, %v8780
        %v8782 = vrot.slane %v8774, %v8781
        %v8784 = vunpack.c.l.s4 1983009808
        %v8785 = vunpack.c.0.s8 %v8784
        %v8786 = vlaneseq
        %v8787 = vshrl.u32 %v8786, 7
        %v8788 = vsub.s32 %v8785, %v8787
        %v8789 = vrot.slane %v8775, %v8788
        %v8790 = vcombine.low %v8782, %v8789
        %v8791 = vcombine.low %v4189, %v4190
        %v8792 = vcombine.low %v4191, %v4192
        %v8794 = vunpack.c.l.s4 1983009808
        %v8795 = vunpack.c.0.s8 %v8794
        %v8796 = vlaneseq
        %v8797 = vshrl.u32 %v8796, 7
        %v8798 = vsub.s32 %v8795, %v8797
        %v8799 = vrot.slane %v8791, %v8798
        %v8801 = vunpack.c.l.s4 1983009808
        %v8802 = vunpack.c.0.s8 %v8801
        %v8803 = vlaneseq
        %v8804 = vshrl.u32 %v8803, 7
        %v8805 = vsub.s32 %v8802, %v8804
        %v8806 = vrot.slane %v8792, %v8805
        %v8807 = vcombine.low %v8799, %v8806
        %v8808 = vcombine.low %v4193, %v4194
        %v8809 = vcombine.low %v4195, %v4196
        %v8811 = vunpack.c.l.s4 1983009808
        %v8812 = vunpack.c.0.s8 %v8811
        %v8813 = vlaneseq
        %v8814 = vshrl.u32 %v8813, 7
        %v8815 = vsub.s32 %v8812, %v8814
        %v8816 = vrot.slane %v8808, %v8815
        %v8818 = vunpack.c.l.s4 1983009808
        %v8819 = vunpack.c.0.s8 %v8818
        %v8820 = vlaneseq
        %v8821 = vshrl.u32 %v8820, 7
        %v8822 = vsub.s32 %v8819, %v8821
        %v8823 = vrot.slane %v8809, %v8822
        %v8824 = vcombine.low %v8816, %v8823
        %v8825 = vcombine.low %v8013, %v8014
        %v8826 = vcombine.low %v8015, %v8016
        %v8828 = vunpack.c.l.s4 1983009808
        %v8829 = vunpack.c.0.s8 %v8828
        %v8830 = vlaneseq
        %v8831 = vshrl.u32 %v8830, 7
        %v8832 = vsub.s32 %v8829, %v8831
        %v8833 = vrot.slane %v8825, %v8832
        %v8835 = vunpack.c.l.s4 1983009808
        %v8836 = vunpack.c.0.s8 %v8835
        %v8837 = vlaneseq
        %v8838 = vshrl.u32 %v8837, 7
        %v8839 = vsub.s32 %v8836, %v8838
        %v8840 = vrot.slane %v8826, %v8839
        %v8841 = vcombine.low %v8833, %v8840
        %v8842 = vcombine.low %v8017, %v8018
        %v8843 = vcombine.low %v8019, %v8020
        %v8845 = vunpack.c.l.s4 1983009808
        %v8846 = vunpack.c.0.s8 %v8845
        %v8847 = vlaneseq
        %v8848 = vshrl.u32 %v8847, 7
        %v8849 = vsub.s32 %v8846, %v8848
        %v8850 = vrot.slane %v8842, %v8849
        %v8852 = vunpack.c.l.s4 1983009808
        %v8853 = vunpack.c.0.s8 %v8852
        %v8854 = vlaneseq
        %v8855 = vshrl.u32 %v8854, 7
        %v8856 = vsub.s32 %v8853, %v8855
        %v8857 = vrot.slane %v8843, %v8856
        %v8858 = vcombine.low %v8850, %v8857
        %v8859 = vcombine.low %v8021, %v8022
        %v8860 = vcombine.low %v8023, %v8024
        %v8862 = vunpack.c.l.s4 1983009808
        %v8863 = vunpack.c.0.s8 %v8862
        %v8864 = vlaneseq
        %v8865 = vshrl.u32 %v8864, 7
        %v8866 = vsub.s32 %v8863, %v8865
        %v8867 = vrot.slane %v8859, %v8866
        %v8869 = vunpack.c.l.s4 1983009808
        %v8870 = vunpack.c.0.s8 %v8869
        %v8871 = vlaneseq
        %v8872 = vshrl.u32 %v8871, 7
        %v8873 = vsub.s32 %v8870, %v8872
        %v8874 = vrot.slane %v8860, %v8873
        %v8875 = vcombine.low %v8867, %v8874
        %v8876 = vcombine.low %v8025, %v8026
        %v8877 = vcombine.low %v8027, %v8028
        %v8879 = vunpack.c.l.s4 1983009808
        %v8880 = vunpack.c.0.s8 %v8879
        %v8881 = vlaneseq
        %v8882 = vshrl.u32 %v8881, 7
        %v8883 = vsub.s32 %v8880, %v8882
        %v8884 = vrot.slane %v8876, %v8883
        %v8886 = vunpack.c.l.s4 1983009808
        %v8887 = vunpack.c.0.s8 %v8886
        %v8888 = vlaneseq
        %v8889 = vshrl.u32 %v8888, 7
        %v8890 = vsub.s32 %v8887, %v8889
        %v8891 = vrot.slane %v8877, %v8890
        %v8892 = vcombine.low %v8884, %v8891
        %v8893 = vcombine.low %v4197, %v4198
        %v8894 = vcombine.low %v4199, %v4200
        %v8896 = vunpack.c.l.s4 1983009808
        %v8897 = vunpack.c.0.s8 %v8896
        %v8898 = vlaneseq
        %v8899 = vshrl.u32 %v8898, 7
        %v8900 = vsub.s32 %v8897, %v8899
        %v8901 = vrot.slane %v8893, %v8900
        %v8903 = vunpack.c.l.s4 1983009808
        %v8904 = vunpack.c.0.s8 %v8903
        %v8905 = vlaneseq
        %v8906 = vshrl.u32 %v8905, 7
        %v8907 = vsub.s32 %v8904, %v8906
        %v8908 = vrot.slane %v8894, %v8907
        %v8909 = vcombine.low %v8901, %v8908
        %v8910 = vcombine.low %v4201, %v4202
        %v8911 = vcombine.low %v4203, %v4204
        %v8913 = vunpack.c.l.s4 1983009808
        %v8914 = vunpack.c.0.s8 %v8913
        %v8915 = vlaneseq
        %v8916 = vshrl.u32 %v8915, 7
        %v8917 = vsub.s32 %v8914, %v8916
        %v8918 = vrot.slane %v8910, %v8917
        %v8920 = vunpack.c.l.s4 1983009808
        %v8921 = vunpack.c.0.s8 %v8920
        %v8922 = vlaneseq
        %v8923 = vshrl.u32 %v8922, 7
        %v8924 = vsub.s32 %v8921, %v8923
        %v8925 = vrot.slane %v8911, %v8924
        %v8926 = vcombine.low %v8918, %v8925
        %v8927 = vcombine.low %v4205, %v4206
        %v8928 = vcombine.low %v4207, %v4208
        %v8930 = vunpack.c.l.s4 1983009808
        %v8931 = vunpack.c.0.s8 %v8930
        %v8932 = vlaneseq
        %v8933 = vshrl.u32 %v8932, 7
        %v8934 = vsub.s32 %v8931, %v8933
        %v8935 = vrot.slane %v8927, %v8934
        %v8937 = vunpack.c.l.s4 1983009808
        %v8938 = vunpack.c.0.s8 %v8937
        %v8939 = vlaneseq
        %v8940 = vshrl.u32 %v8939, 7
        %v8941 = vsub.s32 %v8938, %v8940
        %v8942 = vrot.slane %v8928, %v8941
        %v8943 = vcombine.low %v8935, %v8942
        %v8944 = vcombine.low %v4209, %v4210
        %v8945 = vcombine.low %v4211, %v4212
        %v8947 = vunpack.c.l.s4 1983009808
        %v8948 = vunpack.c.0.s8 %v8947
        %v8949 = vlaneseq
        %v8950 = vshrl.u32 %v8949, 7
        %v8951 = vsub.s32 %v8948, %v8950
        %v8952 = vrot.slane %v8944, %v8951
        %v8954 = vunpack.c.l.s4 1983009808
        %v8955 = vunpack.c.0.s8 %v8954
        %v8956 = vlaneseq
        %v8957 = vshrl.u32 %v8956, 7
        %v8958 = vsub.s32 %v8955, %v8957
        %v8959 = vrot.slane %v8945, %v8958
        %v8960 = vcombine.low %v8952, %v8959
        %v8961 = vcombine.low %v8029, %v8030
        %v8962 = vcombine.low %v8031, %v8032
        %v8964 = vunpack.c.l.s4 1983009808
        %v8965 = vunpack.c.0.s8 %v8964
        %v8966 = vlaneseq
        %v8967 = vshrl.u32 %v8966, 7
        %v8968 = vsub.s32 %v8965, %v8967
        %v8969 = vrot.slane %v8961, %v8968
        %v8971 = vunpack.c.l.s4 1983009808
        %v8972 = vunpack.c.0.s8 %v8971
        %v8973 = vlaneseq
        %v8974 = vshrl.u32 %v8973, 7
        %v8975 = vsub.s32 %v8972, %v8974
        %v8976 = vrot.slane %v8962, %v8975
        %v8977 = vcombine.low %v8969, %v8976
        %v8978 = vcombine.low %v8033, %v8034
        %v8979 = vcombine.low %v8035, %v8036
        %v8981 = vunpack.c.l.s4 1983009808
        %v8982 = vunpack.c.0.s8 %v8981
        %v8983 = vlaneseq
        %v8984 = vshrl.u32 %v8983, 7
        %v8985 = vsub.s32 %v8982, %v8984
        %v8986 = vrot.slane %v8978, %v8985
        %v8988 = vunpack.c.l.s4 1983009808
        %v8989 = vunpack.c.0.s8 %v8988
        %v8990 = vlaneseq
        %v8991 = vshrl.u32 %v8990, 7
        %v8992 = vsub.s32 %v8989, %v8991
        %v8993 = vrot.slane %v8979, %v8992
        %v8994 = vcombine.low %v8986, %v8993
        %v8995 = vcombine.low %v8037, %v8038
        %v8996 = vcombine.low %v8039, %v8040
        %v8998 = vunpack.c.l.s4 1983009808
        %v8999 = vunpack.c.0.s8 %v8998
        %v9000 = vlaneseq
        %v9001 = vshrl.u32 %v9000, 7
        %v9002 = vsub.s32 %v8999, %v9001
        %v9003 = vrot.slane %v8995, %v9002
        %v9005 = vunpack.c.l.s4 1983009808
        %v9006 = vunpack.c.0.s8 %v9005
        %v9007 = vlaneseq
        %v9008 = vshrl.u32 %v9007, 7
        %v9009 = vsub.s32 %v9006, %v9008
        %v9010 = vrot.slane %v8996, %v9009
        %v9011 = vcombine.low %v9003, %v9010
        %v9012 = vcombine.low %v8041, %v8042
        %v9013 = vcombine.low %v8043, %v8044
        %v9015 = vunpack.c.l.s4 1983009808
        %v9016 = vunpack.c.0.s8 %v9015
        %v9017 = vlaneseq
        %v9018 = vshrl.u32 %v9017, 7
        %v9019 = vsub.s32 %v9016, %v9018
        %v9020 = vrot.slane %v9012, %v9019
        %v9022 = vunpack.c.l.s4 1983009808
        %v9023 = vunpack.c.0.s8 %v9022
        %v9024 = vlaneseq
        %v9025 = vshrl.u32 %v9024, 7
        %v9026 = vsub.s32 %v9023, %v9025
        %v9027 = vrot.slane %v9013, %v9026
        %v9028 = vcombine.low %v9020, %v9027
        %v9029 = vcombine.low %v4213, %v4214
        %v9030 = vcombine.low %v4215, %v4216
        %v9032 = vunpack.c.l.s4 1983009808
        %v9033 = vunpack.c.0.s8 %v9032
        %v9034 = vlaneseq
        %v9035 = vshrl.u32 %v9034, 7
        %v9036 = vsub.s32 %v9033, %v9035
        %v9037 = vrot.slane %v9029, %v9036
        %v9039 = vunpack.c.l.s4 1983009808
        %v9040 = vunpack.c.0.s8 %v9039
        %v9041 = vlaneseq
        %v9042 = vshrl.u32 %v9041, 7
        %v9043 = vsub.s32 %v9040, %v9042
        %v9044 = vrot.slane %v9030, %v9043
        %v9045 = vcombine.low %v9037, %v9044
        %v9046 = vcombine.low %v4217, %v4218
        %v9047 = vcombine.low %v4219, %v4220
        %v9049 = vunpack.c.l.s4 1983009808
        %v9050 = vunpack.c.0.s8 %v9049
        %v9051 = vlaneseq
        %v9052 = vshrl.u32 %v9051, 7
        %v9053 = vsub.s32 %v9050, %v9052
        %v9054 = vrot.slane %v9046, %v9053
        %v9056 = vunpack.c.l.s4 1983009808
        %v9057 = vunpack.c.0.s8 %v9056
        %v9058 = vlaneseq
        %v9059 = vshrl.u32 %v9058, 7
        %v9060 = vsub.s32 %v9057, %v9059
        %v9061 = vrot.slane %v9047, %v9060
        %v9062 = vcombine.low %v9054, %v9061
        %v9063 = vcombine.low %v4221, %v4222
        %v9064 = vcombine.low %v4223, %v4224
        %v9066 = vunpack.c.l.s4 1983009808
        %v9067 = vunpack.c.0.s8 %v9066
        %v9068 = vlaneseq
        %v9069 = vshrl.u32 %v9068, 7
        %v9070 = vsub.s32 %v9067, %v9069
        %v9071 = vrot.slane %v9063, %v9070
        %v9073 = vunpack.c.l.s4 1983009808
        %v9074 = vunpack.c.0.s8 %v9073
        %v9075 = vlaneseq
        %v9076 = vshrl.u32 %v9075, 7
        %v9077 = vsub.s32 %v9074, %v9076
        %v9078 = vrot.slane %v9064, %v9077
        %v9079 = vcombine.low %v9071, %v9078
        %v9080 = vcombine.low %v4225, %v4226
        %v9081 = vcombine.low %v4227, %v4228
        %v9083 = vunpack.c.l.s4 1983009808
        %v9084 = vunpack.c.0.s8 %v9083
        %v9085 = vlaneseq
        %v9086 = vshrl.u32 %v9085, 7
        %v9087 = vsub.s32 %v9084, %v9086
        %v9088 = vrot.slane %v9080, %v9087
        %v9090 = vunpack.c.l.s4 1983009808
        %v9091 = vunpack.c.0.s8 %v9090
        %v9092 = vlaneseq
        %v9093 = vshrl.u32 %v9092, 7
        %v9094 = vsub.s32 %v9091, %v9093
        %v9095 = vrot.slane %v9081, %v9094
        %v9096 = vcombine.low %v9088, %v9095
        %v9097 = vcombine.low %v8045, %v8046
        %v9098 = vcombine.low %v8047, %v8048
        %v9100 = vunpack.c.l.s4 1983009808
        %v9101 = vunpack.c.0.s8 %v9100
        %v9102 = vlaneseq
        %v9103 = vshrl.u32 %v9102, 7
        %v9104 = vsub.s32 %v9101, %v9103
        %v9105 = vrot.slane %v9097, %v9104
        %v9107 = vunpack.c.l.s4 1983009808
        %v9108 = vunpack.c.0.s8 %v9107
        %v9109 = vlaneseq
        %v9110 = vshrl.u32 %v9109, 7
        %v9111 = vsub.s32 %v9108, %v9110
        %v9112 = vrot.slane %v9098, %v9111
        %v9113 = vcombine.low %v9105, %v9112
        %v9114 = vcombine.low %v8049, %v8050
        %v9115 = vcombine.low %v8051, %v8052
        %v9117 = vunpack.c.l.s4 1983009808
        %v9118 = vunpack.c.0.s8 %v9117
        %v9119 = vlaneseq
        %v9120 = vshrl.u32 %v9119, 7
        %v9121 = vsub.s32 %v9118, %v9120
        %v9122 = vrot.slane %v9114, %v9121
        %v9124 = vunpack.c.l.s4 1983009808
        %v9125 = vunpack.c.0.s8 %v9124
        %v9126 = vlaneseq
        %v9127 = vshrl.u32 %v9126, 7
        %v9128 = vsub.s32 %v9125, %v9127
        %v9129 = vrot.slane %v9115, %v9128
        %v9130 = vcombine.low %v9122, %v9129
        %v9131 = vcombine.low %v8053, %v8054
        %v9132 = vcombine.low %v8055, %v8056
        %v9134 = vunpack.c.l.s4 1983009808
        %v9135 = vunpack.c.0.s8 %v9134
        %v9136 = vlaneseq
        %v9137 = vshrl.u32 %v9136, 7
        %v9138 = vsub.s32 %v9135, %v9137
        %v9139 = vrot.slane %v9131, %v9138
        %v9141 = vunpack.c.l.s4 1983009808
        %v9142 = vunpack.c.0.s8 %v9141
        %v9143 = vlaneseq
        %v9144 = vshrl.u32 %v9143, 7
        %v9145 = vsub.s32 %v9142, %v9144
        %v9146 = vrot.slane %v9132, %v9145
        %v9147 = vcombine.low %v9139, %v9146
        %v9148 = vcombine.low %v8057, %v8058
        %v9149 = vcombine.low %v8059, %v8060
        %v9151 = vunpack.c.l.s4 1983009808
        %v9152 = vunpack.c.0.s8 %v9151
        %v9153 = vlaneseq
        %v9154 = vshrl.u32 %v9153, 7
        %v9155 = vsub.s32 %v9152, %v9154
        %v9156 = vrot.slane %v9148, %v9155
        %v9158 = vunpack.c.l.s4 1983009808
        %v9159 = vunpack.c.0.s8 %v9158
        %v9160 = vlaneseq
        %v9161 = vshrl.u32 %v9160, 7
        %v9162 = vsub.s32 %v9159, %v9161
        %v9163 = vrot.slane %v9149, %v9162
        %v9164 = vcombine.low %v9156, %v9163
        %v9165 = vcombine.low %v4229, %v4230
        %v9166 = vcombine.low %v4231, %v4232
        %v9168 = vunpack.c.l.s4 1983009808
        %v9169 = vunpack.c.0.s8 %v9168
        %v9170 = vlaneseq
        %v9171 = vshrl.u32 %v9170, 7
        %v9172 = vsub.s32 %v9169, %v9171
        %v9173 = vrot.slane %v9165, %v9172
        %v9175 = vunpack.c.l.s4 1983009808
        %v9176 = vunpack.c.0.s8 %v9175
        %v9177 = vlaneseq
        %v9178 = vshrl.u32 %v9177, 7
        %v9179 = vsub.s32 %v9176, %v9178
        %v9180 = vrot.slane %v9166, %v9179
        %v9181 = vcombine.low %v9173, %v9180
        %v9182 = vcombine.low %v4233, %v4234
        %v9183 = vcombine.low %v4235, %v4236
        %v9185 = vunpack.c.l.s4 1983009808
        %v9186 = vunpack.c.0.s8 %v9185
        %v9187 = vlaneseq
        %v9188 = vshrl.u32 %v9187, 7
        %v9189 = vsub.s32 %v9186, %v9188
        %v9190 = vrot.slane %v9182, %v9189
        %v9192 = vunpack.c.l.s4 1983009808
        %v9193 = vunpack.c.0.s8 %v9192
        %v9194 = vlaneseq
        %v9195 = vshrl.u32 %v9194, 7
        %v9196 = vsub.s32 %v9193, %v9195
        %v9197 = vrot.slane %v9183, %v9196
        %v9198 = vcombine.low %v9190, %v9197
        %v9199 = vcombine.low %v4237, %v4238
        %v9200 = vcombine.low %v4239, %v4240
        %v9202 = vunpack.c.l.s4 1983009808
        %v9203 = vunpack.c.0.s8 %v9202
        %v9204 = vlaneseq
        %v9205 = vshrl.u32 %v9204, 7
        %v9206 = vsub.s32 %v9203, %v9205
        %v9207 = vrot.slane %v9199, %v9206
        %v9209 = vunpack.c.l.s4 1983009808
        %v9210 = vunpack.c.0.s8 %v9209
        %v9211 = vlaneseq
        %v9212 = vshrl.u32 %v9211, 7
        %v9213 = vsub.s32 %v9210, %v9212
        %v9214 = vrot.slane %v9200, %v9213
        %v9215 = vcombine.low %v9207, %v9214
        %v9216 = vcombine.low %v4241, %v4242
        %v9217 = vcombine.low %v4243, %v4244
        %v9219 = vunpack.c.l.s4 1983009808
        %v9220 = vunpack.c.0.s8 %v9219
        %v9221 = vlaneseq
        %v9222 = vshrl.u32 %v9221, 7
        %v9223 = vsub.s32 %v9220, %v9222
        %v9224 = vrot.slane %v9216, %v9223
        %v9226 = vunpack.c.l.s4 1983009808
        %v9227 = vunpack.c.0.s8 %v9226
        %v9228 = vlaneseq
        %v9229 = vshrl.u32 %v9228, 7
        %v9230 = vsub.s32 %v9227, %v9229
        %v9231 = vrot.slane %v9217, %v9230
        %v9232 = vcombine.low %v9224, %v9231
        %v9233 = vcombine.low %v8061, %v8062
        %v9234 = vcombine.low %v8063, %v8064
        %v9236 = vunpack.c.l.s4 1983009808
        %v9237 = vunpack.c.0.s8 %v9236
        %v9238 = vlaneseq
        %v9239 = vshrl.u32 %v9238, 7
        %v9240 = vsub.s32 %v9237, %v9239
        %v9241 = vrot.slane %v9233, %v9240
        %v9243 = vunpack.c.l.s4 1983009808
        %v9244 = vunpack.c.0.s8 %v9243
        %v9245 = vlaneseq
        %v9246 = vshrl.u32 %v9245, 7
        %v9247 = vsub.s32 %v9244, %v9246
        %v9248 = vrot.slane %v9234, %v9247
        %v9249 = vcombine.low %v9241, %v9248
        %v9250 = vcombine.low %v8065, %v8066
        %v9251 = vcombine.low %v8067, %v8068
        %v9253 = vunpack.c.l.s4 1983009808
        %v9254 = vunpack.c.0.s8 %v9253
        %v9255 = vlaneseq
        %v9256 = vshrl.u32 %v9255, 7
        %v9257 = vsub.s32 %v9254, %v9256
        %v9258 = vrot.slane %v9250, %v9257
        %v9260 = vunpack.c.l.s4 1983009808
        %v9261 = vunpack.c.0.s8 %v9260
        %v9262 = vlaneseq
        %v9263 = vshrl.u32 %v9262, 7
        %v9264 = vsub.s32 %v9261, %v9263
        %v9265 = vrot.slane %v9251, %v9264
        %v9266 = vcombine.low %v9258, %v9265
        %v9267 = vcombine.low %v8069, %v8070
        %v9268 = vcombine.low %v8071, %v8072
        %v9270 = vunpack.c.l.s4 1983009808
        %v9271 = vunpack.c.0.s8 %v9270
        %v9272 = vlaneseq
        %v9273 = vshrl.u32 %v9272, 7
        %v9274 = vsub.s32 %v9271, %v9273
        %v9275 = vrot.slane %v9267, %v9274
        %v9277 = vunpack.c.l.s4 1983009808
        %v9278 = vunpack.c.0.s8 %v9277
        %v9279 = vlaneseq
        %v9280 = vshrl.u32 %v9279, 7
        %v9281 = vsub.s32 %v9278, %v9280
        %v9282 = vrot.slane %v9268, %v9281
        %v9283 = vcombine.low %v9275, %v9282
        %v9284 = vcombine.low %v8073, %v8074
        %v9285 = vcombine.low %v8075, %v8076
        %v9287 = vunpack.c.l.s4 1983009808
        %v9288 = vunpack.c.0.s8 %v9287
        %v9289 = vlaneseq
        %v9290 = vshrl.u32 %v9289, 7
        %v9291 = vsub.s32 %v9288, %v9290
        %v9292 = vrot.slane %v9284, %v9291
        %v9294 = vunpack.c.l.s4 1983009808
        %v9295 = vunpack.c.0.s8 %v9294
        %v9296 = vlaneseq
        %v9297 = vshrl.u32 %v9296, 7
        %v9298 = vsub.s32 %v9295, %v9297
        %v9299 = vrot.slane %v9285, %v9298
        %v9300 = vcombine.low %v9292, %v9299
        %v9301 = vcombine.low %v4245, %v4246
        %v9302 = vcombine.low %v4247, %v4248
        %v9304 = vunpack.c.l.s4 1983009808
        %v9305 = vunpack.c.0.s8 %v9304
        %v9306 = vlaneseq
        %v9307 = vshrl.u32 %v9306, 7
        %v9308 = vsub.s32 %v9305, %v9307
        %v9309 = vrot.slane %v9301, %v9308
        %v9311 = vunpack.c.l.s4 1983009808
        %v9312 = vunpack.c.0.s8 %v9311
        %v9313 = vlaneseq
        %v9314 = vshrl.u32 %v9313, 7
        %v9315 = vsub.s32 %v9312, %v9314
        %v9316 = vrot.slane %v9302, %v9315
        %v9317 = vcombine.low %v9309, %v9316
        %v9318 = vcombine.low %v4249, %v4250
        %v9319 = vcombine.low %v4251, %v4252
        %v9321 = vunpack.c.l.s4 1983009808
        %v9322 = vunpack.c.0.s8 %v9321
        %v9323 = vlaneseq
        %v9324 = vshrl.u32 %v9323, 7
        %v9325 = vsub.s32 %v9322, %v9324
        %v9326 = vrot.slane %v9318, %v9325
        %v9328 = vunpack.c.l.s4 1983009808
        %v9329 = vunpack.c.0.s8 %v9328
        %v9330 = vlaneseq
        %v9331 = vshrl.u32 %v9330, 7
        %v9332 = vsub.s32 %v9329, %v9331
        %v9333 = vrot.slane %v9319, %v9332
        %v9334 = vcombine.low %v9326, %v9333
        %v9335 = vcombine.low %v4253, %v4254
        %v9336 = vcombine.low %v4255, %v4256
        %v9338 = vunpack.c.l.s4 1983009808
        %v9339 = vunpack.c.0.s8 %v9338
        %v9340 = vlaneseq
        %v9341 = vshrl.u32 %v9340, 7
        %v9342 = vsub.s32 %v9339, %v9341
        %v9343 = vrot.slane %v9335, %v9342
        %v9345 = vunpack.c.l.s4 1983009808
        %v9346 = vunpack.c.0.s8 %v9345
        %v9347 = vlaneseq
        %v9348 = vshrl.u32 %v9347, 7
        %v9349 = vsub.s32 %v9346, %v9348
        %v9350 = vrot.slane %v9336, %v9349
        %v9351 = vcombine.low %v9343, %v9350
        %v9352 = vcombine.low %v4257, %v4258
        %v9353 = vcombine.low %v4259, %v4260
        %v9355 = vunpack.c.l.s4 1983009808
        %v9356 = vunpack.c.0.s8 %v9355
        %v9357 = vlaneseq
        %v9358 = vshrl.u32 %v9357, 7
        %v9359 = vsub.s32 %v9356, %v9358
        %v9360 = vrot.slane %v9352, %v9359
        %v9362 = vunpack.c.l.s4 1983009808
        %v9363 = vunpack.c.0.s8 %v9362
        %v9364 = vlaneseq
        %v9365 = vshrl.u32 %v9364, 7
        %v9366 = vsub.s32 %v9363, %v9365
        %v9367 = vrot.slane %v9353, %v9366
        %v9368 = vcombine.low %v9360, %v9367
        %v9369 = vcombine.low %v8077, %v8078
        %v9370 = vcombine.low %v8079, %v8080
        %v9372 = vunpack.c.l.s4 1983009808
        %v9373 = vunpack.c.0.s8 %v9372
        %v9374 = vlaneseq
        %v9375 = vshrl.u32 %v9374, 7
        %v9376 = vsub.s32 %v9373, %v9375
        %v9377 = vrot.slane %v9369, %v9376
        %v9379 = vunpack.c.l.s4 1983009808
        %v9380 = vunpack.c.0.s8 %v9379
        %v9381 = vlaneseq
        %v9382 = vshrl.u32 %v9381, 7
        %v9383 = vsub.s32 %v9380, %v9382
        %v9384 = vrot.slane %v9370, %v9383
        %v9385 = vcombine.low %v9377, %v9384
        %v9386 = vcombine.low %v8081, %v8082
        %v9387 = vcombine.low %v8083, %v8084
        %v9389 = vunpack.c.l.s4 1983009808
        %v9390 = vunpack.c.0.s8 %v9389
        %v9391 = vlaneseq
        %v9392 = vshrl.u32 %v9391, 7
        %v9393 = vsub.s32 %v9390, %v9392
        %v9394 = vrot.slane %v9386, %v9393
        %v9396 = vunpack.c.l.s4 1983009808
        %v9397 = vunpack.c.0.s8 %v9396
        %v9398 = vlaneseq
        %v9399 = vshrl.u32 %v9398, 7
        %v9400 = vsub.s32 %v9397, %v9399
        %v9401 = vrot.slane %v9387, %v9400
        %v9402 = vcombine.low %v9394, %v9401
        %v9403 = vcombine.low %v8085, %v8086
        %v9404 = vcombine.low %v8087, %v8088
        %v9406 = vunpack.c.l.s4 1983009808
        %v9407 = vunpack.c.0.s8 %v9406
        %v9408 = vlaneseq
        %v9409 = vshrl.u32 %v9408, 7
        %v9410 = vsub.s32 %v9407, %v9409
        %v9411 = vrot.slane %v9403, %v9410
        %v9413 = vunpack.c.l.s4 1983009808
        %v9414 = vunpack.c.0.s8 %v9413
        %v9415 = vlaneseq
        %v9416 = vshrl.u32 %v9415, 7
        %v9417 = vsub.s32 %v9414, %v9416
        %v9418 = vrot.slane %v9404, %v9417
        %v9419 = vcombine.low %v9411, %v9418
        %v9420 = vcombine.low %v8089, %v8090
        %v9421 = vcombine.low %v8091, %v8092
        %v9423 = vunpack.c.l.s4 1983009808
        %v9424 = vunpack.c.0.s8 %v9423
        %v9425 = vlaneseq
        %v9426 = vshrl.u32 %v9425, 7
        %v9427 = vsub.s32 %v9424, %v9426
        %v9428 = vrot.slane %v9420, %v9427
        %v9430 = vunpack.c.l.s4 1983009808
        %v9431 = vunpack.c.0.s8 %v9430
        %v9432 = vlaneseq
        %v9433 = vshrl.u32 %v9432, 7
        %v9434 = vsub.s32 %v9431, %v9433
        %v9435 = vrot.slane %v9421, %v9434
        %v9436 = vcombine.low %v9428, %v9435
        %9501 = vst [vmem:[%s177] sm:$0xff] %v8365
        %9502 = vst [vmem:[%s177 + $0x8] sm:$0xff] %v8382
        %9503 = vst [vmem:[%s177 + $0x10] sm:$0xff] %v8399
        %9504 = vst [vmem:[%s177 + $0x18] sm:$0xff] %v8416
        %9505 = vst [vmem:[%s177 + $0x20] sm:$0xff] %v8433
        %9506 = vst [vmem:[%s177 + $0x28] sm:$0xff] %v8450
        %9507 = vst [vmem:[%s177 + $0x30] sm:$0xff] %v8467
        %9508 = vst [vmem:[%s177 + $0x38] sm:$0xff] %v8484
        %9509 = vst [vmem:[%s177 + $0x40] sm:$0xff] %v8501
        %9510 = vst [vmem:[%s177 + $0x48] sm:$0xff] %v8518
        %9511 = vst [vmem:[%s177 + $0x50] sm:$0xff] %v8535
        %9512 = vst [vmem:[%s177 + $0x58] sm:$0xff] %v8552
        %9513 = vst [vmem:[%s177 + $0x60] sm:$0xff] %v8569
        %9514 = vst [vmem:[%s177 + $0x68] sm:$0xff] %v8586
        %9515 = vst [vmem:[%s177 + $0x70] sm:$0xff] %v8603
        %9516 = vst [vmem:[%s177 + $0x78] sm:$0xff] %v8620
        %9517 = vst [vmem:[%s177 + $0x80] sm:$0xff] %v8637
        %9518 = vst [vmem:[%s177 + $0x88] sm:$0xff] %v8654
        %9519 = vst [vmem:[%s177 + $0x90] sm:$0xff] %v8671
        %9520 = vst [vmem:[%s177 + $0x98] sm:$0xff] %v8688
        %9521 = vst [vmem:[%s177 + $0xa0] sm:$0xff] %v8705
        %9522 = vst [vmem:[%s177 + $0xa8] sm:$0xff] %v8722
        %9523 = vst [vmem:[%s177 + $0xb0] sm:$0xff] %v8739
        %9524 = vst [vmem:[%s177 + $0xb8] sm:$0xff] %v8756
        %9525 = vst [vmem:[%s177 + $0xc0] sm:$0xff] %v8773
        %9526 = vst [vmem:[%s177 + $0xc8] sm:$0xff] %v8790
        %9527 = vst [vmem:[%s177 + $0xd0] sm:$0xff] %v8807
        %9528 = vst [vmem:[%s177 + $0xd8] sm:$0xff] %v8824
        %9529 = vst [vmem:[%s177 + $0xe0] sm:$0xff] %v8841
        %9530 = vst [vmem:[%s177 + $0xe8] sm:$0xff] %v8858
        %9531 = vst [vmem:[%s177 + $0xf0] sm:$0xff] %v8875
        %9532 = vst [vmem:[%s177 + $0xf8] sm:$0xff] %v8892
        %9533 = vst [vmem:[%s177 + $0x100] sm:$0xff] %v8909
        %9534 = vst [vmem:[%s177 + $0x108] sm:$0xff] %v8926
        %9535 = vst [vmem:[%s177 + $0x110] sm:$0xff] %v8943
        %9536 = vst [vmem:[%s177 + $0x118] sm:$0xff] %v8960
        %9537 = vst [vmem:[%s177 + $0x120] sm:$0xff] %v8977
        %9538 = vst [vmem:[%s177 + $0x128] sm:$0xff] %v8994
        %9539 = vst [vmem:[%s177 + $0x130] sm:$0xff] %v9011
        %9540 = vst [vmem:[%s177 + $0x138] sm:$0xff] %v9028
        %9541 = vst [vmem:[%s177 + $0x140] sm:$0xff] %v9045
        %9542 = vst [vmem:[%s177 + $0x148] sm:$0xff] %v9062
        %9543 = vst [vmem:[%s177 + $0x150] sm:$0xff] %v9079
        %9544 = vst [vmem:[%s177 + $0x158] sm:$0xff] %v9096
        %9545 = vst [vmem:[%s177 + $0x160] sm:$0xff] %v9113
        %9546 = vst [vmem:[%s177 + $0x168] sm:$0xff] %v9130
        %9547 = vst [vmem:[%s177 + $0x170] sm:$0xff] %v9147
        %9548 = vst [vmem:[%s177 + $0x178] sm:$0xff] %v9164
        %9549 = vst [vmem:[%s177 + $0x180] sm:$0xff] %v9181
        %9550 = vst [vmem:[%s177 + $0x188] sm:$0xff] %v9198
        %9551 = vst [vmem:[%s177 + $0x190] sm:$0xff] %v9215
        %9552 = vst [vmem:[%s177 + $0x198] sm:$0xff] %v9232
        %9553 = vst [vmem:[%s177 + $0x1a0] sm:$0xff] %v9249
        %9554 = vst [vmem:[%s177 + $0x1a8] sm:$0xff] %v9266
        %9555 = vst [vmem:[%s177 + $0x1b0] sm:$0xff] %v9283
        %9556 = vst [vmem:[%s177 + $0x1b8] sm:$0xff] %v9300
        %9557 = vst [vmem:[%s177 + $0x1c0] sm:$0xff] %v9317
        %9558 = vst [vmem:[%s177 + $0x1c8] sm:$0xff] %v9334
        %9559 = vst [vmem:[%s177 + $0x1d0] sm:$0xff] %v9351
        %9560 = vst [vmem:[%s177 + $0x1d8] sm:$0xff] %v9368
        %9561 = vst [vmem:[%s177 + $0x1e0] sm:$0xff] %v9385
        %9562 = vst [vmem:[%s177 + $0x1e8] sm:$0xff] %v9402
        %9563 = vst [vmem:[%s177 + $0x1f0] sm:$0xff] %v9419
        %9564 = vst [vmem:[%s177 + $0x1f8] sm:$0xff] %v9436
        %s9565 = sand.u32 %s107, 1
        %s9566 = scalar_lea.sflag [#allocation3], %s9565
        %s9567 = sand.u32 %s107, 1
        %s9568 = smul.addr %s9567, 512
        %s9569 = scalar_lea.vmem [#allocation2], %s9568
        // Predicated region
        $region33: #{conv2d_transpose_bn_relu.1} parent=31 // pred_check
          %p9570 = pneg %p117
        $region34: #{conv2d_transpose_bn_relu.1} parent=31 // pred_check_branch
          %9572 = sbr.rel (%p9570) target = $region36
        $region35: #{conv2d_transpose_bn_relu.1} parent=31 // pred_region
          %s9573 = smul.u32 16, %s22
          %s9575 = ssub.s32 8192, 8192
          %9576 = vsyncadd %s9566, %s9575
          %s9577 = smul.addr %s9573, 4
          %s9578 = smul.addr %s21, 128
          %s9579 = sadd.s32 %s9577, %s9578
          %s9580 = smul.addr %s9579, 128
          %s9581 = scalar_lea.hbm %s3, %s9580
          %s9582 = sshll.u32 %s9569, 4
          %s9583 = int_to_ptr.vmem [resolvable:$true] %s9582
          %9588 = dma.vmem_to_hbm [thread:$0]  %s9583, 8192, %s9581, %s9566, 128, 128, 8
        $region36: #{conv2d_transpose_bn_relu.1} parent=31 // pred_fallthru
          _
      $region32: #{conv2d_transpose_bn_relu.1} parent=5 // pred_fallthru
        _
      %p9589 = scmp.le.s32.totalorder 2, %s12
      // Predicated region
      $region37: #{conv2d_transpose_bn_relu.1} parent=5 // pred_check
        %p9590 = pneg %p9589
      $region38: #{conv2d_transpose_bn_relu.1} parent=5 // pred_check_branch
        %9592 = sbr.rel (%p9590) target = $region40
      $region39: #{conv2d_transpose_bn_relu.1} parent=5 // pred_region
        %s9593 = ssub.s32 %s12, 2
        // Predicated region
        $region41: #{conv2d_transpose_bn_relu.1} parent=39 // pred_check
          %p9594 = pneg %p123
        $region42: #{conv2d_transpose_bn_relu.1} parent=39 // pred_check_branch
          %9596 = sbr.rel (%p9594) target = $region44
        $region43: #{conv2d_transpose_bn_relu.1} parent=39 // pred_region
          %s9597 = sand.u32 %s108, 1
          %s9598 = scalar_lea.sflag [#allocation3], %s9597
          %s9599 = sand.u32 %s108, 1
          %s9600 = smul.addr %s9599, 512
          %s9601 = scalar_lea.vmem [#allocation2], %s9600
          %9602 = dma.done %s9598, 8192
        $region44: #{conv2d_transpose_bn_relu.1} parent=39 // pred_fallthru
          _
      $region40: #{conv2d_transpose_bn_relu.1} parent=5 // pred_fallthru
        _
    $region6: #{conv2d_transpose_bn_relu.1} parent=1 // loop_footer
      %s16 = sadd.s32 1, %s12
    $region7: #{conv2d_transpose_bn_relu.1} parent=1 // loop_footer_branch
      %11 = sbr.rel target = $region3
    $region8: #{conv2d_transpose_bn_relu.1} parent=1 // loop_exit
      _
    %9603 = vsyncpa [#allocation3], 1
    %s9604 = scalar_lea.sflag [#allocation3], 1
    %9605 = vsyncpa %s9604, 1

</llo_original>
